<compile_context>
chip_gen: v5e
topology: v5e:2x2
jax: 0.10.0
libtpu: 0.0.40
codegen_flags: <defaults>
</compile_context>

<pallas_src>
import functools
import math

import jax
import jax.numpy as jnp
from jax.experimental import pallas as pl
from jax.experimental.pallas import tpu as pltpu


# ----------------------------- in-kernel helpers (lane-dense (C, N) layout) -----------------

def _elu(y):
    # ELU(alpha=1); clamp the exp argument so the unused branch never overflows.
    return jnp.where(y > 0.0, y, jnp.exp(jnp.minimum(y, 0.0)) - 1.0)


def _layernorm_cn(x, g, b, eps=1e-5):
    # LayerNorm over the channel (sublane) axis of a (C, N) slab; g/b are (C, 1) columns.
    mu = jnp.mean(x, axis=0, keepdims=True)
    xc = x - mu
    var = jnp.mean(xc * xc, axis=0, keepdims=True)
    return xc * jax.lax.rsqrt(var + eps) * g + b


def _ba_ffn_cn(x, l1g, l1b, wqkv, bqkv, wpr, bpr, l2g, l2b, wf1, bf1, wf2, bf2,
               a1, b1, a2, b2, *, H, hd):
    """BA_FFN_Block on a lane-dense (C, N) slab.

    wqkv rows are pre-permuted to [k(H*hd) | v(H*hd) | q(H)] so every block starts at an
    8-aligned sublane offset.  a1/b1/a2/b2 are the normalised `Add` weights, baked in as
    compile-time constants.  All heads share ONE projection matmul (K = H*hd)."""
    Khd = H * hd
    # ---- norm1 + BroadcastAttention ----
    xn = _layernorm_cn(x, l1g, l1b)
    qkv = jnp.dot(wqkv, xn, preferred_element_type=jnp.float32) + bqkv        # (2*H*hd + H, N)
    k = qkv[:Khd]                                                             # (H*hd, N)
    v = qkv[Khd:2 * Khd]                                                      # (H*hd, N)
    q = qkv[2 * Khd:2 * Khd + H]                                              # (H, N)
    # softmax over the sequence (lane) axis, per head -- exact division.
    m = jnp.max(q, axis=-1, keepdims=True)
    e = jnp.exp(q - m)
    scores = e / jnp.sum(e, axis=-1, keepdims=True)                           # (H, N)
    # per-head context vectors (sum over the sequence), concatenated to one (H*hd, 1) column.
    ctx = jnp.concatenate(
        [jnp.sum(k[h * hd:(h + 1) * hd] * scores[h:h + 1], axis=-1, keepdims=True)
         for h in range(H)], axis=0)                                          # (H*hd, 1)
    attn_in = jnp.maximum(v, 0.0) * ctx                                       # (H*hd, N)
    attn = jnp.dot(wpr, attn_in, preferred_element_type=jnp.float32) + bpr    # (C, N)
    x1 = a1 * attn + b1 * x                                                   # Add #1

    # ---- norm2 + FFN ----
    xn2 = _layernorm_cn(x1, l2g, l2b)
    hh = _elu(jnp.dot(wf1, xn2, preferred_element_type=jnp.float32) + bf1)
    ffn = jnp.dot(wf2, hh, preferred_element_type=jnp.float32) + bf2
    return a2 * ffn + b2 * x1                                                 # Add #2


# ----------------------------- fused branch kernel -----------------------------

def _branch_kernel(p_ref, *refs, H, hd1, hd2, add_scalars):
    """Whole branch (Conv(k3,s2)+BN+ELU -> LFEL1 -> LFEL2 -> AdaptiveAvgPool1d(1)) for a
    block of samples; activations never leave VMEM/vregs."""
    o_ref = refs[-1]
    vals = [r[...] for r in refs[:-1]]           # read each tiny weight once per grid step
    (wc, bc,
     wp1, bp1, l1g1, l1b1, wqkv1, bqkv1, wpr1, bpr1, l2g1, l2b1, wf11, bf11, wf21, bf21,
     wp2, bp2, l1g2, l1b2, wqkv2, bqkv2, wpr2, bpr2, l2g2, l2b2, wf12, bf12, wf22, bf22) = vals
    a11, b11, a21, b21, a12, b12, a22, b22 = add_scalars

    for b in range(p_ref.shape[0]):              # static unroll over samples in this block
        x = p_ref[b]                             # (Cin*3, N) im2col patches, lane-dense
        # Conv1d(k=3, s=2, p=1, bias=False) + folded eval-BN + ELU (im2col'd left-mult matmul)
        x = _elu(jnp.dot(wc, x, preferred_element_type=jnp.float32) + bc)
        # ---- LFEL 1: Conv1x1 + BN + ELU projection, then BA_FFN block ----
        x = _elu(jnp.dot(wp1, x, preferred_element_type=jnp.float32) + bp1)
        x = _ba_ffn_cn(x, l1g1, l1b1, wqkv1, bqkv1, wpr1, bpr1, l2g1, l2b1,
                       wf11, bf11, wf21, bf21, a11, b11, a21, b21, H=H, hd=hd1)
        # ---- LFEL 2 ----
        x = _elu(jnp.dot(wp2, x, preferred_element_type=jnp.float32) + bp2)
        x = _ba_ffn_cn(x, l1g2, l1b2, wqkv2, bqkv2, wpr2, bpr2, l2g2, l2b2,
                       wf12, bf12, wf22, bf22, a12, b12, a22, b22, H=H, hd=hd2)
        # AdaptiveAvgPool1d(1) over the sequence (lane) axis
        o_ref[b] = jnp.mean(x, axis=-1, keepdims=True)                        # (C_out, 1)


def _grid_steps():
    """2 parallel grid steps on dual-TensorCore chips (v7x); 1 step on v5e/v6e."""
    try:
        kind = jax.devices()[0].device_kind.lower()
    except Exception:
        kind = ""
    return 1 if ("v5" in kind or "v6" in kind) else 2


def branch_forward_fused(patches, weights, add_scalars, *, H, b_blk=None):
    """patches: (B2, Cin*3, N) lane-dense im2col slabs -> pooled features (B2, C_out)."""
    B2, KP, N = patches.shape
    if b_blk is None:
        steps = _grid_steps()
        if B2 % steps:
            steps = 1
        b_blk = B2 // steps
    assert B2 % b_blk == 0
    c_mid = weights[2].shape[0]                  # wp1: (c_mid, dim)
    c_out = weights[16].shape[0]                 # wp2: (c_out, c_mid)
    hd1, hd2 = c_mid // H, c_out // H

    zero2d = lambda i: (0, 0)                    # every weight: one full, never-changing block
    in_specs = ([pl.BlockSpec((b_blk, KP, N), lambda i: (i, 0, 0))]
                + [pl.BlockSpec(w.shape, zero2d) for w in weights])

    out = pl.pallas_call(
        functools.partial(_branch_kernel, H=H, hd1=hd1, hd2=hd2, add_scalars=add_scalars),
        out_shape=jax.ShapeDtypeStruct((B2, c_out, 1), jnp.float32),
        grid=(B2 // b_blk,),
        in_specs=in_specs,
        out_specs=pl.BlockSpec((b_blk, c_out, 1), lambda i: (i, 0, 0)),
        compiler_params=pltpu.CompilerParams(
            dimension_semantics=("parallel",),   # megacore sharding on v7x
        ),
    )(patches, *weights)
    return out.reshape(B2, c_out)


# ----------------------------- XLA epilogue: cross-attn (T==1) + heads ----------------------

def head_forward(f_time, f_freq, hp):
    # CrossAttention with a single token: softmax over one key == 1, so out = o_proj(v_proj(x_kv));
    # o_w @ kv_w[v-half] is pre-folded into one (C, C) matrix (both convs are bias-free).
    ft = f_time + f_freq @ hp["m_t2f"]
    ff = f_freq + ft @ hp["m_f2t"]               # uses the UPDATED f_time, as in the PyTorch forward
    fused = jnp.concatenate([ft, ff], axis=-1)   # (B, 8*dim)
    cls = jax.nn.sigmoid(
        jax.nn.relu(fused @ hp["cls_w1"] + hp["cls_b1"]) @ hp["cls_w2"] + hp["cls_b2"])
    reg = jax.nn.relu(fused @ hp["reg_w1"] + hp["reg_b1"]) @ hp["reg_w2"] + hp["reg_b2"]
    return jnp.concatenate([cls, reg], axis=-1)  # (B, 2) = [sigmoid(cls), reg]


# ----------------------------- one-time parameter folding (outside jit) ---------------------

def fold_bn_rows(w, b, gamma, beta, mean, var, eps=1e-5):
    """Fold eval-mode BatchNorm1d into a left-multiplying (C_out, C_in) weight + bias."""
    s = gamma / jnp.sqrt(var + eps)
    return w * s[:, None], (b - mean) * s + beta


def add_norm_weights(w, eps=1e-12):
    """`Add` module: relu(w) / (sum + eps) -> two python-float scalars (compile-time constants)."""
    wr = jnp.maximum(w, 0.0)
    wn = wr / (jnp.sum(wr) + eps)
    return float(wn[0]), float(wn[1])


def qkv_perm_kvq(H, hd):
    """PyTorch per-head-interleaved [q(1), k(hd), v(hd)] rows -> grouped [k(H*hd) | v(H*hd) | q(H)]."""
    k = [h * (1 + 2 * hd) + 1 + d for h in range(H) for d in range(hd)]
    v = [h * (1 + 2 * hd) + 1 + hd + d for h in range(H) for d in range(hd)]
    q = [h * (1 + 2 * hd) for h in range(H)]
    return jnp.array(k + v + q, dtype=jnp.int32)


def downsample_im2col(x):
    """AvgPool1d(2,2) then im2col for Conv1d(k=3, s=2, p=1): (B, Cin, L) -> (B, Cin*3, Lout)."""
    B, Cin, L = x.shape
    d = x.reshape(B, Cin, L // 2, 2).mean(axis=-1)                            # AvgPool1d(2, 2)
    Ld = L // 2
    Lout = (Ld + 2 - 3) // 2 + 1
    dp = jnp.pad(d, ((0, 0), (0, 0), (1, 1)))
    # patches[b, c*3 + k, l] = dp[b, c, 2*l + k]
    patches = jnp.stack([dp[:, :, k:k + 2 * Lout:2] for k in range(3)], axis=2)  # (B, Cin, 3, Lout)
    return patches.reshape(B, Cin * 3, Lout)


def prepare_params(params, num_heads):
    """Fold BN / Add / degenerate cross-attn into the forms the kernel + XLA epilogue consume.
    Called ONCE, outside jit (per perf review)."""
    br = params["branch"]
    col = lambda v: v.reshape(-1, 1)

    def prep_lfel(lp):
        d_out = lp["proj_w"].shape[0]
        hd = d_out // num_heads
        wp, bp = fold_bn_rows(lp["proj_w"], lp["proj_b"], lp["proj_bn_gamma"],
                              lp["proj_bn_beta"], lp["proj_bn_mean"], lp["proj_bn_var"])
        perm = qkv_perm_kvq(num_heads, hd)
        args = [wp, col(bp), col(lp["ln1_g"]), col(lp["ln1_b"]),
                lp["qkv_w"][perm, :], col(lp["qkv_b"][perm]),
                lp["attn_proj_w"], col(lp["attn_proj_b"]),
                col(lp["ln2_g"]), col(lp["ln2_b"]),
                lp["ffn_w1"], col(lp["ffn_b1"]), lp["ffn_w2"], col(lp["ffn_b2"])]
        scal = list(add_norm_weights(lp["add1_w"])) + list(add_norm_weights(lp["add2_w"]))
        return args, scal

    # downsampling Conv1d(k=3, s=2, bias=False) + eval-BN folded for the im2col matmul
    dim = br["conv_w"].shape[0]
    wc = br["conv_w"].reshape(dim, -1)                                        # (dim, Cin*3)
    wc, bc = fold_bn_rows(wc, jnp.zeros((dim,), jnp.float32),
                          br["bn_gamma"], br["bn_beta"], br["bn_mean"], br["bn_var"])
    args1, s1 = prep_lfel(br["lfel1"])
    args2, s2 = prep_lfel(br["lfel2"])
    weights = tuple([wc, col(bc)] + args1 + args2)
    add_scalars = tuple(s1 + s2)                                              # 8 python floats

    # T == 1 cross attention: out = (o_w @ kv_w[v-half]) @ x_kv; the q projection is unused.
    C = br["lfel2"]["proj_w"].shape[0]
    m_t2f = (params["cross_t2f"]["o_w"] @ params["cross_t2f"]["kv_w"][C:, :]).T
    m_f2t = (params["cross_f2t"]["o_w"] @ params["cross_f2t"]["kv_w"][C:, :]).T
    head = dict(m_t2f=m_t2f, m_f2t=m_f2t,
                cls_w1=params["cls_w1"].T, cls_b1=params["cls_b1"],
                cls_w2=params["cls_w2"].T, cls_b2=params["cls_b2"],
                reg_w1=params["reg_w1"].T, reg_b1=params["reg_b1"],
                reg_w2=params["reg_w2"].T, reg_b2=params["reg_b2"])
    return dict(weights=weights, head=head), add_scalars


# ----------------------------- full forward -----------------------------

def net_forward(x, prep, *, add_scalars, num_heads=4, b_blk=None):
    """x: (B, in_channel, T) channel-first; split at 2048 exactly like the PyTorch module."""
    B = x.shape[0]
    assert x.shape[2] == 2 * 2048, "this implementation assumes equal 2048-length time/freq halves"
    x_time = x[:, :, :2048]
    x_freq = x[:, :, 2048:]
    # branch_freq is a deepcopy of branch_time -> identical parameters, so both halves are
    # batched into one pass of the single fused branch kernel.
    xb = jnp.concatenate([x_time, x_freq], axis=0)                            # (2B, Cin, 2048)
    patches = downsample_im2col(xb)                                           # (2B, Cin*3, 512)
    pooled = branch_forward_fused(patches, prep["weights"], add_scalars,
                                  H=num_heads, b_blk=b_blk)                   # (2B, 4*dim)
    f_time, f_freq = pooled[:B], pooled[B:]
    # Tiny epilogue (degenerate cross-attn + cls/reg heads) stays in XLA per perf review.
    return head_forward(f_time, f_freq, prep["head"])                         # (B, 2)


# ----------------------------- deterministic parameter init -----------------------------

def init_params(key, dim=16, num_heads=4, in_channel=2):
    kit = iter(jax.random.split(key, 64))

    def nrm(shape, fan_in):
        return jax.random.normal(next(kit), shape, jnp.float32) * (1.0 / math.sqrt(fan_in))

    def small(shape):
        return jax.random.normal(next(kit), shape, jnp.float32) * 0.01

    def init_lfel(d_in, d_out):
        hd = d_out // num_heads
        ffn = d_out // 4
        cq = num_heads * (1 + 2 * hd)
        return dict(
            proj_w=nrm((d_out, d_in), d_in), proj_b=small((d_out,)),
            proj_bn_gamma=jnp.ones((d_out,), jnp.float32),
            proj_bn_beta=jnp.zeros((d_out,), jnp.float32),
            proj_bn_mean=jnp.zeros((d_out,), jnp.float32),
            proj_bn_var=jnp.ones((d_out,), jnp.float32),
            ln1_g=jnp.ones((d_out,), jnp.float32), ln1_b=jnp.zeros((d_out,), jnp.float32),
            qkv_w=nrm((cq, d_out), d_out), qkv_b=small((cq,)),
            attn_proj_w=nrm((d_out, d_out), d_out), attn_proj_b=small((d_out,)),
            add1_w=jnp.ones((2,), jnp.float32),
            ln2_g=jnp.ones((d_out,), jnp.float32), ln2_b=jnp.zeros((d_out,), jnp.float32),
            ffn_w1=nrm((ffn, d_out), d_out), ffn_b1=small((ffn,)),
            ffn_w2=nrm((d_out, ffn), ffn), ffn_b2=small((d_out,)),
            add2_w=jnp.ones((2,), jnp.float32),
        )

    branch = dict(
        conv_w=nrm((dim, in_channel, 3), in_channel * 3),
        bn_gamma=jnp.ones((dim,), jnp.float32), bn_beta=jnp.zeros((dim,), jnp.float32),
        bn_mean=jnp.zeros((dim,), jnp.float32), bn_var=jnp.ones((dim,), jnp.float32),
        lfel1=init_lfel(dim, 2 * dim),
        lfel2=init_lfel(2 * dim, 4 * dim),
    )
    C = 4 * dim

    def init_cross():
        # q_w kept for structural fidelity; mathematically unused when T == 1.
        return dict(q_w=nrm((C, C), C), kv_w=nrm((2 * C, C), C), o_w=nrm((C, C), C))

    return dict(
        branch=branch,  # branch_freq = deepcopy(branch_time) -> identical initial parameters
        cross_t2f=init_cross(),
        cross_f2t=init_cross(),
        cls_w1=nrm((16, 8 * dim), 8 * dim), cls_b1=small((16,)),
        cls_w2=nrm((1, 16), 16), cls_b2=small((1,)),
        reg_w1=nrm((16, 8 * dim), 8 * dim), reg_b1=small((16,)),
        reg_w2=nrm((1, 16), 16), reg_b2=small((1,)),
    )


# ----------------------------- main -----------------------------

if __name__ == "__main__":
    key = jax.random.PRNGKey(0)
    pkey, xkey = jax.random.split(key)
    params = init_params(pkey, dim=16, num_heads=4, in_channel=2)

    # Fold BN / Add / cross-attn parameters ONCE, outside the jitted forward.
    prep, add_scalars = prepare_params(params, num_heads=4)

    # Input matches the PyTorch NCT layout; the forward slices at 2048, so total length 4096
    # gives equal time/freq halves.
    x = jax.random.normal(xkey, (2, 2, 4096), jnp.float32)

    net = jax.jit(functools.partial(net_forward, add_scalars=add_scalars, num_heads=4))
    out = jax.block_until_ready(net(x, prep))

    assert out.shape == (2, 2), out.shape
    assert bool(jnp.all(jnp.isfinite(out)))
    print("KERNEL_OK")
</pallas_src>

<mosaic_0001>
module attributes {stable_mosaic.version = 11 : i64} {
  func.func @_branch_kernel(%arg0: i32, %arg1: memref<2x6x512xf32, #tpu.memory_space<vmem>>, %arg2: memref<16x6xf32, #tpu.memory_space<vmem>>, %arg3: memref<16x1xf32, #tpu.memory_space<vmem>>, %arg4: memref<32x16xf32, #tpu.memory_space<vmem>>, %arg5: memref<32x1xf32, #tpu.memory_space<vmem>>, %arg6: memref<32x1xf32, #tpu.memory_space<vmem>>, %arg7: memref<32x1xf32, #tpu.memory_space<vmem>>, %arg8: memref<68x32xf32, #tpu.memory_space<vmem>>, %arg9: memref<68x1xf32, #tpu.memory_space<vmem>>, %arg10: memref<32x32xf32, #tpu.memory_space<vmem>>, %arg11: memref<32x1xf32, #tpu.memory_space<vmem>>, %arg12: memref<32x1xf32, #tpu.memory_space<vmem>>, %arg13: memref<32x1xf32, #tpu.memory_space<vmem>>, %arg14: memref<8x32xf32, #tpu.memory_space<vmem>>, %arg15: memref<8x1xf32, #tpu.memory_space<vmem>>, %arg16: memref<32x8xf32, #tpu.memory_space<vmem>>, %arg17: memref<32x1xf32, #tpu.memory_space<vmem>>, %arg18: memref<64x32xf32, #tpu.memory_space<vmem>>, %arg19: memref<64x1xf32, #tpu.memory_space<vmem>>, %arg20: memref<64x1xf32, #tpu.memory_space<vmem>>, %arg21: memref<64x1xf32, #tpu.memory_space<vmem>>, %arg22: memref<132x64xf32, #tpu.memory_space<vmem>>, %arg23: memref<132x1xf32, #tpu.memory_space<vmem>>, %arg24: memref<64x64xf32, #tpu.memory_space<vmem>>, %arg25: memref<64x1xf32, #tpu.memory_space<vmem>>, %arg26: memref<64x1xf32, #tpu.memory_space<vmem>>, %arg27: memref<64x1xf32, #tpu.memory_space<vmem>>, %arg28: memref<16x64xf32, #tpu.memory_space<vmem>>, %arg29: memref<16x1xf32, #tpu.memory_space<vmem>>, %arg30: memref<64x16xf32, #tpu.memory_space<vmem>>, %arg31: memref<64x1xf32, #tpu.memory_space<vmem>>, %arg32: memref<2x64x1xf32, #tpu.memory_space<vmem>>) attributes {dimension_semantics = [#tpu.dimension_semantics<parallel>], iteration_bounds = array<i64: 2>, scalar_prefetch = 0 : i64, scratch_operands = 0 : i64, tpu.core_type = #tpu.core_type<tc>, window_params = [{transform_indices = @transform_0, window_bounds = array<i64: 2, 6, 512>}, {pipeline_mode = #tpu.pipeline_mode<synchronous>, transform_indices = @transform_1, window_bounds = array<i64: 16, 6>}, {pipeline_mode = #tpu.pipeline_mode<synchronous>, transform_indices = @transform_2, window_bounds = array<i64: 16, 1>}, {pipeline_mode = #tpu.pipeline_mode<synchronous>, transform_indices = @transform_3, window_bounds = array<i64: 32, 16>}, {pipeline_mode = #tpu.pipeline_mode<synchronous>, transform_indices = @transform_4, window_bounds = array<i64: 32, 1>}, {pipeline_mode = #tpu.pipeline_mode<synchronous>, transform_indices = @transform_5, window_bounds = array<i64: 32, 1>}, {pipeline_mode = #tpu.pipeline_mode<synchronous>, transform_indices = @transform_6, window_bounds = array<i64: 32, 1>}, {pipeline_mode = #tpu.pipeline_mode<synchronous>, transform_indices = @transform_7, window_bounds = array<i64: 68, 32>}, {pipeline_mode = #tpu.pipeline_mode<synchronous>, transform_indices = @transform_8, window_bounds = array<i64: 68, 1>}, {pipeline_mode = #tpu.pipeline_mode<synchronous>, transform_indices = @transform_9, window_bounds = array<i64: 32, 32>}, {pipeline_mode = #tpu.pipeline_mode<synchronous>, transform_indices = @transform_10, window_bounds = array<i64: 32, 1>}, {pipeline_mode = #tpu.pipeline_mode<synchronous>, transform_indices = @transform_11, window_bounds = array<i64: 32, 1>}, {pipeline_mode = #tpu.pipeline_mode<synchronous>, transform_indices = @transform_12, window_bounds = array<i64: 32, 1>}, {pipeline_mode = #tpu.pipeline_mode<synchronous>, transform_indices = @transform_13, window_bounds = array<i64: 8, 32>}, {pipeline_mode = #tpu.pipeline_mode<synchronous>, transform_indices = @transform_14, window_bounds = array<i64: 8, 1>}, {pipeline_mode = #tpu.pipeline_mode<synchronous>, transform_indices = @transform_15, window_bounds = array<i64: 32, 8>}, {pipeline_mode = #tpu.pipeline_mode<synchronous>, transform_indices = @transform_16, window_bounds = array<i64: 32, 1>}, {pipeline_mode = #tpu.pipeline_mode<synchronous>, transform_indices = @transform_17, window_bounds = array<i64: 64, 32>}, {pipeline_mode = #tpu.pipeline_mode<synchronous>, transform_indices = @transform_18, window_bounds = array<i64: 64, 1>}, {pipeline_mode = #tpu.pipeline_mode<synchronous>, transform_indices = @transform_19, window_bounds = array<i64: 64, 1>}, {pipeline_mode = #tpu.pipeline_mode<synchronous>, transform_indices = @transform_20, window_bounds = array<i64: 64, 1>}, {pipeline_mode = #tpu.pipeline_mode<synchronous>, transform_indices = @transform_21, window_bounds = array<i64: 132, 64>}, {pipeline_mode = #tpu.pipeline_mode<synchronous>, transform_indices = @transform_22, window_bounds = array<i64: 132, 1>}, {pipeline_mode = #tpu.pipeline_mode<synchronous>, transform_indices = @transform_23, window_bounds = array<i64: 64, 64>}, {pipeline_mode = #tpu.pipeline_mode<synchronous>, transform_indices = @transform_24, window_bounds = array<i64: 64, 1>}, {pipeline_mode = #tpu.pipeline_mode<synchronous>, transform_indices = @transform_25, window_bounds = array<i64: 64, 1>}, {pipeline_mode = #tpu.pipeline_mode<synchronous>, transform_indices = @transform_26, window_bounds = array<i64: 64, 1>}, {pipeline_mode = #tpu.pipeline_mode<synchronous>, transform_indices = @transform_27, window_bounds = array<i64: 16, 64>}, {pipeline_mode = #tpu.pipeline_mode<synchronous>, transform_indices = @transform_28, window_bounds = array<i64: 16, 1>}, {pipeline_mode = #tpu.pipeline_mode<synchronous>, transform_indices = @transform_29, window_bounds = array<i64: 64, 16>}, {pipeline_mode = #tpu.pipeline_mode<synchronous>, transform_indices = @transform_30, window_bounds = array<i64: 64, 1>}, {transform_indices = @transform_31, window_bounds = array<i64: 2, 64, 1>}]} {
    %c0 = arith.constant 0 : index
    %c0_0 = arith.constant 0 : index
    %0 = vector.load %arg2[%c0, %c0_0] : memref<16x6xf32, #tpu.memory_space<vmem>>, vector<16x6xf32>
    %c0_1 = arith.constant 0 : index
    %c0_2 = arith.constant 0 : index
    %1 = vector.load %arg3[%c0_1, %c0_2] : memref<16x1xf32, #tpu.memory_space<vmem>>, vector<16x1xf32>
    %c0_3 = arith.constant 0 : index
    %c0_4 = arith.constant 0 : index
    %2 = vector.load %arg4[%c0_3, %c0_4] : memref<32x16xf32, #tpu.memory_space<vmem>>, vector<32x16xf32>
    %c0_5 = arith.constant 0 : index
    %c0_6 = arith.constant 0 : index
    %3 = vector.load %arg5[%c0_5, %c0_6] : memref<32x1xf32, #tpu.memory_space<vmem>>, vector<32x1xf32>
    %c0_7 = arith.constant 0 : index
    %c0_8 = arith.constant 0 : index
    %4 = vector.load %arg6[%c0_7, %c0_8] : memref<32x1xf32, #tpu.memory_space<vmem>>, vector<32x1xf32>
    %c0_9 = arith.constant 0 : index
    %c0_10 = arith.constant 0 : index
    %5 = vector.load %arg7[%c0_9, %c0_10] : memref<32x1xf32, #tpu.memory_space<vmem>>, vector<32x1xf32>
    %c0_11 = arith.constant 0 : index
    %c0_12 = arith.constant 0 : index
    %6 = vector.load %arg8[%c0_11, %c0_12] : memref<68x32xf32, #tpu.memory_space<vmem>>, vector<68x32xf32>
    %c0_13 = arith.constant 0 : index
    %c0_14 = arith.constant 0 : index
    %7 = vector.load %arg9[%c0_13, %c0_14] : memref<68x1xf32, #tpu.memory_space<vmem>>, vector<68x1xf32>
    %c0_15 = arith.constant 0 : index
    %c0_16 = arith.constant 0 : index
    %8 = vector.load %arg10[%c0_15, %c0_16] : memref<32x32xf32, #tpu.memory_space<vmem>>, vector<32x32xf32>
    %c0_17 = arith.constant 0 : index
    %c0_18 = arith.constant 0 : index
    %9 = vector.load %arg11[%c0_17, %c0_18] : memref<32x1xf32, #tpu.memory_space<vmem>>, vector<32x1xf32>
    %c0_19 = arith.constant 0 : index
    %c0_20 = arith.constant 0 : index
    %10 = vector.load %arg12[%c0_19, %c0_20] : memref<32x1xf32, #tpu.memory_space<vmem>>, vector<32x1xf32>
    %c0_21 = arith.constant 0 : index
    %c0_22 = arith.constant 0 : index
    %11 = vector.load %arg13[%c0_21, %c0_22] : memref<32x1xf32, #tpu.memory_space<vmem>>, vector<32x1xf32>
    %c0_23 = arith.constant 0 : index
    %c0_24 = arith.constant 0 : index
    %12 = vector.load %arg14[%c0_23, %c0_24] : memref<8x32xf32, #tpu.memory_space<vmem>>, vector<8x32xf32>
    %c0_25 = arith.constant 0 : index
    %c0_26 = arith.constant 0 : index
    %13 = vector.load %arg15[%c0_25, %c0_26] : memref<8x1xf32, #tpu.memory_space<vmem>>, vector<8x1xf32>
    %c0_27 = arith.constant 0 : index
    %c0_28 = arith.constant 0 : index
    %14 = vector.load %arg16[%c0_27, %c0_28] : memref<32x8xf32, #tpu.memory_space<vmem>>, vector<32x8xf32>
    %c0_29 = arith.constant 0 : index
    %c0_30 = arith.constant 0 : index
    %15 = vector.load %arg17[%c0_29, %c0_30] : memref<32x1xf32, #tpu.memory_space<vmem>>, vector<32x1xf32>
    %c0_31 = arith.constant 0 : index
    %c0_32 = arith.constant 0 : index
    %16 = vector.load %arg18[%c0_31, %c0_32] : memref<64x32xf32, #tpu.memory_space<vmem>>, vector<64x32xf32>
    %c0_33 = arith.constant 0 : index
    %c0_34 = arith.constant 0 : index
    %17 = vector.load %arg19[%c0_33, %c0_34] : memref<64x1xf32, #tpu.memory_space<vmem>>, vector<64x1xf32>
    %c0_35 = arith.constant 0 : index
    %c0_36 = arith.constant 0 : index
    %18 = vector.load %arg20[%c0_35, %c0_36] : memref<64x1xf32, #tpu.memory_space<vmem>>, vector<64x1xf32>
    %c0_37 = arith.constant 0 : index
    %c0_38 = arith.constant 0 : index
    %19 = vector.load %arg21[%c0_37, %c0_38] : memref<64x1xf32, #tpu.memory_space<vmem>>, vector<64x1xf32>
    %c0_39 = arith.constant 0 : index
    %c0_40 = arith.constant 0 : index
    %20 = vector.load %arg22[%c0_39, %c0_40] : memref<132x64xf32, #tpu.memory_space<vmem>>, vector<132x64xf32>
    %c0_41 = arith.constant 0 : index
    %c0_42 = arith.constant 0 : index
    %21 = vector.load %arg23[%c0_41, %c0_42] : memref<132x1xf32, #tpu.memory_space<vmem>>, vector<132x1xf32>
    %c0_43 = arith.constant 0 : index
    %c0_44 = arith.constant 0 : index
    %22 = vector.load %arg24[%c0_43, %c0_44] : memref<64x64xf32, #tpu.memory_space<vmem>>, vector<64x64xf32>
    %c0_45 = arith.constant 0 : index
    %c0_46 = arith.constant 0 : index
    %23 = vector.load %arg25[%c0_45, %c0_46] : memref<64x1xf32, #tpu.memory_space<vmem>>, vector<64x1xf32>
    %c0_47 = arith.constant 0 : index
    %c0_48 = arith.constant 0 : index
    %24 = vector.load %arg26[%c0_47, %c0_48] : memref<64x1xf32, #tpu.memory_space<vmem>>, vector<64x1xf32>
    %c0_49 = arith.constant 0 : index
    %c0_50 = arith.constant 0 : index
    %25 = vector.load %arg27[%c0_49, %c0_50] : memref<64x1xf32, #tpu.memory_space<vmem>>, vector<64x1xf32>
    %c0_51 = arith.constant 0 : index
    %c0_52 = arith.constant 0 : index
    %26 = vector.load %arg28[%c0_51, %c0_52] : memref<16x64xf32, #tpu.memory_space<vmem>>, vector<16x64xf32>
    %c0_53 = arith.constant 0 : index
    %c0_54 = arith.constant 0 : index
    %27 = vector.load %arg29[%c0_53, %c0_54] : memref<16x1xf32, #tpu.memory_space<vmem>>, vector<16x1xf32>
    %c0_55 = arith.constant 0 : index
    %c0_56 = arith.constant 0 : index
    %28 = vector.load %arg30[%c0_55, %c0_56] : memref<64x16xf32, #tpu.memory_space<vmem>>, vector<64x16xf32>
    %c0_57 = arith.constant 0 : index
    %c0_58 = arith.constant 0 : index
    %29 = vector.load %arg31[%c0_57, %c0_58] : memref<64x1xf32, #tpu.memory_space<vmem>>, vector<64x1xf32>
    %c0_59 = arith.constant 0 : index
    %c0_60 = arith.constant 0 : index
    %c0_61 = arith.constant 0 : index
    %30 = vector.load %arg1[%c0_59, %c0_60, %c0_61] : memref<2x6x512xf32, #tpu.memory_space<vmem>>, vector<1x6x512xf32>
    %31 = vector.shape_cast %30 : vector<1x6x512xf32> to vector<6x512xf32>
    %cst = arith.constant dense<0.000000e+00> : vector<16x512xf32>
    %32 = tpu.matmul %0, %31, %cst {dimension_numbers = #tpu.dot_dimension_numbers<[1], [0], [0], [1], [0, 0, 1, 1], [], []>} : vector<16x6xf32>, vector<6x512xf32>, vector<16x512xf32> -> vector<16x512xf32>
    %33 = vector.broadcast %1 : vector<16x1xf32> to vector<16x512xf32>
    %34 = arith.addf %32, %33 : vector<16x512xf32>
    %cst_62 = arith.constant 0.000000e+00 : f32
    %35 = vector.broadcast %cst_62 : f32 to vector<16x512xf32>
    %36 = arith.cmpf ogt, %34, %35 : vector<16x512xf32>
    %cst_63 = arith.constant 0.000000e+00 : f32
    %37 = vector.broadcast %cst_63 : f32 to vector<16x512xf32>
    %38 = arith.minimumf %34, %37 : vector<16x512xf32>
    %39 = math.exp %38 : vector<16x512xf32>
    %cst_64 = arith.constant 1.000000e+00 : f32
    %40 = vector.broadcast %cst_64 : f32 to vector<16x512xf32>
    %41 = arith.subf %39, %40 : vector<16x512xf32>
    %42 = arith.select %36, %34, %41 : vector<16x512xi1>, vector<16x512xf32>
    %cst_65 = arith.constant dense<0.000000e+00> : vector<32x512xf32>
    %43 = tpu.matmul %2, %42, %cst_65 {dimension_numbers = #tpu.dot_dimension_numbers<[1], [0], [0], [1], [0, 0, 1, 1], [], []>} : vector<32x16xf32>, vector<16x512xf32>, vector<32x512xf32> -> vector<32x512xf32>
    %44 = vector.broadcast %3 : vector<32x1xf32> to vector<32x512xf32>
    %45 = arith.addf %43, %44 : vector<32x512xf32>
    %cst_66 = arith.constant 0.000000e+00 : f32
    %46 = vector.broadcast %cst_66 : f32 to vector<32x512xf32>
    %47 = arith.cmpf ogt, %45, %46 : vector<32x512xf32>
    %cst_67 = arith.constant 0.000000e+00 : f32
    %48 = vector.broadcast %cst_67 : f32 to vector<32x512xf32>
    %49 = arith.minimumf %45, %48 : vector<32x512xf32>
    %50 = math.exp %49 : vector<32x512xf32>
    %cst_68 = arith.constant 1.000000e+00 : f32
    %51 = vector.broadcast %cst_68 : f32 to vector<32x512xf32>
    %52 = arith.subf %50, %51 : vector<32x512xf32>
    %53 = arith.select %47, %45, %52 : vector<32x512xi1>, vector<32x512xf32>
    %cst_69 = arith.constant dense<0.000000e+00> : vector<512xf32>
    %54 = vector.multi_reduction <add>, %53, %cst_69 [0] : vector<32x512xf32> to vector<512xf32>
    %55 = vector.shape_cast %54 : vector<512xf32> to vector<1x512xf32>
    %cst_70 = arith.constant 3.200000e+01 : f32
    %56 = vector.broadcast %cst_70 : f32 to vector<1x512xf32>
    %57 = arith.divf %55, %56 : vector<1x512xf32>
    %58 = vector.broadcast %57 : vector<1x512xf32> to vector<32x512xf32>
    %59 = arith.subf %53, %58 : vector<32x512xf32>
    %60 = arith.mulf %59, %59 : vector<32x512xf32>
    %cst_71 = arith.constant dense<0.000000e+00> : vector<512xf32>
    %61 = vector.multi_reduction <add>, %60, %cst_71 [0] : vector<32x512xf32> to vector<512xf32>
    %62 = vector.shape_cast %61 : vector<512xf32> to vector<1x512xf32>
    %cst_72 = arith.constant 3.200000e+01 : f32
    %63 = vector.broadcast %cst_72 : f32 to vector<1x512xf32>
    %64 = arith.divf %62, %63 : vector<1x512xf32>
    %cst_73 = arith.constant 9.99999974E-6 : f32
    %65 = vector.broadcast %cst_73 : f32 to vector<1x512xf32>
    %66 = arith.addf %64, %65 : vector<1x512xf32>
    %67 = math.rsqrt %66 : vector<1x512xf32>
    %68 = vector.broadcast %67 : vector<1x512xf32> to vector<32x512xf32>
    %69 = arith.mulf %59, %68 : vector<32x512xf32>
    %70 = vector.broadcast %4 : vector<32x1xf32> to vector<32x512xf32>
    %71 = arith.mulf %69, %70 : vector<32x512xf32>
    %72 = vector.broadcast %5 : vector<32x1xf32> to vector<32x512xf32>
    %73 = arith.addf %71, %72 : vector<32x512xf32>
    %cst_74 = arith.constant dense<0.000000e+00> : vector<68x512xf32>
    %74 = tpu.matmul %6, %73, %cst_74 {dimension_numbers = #tpu.dot_dimension_numbers<[1], [0], [0], [1], [0, 0, 1, 1], [], []>} : vector<68x32xf32>, vector<32x512xf32>, vector<68x512xf32> -> vector<68x512xf32>
    %75 = vector.broadcast %7 : vector<68x1xf32> to vector<68x512xf32>
    %76 = arith.addf %74, %75 : vector<68x512xf32>
    %77 = vector.extract_strided_slice %76 {offsets = [0, 0], sizes = [32, 512], strides = [1, 1]} : vector<68x512xf32> to vector<32x512xf32>
    %78 = vector.extract_strided_slice %76 {offsets = [32, 0], sizes = [32, 512], strides = [1, 1]} : vector<68x512xf32> to vector<32x512xf32>
    %79 = vector.extract_strided_slice %76 {offsets = [64, 0], sizes = [4, 512], strides = [1, 1]} : vector<68x512xf32> to vector<4x512xf32>
    %cst_75 = arith.constant dense<0xFF800000> : vector<4xf32>
    %80 = vector.multi_reduction <maximumf>, %79, %cst_75 [1] : vector<4x512xf32> to vector<4xf32>
    %81 = vector.shape_cast %80 : vector<4xf32> to vector<4x1xf32>
    %82 = vector.broadcast %81 : vector<4x1xf32> to vector<4x512xf32>
    %83 = arith.subf %79, %82 : vector<4x512xf32>
    %84 = math.exp %83 : vector<4x512xf32>
    %cst_76 = arith.constant dense<0.000000e+00> : vector<4xf32>
    %85 = vector.multi_reduction <add>, %84, %cst_76 [1] : vector<4x512xf32> to vector<4xf32>
    %86 = vector.shape_cast %85 : vector<4xf32> to vector<4x1xf32>
    %87 = vector.broadcast %86 : vector<4x1xf32> to vector<4x512xf32>
    %88 = arith.divf %84, %87 : vector<4x512xf32>
    %89 = vector.extract_strided_slice %77 {offsets = [0, 0], sizes = [8, 512], strides = [1, 1]} : vector<32x512xf32> to vector<8x512xf32>
    %90 = vector.extract_strided_slice %88 {offsets = [0, 0], sizes = [1, 512], strides = [1, 1]} : vector<4x512xf32> to vector<1x512xf32>
    %91 = vector.broadcast %90 : vector<1x512xf32> to vector<8x512xf32>
    %92 = arith.mulf %89, %91 : vector<8x512xf32>
    %cst_77 = arith.constant dense<0.000000e+00> : vector<8xf32>
    %93 = vector.multi_reduction <add>, %92, %cst_77 [1] : vector<8x512xf32> to vector<8xf32>
    %94 = vector.shape_cast %93 : vector<8xf32> to vector<8x1xf32>
    %95 = vector.extract_strided_slice %77 {offsets = [8, 0], sizes = [8, 512], strides = [1, 1]} : vector<32x512xf32> to vector<8x512xf32>
    %96 = vector.extract_strided_slice %88 {offsets = [1, 0], sizes = [1, 512], strides = [1, 1]} : vector<4x512xf32> to vector<1x512xf32>
    %97 = vector.broadcast %96 : vector<1x512xf32> to vector<8x512xf32>
    %98 = arith.mulf %95, %97 : vector<8x512xf32>
    %cst_78 = arith.constant dense<0.000000e+00> : vector<8xf32>
    %99 = vector.multi_reduction <add>, %98, %cst_78 [1] : vector<8x512xf32> to vector<8xf32>
    %100 = vector.shape_cast %99 : vector<8xf32> to vector<8x1xf32>
    %101 = vector.extract_strided_slice %77 {offsets = [16, 0], sizes = [8, 512], strides = [1, 1]} : vector<32x512xf32> to vector<8x512xf32>
    %102 = vector.extract_strided_slice %88 {offsets = [2, 0], sizes = [1, 512], strides = [1, 1]} : vector<4x512xf32> to vector<1x512xf32>
    %103 = vector.broadcast %102 : vector<1x512xf32> to vector<8x512xf32>
    %104 = arith.mulf %101, %103 : vector<8x512xf32>
    %cst_79 = arith.constant dense<0.000000e+00> : vector<8xf32>
    %105 = vector.multi_reduction <add>, %104, %cst_79 [1] : vector<8x512xf32> to vector<8xf32>
    %106 = vector.shape_cast %105 : vector<8xf32> to vector<8x1xf32>
    %107 = vector.extract_strided_slice %77 {offsets = [24, 0], sizes = [8, 512], strides = [1, 1]} : vector<32x512xf32> to vector<8x512xf32>
    %108 = vector.extract_strided_slice %88 {offsets = [3, 0], sizes = [1, 512], strides = [1, 1]} : vector<4x512xf32> to vector<1x512xf32>
    %109 = vector.broadcast %108 : vector<1x512xf32> to vector<8x512xf32>
    %110 = arith.mulf %107, %109 : vector<8x512xf32>
    %cst_80 = arith.constant dense<0.000000e+00> : vector<8xf32>
    %111 = vector.multi_reduction <add>, %110, %cst_80 [1] : vector<8x512xf32> to vector<8xf32>
    %112 = vector.shape_cast %111 : vector<8xf32> to vector<8x1xf32>
    %113 = tpu.concatenate %94, %100, %106, %112 in 0 : vector<8x1xf32>, vector<8x1xf32>, vector<8x1xf32>, vector<8x1xf32> -> vector<32x1xf32>
    %cst_81 = arith.constant 0.000000e+00 : f32
    %114 = vector.broadcast %cst_81 : f32 to vector<32x512xf32>
    %115 = arith.maximumf %78, %114 : vector<32x512xf32>
    %116 = vector.broadcast %113 : vector<32x1xf32> to vector<32x512xf32>
    %117 = arith.mulf %115, %116 : vector<32x512xf32>
    %cst_82 = arith.constant dense<0.000000e+00> : vector<32x512xf32>
    %118 = tpu.matmul %8, %117, %cst_82 {dimension_numbers = #tpu.dot_dimension_numbers<[1], [0], [0], [1], [0, 0, 1, 1], [], []>} : vector<32x32xf32>, vector<32x512xf32>, vector<32x512xf32> -> vector<32x512xf32>
    %119 = vector.broadcast %9 : vector<32x1xf32> to vector<32x512xf32>
    %120 = arith.addf %118, %119 : vector<32x512xf32>
    %cst_83 = arith.constant 5.000000e-01 : f32
    %121 = vector.broadcast %cst_83 : f32 to vector<32x512xf32>
    %122 = arith.mulf %121, %120 : vector<32x512xf32>
    %cst_84 = arith.constant 5.000000e-01 : f32
    %123 = vector.broadcast %cst_84 : f32 to vector<32x512xf32>
    %124 = arith.mulf %123, %53 : vector<32x512xf32>
    %125 = arith.addf %122, %124 : vector<32x512xf32>
    %cst_85 = arith.constant dense<0.000000e+00> : vector<512xf32>
    %126 = vector.multi_reduction <add>, %125, %cst_85 [0] : vector<32x512xf32> to vector<512xf32>
    %127 = vector.shape_cast %126 : vector<512xf32> to vector<1x512xf32>
    %cst_86 = arith.constant 3.200000e+01 : f32
    %128 = vector.broadcast %cst_86 : f32 to vector<1x512xf32>
    %129 = arith.divf %127, %128 : vector<1x512xf32>
    %130 = vector.broadcast %129 : vector<1x512xf32> to vector<32x512xf32>
    %131 = arith.subf %125, %130 : vector<32x512xf32>
    %132 = arith.mulf %131, %131 : vector<32x512xf32>
    %cst_87 = arith.constant dense<0.000000e+00> : vector<512xf32>
    %133 = vector.multi_reduction <add>, %132, %cst_87 [0] : vector<32x512xf32> to vector<512xf32>
    %134 = vector.shape_cast %133 : vector<512xf32> to vector<1x512xf32>
    %cst_88 = arith.constant 3.200000e+01 : f32
    %135 = vector.broadcast %cst_88 : f32 to vector<1x512xf32>
    %136 = arith.divf %134, %135 : vector<1x512xf32>
    %cst_89 = arith.constant 9.99999974E-6 : f32
    %137 = vector.broadcast %cst_89 : f32 to vector<1x512xf32>
    %138 = arith.addf %136, %137 : vector<1x512xf32>
    %139 = math.rsqrt %138 : vector<1x512xf32>
    %140 = vector.broadcast %139 : vector<1x512xf32> to vector<32x512xf32>
    %141 = arith.mulf %131, %140 : vector<32x512xf32>
    %142 = vector.broadcast %10 : vector<32x1xf32> to vector<32x512xf32>
    %143 = arith.mulf %141, %142 : vector<32x512xf32>
    %144 = vector.broadcast %11 : vector<32x1xf32> to vector<32x512xf32>
    %145 = arith.addf %143, %144 : vector<32x512xf32>
    %cst_90 = arith.constant dense<0.000000e+00> : vector<8x512xf32>
    %146 = tpu.matmul %12, %145, %cst_90 {dimension_numbers = #tpu.dot_dimension_numbers<[1], [0], [0], [1], [0, 0, 1, 1], [], []>} : vector<8x32xf32>, vector<32x512xf32>, vector<8x512xf32> -> vector<8x512xf32>
    %147 = vector.broadcast %13 : vector<8x1xf32> to vector<8x512xf32>
    %148 = arith.addf %146, %147 : vector<8x512xf32>
    %cst_91 = arith.constant 0.000000e+00 : f32
    %149 = vector.broadcast %cst_91 : f32 to vector<8x512xf32>
    %150 = arith.cmpf ogt, %148, %149 : vector<8x512xf32>
    %cst_92 = arith.constant 0.000000e+00 : f32
    %151 = vector.broadcast %cst_92 : f32 to vector<8x512xf32>
    %152 = arith.minimumf %148, %151 : vector<8x512xf32>
    %153 = math.exp %152 : vector<8x512xf32>
    %cst_93 = arith.constant 1.000000e+00 : f32
    %154 = vector.broadcast %cst_93 : f32 to vector<8x512xf32>
    %155 = arith.subf %153, %154 : vector<8x512xf32>
    %156 = arith.select %150, %148, %155 : vector<8x512xi1>, vector<8x512xf32>
    %cst_94 = arith.constant dense<0.000000e+00> : vector<32x512xf32>
    %157 = tpu.matmul %14, %156, %cst_94 {dimension_numbers = #tpu.dot_dimension_numbers<[1], [0], [0], [1], [0, 0, 1, 1], [], []>} : vector<32x8xf32>, vector<8x512xf32>, vector<32x512xf32> -> vector<32x512xf32>
    %158 = vector.broadcast %15 : vector<32x1xf32> to vector<32x512xf32>
    %159 = arith.addf %157, %158 : vector<32x512xf32>
    %cst_95 = arith.constant 5.000000e-01 : f32
    %160 = vector.broadcast %cst_95 : f32 to vector<32x512xf32>
    %161 = arith.mulf %160, %159 : vector<32x512xf32>
    %cst_96 = arith.constant 5.000000e-01 : f32
    %162 = vector.broadcast %cst_96 : f32 to vector<32x512xf32>
    %163 = arith.mulf %162, %125 : vector<32x512xf32>
    %164 = arith.addf %161, %163 : vector<32x512xf32>
    %cst_97 = arith.constant dense<0.000000e+00> : vector<64x512xf32>
    %165 = tpu.matmul %16, %164, %cst_97 {dimension_numbers = #tpu.dot_dimension_numbers<[1], [0], [0], [1], [0, 0, 1, 1], [], []>} : vector<64x32xf32>, vector<32x512xf32>, vector<64x512xf32> -> vector<64x512xf32>
    %166 = vector.broadcast %17 : vector<64x1xf32> to vector<64x512xf32>
    %167 = arith.addf %165, %166 : vector<64x512xf32>
    %cst_98 = arith.constant 0.000000e+00 : f32
    %168 = vector.broadcast %cst_98 : f32 to vector<64x512xf32>
    %169 = arith.cmpf ogt, %167, %168 : vector<64x512xf32>
    %cst_99 = arith.constant 0.000000e+00 : f32
    %170 = vector.broadcast %cst_99 : f32 to vector<64x512xf32>
    %171 = arith.minimumf %167, %170 : vector<64x512xf32>
    %172 = math.exp %171 : vector<64x512xf32>
    %cst_100 = arith.constant 1.000000e+00 : f32
    %173 = vector.broadcast %cst_100 : f32 to vector<64x512xf32>
    %174 = arith.subf %172, %173 : vector<64x512xf32>
    %175 = arith.select %169, %167, %174 : vector<64x512xi1>, vector<64x512xf32>
    %cst_101 = arith.constant dense<0.000000e+00> : vector<512xf32>
    %176 = vector.multi_reduction <add>, %175, %cst_101 [0] : vector<64x512xf32> to vector<512xf32>
    %177 = vector.shape_cast %176 : vector<512xf32> to vector<1x512xf32>
    %cst_102 = arith.constant 6.400000e+01 : f32
    %178 = vector.broadcast %cst_102 : f32 to vector<1x512xf32>
    %179 = arith.divf %177, %178 : vector<1x512xf32>
    %180 = vector.broadcast %179 : vector<1x512xf32> to vector<64x512xf32>
    %181 = arith.subf %175, %180 : vector<64x512xf32>
    %182 = arith.mulf %181, %181 : vector<64x512xf32>
    %cst_103 = arith.constant dense<0.000000e+00> : vector<512xf32>
    %183 = vector.multi_reduction <add>, %182, %cst_103 [0] : vector<64x512xf32> to vector<512xf32>
    %184 = vector.shape_cast %183 : vector<512xf32> to vector<1x512xf32>
    %cst_104 = arith.constant 6.400000e+01 : f32
    %185 = vector.broadcast %cst_104 : f32 to vector<1x512xf32>
    %186 = arith.divf %184, %185 : vector<1x512xf32>
    %cst_105 = arith.constant 9.99999974E-6 : f32
    %187 = vector.broadcast %cst_105 : f32 to vector<1x512xf32>
    %188 = arith.addf %186, %187 : vector<1x512xf32>
    %189 = math.rsqrt %188 : vector<1x512xf32>
    %190 = vector.broadcast %189 : vector<1x512xf32> to vector<64x512xf32>
    %191 = arith.mulf %181, %190 : vector<64x512xf32>
    %192 = vector.broadcast %18 : vector<64x1xf32> to vector<64x512xf32>
    %193 = arith.mulf %191, %192 : vector<64x512xf32>
    %194 = vector.broadcast %19 : vector<64x1xf32> to vector<64x512xf32>
    %195 = arith.addf %193, %194 : vector<64x512xf32>
    %cst_106 = arith.constant dense<0.000000e+00> : vector<132x512xf32>
    %196 = tpu.matmul %20, %195, %cst_106 {dimension_numbers = #tpu.dot_dimension_numbers<[1], [0], [0], [1], [0, 0, 1, 1], [], []>} : vector<132x64xf32>, vector<64x512xf32>, vector<132x512xf32> -> vector<132x512xf32>
    %197 = vector.broadcast %21 : vector<132x1xf32> to vector<132x512xf32>
    %198 = arith.addf %196, %197 : vector<132x512xf32>
    %199 = vector.extract_strided_slice %198 {offsets = [0, 0], sizes = [64, 512], strides = [1, 1]} : vector<132x512xf32> to vector<64x512xf32>
    %200 = vector.extract_strided_slice %198 {offsets = [64, 0], sizes = [64, 512], strides = [1, 1]} : vector<132x512xf32> to vector<64x512xf32>
    %201 = vector.extract_strided_slice %198 {offsets = [128, 0], sizes = [4, 512], strides = [1, 1]} : vector<132x512xf32> to vector<4x512xf32>
    %cst_107 = arith.constant dense<0xFF800000> : vector<4xf32>
    %202 = vector.multi_reduction <maximumf>, %201, %cst_107 [1] : vector<4x512xf32> to vector<4xf32>
    %203 = vector.shape_cast %202 : vector<4xf32> to vector<4x1xf32>
    %204 = vector.broadcast %203 : vector<4x1xf32> to vector<4x512xf32>
    %205 = arith.subf %201, %204 : vector<4x512xf32>
    %206 = math.exp %205 : vector<4x512xf32>
    %cst_108 = arith.constant dense<0.000000e+00> : vector<4xf32>
    %207 = vector.multi_reduction <add>, %206, %cst_108 [1] : vector<4x512xf32> to vector<4xf32>
    %208 = vector.shape_cast %207 : vector<4xf32> to vector<4x1xf32>
    %209 = vector.broadcast %208 : vector<4x1xf32> to vector<4x512xf32>
    %210 = arith.divf %206, %209 : vector<4x512xf32>
    %211 = vector.extract_strided_slice %199 {offsets = [0, 0], sizes = [16, 512], strides = [1, 1]} : vector<64x512xf32> to vector<16x512xf32>
    %212 = vector.extract_strided_slice %210 {offsets = [0, 0], sizes = [1, 512], strides = [1, 1]} : vector<4x512xf32> to vector<1x512xf32>
    %213 = vector.broadcast %212 : vector<1x512xf32> to vector<16x512xf32>
    %214 = arith.mulf %211, %213 : vector<16x512xf32>
    %cst_109 = arith.constant dense<0.000000e+00> : vector<16xf32>
    %215 = vector.multi_reduction <add>, %214, %cst_109 [1] : vector<16x512xf32> to vector<16xf32>
    %216 = vector.shape_cast %215 : vector<16xf32> to vector<16x1xf32>
    %217 = vector.extract_strided_slice %199 {offsets = [16, 0], sizes = [16, 512], strides = [1, 1]} : vector<64x512xf32> to vector<16x512xf32>
    %218 = vector.extract_strided_slice %210 {offsets = [1, 0], sizes = [1, 512], strides = [1, 1]} : vector<4x512xf32> to vector<1x512xf32>
    %219 = vector.broadcast %218 : vector<1x512xf32> to vector<16x512xf32>
    %220 = arith.mulf %217, %219 : vector<16x512xf32>
    %cst_110 = arith.constant dense<0.000000e+00> : vector<16xf32>
    %221 = vector.multi_reduction <add>, %220, %cst_110 [1] : vector<16x512xf32> to vector<16xf32>
    %222 = vector.shape_cast %221 : vector<16xf32> to vector<16x1xf32>
    %223 = vector.extract_strided_slice %199 {offsets = [32, 0], sizes = [16, 512], strides = [1, 1]} : vector<64x512xf32> to vector<16x512xf32>
    %224 = vector.extract_strided_slice %210 {offsets = [2, 0], sizes = [1, 512], strides = [1, 1]} : vector<4x512xf32> to vector<1x512xf32>
    %225 = vector.broadcast %224 : vector<1x512xf32> to vector<16x512xf32>
    %226 = arith.mulf %223, %225 : vector<16x512xf32>
    %cst_111 = arith.constant dense<0.000000e+00> : vector<16xf32>
    %227 = vector.multi_reduction <add>, %226, %cst_111 [1] : vector<16x512xf32> to vector<16xf32>
    %228 = vector.shape_cast %227 : vector<16xf32> to vector<16x1xf32>
    %229 = vector.extract_strided_slice %199 {offsets = [48, 0], sizes = [16, 512], strides = [1, 1]} : vector<64x512xf32> to vector<16x512xf32>
    %230 = vector.extract_strided_slice %210 {offsets = [3, 0], sizes = [1, 512], strides = [1, 1]} : vector<4x512xf32> to vector<1x512xf32>
    %231 = vector.broadcast %230 : vector<1x512xf32> to vector<16x512xf32>
    %232 = arith.mulf %229, %231 : vector<16x512xf32>
    %cst_112 = arith.constant dense<0.000000e+00> : vector<16xf32>
    %233 = vector.multi_reduction <add>, %232, %cst_112 [1] : vector<16x512xf32> to vector<16xf32>
    %234 = vector.shape_cast %233 : vector<16xf32> to vector<16x1xf32>
    %235 = tpu.concatenate %216, %222, %228, %234 in 0 : vector<16x1xf32>, vector<16x1xf32>, vector<16x1xf32>, vector<16x1xf32> -> vector<64x1xf32>
    %cst_113 = arith.constant 0.000000e+00 : f32
    %236 = vector.broadcast %cst_113 : f32 to vector<64x512xf32>
    %237 = arith.maximumf %200, %236 : vector<64x512xf32>
    %238 = vector.broadcast %235 : vector<64x1xf32> to vector<64x512xf32>
    %239 = arith.mulf %237, %238 : vector<64x512xf32>
    %cst_114 = arith.constant dense<0.000000e+00> : vector<64x512xf32>
    %240 = tpu.matmul %22, %239, %cst_114 {dimension_numbers = #tpu.dot_dimension_numbers<[1], [0], [0], [1], [0, 0, 1, 1], [], []>} : vector<64x64xf32>, vector<64x512xf32>, vector<64x512xf32> -> vector<64x512xf32>
    %241 = vector.broadcast %23 : vector<64x1xf32> to vector<64x512xf32>
    %242 = arith.addf %240, %241 : vector<64x512xf32>
    %cst_115 = arith.constant 5.000000e-01 : f32
    %243 = vector.broadcast %cst_115 : f32 to vector<64x512xf32>
    %244 = arith.mulf %243, %242 : vector<64x512xf32>
    %cst_116 = arith.constant 5.000000e-01 : f32
    %245 = vector.broadcast %cst_116 : f32 to vector<64x512xf32>
    %246 = arith.mulf %245, %175 : vector<64x512xf32>
    %247 = arith.addf %244, %246 : vector<64x512xf32>
    %cst_117 = arith.constant dense<0.000000e+00> : vector<512xf32>
    %248 = vector.multi_reduction <add>, %247, %cst_117 [0] : vector<64x512xf32> to vector<512xf32>
    %249 = vector.shape_cast %248 : vector<512xf32> to vector<1x512xf32>
    %cst_118 = arith.constant 6.400000e+01 : f32
    %250 = vector.broadcast %cst_118 : f32 to vector<1x512xf32>
    %251 = arith.divf %249, %250 : vector<1x512xf32>
    %252 = vector.broadcast %251 : vector<1x512xf32> to vector<64x512xf32>
    %253 = arith.subf %247, %252 : vector<64x512xf32>
    %254 = arith.mulf %253, %253 : vector<64x512xf32>
    %cst_119 = arith.constant dense<0.000000e+00> : vector<512xf32>
    %255 = vector.multi_reduction <add>, %254, %cst_119 [0] : vector<64x512xf32> to vector<512xf32>
    %256 = vector.shape_cast %255 : vector<512xf32> to vector<1x512xf32>
    %cst_120 = arith.constant 6.400000e+01 : f32
    %257 = vector.broadcast %cst_120 : f32 to vector<1x512xf32>
    %258 = arith.divf %256, %257 : vector<1x512xf32>
    %cst_121 = arith.constant 9.99999974E-6 : f32
    %259 = vector.broadcast %cst_121 : f32 to vector<1x512xf32>
    %260 = arith.addf %258, %259 : vector<1x512xf32>
    %261 = math.rsqrt %260 : vector<1x512xf32>
    %262 = vector.broadcast %261 : vector<1x512xf32> to vector<64x512xf32>
    %263 = arith.mulf %253, %262 : vector<64x512xf32>
    %264 = vector.broadcast %24 : vector<64x1xf32> to vector<64x512xf32>
    %265 = arith.mulf %263, %264 : vector<64x512xf32>
    %266 = vector.broadcast %25 : vector<64x1xf32> to vector<64x512xf32>
    %267 = arith.addf %265, %266 : vector<64x512xf32>
    %cst_122 = arith.constant dense<0.000000e+00> : vector<16x512xf32>
    %268 = tpu.matmul %26, %267, %cst_122 {dimension_numbers = #tpu.dot_dimension_numbers<[1], [0], [0], [1], [0, 0, 1, 1], [], []>} : vector<16x64xf32>, vector<64x512xf32>, vector<16x512xf32> -> vector<16x512xf32>
    %269 = vector.broadcast %27 : vector<16x1xf32> to vector<16x512xf32>
    %270 = arith.addf %268, %269 : vector<16x512xf32>
    %cst_123 = arith.constant 0.000000e+00 : f32
    %271 = vector.broadcast %cst_123 : f32 to vector<16x512xf32>
    %272 = arith.cmpf ogt, %270, %271 : vector<16x512xf32>
    %cst_124 = arith.constant 0.000000e+00 : f32
    %273 = vector.broadcast %cst_124 : f32 to vector<16x512xf32>
    %274 = arith.minimumf %270, %273 : vector<16x512xf32>
    %275 = math.exp %274 : vector<16x512xf32>
    %cst_125 = arith.constant 1.000000e+00 : f32
    %276 = vector.broadcast %cst_125 : f32 to vector<16x512xf32>
    %277 = arith.subf %275, %276 : vector<16x512xf32>
    %278 = arith.select %272, %270, %277 : vector<16x512xi1>, vector<16x512xf32>
    %cst_126 = arith.constant dense<0.000000e+00> : vector<64x512xf32>
    %279 = tpu.matmul %28, %278, %cst_126 {dimension_numbers = #tpu.dot_dimension_numbers<[1], [0], [0], [1], [0, 0, 1, 1], [], []>} : vector<64x16xf32>, vector<16x512xf32>, vector<64x512xf32> -> vector<64x512xf32>
    %280 = vector.broadcast %29 : vector<64x1xf32> to vector<64x512xf32>
    %281 = arith.addf %279, %280 : vector<64x512xf32>
    %cst_127 = arith.constant 5.000000e-01 : f32
    %282 = vector.broadcast %cst_127 : f32 to vector<64x512xf32>
    %283 = arith.mulf %282, %281 : vector<64x512xf32>
    %cst_128 = arith.constant 5.000000e-01 : f32
    %284 = vector.broadcast %cst_128 : f32 to vector<64x512xf32>
    %285 = arith.mulf %284, %247 : vector<64x512xf32>
    %286 = arith.addf %283, %285 : vector<64x512xf32>
    %cst_129 = arith.constant dense<0.000000e+00> : vector<64xf32>
    %287 = vector.multi_reduction <add>, %286, %cst_129 [1] : vector<64x512xf32> to vector<64xf32>
    %288 = vector.shape_cast %287 : vector<64xf32> to vector<64x1xf32>
    %cst_130 = arith.constant 5.120000e+02 : f32
    %289 = vector.broadcast %cst_130 : f32 to vector<64x1xf32>
    %290 = arith.divf %288, %289 : vector<64x1xf32>
    %c0_131 = arith.constant 0 : index
    %c0_132 = arith.constant 0 : index
    %c0_133 = arith.constant 0 : index
    %291 = vector.load %arg32[%c0_131, %c0_132, %c0_133] : memref<2x64x1xf32, #tpu.memory_space<vmem>>, vector<1x64x1xf32>
    %292 = vector.shape_cast %291 : vector<1x64x1xf32> to vector<64x1xf32>
    %293 = vector.shape_cast %290 : vector<64x1xf32> to vector<1x64x1xf32>
    tpu.vector_store %arg32[%c0_131, %c0_132, %c0_133], %293 {strides = array<i32>} : memref<2x64x1xf32, #tpu.memory_space<vmem>>, vector<1x64x1xf32>,
    %c1 = arith.constant 1 : index
    %c0_134 = arith.constant 0 : index
    %c0_135 = arith.constant 0 : index
    %294 = vector.load %arg1[%c1, %c0_134, %c0_135] : memref<2x6x512xf32, #tpu.memory_space<vmem>>, vector<1x6x512xf32>
    %295 = vector.shape_cast %294 : vector<1x6x512xf32> to vector<6x512xf32>
    %cst_136 = arith.constant dense<0.000000e+00> : vector<16x512xf32>
    %296 = tpu.matmul %0, %295, %cst_136 {dimension_numbers = #tpu.dot_dimension_numbers<[1], [0], [0], [1], [0, 0, 1, 1], [], []>} : vector<16x6xf32>, vector<6x512xf32>, vector<16x512xf32> -> vector<16x512xf32>
    %297 = vector.broadcast %1 : vector<16x1xf32> to vector<16x512xf32>
    %298 = arith.addf %296, %297 : vector<16x512xf32>
    %cst_137 = arith.constant 0.000000e+00 : f32
    %299 = vector.broadcast %cst_137 : f32 to vector<16x512xf32>
    %300 = arith.cmpf ogt, %298, %299 : vector<16x512xf32>
    %cst_138 = arith.constant 0.000000e+00 : f32
    %301 = vector.broadcast %cst_138 : f32 to vector<16x512xf32>
    %302 = arith.minimumf %298, %301 : vector<16x512xf32>
    %303 = math.exp %302 : vector<16x512xf32>
    %cst_139 = arith.constant 1.000000e+00 : f32
    %304 = vector.broadcast %cst_139 : f32 to vector<16x512xf32>
    %305 = arith.subf %303, %304 : vector<16x512xf32>
    %306 = arith.select %300, %298, %305 : vector<16x512xi1>, vector<16x512xf32>
    %cst_140 = arith.constant dense<0.000000e+00> : vector<32x512xf32>
    %307 = tpu.matmul %2, %306, %cst_140 {dimension_numbers = #tpu.dot_dimension_numbers<[1], [0], [0], [1], [0, 0, 1, 1], [], []>} : vector<32x16xf32>, vector<16x512xf32>, vector<32x512xf32> -> vector<32x512xf32>
    %308 = vector.broadcast %3 : vector<32x1xf32> to vector<32x512xf32>
    %309 = arith.addf %307, %308 : vector<32x512xf32>
    %cst_141 = arith.constant 0.000000e+00 : f32
    %310 = vector.broadcast %cst_141 : f32 to vector<32x512xf32>
    %311 = arith.cmpf ogt, %309, %310 : vector<32x512xf32>
    %cst_142 = arith.constant 0.000000e+00 : f32
    %312 = vector.broadcast %cst_142 : f32 to vector<32x512xf32>
    %313 = arith.minimumf %309, %312 : vector<32x512xf32>
    %314 = math.exp %313 : vector<32x512xf32>
    %cst_143 = arith.constant 1.000000e+00 : f32
    %315 = vector.broadcast %cst_143 : f32 to vector<32x512xf32>
    %316 = arith.subf %314, %315 : vector<32x512xf32>
    %317 = arith.select %311, %309, %316 : vector<32x512xi1>, vector<32x512xf32>
    %cst_144 = arith.constant dense<0.000000e+00> : vector<512xf32>
    %318 = vector.multi_reduction <add>, %317, %cst_144 [0] : vector<32x512xf32> to vector<512xf32>
    %319 = vector.shape_cast %318 : vector<512xf32> to vector<1x512xf32>
    %cst_145 = arith.constant 3.200000e+01 : f32
    %320 = vector.broadcast %cst_145 : f32 to vector<1x512xf32>
    %321 = arith.divf %319, %320 : vector<1x512xf32>
    %322 = vector.broadcast %321 : vector<1x512xf32> to vector<32x512xf32>
    %323 = arith.subf %317, %322 : vector<32x512xf32>
    %324 = arith.mulf %323, %323 : vector<32x512xf32>
    %cst_146 = arith.constant dense<0.000000e+00> : vector<512xf32>
    %325 = vector.multi_reduction <add>, %324, %cst_146 [0] : vector<32x512xf32> to vector<512xf32>
    %326 = vector.shape_cast %325 : vector<512xf32> to vector<1x512xf32>
    %cst_147 = arith.constant 3.200000e+01 : f32
    %327 = vector.broadcast %cst_147 : f32 to vector<1x512xf32>
    %328 = arith.divf %326, %327 : vector<1x512xf32>
    %cst_148 = arith.constant 9.99999974E-6 : f32
    %329 = vector.broadcast %cst_148 : f32 to vector<1x512xf32>
    %330 = arith.addf %328, %329 : vector<1x512xf32>
    %331 = math.rsqrt %330 : vector<1x512xf32>
    %332 = vector.broadcast %331 : vector<1x512xf32> to vector<32x512xf32>
    %333 = arith.mulf %323, %332 : vector<32x512xf32>
    %334 = vector.broadcast %4 : vector<32x1xf32> to vector<32x512xf32>
    %335 = arith.mulf %333, %334 : vector<32x512xf32>
    %336 = vector.broadcast %5 : vector<32x1xf32> to vector<32x512xf32>
    %337 = arith.addf %335, %336 : vector<32x512xf32>
    %cst_149 = arith.constant dense<0.000000e+00> : vector<68x512xf32>
    %338 = tpu.matmul %6, %337, %cst_149 {dimension_numbers = #tpu.dot_dimension_numbers<[1], [0], [0], [1], [0, 0, 1, 1], [], []>} : vector<68x32xf32>, vector<32x512xf32>, vector<68x512xf32> -> vector<68x512xf32>
    %339 = vector.broadcast %7 : vector<68x1xf32> to vector<68x512xf32>
    %340 = arith.addf %338, %339 : vector<68x512xf32>
    %341 = vector.extract_strided_slice %340 {offsets = [0, 0], sizes = [32, 512], strides = [1, 1]} : vector<68x512xf32> to vector<32x512xf32>
    %342 = vector.extract_strided_slice %340 {offsets = [32, 0], sizes = [32, 512], strides = [1, 1]} : vector<68x512xf32> to vector<32x512xf32>
    %343 = vector.extract_strided_slice %340 {offsets = [64, 0], sizes = [4, 512], strides = [1, 1]} : vector<68x512xf32> to vector<4x512xf32>
    %cst_150 = arith.constant dense<0xFF800000> : vector<4xf32>
    %344 = vector.multi_reduction <maximumf>, %343, %cst_150 [1] : vector<4x512xf32> to vector<4xf32>
    %345 = vector.shape_cast %344 : vector<4xf32> to vector<4x1xf32>
    %346 = vector.broadcast %345 : vector<4x1xf32> to vector<4x512xf32>
    %347 = arith.subf %343, %346 : vector<4x512xf32>
    %348 = math.exp %347 : vector<4x512xf32>
    %cst_151 = arith.constant dense<0.000000e+00> : vector<4xf32>
    %349 = vector.multi_reduction <add>, %348, %cst_151 [1] : vector<4x512xf32> to vector<4xf32>
    %350 = vector.shape_cast %349 : vector<4xf32> to vector<4x1xf32>
    %351 = vector.broadcast %350 : vector<4x1xf32> to vector<4x512xf32>
    %352 = arith.divf %348, %351 : vector<4x512xf32>
    %353 = vector.extract_strided_slice %341 {offsets = [0, 0], sizes = [8, 512], strides = [1, 1]} : vector<32x512xf32> to vector<8x512xf32>
    %354 = vector.extract_strided_slice %352 {offsets = [0, 0], sizes = [1, 512], strides = [1, 1]} : vector<4x512xf32> to vector<1x512xf32>
    %355 = vector.broadcast %354 : vector<1x512xf32> to vector<8x512xf32>
    %356 = arith.mulf %353, %355 : vector<8x512xf32>
    %cst_152 = arith.constant dense<0.000000e+00> : vector<8xf32>
    %357 = vector.multi_reduction <add>, %356, %cst_152 [1] : vector<8x512xf32> to vector<8xf32>
    %358 = vector.shape_cast %357 : vector<8xf32> to vector<8x1xf32>
    %359 = vector.extract_strided_slice %341 {offsets = [8, 0], sizes = [8, 512], strides = [1, 1]} : vector<32x512xf32> to vector<8x512xf32>
    %360 = vector.extract_strided_slice %352 {offsets = [1, 0], sizes = [1, 512], strides = [1, 1]} : vector<4x512xf32> to vector<1x512xf32>
    %361 = vector.broadcast %360 : vector<1x512xf32> to vector<8x512xf32>
    %362 = arith.mulf %359, %361 : vector<8x512xf32>
    %cst_153 = arith.constant dense<0.000000e+00> : vector<8xf32>
    %363 = vector.multi_reduction <add>, %362, %cst_153 [1] : vector<8x512xf32> to vector<8xf32>
    %364 = vector.shape_cast %363 : vector<8xf32> to vector<8x1xf32>
    %365 = vector.extract_strided_slice %341 {offsets = [16, 0], sizes = [8, 512], strides = [1, 1]} : vector<32x512xf32> to vector<8x512xf32>
    %366 = vector.extract_strided_slice %352 {offsets = [2, 0], sizes = [1, 512], strides = [1, 1]} : vector<4x512xf32> to vector<1x512xf32>
    %367 = vector.broadcast %366 : vector<1x512xf32> to vector<8x512xf32>
    %368 = arith.mulf %365, %367 : vector<8x512xf32>
    %cst_154 = arith.constant dense<0.000000e+00> : vector<8xf32>
    %369 = vector.multi_reduction <add>, %368, %cst_154 [1] : vector<8x512xf32> to vector<8xf32>
    %370 = vector.shape_cast %369 : vector<8xf32> to vector<8x1xf32>
    %371 = vector.extract_strided_slice %341 {offsets = [24, 0], sizes = [8, 512], strides = [1, 1]} : vector<32x512xf32> to vector<8x512xf32>
    %372 = vector.extract_strided_slice %352 {offsets = [3, 0], sizes = [1, 512], strides = [1, 1]} : vector<4x512xf32> to vector<1x512xf32>
    %373 = vector.broadcast %372 : vector<1x512xf32> to vector<8x512xf32>
    %374 = arith.mulf %371, %373 : vector<8x512xf32>
    %cst_155 = arith.constant dense<0.000000e+00> : vector<8xf32>
    %375 = vector.multi_reduction <add>, %374, %cst_155 [1] : vector<8x512xf32> to vector<8xf32>
    %376 = vector.shape_cast %375 : vector<8xf32> to vector<8x1xf32>
    %377 = tpu.concatenate %358, %364, %370, %376 in 0 : vector<8x1xf32>, vector<8x1xf32>, vector<8x1xf32>, vector<8x1xf32> -> vector<32x1xf32>
    %cst_156 = arith.constant 0.000000e+00 : f32
    %378 = vector.broadcast %cst_156 : f32 to vector<32x512xf32>
    %379 = arith.maximumf %342, %378 : vector<32x512xf32>
    %380 = vector.broadcast %377 : vector<32x1xf32> to vector<32x512xf32>
    %381 = arith.mulf %379, %380 : vector<32x512xf32>
    %cst_157 = arith.constant dense<0.000000e+00> : vector<32x512xf32>
    %382 = tpu.matmul %8, %381, %cst_157 {dimension_numbers = #tpu.dot_dimension_numbers<[1], [0], [0], [1], [0, 0, 1, 1], [], []>} : vector<32x32xf32>, vector<32x512xf32>, vector<32x512xf32> -> vector<32x512xf32>
    %383 = vector.broadcast %9 : vector<32x1xf32> to vector<32x512xf32>
    %384 = arith.addf %382, %383 : vector<32x512xf32>
    %cst_158 = arith.constant 5.000000e-01 : f32
    %385 = vector.broadcast %cst_158 : f32 to vector<32x512xf32>
    %386 = arith.mulf %385, %384 : vector<32x512xf32>
    %cst_159 = arith.constant 5.000000e-01 : f32
    %387 = vector.broadcast %cst_159 : f32 to vector<32x512xf32>
    %388 = arith.mulf %387, %317 : vector<32x512xf32>
    %389 = arith.addf %386, %388 : vector<32x512xf32>
    %cst_160 = arith.constant dense<0.000000e+00> : vector<512xf32>
    %390 = vector.multi_reduction <add>, %389, %cst_160 [0] : vector<32x512xf32> to vector<512xf32>
    %391 = vector.shape_cast %390 : vector<512xf32> to vector<1x512xf32>
    %cst_161 = arith.constant 3.200000e+01 : f32
    %392 = vector.broadcast %cst_161 : f32 to vector<1x512xf32>
    %393 = arith.divf %391, %392 : vector<1x512xf32>
    %394 = vector.broadcast %393 : vector<1x512xf32> to vector<32x512xf32>
    %395 = arith.subf %389, %394 : vector<32x512xf32>
    %396 = arith.mulf %395, %395 : vector<32x512xf32>
    %cst_162 = arith.constant dense<0.000000e+00> : vector<512xf32>
    %397 = vector.multi_reduction <add>, %396, %cst_162 [0] : vector<32x512xf32> to vector<512xf32>
    %398 = vector.shape_cast %397 : vector<512xf32> to vector<1x512xf32>
    %cst_163 = arith.constant 3.200000e+01 : f32
    %399 = vector.broadcast %cst_163 : f32 to vector<1x512xf32>
    %400 = arith.divf %398, %399 : vector<1x512xf32>
    %cst_164 = arith.constant 9.99999974E-6 : f32
    %401 = vector.broadcast %cst_164 : f32 to vector<1x512xf32>
    %402 = arith.addf %400, %401 : vector<1x512xf32>
    %403 = math.rsqrt %402 : vector<1x512xf32>
    %404 = vector.broadcast %403 : vector<1x512xf32> to vector<32x512xf32>
    %405 = arith.mulf %395, %404 : vector<32x512xf32>
    %406 = vector.broadcast %10 : vector<32x1xf32> to vector<32x512xf32>
    %407 = arith.mulf %405, %406 : vector<32x512xf32>
    %408 = vector.broadcast %11 : vector<32x1xf32> to vector<32x512xf32>
    %409 = arith.addf %407, %408 : vector<32x512xf32>
    %cst_165 = arith.constant dense<0.000000e+00> : vector<8x512xf32>
    %410 = tpu.matmul %12, %409, %cst_165 {dimension_numbers = #tpu.dot_dimension_numbers<[1], [0], [0], [1], [0, 0, 1, 1], [], []>} : vector<8x32xf32>, vector<32x512xf32>, vector<8x512xf32> -> vector<8x512xf32>
    %411 = vector.broadcast %13 : vector<8x1xf32> to vector<8x512xf32>
    %412 = arith.addf %410, %411 : vector<8x512xf32>
    %cst_166 = arith.constant 0.000000e+00 : f32
    %413 = vector.broadcast %cst_166 : f32 to vector<8x512xf32>
    %414 = arith.cmpf ogt, %412, %413 : vector<8x512xf32>
    %cst_167 = arith.constant 0.000000e+00 : f32
    %415 = vector.broadcast %cst_167 : f32 to vector<8x512xf32>
    %416 = arith.minimumf %412, %415 : vector<8x512xf32>
    %417 = math.exp %416 : vector<8x512xf32>
    %cst_168 = arith.constant 1.000000e+00 : f32
    %418 = vector.broadcast %cst_168 : f32 to vector<8x512xf32>
    %419 = arith.subf %417, %418 : vector<8x512xf32>
    %420 = arith.select %414, %412, %419 : vector<8x512xi1>, vector<8x512xf32>
    %cst_169 = arith.constant dense<0.000000e+00> : vector<32x512xf32>
    %421 = tpu.matmul %14, %420, %cst_169 {dimension_numbers = #tpu.dot_dimension_numbers<[1], [0], [0], [1], [0, 0, 1, 1], [], []>} : vector<32x8xf32>, vector<8x512xf32>, vector<32x512xf32> -> vector<32x512xf32>
    %422 = vector.broadcast %15 : vector<32x1xf32> to vector<32x512xf32>
    %423 = arith.addf %421, %422 : vector<32x512xf32>
    %cst_170 = arith.constant 5.000000e-01 : f32
    %424 = vector.broadcast %cst_170 : f32 to vector<32x512xf32>
    %425 = arith.mulf %424, %423 : vector<32x512xf32>
    %cst_171 = arith.constant 5.000000e-01 : f32
    %426 = vector.broadcast %cst_171 : f32 to vector<32x512xf32>
    %427 = arith.mulf %426, %389 : vector<32x512xf32>
    %428 = arith.addf %425, %427 : vector<32x512xf32>
    %cst_172 = arith.constant dense<0.000000e+00> : vector<64x512xf32>
    %429 = tpu.matmul %16, %428, %cst_172 {dimension_numbers = #tpu.dot_dimension_numbers<[1], [0], [0], [1], [0, 0, 1, 1], [], []>} : vector<64x32xf32>, vector<32x512xf32>, vector<64x512xf32> -> vector<64x512xf32>
    %430 = vector.broadcast %17 : vector<64x1xf32> to vector<64x512xf32>
    %431 = arith.addf %429, %430 : vector<64x512xf32>
    %cst_173 = arith.constant 0.000000e+00 : f32
    %432 = vector.broadcast %cst_173 : f32 to vector<64x512xf32>
    %433 = arith.cmpf ogt, %431, %432 : vector<64x512xf32>
    %cst_174 = arith.constant 0.000000e+00 : f32
    %434 = vector.broadcast %cst_174 : f32 to vector<64x512xf32>
    %435 = arith.minimumf %431, %434 : vector<64x512xf32>
    %436 = math.exp %435 : vector<64x512xf32>
    %cst_175 = arith.constant 1.000000e+00 : f32
    %437 = vector.broadcast %cst_175 : f32 to vector<64x512xf32>
    %438 = arith.subf %436, %437 : vector<64x512xf32>
    %439 = arith.select %433, %431, %438 : vector<64x512xi1>, vector<64x512xf32>
    %cst_176 = arith.constant dense<0.000000e+00> : vector<512xf32>
    %440 = vector.multi_reduction <add>, %439, %cst_176 [0] : vector<64x512xf32> to vector<512xf32>
    %441 = vector.shape_cast %440 : vector<512xf32> to vector<1x512xf32>
    %cst_177 = arith.constant 6.400000e+01 : f32
    %442 = vector.broadcast %cst_177 : f32 to vector<1x512xf32>
    %443 = arith.divf %441, %442 : vector<1x512xf32>
    %444 = vector.broadcast %443 : vector<1x512xf32> to vector<64x512xf32>
    %445 = arith.subf %439, %444 : vector<64x512xf32>
    %446 = arith.mulf %445, %445 : vector<64x512xf32>
    %cst_178 = arith.constant dense<0.000000e+00> : vector<512xf32>
    %447 = vector.multi_reduction <add>, %446, %cst_178 [0] : vector<64x512xf32> to vector<512xf32>
    %448 = vector.shape_cast %447 : vector<512xf32> to vector<1x512xf32>
    %cst_179 = arith.constant 6.400000e+01 : f32
    %449 = vector.broadcast %cst_179 : f32 to vector<1x512xf32>
    %450 = arith.divf %448, %449 : vector<1x512xf32>
    %cst_180 = arith.constant 9.99999974E-6 : f32
    %451 = vector.broadcast %cst_180 : f32 to vector<1x512xf32>
    %452 = arith.addf %450, %451 : vector<1x512xf32>
    %453 = math.rsqrt %452 : vector<1x512xf32>
    %454 = vector.broadcast %453 : vector<1x512xf32> to vector<64x512xf32>
    %455 = arith.mulf %445, %454 : vector<64x512xf32>
    %456 = vector.broadcast %18 : vector<64x1xf32> to vector<64x512xf32>
    %457 = arith.mulf %455, %456 : vector<64x512xf32>
    %458 = vector.broadcast %19 : vector<64x1xf32> to vector<64x512xf32>
    %459 = arith.addf %457, %458 : vector<64x512xf32>
    %cst_181 = arith.constant dense<0.000000e+00> : vector<132x512xf32>
    %460 = tpu.matmul %20, %459, %cst_181 {dimension_numbers = #tpu.dot_dimension_numbers<[1], [0], [0], [1], [0, 0, 1, 1], [], []>} : vector<132x64xf32>, vector<64x512xf32>, vector<132x512xf32> -> vector<132x512xf32>
    %461 = vector.broadcast %21 : vector<132x1xf32> to vector<132x512xf32>
    %462 = arith.addf %460, %461 : vector<132x512xf32>
    %463 = vector.extract_strided_slice %462 {offsets = [0, 0], sizes = [64, 512], strides = [1, 1]} : vector<132x512xf32> to vector<64x512xf32>
    %464 = vector.extract_strided_slice %462 {offsets = [64, 0], sizes = [64, 512], strides = [1, 1]} : vector<132x512xf32> to vector<64x512xf32>
    %465 = vector.extract_strided_slice %462 {offsets = [128, 0], sizes = [4, 512], strides = [1, 1]} : vector<132x512xf32> to vector<4x512xf32>
    %cst_182 = arith.constant dense<0xFF800000> : vector<4xf32>
    %466 = vector.multi_reduction <maximumf>, %465, %cst_182 [1] : vector<4x512xf32> to vector<4xf32>
    %467 = vector.shape_cast %466 : vector<4xf32> to vector<4x1xf32>
    %468 = vector.broadcast %467 : vector<4x1xf32> to vector<4x512xf32>
    %469 = arith.subf %465, %468 : vector<4x512xf32>
    %470 = math.exp %469 : vector<4x512xf32>
    %cst_183 = arith.constant dense<0.000000e+00> : vector<4xf32>
    %471 = vector.multi_reduction <add>, %470, %cst_183 [1] : vector<4x512xf32> to vector<4xf32>
    %472 = vector.shape_cast %471 : vector<4xf32> to vector<4x1xf32>
    %473 = vector.broadcast %472 : vector<4x1xf32> to vector<4x512xf32>
    %474 = arith.divf %470, %473 : vector<4x512xf32>
    %475 = vector.extract_strided_slice %463 {offsets = [0, 0], sizes = [16, 512], strides = [1, 1]} : vector<64x512xf32> to vector<16x512xf32>
    %476 = vector.extract_strided_slice %474 {offsets = [0, 0], sizes = [1, 512], strides = [1, 1]} : vector<4x512xf32> to vector<1x512xf32>
    %477 = vector.broadcast %476 : vector<1x512xf32> to vector<16x512xf32>
    %478 = arith.mulf %475, %477 : vector<16x512xf32>
    %cst_184 = arith.constant dense<0.000000e+00> : vector<16xf32>
    %479 = vector.multi_reduction <add>, %478, %cst_184 [1] : vector<16x512xf32> to vector<16xf32>
    %480 = vector.shape_cast %479 : vector<16xf32> to vector<16x1xf32>
    %481 = vector.extract_strided_slice %463 {offsets = [16, 0], sizes = [16, 512], strides = [1, 1]} : vector<64x512xf32> to vector<16x512xf32>
    %482 = vector.extract_strided_slice %474 {offsets = [1, 0], sizes = [1, 512], strides = [1, 1]} : vector<4x512xf32> to vector<1x512xf32>
    %483 = vector.broadcast %482 : vector<1x512xf32> to vector<16x512xf32>
    %484 = arith.mulf %481, %483 : vector<16x512xf32>
    %cst_185 = arith.constant dense<0.000000e+00> : vector<16xf32>
    %485 = vector.multi_reduction <add>, %484, %cst_185 [1] : vector<16x512xf32> to vector<16xf32>
    %486 = vector.shape_cast %485 : vector<16xf32> to vector<16x1xf32>
    %487 = vector.extract_strided_slice %463 {offsets = [32, 0], sizes = [16, 512], strides = [1, 1]} : vector<64x512xf32> to vector<16x512xf32>
    %488 = vector.extract_strided_slice %474 {offsets = [2, 0], sizes = [1, 512], strides = [1, 1]} : vector<4x512xf32> to vector<1x512xf32>
    %489 = vector.broadcast %488 : vector<1x512xf32> to vector<16x512xf32>
    %490 = arith.mulf %487, %489 : vector<16x512xf32>
    %cst_186 = arith.constant dense<0.000000e+00> : vector<16xf32>
    %491 = vector.multi_reduction <add>, %490, %cst_186 [1] : vector<16x512xf32> to vector<16xf32>
    %492 = vector.shape_cast %491 : vector<16xf32> to vector<16x1xf32>
    %493 = vector.extract_strided_slice %463 {offsets = [48, 0], sizes = [16, 512], strides = [1, 1]} : vector<64x512xf32> to vector<16x512xf32>
    %494 = vector.extract_strided_slice %474 {offsets = [3, 0], sizes = [1, 512], strides = [1, 1]} : vector<4x512xf32> to vector<1x512xf32>
    %495 = vector.broadcast %494 : vector<1x512xf32> to vector<16x512xf32>
    %496 = arith.mulf %493, %495 : vector<16x512xf32>
    %cst_187 = arith.constant dense<0.000000e+00> : vector<16xf32>
    %497 = vector.multi_reduction <add>, %496, %cst_187 [1] : vector<16x512xf32> to vector<16xf32>
    %498 = vector.shape_cast %497 : vector<16xf32> to vector<16x1xf32>
    %499 = tpu.concatenate %480, %486, %492, %498 in 0 : vector<16x1xf32>, vector<16x1xf32>, vector<16x1xf32>, vector<16x1xf32> -> vector<64x1xf32>
    %cst_188 = arith.constant 0.000000e+00 : f32
    %500 = vector.broadcast %cst_188 : f32 to vector<64x512xf32>
    %501 = arith.maximumf %464, %500 : vector<64x512xf32>
    %502 = vector.broadcast %499 : vector<64x1xf32> to vector<64x512xf32>
    %503 = arith.mulf %501, %502 : vector<64x512xf32>
    %cst_189 = arith.constant dense<0.000000e+00> : vector<64x512xf32>
    %504 = tpu.matmul %22, %503, %cst_189 {dimension_numbers = #tpu.dot_dimension_numbers<[1], [0], [0], [1], [0, 0, 1, 1], [], []>} : vector<64x64xf32>, vector<64x512xf32>, vector<64x512xf32> -> vector<64x512xf32>
    %505 = vector.broadcast %23 : vector<64x1xf32> to vector<64x512xf32>
    %506 = arith.addf %504, %505 : vector<64x512xf32>
    %cst_190 = arith.constant 5.000000e-01 : f32
    %507 = vector.broadcast %cst_190 : f32 to vector<64x512xf32>
    %508 = arith.mulf %507, %506 : vector<64x512xf32>
    %cst_191 = arith.constant 5.000000e-01 : f32
    %509 = vector.broadcast %cst_191 : f32 to vector<64x512xf32>
    %510 = arith.mulf %509, %439 : vector<64x512xf32>
    %511 = arith.addf %508, %510 : vector<64x512xf32>
    %cst_192 = arith.constant dense<0.000000e+00> : vector<512xf32>
    %512 = vector.multi_reduction <add>, %511, %cst_192 [0] : vector<64x512xf32> to vector<512xf32>
    %513 = vector.shape_cast %512 : vector<512xf32> to vector<1x512xf32>
    %cst_193 = arith.constant 6.400000e+01 : f32
    %514 = vector.broadcast %cst_193 : f32 to vector<1x512xf32>
    %515 = arith.divf %513, %514 : vector<1x512xf32>
    %516 = vector.broadcast %515 : vector<1x512xf32> to vector<64x512xf32>
    %517 = arith.subf %511, %516 : vector<64x512xf32>
    %518 = arith.mulf %517, %517 : vector<64x512xf32>
    %cst_194 = arith.constant dense<0.000000e+00> : vector<512xf32>
    %519 = vector.multi_reduction <add>, %518, %cst_194 [0] : vector<64x512xf32> to vector<512xf32>
    %520 = vector.shape_cast %519 : vector<512xf32> to vector<1x512xf32>
    %cst_195 = arith.constant 6.400000e+01 : f32
    %521 = vector.broadcast %cst_195 : f32 to vector<1x512xf32>
    %522 = arith.divf %520, %521 : vector<1x512xf32>
    %cst_196 = arith.constant 9.99999974E-6 : f32
    %523 = vector.broadcast %cst_196 : f32 to vector<1x512xf32>
    %524 = arith.addf %522, %523 : vector<1x512xf32>
    %525 = math.rsqrt %524 : vector<1x512xf32>
    %526 = vector.broadcast %525 : vector<1x512xf32> to vector<64x512xf32>
    %527 = arith.mulf %517, %526 : vector<64x512xf32>
    %528 = vector.broadcast %24 : vector<64x1xf32> to vector<64x512xf32>
    %529 = arith.mulf %527, %528 : vector<64x512xf32>
    %530 = vector.broadcast %25 : vector<64x1xf32> to vector<64x512xf32>
    %531 = arith.addf %529, %530 : vector<64x512xf32>
    %cst_197 = arith.constant dense<0.000000e+00> : vector<16x512xf32>
    %532 = tpu.matmul %26, %531, %cst_197 {dimension_numbers = #tpu.dot_dimension_numbers<[1], [0], [0], [1], [0, 0, 1, 1], [], []>} : vector<16x64xf32>, vector<64x512xf32>, vector<16x512xf32> -> vector<16x512xf32>
    %533 = vector.broadcast %27 : vector<16x1xf32> to vector<16x512xf32>
    %534 = arith.addf %532, %533 : vector<16x512xf32>
    %cst_198 = arith.constant 0.000000e+00 : f32
    %535 = vector.broadcast %cst_198 : f32 to vector<16x512xf32>
    %536 = arith.cmpf ogt, %534, %535 : vector<16x512xf32>
    %cst_199 = arith.constant 0.000000e+00 : f32
    %537 = vector.broadcast %cst_199 : f32 to vector<16x512xf32>
    %538 = arith.minimumf %534, %537 : vector<16x512xf32>
    %539 = math.exp %538 : vector<16x512xf32>
    %cst_200 = arith.constant 1.000000e+00 : f32
    %540 = vector.broadcast %cst_200 : f32 to vector<16x512xf32>
    %541 = arith.subf %539, %540 : vector<16x512xf32>
    %542 = arith.select %536, %534, %541 : vector<16x512xi1>, vector<16x512xf32>
    %cst_201 = arith.constant dense<0.000000e+00> : vector<64x512xf32>
    %543 = tpu.matmul %28, %542, %cst_201 {dimension_numbers = #tpu.dot_dimension_numbers<[1], [0], [0], [1], [0, 0, 1, 1], [], []>} : vector<64x16xf32>, vector<16x512xf32>, vector<64x512xf32> -> vector<64x512xf32>
    %544 = vector.broadcast %29 : vector<64x1xf32> to vector<64x512xf32>
    %545 = arith.addf %543, %544 : vector<64x512xf32>
    %cst_202 = arith.constant 5.000000e-01 : f32
    %546 = vector.broadcast %cst_202 : f32 to vector<64x512xf32>
    %547 = arith.mulf %546, %545 : vector<64x512xf32>
    %cst_203 = arith.constant 5.000000e-01 : f32
    %548 = vector.broadcast %cst_203 : f32 to vector<64x512xf32>
    %549 = arith.mulf %548, %511 : vector<64x512xf32>
    %550 = arith.addf %547, %549 : vector<64x512xf32>
    %cst_204 = arith.constant dense<0.000000e+00> : vector<64xf32>
    %551 = vector.multi_reduction <add>, %550, %cst_204 [1] : vector<64x512xf32> to vector<64xf32>
    %552 = vector.shape_cast %551 : vector<64xf32> to vector<64x1xf32>
    %cst_205 = arith.constant 5.120000e+02 : f32
    %553 = vector.broadcast %cst_205 : f32 to vector<64x1xf32>
    %554 = arith.divf %552, %553 : vector<64x1xf32>
    %c1_206 = arith.constant 1 : index
    %c0_207 = arith.constant 0 : index
    %c0_208 = arith.constant 0 : index
    %555 = vector.load %arg32[%c1_206, %c0_207, %c0_208] : memref<2x64x1xf32, #tpu.memory_space<vmem>>, vector<1x64x1xf32>
    %556 = vector.shape_cast %555 : vector<1x64x1xf32> to vector<64x1xf32>
    %557 = vector.shape_cast %554 : vector<64x1xf32> to vector<1x64x1xf32>
    tpu.vector_store %arg32[%c1_206, %c0_207, %c0_208], %557 {strides = array<i32>} : memref<2x64x1xf32, #tpu.memory_space<vmem>>, vector<1x64x1xf32>,
    return
  }
  func.func @transform_0(%arg0: i32) -> (i32, i32, i32) {
    %c0_i32 = arith.constant 0 : i32
    %c0_i32_0 = arith.constant 0 : i32
    %c0_i32_1 = arith.constant 0 : i32
    return %arg0, %c0_i32, %c0_i32_0 : i32, i32, i32
  }
  func.func @transform_1(%arg0: i32) -> (i32, i32) {
    %c0_i32 = arith.constant 0 : i32
    %c0_i32_0 = arith.constant 0 : i32
    %c0_i32_1 = arith.constant 0 : i32
    return %c0_i32, %c0_i32_0 : i32, i32
  }
  func.func @transform_2(%arg0: i32) -> (i32, i32) {
    %c0_i32 = arith.constant 0 : i32
    %c0_i32_0 = arith.constant 0 : i32
    %c0_i32_1 = arith.constant 0 : i32
    return %c0_i32, %c0_i32_0 : i32, i32
  }
  func.func @transform_3(%arg0: i32) -> (i32, i32) {
    %c0_i32 = arith.constant 0 : i32
    %c0_i32_0 = arith.constant 0 : i32
    %c0_i32_1 = arith.constant 0 : i32
    return %c0_i32, %c0_i32_0 : i32, i32
  }
  func.func @transform_4(%arg0: i32) -> (i32, i32) {
    %c0_i32 = arith.constant 0 : i32
    %c0_i32_0 = arith.constant 0 : i32
    %c0_i32_1 = arith.constant 0 : i32
    return %c0_i32, %c0_i32_0 : i32, i32
  }
  func.func @transform_5(%arg0: i32) -> (i32, i32) {
    %c0_i32 = arith.constant 0 : i32
    %c0_i32_0 = arith.constant 0 : i32
    %c0_i32_1 = arith.constant 0 : i32
    return %c0_i32, %c0_i32_0 : i32, i32
  }
  func.func @transform_6(%arg0: i32) -> (i32, i32) {
    %c0_i32 = arith.constant 0 : i32
    %c0_i32_0 = arith.constant 0 : i32
    %c0_i32_1 = arith.constant 0 : i32
    return %c0_i32, %c0_i32_0 : i32, i32
  }
  func.func @transform_7(%arg0: i32) -> (i32, i32) {
    %c0_i32 = arith.constant 0 : i32
    %c0_i32_0 = arith.constant 0 : i32
    %c0_i32_1 = arith.constant 0 : i32
    return %c0_i32, %c0_i32_0 : i32, i32
  }
  func.func @transform_8(%arg0: i32) -> (i32, i32) {
    %c0_i32 = arith.constant 0 : i32
    %c0_i32_0 = arith.constant 0 : i32
    %c0_i32_1 = arith.constant 0 : i32
    return %c0_i32, %c0_i32_0 : i32, i32
  }
  func.func @transform_9(%arg0: i32) -> (i32, i32) {
    %c0_i32 = arith.constant 0 : i32
    %c0_i32_0 = arith.constant 0 : i32
    %c0_i32_1 = arith.constant 0 : i32
    return %c0_i32, %c0_i32_0 : i32, i32
  }
  func.func @transform_10(%arg0: i32) -> (i32, i32) {
    %c0_i32 = arith.constant 0 : i32
    %c0_i32_0 = arith.constant 0 : i32
    %c0_i32_1 = arith.constant 0 : i32
    return %c0_i32, %c0_i32_0 : i32, i32
  }
  func.func @transform_11(%arg0: i32) -> (i32, i32) {
    %c0_i32 = arith.constant 0 : i32
    %c0_i32_0 = arith.constant 0 : i32
    %c0_i32_1 = arith.constant 0 : i32
    return %c0_i32, %c0_i32_0 : i32, i32
  }
  func.func @transform_12(%arg0: i32) -> (i32, i32) {
    %c0_i32 = arith.constant 0 : i32
    %c0_i32_0 = arith.constant 0 : i32
    %c0_i32_1 = arith.constant 0 : i32
    return %c0_i32, %c0_i32_0 : i32, i32
  }
  func.func @transform_13(%arg0: i32) -> (i32, i32) {
    %c0_i32 = arith.constant 0 : i32
    %c0_i32_0 = arith.constant 0 : i32
    %c0_i32_1 = arith.constant 0 : i32
    return %c0_i32, %c0_i32_0 : i32, i32
  }
  func.func @transform_14(%arg0: i32) -> (i32, i32) {
    %c0_i32 = arith.constant 0 : i32
    %c0_i32_0 = arith.constant 0 : i32
    %c0_i32_1 = arith.constant 0 : i32
    return %c0_i32, %c0_i32_0 : i32, i32
  }
  func.func @transform_15(%arg0: i32) -> (i32, i32) {
    %c0_i32 = arith.constant 0 : i32
    %c0_i32_0 = arith.constant 0 : i32
    %c0_i32_1 = arith.constant 0 : i32
    return %c0_i32, %c0_i32_0 : i32, i32
  }
  func.func @transform_16(%arg0: i32) -> (i32, i32) {
    %c0_i32 = arith.constant 0 : i32
    %c0_i32_0 = arith.constant 0 : i32
    %c0_i32_1 = arith.constant 0 : i32
    return %c0_i32, %c0_i32_0 : i32, i32
  }
  func.func @transform_17(%arg0: i32) -> (i32, i32) {
    %c0_i32 = arith.constant 0 : i32
    %c0_i32_0 = arith.constant 0 : i32
    %c0_i32_1 = arith.constant 0 : i32
    return %c0_i32, %c0_i32_0 : i32, i32
  }
  func.func @transform_18(%arg0: i32) -> (i32, i32) {
    %c0_i32 = arith.constant 0 : i32
    %c0_i32_0 = arith.constant 0 : i32
    %c0_i32_1 = arith.constant 0 : i32
    return %c0_i32, %c0_i32_0 : i32, i32
  }
  func.func @transform_19(%arg0: i32) -> (i32, i32) {
    %c0_i32 = arith.constant 0 : i32
    %c0_i32_0 = arith.constant 0 : i32
    %c0_i32_1 = arith.constant 0 : i32
    return %c0_i32, %c0_i32_0 : i32, i32
  }
  func.func @transform_20(%arg0: i32) -> (i32, i32) {
    %c0_i32 = arith.constant 0 : i32
    %c0_i32_0 = arith.constant 0 : i32
    %c0_i32_1 = arith.constant 0 : i32
    return %c0_i32, %c0_i32_0 : i32, i32
  }
  func.func @transform_21(%arg0: i32) -> (i32, i32) {
    %c0_i32 = arith.constant 0 : i32
    %c0_i32_0 = arith.constant 0 : i32
    %c0_i32_1 = arith.constant 0 : i32
    return %c0_i32, %c0_i32_0 : i32, i32
  }
  func.func @transform_22(%arg0: i32) -> (i32, i32) {
    %c0_i32 = arith.constant 0 : i32
    %c0_i32_0 = arith.constant 0 : i32
    %c0_i32_1 = arith.constant 0 : i32
    return %c0_i32, %c0_i32_0 : i32, i32
  }
  func.func @transform_23(%arg0: i32) -> (i32, i32) {
    %c0_i32 = arith.constant 0 : i32
    %c0_i32_0 = arith.constant 0 : i32
    %c0_i32_1 = arith.constant 0 : i32
    return %c0_i32, %c0_i32_0 : i32, i32
  }
  func.func @transform_24(%arg0: i32) -> (i32, i32) {
    %c0_i32 = arith.constant 0 : i32
    %c0_i32_0 = arith.constant 0 : i32
    %c0_i32_1 = arith.constant 0 : i32
    return %c0_i32, %c0_i32_0 : i32, i32
  }
  func.func @transform_25(%arg0: i32) -> (i32, i32) {
    %c0_i32 = arith.constant 0 : i32
    %c0_i32_0 = arith.constant 0 : i32
    %c0_i32_1 = arith.constant 0 : i32
    return %c0_i32, %c0_i32_0 : i32, i32
  }
  func.func @transform_26(%arg0: i32) -> (i32, i32) {
    %c0_i32 = arith.constant 0 : i32
    %c0_i32_0 = arith.constant 0 : i32
    %c0_i32_1 = arith.constant 0 : i32
    return %c0_i32, %c0_i32_0 : i32, i32
  }
  func.func @transform_27(%arg0: i32) -> (i32, i32) {
    %c0_i32 = arith.constant 0 : i32
    %c0_i32_0 = arith.constant 0 : i32
    %c0_i32_1 = arith.constant 0 : i32
    return %c0_i32, %c0_i32_0 : i32, i32
  }
  func.func @transform_28(%arg0: i32) -> (i32, i32) {
    %c0_i32 = arith.constant 0 : i32
    %c0_i32_0 = arith.constant 0 : i32
    %c0_i32_1 = arith.constant 0 : i32
    return %c0_i32, %c0_i32_0 : i32, i32
  }
  func.func @transform_29(%arg0: i32) -> (i32, i32) {
    %c0_i32 = arith.constant 0 : i32
    %c0_i32_0 = arith.constant 0 : i32
    %c0_i32_1 = arith.constant 0 : i32
    return %c0_i32, %c0_i32_0 : i32, i32
  }
  func.func @transform_30(%arg0: i32) -> (i32, i32) {
    %c0_i32 = arith.constant 0 : i32
    %c0_i32_0 = arith.constant 0 : i32
    %c0_i32_1 = arith.constant 0 : i32
    return %c0_i32, %c0_i32_0 : i32, i32
  }
  func.func @transform_31(%arg0: i32) -> (i32, i32, i32) {
    %c0_i32 = arith.constant 0 : i32
    %c0_i32_0 = arith.constant 0 : i32
    %c0_i32_1 = arith.constant 0 : i32
    return %arg0, %c0_i32, %c0_i32_0 : i32, i32, i32
  }
}

</mosaic_0001>

<llo_original>
// kernel: net_forward.1
$region0: #{net_forward.1}
  #allocation0 [shape = 'u32[]', space=smem, size = 0x4, offset = 0x4, fixed_abs, tag = 'smem constant byte address 0x4 - core index']
  #allocation1 [shape = 'u32[72,128]{1,0:T(1,128)}', space=vmem, size = 0x9000, scoped, tag = 'internal scratch']
  %s0 = inlined_call_operand.smem [shape: u32[32], index: -1, kind: input, shape index: {}]
  %s1 = sld [smem:[%s0]]
  %s2 = scalar_lea.smem %s0, 1
  %s3 = sld [smem:[%s2]]
  %s4 = scalar_lea.smem %s0, 2
  %s5 = sld [smem:[%s4]]
  %s6 = scalar_lea.smem %s0, 3
  %s7 = sld [smem:[%s6]]
  %s8 = scalar_lea.smem %s0, 4
  %s9 = sld [smem:[%s8]]
  %s10 = scalar_lea.smem %s0, 5
  %s11 = sld [smem:[%s10]]
  %s12 = scalar_lea.smem %s0, 6
  %s13 = sld [smem:[%s12]]
  %s14 = scalar_lea.smem %s0, 7
  %s15 = sld [smem:[%s14]]
  %s16 = scalar_lea.smem %s0, 8
  %s17 = sld [smem:[%s16]]
  %s18 = scalar_lea.smem %s0, 9
  %s19 = sld [smem:[%s18]]
  %s20 = scalar_lea.smem %s0, 10
  %s21 = sld [smem:[%s20]]
  %s22 = scalar_lea.smem %s0, 11
  %s23 = sld [smem:[%s22]]
  %s24 = scalar_lea.smem %s0, 12
  %s25 = sld [smem:[%s24]]
  %s26 = scalar_lea.smem %s0, 13
  %s27 = sld [smem:[%s26]]
  %s28 = scalar_lea.smem %s0, 14
  %s29 = sld [smem:[%s28]]
  %s30 = scalar_lea.smem %s0, 15
  %s31 = sld [smem:[%s30]]
  %s32 = scalar_lea.smem %s0, 16
  %s33 = sld [smem:[%s32]]
  %s34 = scalar_lea.smem %s0, 17
  %s35 = sld [smem:[%s34]]
  %s36 = scalar_lea.smem %s0, 18
  %s37 = sld [smem:[%s36]]
  %s38 = scalar_lea.smem %s0, 19
  %s39 = sld [smem:[%s38]]
  %s40 = scalar_lea.smem %s0, 20
  %s41 = sld [smem:[%s40]]
  %s42 = scalar_lea.smem %s0, 21
  %s43 = sld [smem:[%s42]]
  %s44 = scalar_lea.smem %s0, 22
  %s45 = sld [smem:[%s44]]
  %s46 = scalar_lea.smem %s0, 23
  %s47 = sld [smem:[%s46]]
  %s48 = scalar_lea.smem %s0, 24
  %s49 = sld [smem:[%s48]]
  %s50 = scalar_lea.smem %s0, 25
  %s51 = sld [smem:[%s50]]
  %s52 = scalar_lea.smem %s0, 26
  %s53 = sld [smem:[%s52]]
  %s54 = scalar_lea.smem %s0, 27
  %s55 = sld [smem:[%s54]]
  %s56 = scalar_lea.smem %s0, 28
  %s57 = sld [smem:[%s56]]
  %s58 = scalar_lea.smem %s0, 29
  %s59 = sld [smem:[%s58]]
  %s60 = scalar_lea.smem %s0, 30
  %s61 = sld [smem:[%s60]]
  %s62 = scalar_lea.smem %s0, 31
  %s63 = sld [smem:[%s62]]
  %s64 = sld [smem:[#allocation0]]
  $region157: #{net_forward.1} parent=0
    _
  %s66 = ssub.s32 1, %s64
  %s67 = scalar_select 0, %s66, %s64
  loop: start=0, step=1, limit=4
  $region2: #{net_forward.1} parent=0 // loop_pre_header
    _
  $region3: #{net_forward.1} parent=0 // loop_header
    %s69 = sphi 0, %s73
    %p70 = scmp.ge.s32.totalorder %s69, 4
    %s79 = sphi 0, %s81
    %s82 = sphi 0, %s79
    %s83 = sphi 0, %s82
    %s99 = sphi 0, %s83
    %s103 = sphi 0, %s103
    %s105 = sphi 0, %s103
    %s106 = sphi 0, %s105
    %s120 = sphi 0, %s106
    %s124 = sphi 0, %s124
    %s126 = sphi 0, %s124
    %s127 = sphi 0, %s126
    %s141 = sphi 0, %s127
    %s145 = sphi 0, %s145
    %s147 = sphi 0, %s145
    %s148 = sphi 0, %s147
    %s162 = sphi 0, %s148
    %s166 = sphi 0, %s166
    %s168 = sphi 0, %s166
    %s169 = sphi 0, %s168
    %s183 = sphi 0, %s169
    %s187 = sphi 0, %s187
    %s189 = sphi 0, %s187
    %s190 = sphi 0, %s189
    %s204 = sphi 0, %s190
    %s208 = sphi 0, %s208
    %s210 = sphi 0, %s208
    %s211 = sphi 0, %s210
    %s225 = sphi 0, %s211
    %s229 = sphi 0, %s229
    %s231 = sphi 0, %s229
    %s232 = sphi 0, %s231
    %s246 = sphi 0, %s232
    %s250 = sphi 0, %s250
    %s252 = sphi 0, %s250
    %s253 = sphi 0, %s252
    %s267 = sphi 0, %s253
    %s271 = sphi 0, %s271
    %s273 = sphi 0, %s271
    %s274 = sphi 0, %s273
    %s288 = sphi 0, %s274
    %s292 = sphi 0, %s292
    %s294 = sphi 0, %s292
    %s295 = sphi 0, %s294
    %s309 = sphi 0, %s295
    %s313 = sphi 0, %s313
    %s315 = sphi 0, %s313
    %s316 = sphi 0, %s315
    %s330 = sphi 0, %s316
    %s334 = sphi 0, %s334
    %s336 = sphi 0, %s334
    %s337 = sphi 0, %s336
    %s351 = sphi 0, %s337
    %s355 = sphi 0, %s355
    %s357 = sphi 0, %s355
    %s358 = sphi 0, %s357
    %s372 = sphi 0, %s358
    %s376 = sphi 0, %s376
    %s378 = sphi 0, %s376
    %s379 = sphi 0, %s378
    %s393 = sphi 0, %s379
    %s397 = sphi 0, %s397
    %s399 = sphi 0, %s397
    %s400 = sphi 0, %s399
    %s414 = sphi 0, %s400
    %s418 = sphi 0, %s418
    %s420 = sphi 0, %s418
    %s421 = sphi 0, %s420
    %s435 = sphi 0, %s421
    %s439 = sphi 0, %s439
    %s441 = sphi 0, %s439
    %s442 = sphi 0, %s441
    %s456 = sphi 0, %s442
    %s460 = sphi 0, %s460
    %s462 = sphi 0, %s460
    %s463 = sphi 0, %s462
    %s477 = sphi 0, %s463
    %s481 = sphi 0, %s481
    %s483 = sphi 0, %s481
    %s484 = sphi 0, %s483
    %s498 = sphi 0, %s484
    %s502 = sphi 0, %s502
    %s504 = sphi 0, %s502
    %s505 = sphi 0, %s504
    %s519 = sphi 0, %s505
    %s523 = sphi 0, %s523
    %s525 = sphi 0, %s523
    %s526 = sphi 0, %s525
    %s540 = sphi 0, %s526
    %s544 = sphi 0, %s544
    %s546 = sphi 0, %s544
    %s547 = sphi 0, %s546
    %s561 = sphi 0, %s547
    %s565 = sphi 0, %s565
    %s567 = sphi 0, %s565
    %s568 = sphi 0, %s567
    %s582 = sphi 0, %s568
    %s586 = sphi 0, %s586
    %s588 = sphi 0, %s586
    %s589 = sphi 0, %s588
    %s603 = sphi 0, %s589
    %s607 = sphi 0, %s607
    %s609 = sphi 0, %s607
    %s610 = sphi 0, %s609
    %s624 = sphi 0, %s610
    %s628 = sphi 0, %s628
    %s630 = sphi 0, %s628
    %s631 = sphi 0, %s630
    %s645 = sphi 0, %s631
    %s649 = sphi 0, %s649
    %s651 = sphi 0, %s649
    %s652 = sphi 0, %s651
    %s666 = sphi 0, %s652
    %s670 = sphi 0, %s670
    %s672 = sphi 0, %s670
    %s673 = sphi 0, %s672
    %s687 = sphi 0, %s673
    %s691 = sphi 0, %s691
    %s693 = sphi 0, %s691
    %s694 = sphi 0, %s693
    %s708 = sphi 0, %s694
    %s712 = sphi 0, %s712
    %s714 = sphi 0, %s712
    %s715 = sphi 0, %s714
    %s729 = sphi 0, %s715
    %s735 = sphi 0, %s737
    %s738 = sphi 0, %s735
    %s739 = sphi 0, %s738
    %s755 = sphi 0, %s739
  $region4: #{net_forward.1} parent=0 // loop_header_branch
    %72 = sbr.rel (%p70) target = $region8
  $region5: #{net_forward.1} parent=0 // loop_body
    %s74 = ssub.s32 %s69, 1
    %s75 = ssub.s32 %s69, 2
    %s76 = sadd.s32 %s69, 1
    %s77 = ssub.s32 %s69, %s76
    %p78 = scmp.eq.s32.totalorder %s77, 0
    %s80 = sadd.s32 %s79, 1
    %s81 = scalar_select %p78, %s79, %s80
    %p84 = pneg %p78
    %p85 = scmp.eq.s32.totalorder %s69, 1
    %p86 = por %p84, %p85
    %p87 = scmp.ne.s32.totalorder %s79, %s82
    %p88 = scmp.eq.s32.totalorder %s69, 0
    %p89 = por %p87, %p88
    %p90 = scmp.ne.s32.totalorder %s79, %s82
    %p91 = scmp.eq.s32.totalorder %s74, 1
    %p92 = por %p90, %p91
    %p93 = scmp.ne.s32.totalorder %s82, %s83
    %p94 = scmp.eq.s32.totalorder %s74, 0
    %p95 = por %p93, %p94
    %p96 = scmp.ne.s32.totalorder %s82, %s83
    %p97 = scmp.eq.s32.totalorder %s75, 1
    %p98 = por %p96, %p97
    %p100 = scmp.ne.s32.totalorder %s83, %s99
    %p101 = scmp.eq.s32.totalorder %s75, 0
    %p102 = por %p100, %p101
    %s104 = sadd.s32 %s103, 1
    %p107 = scmp.eq.s32.totalorder %s69, 1
    %p108 = scmp.ne.s32.totalorder %s103, %s105
    %p109 = scmp.eq.s32.totalorder %s69, 0
    %p110 = por %p108, %p109
    %p111 = scmp.ne.s32.totalorder %s103, %s105
    %p112 = scmp.eq.s32.totalorder %s74, 1
    %p113 = por %p111, %p112
    %p114 = scmp.ne.s32.totalorder %s105, %s106
    %p115 = scmp.eq.s32.totalorder %s74, 0
    %p116 = por %p114, %p115
    %p117 = scmp.ne.s32.totalorder %s105, %s106
    %p118 = scmp.eq.s32.totalorder %s75, 1
    %p119 = por %p117, %p118
    %p121 = scmp.ne.s32.totalorder %s106, %s120
    %p122 = scmp.eq.s32.totalorder %s75, 0
    %p123 = por %p121, %p122
    %s125 = sadd.s32 %s124, 1
    %p128 = scmp.eq.s32.totalorder %s69, 1
    %p129 = scmp.ne.s32.totalorder %s124, %s126
    %p130 = scmp.eq.s32.totalorder %s69, 0
    %p131 = por %p129, %p130
    %p132 = scmp.ne.s32.totalorder %s124, %s126
    %p133 = scmp.eq.s32.totalorder %s74, 1
    %p134 = por %p132, %p133
    %p135 = scmp.ne.s32.totalorder %s126, %s127
    %p136 = scmp.eq.s32.totalorder %s74, 0
    %p137 = por %p135, %p136
    %p138 = scmp.ne.s32.totalorder %s126, %s127
    %p139 = scmp.eq.s32.totalorder %s75, 1
    %p140 = por %p138, %p139
    %p142 = scmp.ne.s32.totalorder %s127, %s141
    %p143 = scmp.eq.s32.totalorder %s75, 0
    %p144 = por %p142, %p143
    %s146 = sadd.s32 %s145, 1
    %p149 = scmp.eq.s32.totalorder %s69, 1
    %p150 = scmp.ne.s32.totalorder %s145, %s147
    %p151 = scmp.eq.s32.totalorder %s69, 0
    %p152 = por %p150, %p151
    %p153 = scmp.ne.s32.totalorder %s145, %s147
    %p154 = scmp.eq.s32.totalorder %s74, 1
    %p155 = por %p153, %p154
    %p156 = scmp.ne.s32.totalorder %s147, %s148
    %p157 = scmp.eq.s32.totalorder %s74, 0
    %p158 = por %p156, %p157
    %p159 = scmp.ne.s32.totalorder %s147, %s148
    %p160 = scmp.eq.s32.totalorder %s75, 1
    %p161 = por %p159, %p160
    %p163 = scmp.ne.s32.totalorder %s148, %s162
    %p164 = scmp.eq.s32.totalorder %s75, 0
    %p165 = por %p163, %p164
    %s167 = sadd.s32 %s166, 1
    %p170 = scmp.eq.s32.totalorder %s69, 1
    %p171 = scmp.ne.s32.totalorder %s166, %s168
    %p172 = scmp.eq.s32.totalorder %s69, 0
    %p173 = por %p171, %p172
    %p174 = scmp.ne.s32.totalorder %s166, %s168
    %p175 = scmp.eq.s32.totalorder %s74, 1
    %p176 = por %p174, %p175
    %p177 = scmp.ne.s32.totalorder %s168, %s169
    %p178 = scmp.eq.s32.totalorder %s74, 0
    %p179 = por %p177, %p178
    %p180 = scmp.ne.s32.totalorder %s168, %s169
    %p181 = scmp.eq.s32.totalorder %s75, 1
    %p182 = por %p180, %p181
    %p184 = scmp.ne.s32.totalorder %s169, %s183
    %p185 = scmp.eq.s32.totalorder %s75, 0
    %p186 = por %p184, %p185
    %s188 = sadd.s32 %s187, 1
    %p191 = scmp.eq.s32.totalorder %s69, 1
    %p192 = scmp.ne.s32.totalorder %s187, %s189
    %p193 = scmp.eq.s32.totalorder %s69, 0
    %p194 = por %p192, %p193
    %p195 = scmp.ne.s32.totalorder %s187, %s189
    %p196 = scmp.eq.s32.totalorder %s74, 1
    %p197 = por %p195, %p196
    %p198 = scmp.ne.s32.totalorder %s189, %s190
    %p199 = scmp.eq.s32.totalorder %s74, 0
    %p200 = por %p198, %p199
    %p201 = scmp.ne.s32.totalorder %s189, %s190
    %p202 = scmp.eq.s32.totalorder %s75, 1
    %p203 = por %p201, %p202
    %p205 = scmp.ne.s32.totalorder %s190, %s204
    %p206 = scmp.eq.s32.totalorder %s75, 0
    %p207 = por %p205, %p206
    %s209 = sadd.s32 %s208, 1
    %p212 = scmp.eq.s32.totalorder %s69, 1
    %p213 = scmp.ne.s32.totalorder %s208, %s210
    %p214 = scmp.eq.s32.totalorder %s69, 0
    %p215 = por %p213, %p214
    %p216 = scmp.ne.s32.totalorder %s208, %s210
    %p217 = scmp.eq.s32.totalorder %s74, 1
    %p218 = por %p216, %p217
    %p219 = scmp.ne.s32.totalorder %s210, %s211
    %p220 = scmp.eq.s32.totalorder %s74, 0
    %p221 = por %p219, %p220
    %p222 = scmp.ne.s32.totalorder %s210, %s211
    %p223 = scmp.eq.s32.totalorder %s75, 1
    %p224 = por %p222, %p223
    %p226 = scmp.ne.s32.totalorder %s211, %s225
    %p227 = scmp.eq.s32.totalorder %s75, 0
    %p228 = por %p226, %p227
    %s230 = sadd.s32 %s229, 1
    %p233 = scmp.eq.s32.totalorder %s69, 1
    %p234 = scmp.ne.s32.totalorder %s229, %s231
    %p235 = scmp.eq.s32.totalorder %s69, 0
    %p236 = por %p234, %p235
    %p237 = scmp.ne.s32.totalorder %s229, %s231
    %p238 = scmp.eq.s32.totalorder %s74, 1
    %p239 = por %p237, %p238
    %p240 = scmp.ne.s32.totalorder %s231, %s232
    %p241 = scmp.eq.s32.totalorder %s74, 0
    %p242 = por %p240, %p241
    %p243 = scmp.ne.s32.totalorder %s231, %s232
    %p244 = scmp.eq.s32.totalorder %s75, 1
    %p245 = por %p243, %p244
    %p247 = scmp.ne.s32.totalorder %s232, %s246
    %p248 = scmp.eq.s32.totalorder %s75, 0
    %p249 = por %p247, %p248
    %s251 = sadd.s32 %s250, 1
    %p254 = scmp.eq.s32.totalorder %s69, 1
    %p255 = scmp.ne.s32.totalorder %s250, %s252
    %p256 = scmp.eq.s32.totalorder %s69, 0
    %p257 = por %p255, %p256
    %p258 = scmp.ne.s32.totalorder %s250, %s252
    %p259 = scmp.eq.s32.totalorder %s74, 1
    %p260 = por %p258, %p259
    %p261 = scmp.ne.s32.totalorder %s252, %s253
    %p262 = scmp.eq.s32.totalorder %s74, 0
    %p263 = por %p261, %p262
    %p264 = scmp.ne.s32.totalorder %s252, %s253
    %p265 = scmp.eq.s32.totalorder %s75, 1
    %p266 = por %p264, %p265
    %p268 = scmp.ne.s32.totalorder %s253, %s267
    %p269 = scmp.eq.s32.totalorder %s75, 0
    %p270 = por %p268, %p269
    %s272 = sadd.s32 %s271, 1
    %p275 = scmp.eq.s32.totalorder %s69, 1
    %p276 = scmp.ne.s32.totalorder %s271, %s273
    %p277 = scmp.eq.s32.totalorder %s69, 0
    %p278 = por %p276, %p277
    %p279 = scmp.ne.s32.totalorder %s271, %s273
    %p280 = scmp.eq.s32.totalorder %s74, 1
    %p281 = por %p279, %p280
    %p282 = scmp.ne.s32.totalorder %s273, %s274
    %p283 = scmp.eq.s32.totalorder %s74, 0
    %p284 = por %p282, %p283
    %p285 = scmp.ne.s32.totalorder %s273, %s274
    %p286 = scmp.eq.s32.totalorder %s75, 1
    %p287 = por %p285, %p286
    %p289 = scmp.ne.s32.totalorder %s274, %s288
    %p290 = scmp.eq.s32.totalorder %s75, 0
    %p291 = por %p289, %p290
    %s293 = sadd.s32 %s292, 1
    %p296 = scmp.eq.s32.totalorder %s69, 1
    %p297 = scmp.ne.s32.totalorder %s292, %s294
    %p298 = scmp.eq.s32.totalorder %s69, 0
    %p299 = por %p297, %p298
    %p300 = scmp.ne.s32.totalorder %s292, %s294
    %p301 = scmp.eq.s32.totalorder %s74, 1
    %p302 = por %p300, %p301
    %p303 = scmp.ne.s32.totalorder %s294, %s295
    %p304 = scmp.eq.s32.totalorder %s74, 0
    %p305 = por %p303, %p304
    %p306 = scmp.ne.s32.totalorder %s294, %s295
    %p307 = scmp.eq.s32.totalorder %s75, 1
    %p308 = por %p306, %p307
    %p310 = scmp.ne.s32.totalorder %s295, %s309
    %p311 = scmp.eq.s32.totalorder %s75, 0
    %p312 = por %p310, %p311
    %s314 = sadd.s32 %s313, 1
    %p317 = scmp.eq.s32.totalorder %s69, 1
    %p318 = scmp.ne.s32.totalorder %s313, %s315
    %p319 = scmp.eq.s32.totalorder %s69, 0
    %p320 = por %p318, %p319
    %p321 = scmp.ne.s32.totalorder %s313, %s315
    %p322 = scmp.eq.s32.totalorder %s74, 1
    %p323 = por %p321, %p322
    %p324 = scmp.ne.s32.totalorder %s315, %s316
    %p325 = scmp.eq.s32.totalorder %s74, 0
    %p326 = por %p324, %p325
    %p327 = scmp.ne.s32.totalorder %s315, %s316
    %p328 = scmp.eq.s32.totalorder %s75, 1
    %p329 = por %p327, %p328
    %p331 = scmp.ne.s32.totalorder %s316, %s330
    %p332 = scmp.eq.s32.totalorder %s75, 0
    %p333 = por %p331, %p332
    %s335 = sadd.s32 %s334, 1
    %p338 = scmp.eq.s32.totalorder %s69, 1
    %p339 = scmp.ne.s32.totalorder %s334, %s336
    %p340 = scmp.eq.s32.totalorder %s69, 0
    %p341 = por %p339, %p340
    %p342 = scmp.ne.s32.totalorder %s334, %s336
    %p343 = scmp.eq.s32.totalorder %s74, 1
    %p344 = por %p342, %p343
    %p345 = scmp.ne.s32.totalorder %s336, %s337
    %p346 = scmp.eq.s32.totalorder %s74, 0
    %p347 = por %p345, %p346
    %p348 = scmp.ne.s32.totalorder %s336, %s337
    %p349 = scmp.eq.s32.totalorder %s75, 1
    %p350 = por %p348, %p349
    %p352 = scmp.ne.s32.totalorder %s337, %s351
    %p353 = scmp.eq.s32.totalorder %s75, 0
    %p354 = por %p352, %p353
    %s356 = sadd.s32 %s355, 1
    %p359 = scmp.eq.s32.totalorder %s69, 1
    %p360 = scmp.ne.s32.totalorder %s355, %s357
    %p361 = scmp.eq.s32.totalorder %s69, 0
    %p362 = por %p360, %p361
    %p363 = scmp.ne.s32.totalorder %s355, %s357
    %p364 = scmp.eq.s32.totalorder %s74, 1
    %p365 = por %p363, %p364
    %p366 = scmp.ne.s32.totalorder %s357, %s358
    %p367 = scmp.eq.s32.totalorder %s74, 0
    %p368 = por %p366, %p367
    %p369 = scmp.ne.s32.totalorder %s357, %s358
    %p370 = scmp.eq.s32.totalorder %s75, 1
    %p371 = por %p369, %p370
    %p373 = scmp.ne.s32.totalorder %s358, %s372
    %p374 = scmp.eq.s32.totalorder %s75, 0
    %p375 = por %p373, %p374
    %s377 = sadd.s32 %s376, 1
    %p380 = scmp.eq.s32.totalorder %s69, 1
    %p381 = scmp.ne.s32.totalorder %s376, %s378
    %p382 = scmp.eq.s32.totalorder %s69, 0
    %p383 = por %p381, %p382
    %p384 = scmp.ne.s32.totalorder %s376, %s378
    %p385 = scmp.eq.s32.totalorder %s74, 1
    %p386 = por %p384, %p385
    %p387 = scmp.ne.s32.totalorder %s378, %s379
    %p388 = scmp.eq.s32.totalorder %s74, 0
    %p389 = por %p387, %p388
    %p390 = scmp.ne.s32.totalorder %s378, %s379
    %p391 = scmp.eq.s32.totalorder %s75, 1
    %p392 = por %p390, %p391
    %p394 = scmp.ne.s32.totalorder %s379, %s393
    %p395 = scmp.eq.s32.totalorder %s75, 0
    %p396 = por %p394, %p395
    %s398 = sadd.s32 %s397, 1
    %p401 = scmp.eq.s32.totalorder %s69, 1
    %p402 = scmp.ne.s32.totalorder %s397, %s399
    %p403 = scmp.eq.s32.totalorder %s69, 0
    %p404 = por %p402, %p403
    %p405 = scmp.ne.s32.totalorder %s397, %s399
    %p406 = scmp.eq.s32.totalorder %s74, 1
    %p407 = por %p405, %p406
    %p408 = scmp.ne.s32.totalorder %s399, %s400
    %p409 = scmp.eq.s32.totalorder %s74, 0
    %p410 = por %p408, %p409
    %p411 = scmp.ne.s32.totalorder %s399, %s400
    %p412 = scmp.eq.s32.totalorder %s75, 1
    %p413 = por %p411, %p412
    %p415 = scmp.ne.s32.totalorder %s400, %s414
    %p416 = scmp.eq.s32.totalorder %s75, 0
    %p417 = por %p415, %p416
    %s419 = sadd.s32 %s418, 1
    %p422 = scmp.eq.s32.totalorder %s69, 1
    %p423 = scmp.ne.s32.totalorder %s418, %s420
    %p424 = scmp.eq.s32.totalorder %s69, 0
    %p425 = por %p423, %p424
    %p426 = scmp.ne.s32.totalorder %s418, %s420
    %p427 = scmp.eq.s32.totalorder %s74, 1
    %p428 = por %p426, %p427
    %p429 = scmp.ne.s32.totalorder %s420, %s421
    %p430 = scmp.eq.s32.totalorder %s74, 0
    %p431 = por %p429, %p430
    %p432 = scmp.ne.s32.totalorder %s420, %s421
    %p433 = scmp.eq.s32.totalorder %s75, 1
    %p434 = por %p432, %p433
    %p436 = scmp.ne.s32.totalorder %s421, %s435
    %p437 = scmp.eq.s32.totalorder %s75, 0
    %p438 = por %p436, %p437
    %s440 = sadd.s32 %s439, 1
    %p443 = scmp.eq.s32.totalorder %s69, 1
    %p444 = scmp.ne.s32.totalorder %s439, %s441
    %p445 = scmp.eq.s32.totalorder %s69, 0
    %p446 = por %p444, %p445
    %p447 = scmp.ne.s32.totalorder %s439, %s441
    %p448 = scmp.eq.s32.totalorder %s74, 1
    %p449 = por %p447, %p448
    %p450 = scmp.ne.s32.totalorder %s441, %s442
    %p451 = scmp.eq.s32.totalorder %s74, 0
    %p452 = por %p450, %p451
    %p453 = scmp.ne.s32.totalorder %s441, %s442
    %p454 = scmp.eq.s32.totalorder %s75, 1
    %p455 = por %p453, %p454
    %p457 = scmp.ne.s32.totalorder %s442, %s456
    %p458 = scmp.eq.s32.totalorder %s75, 0
    %p459 = por %p457, %p458
    %s461 = sadd.s32 %s460, 1
    %p464 = scmp.eq.s32.totalorder %s69, 1
    %p465 = scmp.ne.s32.totalorder %s460, %s462
    %p466 = scmp.eq.s32.totalorder %s69, 0
    %p467 = por %p465, %p466
    %p468 = scmp.ne.s32.totalorder %s460, %s462
    %p469 = scmp.eq.s32.totalorder %s74, 1
    %p470 = por %p468, %p469
    %p471 = scmp.ne.s32.totalorder %s462, %s463
    %p472 = scmp.eq.s32.totalorder %s74, 0
    %p473 = por %p471, %p472
    %p474 = scmp.ne.s32.totalorder %s462, %s463
    %p475 = scmp.eq.s32.totalorder %s75, 1
    %p476 = por %p474, %p475
    %p478 = scmp.ne.s32.totalorder %s463, %s477
    %p479 = scmp.eq.s32.totalorder %s75, 0
    %p480 = por %p478, %p479
    %s482 = sadd.s32 %s481, 1
    %p485 = scmp.eq.s32.totalorder %s69, 1
    %p486 = scmp.ne.s32.totalorder %s481, %s483
    %p487 = scmp.eq.s32.totalorder %s69, 0
    %p488 = por %p486, %p487
    %p489 = scmp.ne.s32.totalorder %s481, %s483
    %p490 = scmp.eq.s32.totalorder %s74, 1
    %p491 = por %p489, %p490
    %p492 = scmp.ne.s32.totalorder %s483, %s484
    %p493 = scmp.eq.s32.totalorder %s74, 0
    %p494 = por %p492, %p493
    %p495 = scmp.ne.s32.totalorder %s483, %s484
    %p496 = scmp.eq.s32.totalorder %s75, 1
    %p497 = por %p495, %p496
    %p499 = scmp.ne.s32.totalorder %s484, %s498
    %p500 = scmp.eq.s32.totalorder %s75, 0
    %p501 = por %p499, %p500
    %s503 = sadd.s32 %s502, 1
    %p506 = scmp.eq.s32.totalorder %s69, 1
    %p507 = scmp.ne.s32.totalorder %s502, %s504
    %p508 = scmp.eq.s32.totalorder %s69, 0
    %p509 = por %p507, %p508
    %p510 = scmp.ne.s32.totalorder %s502, %s504
    %p511 = scmp.eq.s32.totalorder %s74, 1
    %p512 = por %p510, %p511
    %p513 = scmp.ne.s32.totalorder %s504, %s505
    %p514 = scmp.eq.s32.totalorder %s74, 0
    %p515 = por %p513, %p514
    %p516 = scmp.ne.s32.totalorder %s504, %s505
    %p517 = scmp.eq.s32.totalorder %s75, 1
    %p518 = por %p516, %p517
    %p520 = scmp.ne.s32.totalorder %s505, %s519
    %p521 = scmp.eq.s32.totalorder %s75, 0
    %p522 = por %p520, %p521
    %s524 = sadd.s32 %s523, 1
    %p527 = scmp.eq.s32.totalorder %s69, 1
    %p528 = scmp.ne.s32.totalorder %s523, %s525
    %p529 = scmp.eq.s32.totalorder %s69, 0
    %p530 = por %p528, %p529
    %p531 = scmp.ne.s32.totalorder %s523, %s525
    %p532 = scmp.eq.s32.totalorder %s74, 1
    %p533 = por %p531, %p532
    %p534 = scmp.ne.s32.totalorder %s525, %s526
    %p535 = scmp.eq.s32.totalorder %s74, 0
    %p536 = por %p534, %p535
    %p537 = scmp.ne.s32.totalorder %s525, %s526
    %p538 = scmp.eq.s32.totalorder %s75, 1
    %p539 = por %p537, %p538
    %p541 = scmp.ne.s32.totalorder %s526, %s540
    %p542 = scmp.eq.s32.totalorder %s75, 0
    %p543 = por %p541, %p542
    %s545 = sadd.s32 %s544, 1
    %p548 = scmp.eq.s32.totalorder %s69, 1
    %p549 = scmp.ne.s32.totalorder %s544, %s546
    %p550 = scmp.eq.s32.totalorder %s69, 0
    %p551 = por %p549, %p550
    %p552 = scmp.ne.s32.totalorder %s544, %s546
    %p553 = scmp.eq.s32.totalorder %s74, 1
    %p554 = por %p552, %p553
    %p555 = scmp.ne.s32.totalorder %s546, %s547
    %p556 = scmp.eq.s32.totalorder %s74, 0
    %p557 = por %p555, %p556
    %p558 = scmp.ne.s32.totalorder %s546, %s547
    %p559 = scmp.eq.s32.totalorder %s75, 1
    %p560 = por %p558, %p559
    %p562 = scmp.ne.s32.totalorder %s547, %s561
    %p563 = scmp.eq.s32.totalorder %s75, 0
    %p564 = por %p562, %p563
    %s566 = sadd.s32 %s565, 1
    %p569 = scmp.eq.s32.totalorder %s69, 1
    %p570 = scmp.ne.s32.totalorder %s565, %s567
    %p571 = scmp.eq.s32.totalorder %s69, 0
    %p572 = por %p570, %p571
    %p573 = scmp.ne.s32.totalorder %s565, %s567
    %p574 = scmp.eq.s32.totalorder %s74, 1
    %p575 = por %p573, %p574
    %p576 = scmp.ne.s32.totalorder %s567, %s568
    %p577 = scmp.eq.s32.totalorder %s74, 0
    %p578 = por %p576, %p577
    %p579 = scmp.ne.s32.totalorder %s567, %s568
    %p580 = scmp.eq.s32.totalorder %s75, 1
    %p581 = por %p579, %p580
    %p583 = scmp.ne.s32.totalorder %s568, %s582
    %p584 = scmp.eq.s32.totalorder %s75, 0
    %p585 = por %p583, %p584
    %s587 = sadd.s32 %s586, 1
    %p590 = scmp.eq.s32.totalorder %s69, 1
    %p591 = scmp.ne.s32.totalorder %s586, %s588
    %p592 = scmp.eq.s32.totalorder %s69, 0
    %p593 = por %p591, %p592
    %p594 = scmp.ne.s32.totalorder %s586, %s588
    %p595 = scmp.eq.s32.totalorder %s74, 1
    %p596 = por %p594, %p595
    %p597 = scmp.ne.s32.totalorder %s588, %s589
    %p598 = scmp.eq.s32.totalorder %s74, 0
    %p599 = por %p597, %p598
    %p600 = scmp.ne.s32.totalorder %s588, %s589
    %p601 = scmp.eq.s32.totalorder %s75, 1
    %p602 = por %p600, %p601
    %p604 = scmp.ne.s32.totalorder %s589, %s603
    %p605 = scmp.eq.s32.totalorder %s75, 0
    %p606 = por %p604, %p605
    %s608 = sadd.s32 %s607, 1
    %p611 = scmp.eq.s32.totalorder %s69, 1
    %p612 = scmp.ne.s32.totalorder %s607, %s609
    %p613 = scmp.eq.s32.totalorder %s69, 0
    %p614 = por %p612, %p613
    %p615 = scmp.ne.s32.totalorder %s607, %s609
    %p616 = scmp.eq.s32.totalorder %s74, 1
    %p617 = por %p615, %p616
    %p618 = scmp.ne.s32.totalorder %s609, %s610
    %p619 = scmp.eq.s32.totalorder %s74, 0
    %p620 = por %p618, %p619
    %p621 = scmp.ne.s32.totalorder %s609, %s610
    %p622 = scmp.eq.s32.totalorder %s75, 1
    %p623 = por %p621, %p622
    %p625 = scmp.ne.s32.totalorder %s610, %s624
    %p626 = scmp.eq.s32.totalorder %s75, 0
    %p627 = por %p625, %p626
    %s629 = sadd.s32 %s628, 1
    %p632 = scmp.eq.s32.totalorder %s69, 1
    %p633 = scmp.ne.s32.totalorder %s628, %s630
    %p634 = scmp.eq.s32.totalorder %s69, 0
    %p635 = por %p633, %p634
    %p636 = scmp.ne.s32.totalorder %s628, %s630
    %p637 = scmp.eq.s32.totalorder %s74, 1
    %p638 = por %p636, %p637
    %p639 = scmp.ne.s32.totalorder %s630, %s631
    %p640 = scmp.eq.s32.totalorder %s74, 0
    %p641 = por %p639, %p640
    %p642 = scmp.ne.s32.totalorder %s630, %s631
    %p643 = scmp.eq.s32.totalorder %s75, 1
    %p644 = por %p642, %p643
    %p646 = scmp.ne.s32.totalorder %s631, %s645
    %p647 = scmp.eq.s32.totalorder %s75, 0
    %p648 = por %p646, %p647
    %s650 = sadd.s32 %s649, 1
    %p653 = scmp.eq.s32.totalorder %s69, 1
    %p654 = scmp.ne.s32.totalorder %s649, %s651
    %p655 = scmp.eq.s32.totalorder %s69, 0
    %p656 = por %p654, %p655
    %p657 = scmp.ne.s32.totalorder %s649, %s651
    %p658 = scmp.eq.s32.totalorder %s74, 1
    %p659 = por %p657, %p658
    %p660 = scmp.ne.s32.totalorder %s651, %s652
    %p661 = scmp.eq.s32.totalorder %s74, 0
    %p662 = por %p660, %p661
    %p663 = scmp.ne.s32.totalorder %s651, %s652
    %p664 = scmp.eq.s32.totalorder %s75, 1
    %p665 = por %p663, %p664
    %p667 = scmp.ne.s32.totalorder %s652, %s666
    %p668 = scmp.eq.s32.totalorder %s75, 0
    %p669 = por %p667, %p668
    %s671 = sadd.s32 %s670, 1
    %p674 = scmp.eq.s32.totalorder %s69, 1
    %p675 = scmp.ne.s32.totalorder %s670, %s672
    %p676 = scmp.eq.s32.totalorder %s69, 0
    %p677 = por %p675, %p676
    %p678 = scmp.ne.s32.totalorder %s670, %s672
    %p679 = scmp.eq.s32.totalorder %s74, 1
    %p680 = por %p678, %p679
    %p681 = scmp.ne.s32.totalorder %s672, %s673
    %p682 = scmp.eq.s32.totalorder %s74, 0
    %p683 = por %p681, %p682
    %p684 = scmp.ne.s32.totalorder %s672, %s673
    %p685 = scmp.eq.s32.totalorder %s75, 1
    %p686 = por %p684, %p685
    %p688 = scmp.ne.s32.totalorder %s673, %s687
    %p689 = scmp.eq.s32.totalorder %s75, 0
    %p690 = por %p688, %p689
    %s692 = sadd.s32 %s691, 1
    %p695 = scmp.eq.s32.totalorder %s69, 1
    %p696 = scmp.ne.s32.totalorder %s691, %s693
    %p697 = scmp.eq.s32.totalorder %s69, 0
    %p698 = por %p696, %p697
    %p699 = scmp.ne.s32.totalorder %s691, %s693
    %p700 = scmp.eq.s32.totalorder %s74, 1
    %p701 = por %p699, %p700
    %p702 = scmp.ne.s32.totalorder %s693, %s694
    %p703 = scmp.eq.s32.totalorder %s74, 0
    %p704 = por %p702, %p703
    %p705 = scmp.ne.s32.totalorder %s693, %s694
    %p706 = scmp.eq.s32.totalorder %s75, 1
    %p707 = por %p705, %p706
    %p709 = scmp.ne.s32.totalorder %s694, %s708
    %p710 = scmp.eq.s32.totalorder %s75, 0
    %p711 = por %p709, %p710
    %s713 = sadd.s32 %s712, 1
    %p716 = scmp.eq.s32.totalorder %s69, 1
    %p717 = scmp.ne.s32.totalorder %s712, %s714
    %p718 = scmp.eq.s32.totalorder %s69, 0
    %p719 = por %p717, %p718
    %p720 = scmp.ne.s32.totalorder %s712, %s714
    %p721 = scmp.eq.s32.totalorder %s74, 1
    %p722 = por %p720, %p721
    %p723 = scmp.ne.s32.totalorder %s714, %s715
    %p724 = scmp.eq.s32.totalorder %s74, 0
    %p725 = por %p723, %p724
    %p726 = scmp.ne.s32.totalorder %s714, %s715
    %p727 = scmp.eq.s32.totalorder %s75, 1
    %p728 = por %p726, %p727
    %p730 = scmp.ne.s32.totalorder %s715, %s729
    %p731 = scmp.eq.s32.totalorder %s75, 0
    %p732 = por %p730, %p731
    %s733 = ssub.s32 %s69, %s76
    %p734 = scmp.eq.s32.totalorder %s733, 0
    %s736 = sadd.s32 %s735, 1
    %s737 = scalar_select %p734, %s735, %s736
    %p740 = pneg %p734
    %p741 = scmp.eq.s32.totalorder %s69, 1
    %p742 = por %p740, %p741
    %p743 = scmp.ne.s32.totalorder %s735, %s738
    %p744 = scmp.eq.s32.totalorder %s69, 0
    %p745 = por %p743, %p744
    %p746 = scmp.ne.s32.totalorder %s735, %s738
    %p747 = scmp.eq.s32.totalorder %s74, 1
    %p748 = por %p746, %p747
    %p749 = scmp.ne.s32.totalorder %s738, %s739
    %p750 = scmp.eq.s32.totalorder %s74, 0
    %p751 = por %p749, %p750
    %p752 = scmp.ne.s32.totalorder %s738, %s739
    %p753 = scmp.eq.s32.totalorder %s75, 1
    %p754 = por %p752, %p753
    %p756 = scmp.ne.s32.totalorder %s739, %s755
    %p757 = scmp.eq.s32.totalorder %s75, 0
    %p758 = por %p756, %p757
    %p759 = scmp.le.s32.totalorder 1, %s69
    %p760 = scmp.lt.s32.totalorder %s69, 3
    %p761 = pnand %p759, %p760
    %p762 = pneg %p761
    // Predicated region
    $region9: #{net_forward.1} parent=5 // pred_check
      _
    $region10: #{net_forward.1} parent=5 // pred_check_branch
      %764 = sbr.rel (%p761) target = $region12
    $region11: #{net_forward.1} parent=5 // pred_region
      %s765 = ssub.s32 %s69, 1
      // Predicated region
      $region13: #{net_forward.1} parent=11 // pred_check
        %p766 = pneg %p116
      $region14: #{net_forward.1} parent=11 // pred_check_branch
        %768 = sbr.rel (%p766) target = $region16
      $region15: #{net_forward.1} parent=11 // pred_region
        _
      $region16: #{net_forward.1} parent=11 // pred_fallthru
        _
      // Predicated region
      $region17: #{net_forward.1} parent=11 // pred_check
        %p769 = pneg %p137
      $region18: #{net_forward.1} parent=11 // pred_check_branch
        %771 = sbr.rel (%p769) target = $region20
      $region19: #{net_forward.1} parent=11 // pred_region
        _
      $region20: #{net_forward.1} parent=11 // pred_fallthru
        _
      // Predicated region
      $region21: #{net_forward.1} parent=11 // pred_check
        %p772 = pneg %p158
      $region22: #{net_forward.1} parent=11 // pred_check_branch
        %774 = sbr.rel (%p772) target = $region24
      $region23: #{net_forward.1} parent=11 // pred_region
        _
      $region24: #{net_forward.1} parent=11 // pred_fallthru
        _
      // Predicated region
      $region25: #{net_forward.1} parent=11 // pred_check
        %p775 = pneg %p179
      $region26: #{net_forward.1} parent=11 // pred_check_branch
        %777 = sbr.rel (%p775) target = $region28
      $region27: #{net_forward.1} parent=11 // pred_region
        _
      $region28: #{net_forward.1} parent=11 // pred_fallthru
        _
      // Predicated region
      $region29: #{net_forward.1} parent=11 // pred_check
        %p778 = pneg %p200
      $region30: #{net_forward.1} parent=11 // pred_check_branch
        %780 = sbr.rel (%p778) target = $region32
      $region31: #{net_forward.1} parent=11 // pred_region
        _
      $region32: #{net_forward.1} parent=11 // pred_fallthru
        _
      // Predicated region
      $region33: #{net_forward.1} parent=11 // pred_check
        %p781 = pneg %p221
      $region34: #{net_forward.1} parent=11 // pred_check_branch
        %783 = sbr.rel (%p781) target = $region36
      $region35: #{net_forward.1} parent=11 // pred_region
        _
      $region36: #{net_forward.1} parent=11 // pred_fallthru
        _
      // Predicated region
      $region37: #{net_forward.1} parent=11 // pred_check
        %p784 = pneg %p242
      $region38: #{net_forward.1} parent=11 // pred_check_branch
        %786 = sbr.rel (%p784) target = $region40
      $region39: #{net_forward.1} parent=11 // pred_region
        _
      $region40: #{net_forward.1} parent=11 // pred_fallthru
        _
      // Predicated region
      $region41: #{net_forward.1} parent=11 // pred_check
        %p787 = pneg %p263
      $region42: #{net_forward.1} parent=11 // pred_check_branch
        %789 = sbr.rel (%p787) target = $region44
      $region43: #{net_forward.1} parent=11 // pred_region
        _
      $region44: #{net_forward.1} parent=11 // pred_fallthru
        _
      // Predicated region
      $region45: #{net_forward.1} parent=11 // pred_check
        %p790 = pneg %p284
      $region46: #{net_forward.1} parent=11 // pred_check_branch
        %792 = sbr.rel (%p790) target = $region48
      $region47: #{net_forward.1} parent=11 // pred_region
        _
      $region48: #{net_forward.1} parent=11 // pred_fallthru
        _
      // Predicated region
      $region49: #{net_forward.1} parent=11 // pred_check
        %p793 = pneg %p305
      $region50: #{net_forward.1} parent=11 // pred_check_branch
        %795 = sbr.rel (%p793) target = $region52
      $region51: #{net_forward.1} parent=11 // pred_region
        _
      $region52: #{net_forward.1} parent=11 // pred_fallthru
        _
      // Predicated region
      $region53: #{net_forward.1} parent=11 // pred_check
        %p796 = pneg %p326
      $region54: #{net_forward.1} parent=11 // pred_check_branch
        %798 = sbr.rel (%p796) target = $region56
      $region55: #{net_forward.1} parent=11 // pred_region
        _
      $region56: #{net_forward.1} parent=11 // pred_fallthru
        _
      // Predicated region
      $region57: #{net_forward.1} parent=11 // pred_check
        %p799 = pneg %p347
      $region58: #{net_forward.1} parent=11 // pred_check_branch
        %801 = sbr.rel (%p799) target = $region60
      $region59: #{net_forward.1} parent=11 // pred_region
        _
      $region60: #{net_forward.1} parent=11 // pred_fallthru
        _
      // Predicated region
      $region61: #{net_forward.1} parent=11 // pred_check
        %p802 = pneg %p368
      $region62: #{net_forward.1} parent=11 // pred_check_branch
        %804 = sbr.rel (%p802) target = $region64
      $region63: #{net_forward.1} parent=11 // pred_region
        _
      $region64: #{net_forward.1} parent=11 // pred_fallthru
        _
      // Predicated region
      $region65: #{net_forward.1} parent=11 // pred_check
        %p805 = pneg %p389
      $region66: #{net_forward.1} parent=11 // pred_check_branch
        %807 = sbr.rel (%p805) target = $region68
      $region67: #{net_forward.1} parent=11 // pred_region
        _
      $region68: #{net_forward.1} parent=11 // pred_fallthru
        _
      // Predicated region
      $region69: #{net_forward.1} parent=11 // pred_check
        %p808 = pneg %p410
      $region70: #{net_forward.1} parent=11 // pred_check_branch
        %810 = sbr.rel (%p808) target = $region72
      $region71: #{net_forward.1} parent=11 // pred_region
        _
      $region72: #{net_forward.1} parent=11 // pred_fallthru
        _
      // Predicated region
      $region73: #{net_forward.1} parent=11 // pred_check
        %p811 = pneg %p431
      $region74: #{net_forward.1} parent=11 // pred_check_branch
        %813 = sbr.rel (%p811) target = $region76
      $region75: #{net_forward.1} parent=11 // pred_region
        _
      $region76: #{net_forward.1} parent=11 // pred_fallthru
        _
      // Predicated region
      $region77: #{net_forward.1} parent=11 // pred_check
        %p814 = pneg %p452
      $region78: #{net_forward.1} parent=11 // pred_check_branch
        %816 = sbr.rel (%p814) target = $region80
      $region79: #{net_forward.1} parent=11 // pred_region
        _
      $region80: #{net_forward.1} parent=11 // pred_fallthru
        _
      // Predicated region
      $region81: #{net_forward.1} parent=11 // pred_check
        %p817 = pneg %p473
      $region82: #{net_forward.1} parent=11 // pred_check_branch
        %819 = sbr.rel (%p817) target = $region84
      $region83: #{net_forward.1} parent=11 // pred_region
        _
      $region84: #{net_forward.1} parent=11 // pred_fallthru
        _
      // Predicated region
      $region85: #{net_forward.1} parent=11 // pred_check
        %p820 = pneg %p494
      $region86: #{net_forward.1} parent=11 // pred_check_branch
        %822 = sbr.rel (%p820) target = $region88
      $region87: #{net_forward.1} parent=11 // pred_region
        _
      $region88: #{net_forward.1} parent=11 // pred_fallthru
        _
      // Predicated region
      $region89: #{net_forward.1} parent=11 // pred_check
        %p823 = pneg %p515
      $region90: #{net_forward.1} parent=11 // pred_check_branch
        %825 = sbr.rel (%p823) target = $region92
      $region91: #{net_forward.1} parent=11 // pred_region
        _
      $region92: #{net_forward.1} parent=11 // pred_fallthru
        _
      // Predicated region
      $region93: #{net_forward.1} parent=11 // pred_check
        %p826 = pneg %p536
      $region94: #{net_forward.1} parent=11 // pred_check_branch
        %828 = sbr.rel (%p826) target = $region96
      $region95: #{net_forward.1} parent=11 // pred_region
        _
      $region96: #{net_forward.1} parent=11 // pred_fallthru
        _
      // Predicated region
      $region97: #{net_forward.1} parent=11 // pred_check
        %p829 = pneg %p557
      $region98: #{net_forward.1} parent=11 // pred_check_branch
        %831 = sbr.rel (%p829) target = $region100
      $region99: #{net_forward.1} parent=11 // pred_region
        _
      $region100: #{net_forward.1} parent=11 // pred_fallthru
        _
      // Predicated region
      $region101: #{net_forward.1} parent=11 // pred_check
        %p832 = pneg %p578
      $region102: #{net_forward.1} parent=11 // pred_check_branch
        %834 = sbr.rel (%p832) target = $region104
      $region103: #{net_forward.1} parent=11 // pred_region
        _
      $region104: #{net_forward.1} parent=11 // pred_fallthru
        _
      // Predicated region
      $region105: #{net_forward.1} parent=11 // pred_check
        %p835 = pneg %p599
      $region106: #{net_forward.1} parent=11 // pred_check_branch
        %837 = sbr.rel (%p835) target = $region108
      $region107: #{net_forward.1} parent=11 // pred_region
        _
      $region108: #{net_forward.1} parent=11 // pred_fallthru
        _
      // Predicated region
      $region109: #{net_forward.1} parent=11 // pred_check
        %p838 = pneg %p620
      $region110: #{net_forward.1} parent=11 // pred_check_branch
        %840 = sbr.rel (%p838) target = $region112
      $region111: #{net_forward.1} parent=11 // pred_region
        _
      $region112: #{net_forward.1} parent=11 // pred_fallthru
        _
      // Predicated region
      $region113: #{net_forward.1} parent=11 // pred_check
        %p841 = pneg %p641
      $region114: #{net_forward.1} parent=11 // pred_check_branch
        %843 = sbr.rel (%p841) target = $region116
      $region115: #{net_forward.1} parent=11 // pred_region
        _
      $region116: #{net_forward.1} parent=11 // pred_fallthru
        _
      // Predicated region
      $region117: #{net_forward.1} parent=11 // pred_check
        %p844 = pneg %p662
      $region118: #{net_forward.1} parent=11 // pred_check_branch
        %846 = sbr.rel (%p844) target = $region120
      $region119: #{net_forward.1} parent=11 // pred_region
        _
      $region120: #{net_forward.1} parent=11 // pred_fallthru
        _
      // Predicated region
      $region121: #{net_forward.1} parent=11 // pred_check
        %p847 = pneg %p683
      $region122: #{net_forward.1} parent=11 // pred_check_branch
        %849 = sbr.rel (%p847) target = $region124
      $region123: #{net_forward.1} parent=11 // pred_region
        _
      $region124: #{net_forward.1} parent=11 // pred_fallthru
        _
      // Predicated region
      $region125: #{net_forward.1} parent=11 // pred_check
        %p850 = pneg %p704
      $region126: #{net_forward.1} parent=11 // pred_check_branch
        %852 = sbr.rel (%p850) target = $region128
      $region127: #{net_forward.1} parent=11 // pred_region
        _
      $region128: #{net_forward.1} parent=11 // pred_fallthru
        _
      // Predicated region
      $region129: #{net_forward.1} parent=11 // pred_check
        %p853 = pneg %p725
      $region130: #{net_forward.1} parent=11 // pred_check_branch
        %855 = sbr.rel (%p853) target = $region132
      $region131: #{net_forward.1} parent=11 // pred_region
        _
      $region132: #{net_forward.1} parent=11 // pred_fallthru
        _
    $region12: #{net_forward.1} parent=5 // pred_fallthru
      _
    %p856 = scmp.lt.s32.totalorder %s69, 2
    // Predicated region
    $region133: #{net_forward.1} parent=5 // pred_check
      %p857 = pneg %p856
    $region134: #{net_forward.1} parent=5 // pred_check_branch
      %859 = sbr.rel (%p857) target = $region136
    $region135: #{net_forward.1} parent=5 // pred_region
      // Predicated region
      $region137: #{net_forward.1} parent=135 // pred_check
        %p860 = pneg %p89
      $region138: #{net_forward.1} parent=135 // pred_check_branch
        %862 = sbr.rel (%p860) target = $region140
      $region139: #{net_forward.1} parent=135 // pred_region
        %s863 = smul.u32 2, %s69
        %p864 = scmp.lt.s32.totalorder %s863, 3
        %s865 = scalar_select %p864, %s863, 3
        %s866 = smul.addr %s865, 4
        %s867 = smul.addr %s866, 8
        %s868 = scalar_lea.vmem %s1, %s867
        %s869 = smul.u32 2, %s69
      $region140: #{net_forward.1} parent=135 // pred_fallthru
        _
    $region136: #{net_forward.1} parent=5 // pred_fallthru
      _
    %p870 = scmp.le.s32.totalorder 1, %s69
    %p871 = scmp.lt.s32.totalorder %s69, 3
    %p872 = pnand %p870, %p871
    %p873 = pneg %p872
    // Predicated region
    $region141: #{net_forward.1} parent=5 // pred_check
      _
    $region142: #{net_forward.1} parent=5 // pred_check_branch
      %875 = sbr.rel (%p872) target = $region144
    $region143: #{net_forward.1} parent=5 // pred_region
      %s876 = ssub.s32 %s69, 1
      %s877 = smul.u32 2, %s74
      %p878 = scmp.lt.s32.totalorder %s877, 3
      %s879 = scalar_select %p878, %s877, 3
      %s880 = smul.addr %s879, 4
      %s881 = smul.addr %s880, 8
      %s882 = scalar_lea.vmem %s1, %s881
      %p883 = pneg %p95
      %p884 = pneg %p92
      %p885 = pneg %p116
      %p886 = pneg %p113
      %p887 = pneg %p137
      %p888 = pneg %p134
      %p889 = pneg %p158
      %p890 = pneg %p155
      %p891 = pneg %p179
      %p892 = pneg %p176
      %p893 = pneg %p200
      %p894 = pneg %p197
      %p895 = pneg %p221
      %p896 = pneg %p218
      %p897 = pneg %p242
      %p898 = pneg %p239
      %p899 = pneg %p263
      %p900 = pneg %p260
      %p901 = pneg %p284
      %p902 = pneg %p281
      %p903 = pneg %p305
      %p904 = pneg %p302
      %p905 = pneg %p326
      %p906 = pneg %p323
      %p907 = pneg %p347
      %p908 = pneg %p344
      %p909 = pneg %p368
      %p910 = pneg %p365
      %p911 = pneg %p389
      %p912 = pneg %p386
      %p913 = pneg %p410
      %p914 = pneg %p407
      %p915 = pneg %p431
      %p916 = pneg %p428
      %p917 = pneg %p452
      %p918 = pneg %p449
      %p919 = pneg %p473
      %p920 = pneg %p470
      %p921 = pneg %p494
      %p922 = pneg %p491
      %p923 = pneg %p515
      %p924 = pneg %p512
      %p925 = pneg %p536
      %p926 = pneg %p533
      %p927 = pneg %p557
      %p928 = pneg %p554
      %p929 = pneg %p578
      %p930 = pneg %p575
      %p931 = pneg %p599
      %p932 = pneg %p596
      %p933 = pneg %p620
      %p934 = pneg %p617
      %p935 = pneg %p641
      %p936 = pneg %p638
      %p937 = pneg %p662
      %p938 = pneg %p659
      %p939 = pneg %p683
      %p940 = pneg %p680
      %p941 = pneg %p704
      %p942 = pneg %p701
      %p943 = pneg %p725
      %p944 = pneg %p722
      %p945 = pneg %p751
      %p946 = pneg %p748
      %s947 = smul.u32 2, %s74
      %p948 = scmp.lt.s32.totalorder %s947, 3
      %s949 = scalar_select %p948, %s947, 3
      %s950 = smul.addr %s949, 8
      %s951 = smul.addr %s950, 8
      %s952 = scalar_lea.vmem %s63, %s951
      %s953 = smul.u32 2, %s74
      %p954 = scmp.lt.s32.totalorder %s953, 3
      %s955 = scalar_select %p954, %s953, 3
      %s956 = smul.addr %s955, 4
      %s957 = smul.addr %s956, 8
      %s958 = scalar_lea.vmem %s1, %s957
      %s959 = smul.u32 2, %s74
      %s960 = smul.u32 2, %s74
      %p961 = scmp.lt.s32.totalorder %s960, 3
      %s962 = scalar_select %p961, %s960, 3
      %s963 = smul.addr %s962, 8
      %s964 = smul.addr %s963, 8
      %s965 = scalar_lea.vmem %s63, %s964
      %s966 = smul.u32 2, %s74
      %v967 = vld [vmem:[%s3] sm:$0xff]
      %v968 = vld [vmem:[%s3 + $0x8] sm:$0xff]
      %v969 = vld [vmem:[%s5] sm:$0xff]
      %v970 = vld [vmem:[%s5 + $0x8] sm:$0xff]
      %v971 = vld [vmem:[%s7] sm:$0xff]
      %v972 = vld [vmem:[%s7 + $0x8] sm:$0xff]
      %v973 = vld [vmem:[%s7 + $0x10] sm:$0xff]
      %v974 = vld [vmem:[%s7 + $0x18] sm:$0xff]
      %v975 = vld [vmem:[%s9] sm:$0xff]
      %v976 = vld [vmem:[%s9 + $0x8] sm:$0xff]
      %v977 = vld [vmem:[%s9 + $0x10] sm:$0xff]
      %v978 = vld [vmem:[%s9 + $0x18] sm:$0xff]
      %v979 = vld [vmem:[%s11] sm:$0xff]
      %v980 = vld [vmem:[%s11 + $0x8] sm:$0xff]
      %v981 = vld [vmem:[%s11 + $0x10] sm:$0xff]
      %v982 = vld [vmem:[%s11 + $0x18] sm:$0xff]
      %v983 = vld [vmem:[%s13] sm:$0xff]
      %v984 = vld [vmem:[%s13 + $0x8] sm:$0xff]
      %v985 = vld [vmem:[%s13 + $0x10] sm:$0xff]
      %v986 = vld [vmem:[%s13 + $0x18] sm:$0xff]
      %v987 = vld [vmem:[%s15] sm:$0xff]
      %v988 = vld [vmem:[%s15 + $0x8] sm:$0xff]
      %v989 = vld [vmem:[%s15 + $0x10] sm:$0xff]
      %v990 = vld [vmem:[%s15 + $0x18] sm:$0xff]
      %v991 = vld [vmem:[%s15 + $0x20] sm:$0xff]
      %v992 = vld [vmem:[%s15 + $0x28] sm:$0xff]
      %v993 = vld [vmem:[%s15 + $0x30] sm:$0xff]
      %v994 = vld [vmem:[%s15 + $0x38] sm:$0xff]
      %v995 = vld [vmem:[%s15 + $0x40] sm:$0xf]
      %v996 = vld [vmem:[%s17] sm:$0xff]
      %v997 = vld [vmem:[%s17 + $0x8] sm:$0xff]
      %v998 = vld [vmem:[%s17 + $0x10] sm:$0xff]
      %v999 = vld [vmem:[%s17 + $0x18] sm:$0xff]
      %v1000 = vld [vmem:[%s17 + $0x20] sm:$0xff]
      %v1001 = vld [vmem:[%s17 + $0x28] sm:$0xff]
      %v1002 = vld [vmem:[%s17 + $0x30] sm:$0xff]
      %v1003 = vld [vmem:[%s17 + $0x38] sm:$0xff]
      %v1004 = vld [vmem:[%s17 + $0x40] sm:$0xf]
      %v1005 = vld [vmem:[%s19] sm:$0xff]
      %v1006 = vld [vmem:[%s19 + $0x8] sm:$0xff]
      %v1007 = vld [vmem:[%s19 + $0x10] sm:$0xff]
      %v1008 = vld [vmem:[%s19 + $0x18] sm:$0xff]
      %v1009 = vld [vmem:[%s21] sm:$0xff]
      %v1010 = vld [vmem:[%s21 + $0x8] sm:$0xff]
      %v1011 = vld [vmem:[%s21 + $0x10] sm:$0xff]
      %v1012 = vld [vmem:[%s21 + $0x18] sm:$0xff]
      %v1013 = vld [vmem:[%s23] sm:$0xff]
      %v1014 = vld [vmem:[%s23 + $0x8] sm:$0xff]
      %v1015 = vld [vmem:[%s23 + $0x10] sm:$0xff]
      %v1016 = vld [vmem:[%s23 + $0x18] sm:$0xff]
      %v1017 = vld [vmem:[%s25] sm:$0xff]
      %v1018 = vld [vmem:[%s25 + $0x8] sm:$0xff]
      %v1019 = vld [vmem:[%s25 + $0x10] sm:$0xff]
      %v1020 = vld [vmem:[%s25 + $0x18] sm:$0xff]
      %v1021 = vld [vmem:[%s27] sm:$0xff]
      %v1022 = vld [vmem:[%s29] sm:$0xff]
      %v1023 = vld [vmem:[%s31] sm:$0xff]
      %v1024 = vld [vmem:[%s31 + $0x8] sm:$0xff]
      %v1025 = vld [vmem:[%s31 + $0x10] sm:$0xff]
      %v1026 = vld [vmem:[%s31 + $0x18] sm:$0xff]
      %v1027 = vld [vmem:[%s33] sm:$0xff]
      %v1028 = vld [vmem:[%s33 + $0x8] sm:$0xff]
      %v1029 = vld [vmem:[%s33 + $0x10] sm:$0xff]
      %v1030 = vld [vmem:[%s33 + $0x18] sm:$0xff]
      %v1031 = vld [vmem:[%s35] sm:$0xff]
      %v1032 = vld [vmem:[%s35 + $0x8] sm:$0xff]
      %v1033 = vld [vmem:[%s35 + $0x10] sm:$0xff]
      %v1034 = vld [vmem:[%s35 + $0x18] sm:$0xff]
      %v1035 = vld [vmem:[%s35 + $0x20] sm:$0xff]
      %v1036 = vld [vmem:[%s35 + $0x28] sm:$0xff]
      %v1037 = vld [vmem:[%s35 + $0x30] sm:$0xff]
      %v1038 = vld [vmem:[%s35 + $0x38] sm:$0xff]
      %v1039 = vld [vmem:[%s37] sm:$0xff]
      %v1040 = vld [vmem:[%s37 + $0x8] sm:$0xff]
      %v1041 = vld [vmem:[%s37 + $0x10] sm:$0xff]
      %v1042 = vld [vmem:[%s37 + $0x18] sm:$0xff]
      %v1043 = vld [vmem:[%s37 + $0x20] sm:$0xff]
      %v1044 = vld [vmem:[%s37 + $0x28] sm:$0xff]
      %v1045 = vld [vmem:[%s37 + $0x30] sm:$0xff]
      %v1046 = vld [vmem:[%s37 + $0x38] sm:$0xff]
      %v1047 = vld [vmem:[%s39] sm:$0xff]
      %v1048 = vld [vmem:[%s39 + $0x8] sm:$0xff]
      %v1049 = vld [vmem:[%s39 + $0x10] sm:$0xff]
      %v1050 = vld [vmem:[%s39 + $0x18] sm:$0xff]
      %v1051 = vld [vmem:[%s39 + $0x20] sm:$0xff]
      %v1052 = vld [vmem:[%s39 + $0x28] sm:$0xff]
      %v1053 = vld [vmem:[%s39 + $0x30] sm:$0xff]
      %v1054 = vld [vmem:[%s39 + $0x38] sm:$0xff]
      %v1055 = vld [vmem:[%s41] sm:$0xff]
      %v1056 = vld [vmem:[%s41 + $0x8] sm:$0xff]
      %v1057 = vld [vmem:[%s41 + $0x10] sm:$0xff]
      %v1058 = vld [vmem:[%s41 + $0x18] sm:$0xff]
      %v1059 = vld [vmem:[%s41 + $0x20] sm:$0xff]
      %v1060 = vld [vmem:[%s41 + $0x28] sm:$0xff]
      %v1061 = vld [vmem:[%s41 + $0x30] sm:$0xff]
      %v1062 = vld [vmem:[%s41 + $0x38] sm:$0xff]
      %v1063 = vld [vmem:[%s43] sm:$0xff]
      %v1064 = vld [vmem:[%s43 + $0x8] sm:$0xff]
      %v1065 = vld [vmem:[%s43 + $0x10] sm:$0xff]
      %v1066 = vld [vmem:[%s43 + $0x18] sm:$0xff]
      %v1067 = vld [vmem:[%s43 + $0x20] sm:$0xff]
      %v1068 = vld [vmem:[%s43 + $0x28] sm:$0xff]
      %v1069 = vld [vmem:[%s43 + $0x30] sm:$0xff]
      %v1070 = vld [vmem:[%s43 + $0x38] sm:$0xff]
      %v1071 = vld [vmem:[%s43 + $0x40] sm:$0xff]
      %v1072 = vld [vmem:[%s43 + $0x48] sm:$0xff]
      %v1073 = vld [vmem:[%s43 + $0x50] sm:$0xff]
      %v1074 = vld [vmem:[%s43 + $0x58] sm:$0xff]
      %v1075 = vld [vmem:[%s43 + $0x60] sm:$0xff]
      %v1076 = vld [vmem:[%s43 + $0x68] sm:$0xff]
      %v1077 = vld [vmem:[%s43 + $0x70] sm:$0xff]
      %v1078 = vld [vmem:[%s43 + $0x78] sm:$0xff]
      %v1079 = vld [vmem:[%s43 + $0x80] sm:$0xf]
      %v1080 = vld [vmem:[%s45] sm:$0xff]
      %v1081 = vld [vmem:[%s45 + $0x8] sm:$0xff]
      %v1082 = vld [vmem:[%s45 + $0x10] sm:$0xff]
      %v1083 = vld [vmem:[%s45 + $0x18] sm:$0xff]
      %v1084 = vld [vmem:[%s45 + $0x20] sm:$0xff]
      %v1085 = vld [vmem:[%s45 + $0x28] sm:$0xff]
      %v1086 = vld [vmem:[%s45 + $0x30] sm:$0xff]
      %v1087 = vld [vmem:[%s45 + $0x38] sm:$0xff]
      %v1088 = vld [vmem:[%s45 + $0x40] sm:$0xff]
      %v1089 = vld [vmem:[%s45 + $0x48] sm:$0xff]
      %v1090 = vld [vmem:[%s45 + $0x50] sm:$0xff]
      %v1091 = vld [vmem:[%s45 + $0x58] sm:$0xff]
      %v1092 = vld [vmem:[%s45 + $0x60] sm:$0xff]
      %v1093 = vld [vmem:[%s45 + $0x68] sm:$0xff]
      %v1094 = vld [vmem:[%s45 + $0x70] sm:$0xff]
      %v1095 = vld [vmem:[%s45 + $0x78] sm:$0xff]
      %v1096 = vld [vmem:[%s45 + $0x80] sm:$0xf]
      %v1097 = vld [vmem:[%s47] sm:$0xff]
      %v1098 = vld [vmem:[%s47 + $0x8] sm:$0xff]
      %v1099 = vld [vmem:[%s47 + $0x10] sm:$0xff]
      %v1100 = vld [vmem:[%s47 + $0x18] sm:$0xff]
      %v1101 = vld [vmem:[%s47 + $0x20] sm:$0xff]
      %v1102 = vld [vmem:[%s47 + $0x28] sm:$0xff]
      %v1103 = vld [vmem:[%s47 + $0x30] sm:$0xff]
      %v1104 = vld [vmem:[%s47 + $0x38] sm:$0xff]
      %v1105 = vld [vmem:[%s49] sm:$0xff]
      %v1106 = vld [vmem:[%s49 + $0x8] sm:$0xff]
      %v1107 = vld [vmem:[%s49 + $0x10] sm:$0xff]
      %v1108 = vld [vmem:[%s49 + $0x18] sm:$0xff]
      %v1109 = vld [vmem:[%s49 + $0x20] sm:$0xff]
      %v1110 = vld [vmem:[%s49 + $0x28] sm:$0xff]
      %v1111 = vld [vmem:[%s49 + $0x30] sm:$0xff]
      %v1112 = vld [vmem:[%s49 + $0x38] sm:$0xff]
      %v1113 = vld [vmem:[%s51] sm:$0xff]
      %v1114 = vld [vmem:[%s51 + $0x8] sm:$0xff]
      %v1115 = vld [vmem:[%s51 + $0x10] sm:$0xff]
      %v1116 = vld [vmem:[%s51 + $0x18] sm:$0xff]
      %v1117 = vld [vmem:[%s51 + $0x20] sm:$0xff]
      %v1118 = vld [vmem:[%s51 + $0x28] sm:$0xff]
      %v1119 = vld [vmem:[%s51 + $0x30] sm:$0xff]
      %v1120 = vld [vmem:[%s51 + $0x38] sm:$0xff]
      %v1121 = vld [vmem:[%s53] sm:$0xff]
      %v1122 = vld [vmem:[%s53 + $0x8] sm:$0xff]
      %v1123 = vld [vmem:[%s53 + $0x10] sm:$0xff]
      %v1124 = vld [vmem:[%s53 + $0x18] sm:$0xff]
      %v1125 = vld [vmem:[%s53 + $0x20] sm:$0xff]
      %v1126 = vld [vmem:[%s53 + $0x28] sm:$0xff]
      %v1127 = vld [vmem:[%s53 + $0x30] sm:$0xff]
      %v1128 = vld [vmem:[%s53 + $0x38] sm:$0xff]
      %v1129 = vld [vmem:[%s55] sm:$0xff]
      %v1130 = vld [vmem:[%s55 + $0x8] sm:$0xff]
      %v1131 = vld [vmem:[%s57] sm:$0xff]
      %v1132 = vld [vmem:[%s57 + $0x8] sm:$0xff]
      %v1133 = vld [vmem:[%s59] sm:$0xff]
      %v1134 = vld [vmem:[%s59 + $0x8] sm:$0xff]
      %v1135 = vld [vmem:[%s59 + $0x10] sm:$0xff]
      %v1136 = vld [vmem:[%s59 + $0x18] sm:$0xff]
      %v1137 = vld [vmem:[%s59 + $0x20] sm:$0xff]
      %v1138 = vld [vmem:[%s59 + $0x28] sm:$0xff]
      %v1139 = vld [vmem:[%s59 + $0x30] sm:$0xff]
      %v1140 = vld [vmem:[%s59 + $0x38] sm:$0xff]
      %v1141 = vld [vmem:[%s61] sm:$0xff]
      %v1142 = vld [vmem:[%s61 + $0x8] sm:$0xff]
      %v1143 = vld [vmem:[%s61 + $0x10] sm:$0xff]
      %v1144 = vld [vmem:[%s61 + $0x18] sm:$0xff]
      %v1145 = vld [vmem:[%s61 + $0x20] sm:$0xff]
      %v1146 = vld [vmem:[%s61 + $0x28] sm:$0xff]
      %v1147 = vld [vmem:[%s61 + $0x30] sm:$0xff]
      %v1148 = vld [vmem:[%s61 + $0x38] sm:$0xff]
      %v1149 = vld [vmem:[%s958] sm:$0x3f]
      %v1150 = vld [vmem:[%s958 + $0x8] sm:$0x3f]
      %v1151 = vld [vmem:[%s958 + $0x10] sm:$0x3f]
      %v1152 = vld [vmem:[%s958 + $0x18] sm:$0x3f]
      %1154 = vset.pattern.permute.xlu0 0
      %1155 = vperm.xlu0 %1154, %v969
      %v1156 = vpop.permute.xlu0 %1155
      %1159 = vset.pattern.permute.xlu0 0
      %1160 = vperm.xlu0 %1159, %v970
      %v1161 = vpop.permute.xlu0 %1160
      %vm1163 = vcmask 48128
      %v1165 = vsel %vm1163, %v967, 0
      %v1168 = vsel %vm1163, %v968, 0
      %vm1170 = vcmask 1045504
      %v1172 = vsel %vm1170, %v1149, 0
      %v1175 = vsel %vm1170, %v1150, 0
      %v1178 = vsel %vm1170, %v1151, 0
      %v1181 = vsel %vm1170, %v1152, 0
      %1183 = vmatpush.msra.mxu0 0.0
      %1184 = vmatpush.msra.mxu0 0.0
      %1185 = vmatpush.msra.mxu0 0.0
      %1186 = vmatpush.msra.mxu0 0.0
      %1187 = vmatpush.msra.mxu0 0.0
      %1188 = vmatpush.msra.mxu0 0.0
      %1189 = vmatpush.msra.mxu0 0.0
      %1190 = vmatpush.msra.mxu0 0.0
      %1191 = vmatpush.msra.mxu0 0.0
      %1192 = vmatpush.msra.mxu0 0.0
      %1193 = vmatpush.msra.mxu0 0.0
      %1194 = vmatpush.msra.mxu0 0.0
      %1195 = vmatpush.msra.mxu0 0.0
      %1196 = vmatpush.msra.mxu0 0.0
      %1197 = vmatpush.msra.mxu0 0.0
      %1198 = vmatpush.msra.mxu0 %v1172
      %1199 = vmatmul.f32.gmra.mxu0 %v1165
      %v1200 = vpop.f32.mrf.mxu0
      %v1201 = vadd.f32 %v1156, %v1200
      %1202 = vmatmul.f32.gmra.mxu0 %v1168
      %v1203 = vpop.f32.mrf.mxu0
      %v1204 = vadd.f32 %v1161, %v1203
      %1205 = vdwg.mxu0
      %1206 = vmatpush.msra.mxu0 0.0
      %1207 = vmatpush.msra.mxu0 0.0
      %1208 = vmatpush.msra.mxu0 0.0
      %1209 = vmatpush.msra.mxu0 0.0
      %1210 = vmatpush.msra.mxu0 0.0
      %1211 = vmatpush.msra.mxu0 0.0
      %1212 = vmatpush.msra.mxu0 0.0
      %1213 = vmatpush.msra.mxu0 0.0
      %1214 = vmatpush.msra.mxu0 0.0
      %1215 = vmatpush.msra.mxu0 0.0
      %1216 = vmatpush.msra.mxu0 0.0
      %1217 = vmatpush.msra.mxu0 0.0
      %1218 = vmatpush.msra.mxu0 0.0
      %1219 = vmatpush.msra.mxu0 0.0
      %1220 = vmatpush.msra.mxu0 0.0
      %1221 = vmatpush.msra.mxu0 %v1175
      %1222 = vmatmul.f32.gmra.mxu0 %v1165
      %v1223 = vpop.f32.mrf.mxu0
      %v1224 = vadd.f32 %v1156, %v1223
      %1225 = vmatmul.f32.gmra.mxu0 %v1168
      %v1226 = vpop.f32.mrf.mxu0
      %v1227 = vadd.f32 %v1161, %v1226
      %1228 = vdwg.mxu0
      %1229 = vmatpush.msra.mxu0 0.0
      %1230 = vmatpush.msra.mxu0 0.0
      %1231 = vmatpush.msra.mxu0 0.0
      %1232 = vmatpush.msra.mxu0 0.0
      %1233 = vmatpush.msra.mxu0 0.0
      %1234 = vmatpush.msra.mxu0 0.0
      %1235 = vmatpush.msra.mxu0 0.0
      %1236 = vmatpush.msra.mxu0 0.0
      %1237 = vmatpush.msra.mxu0 0.0
      %1238 = vmatpush.msra.mxu0 0.0
      %1239 = vmatpush.msra.mxu0 0.0
      %1240 = vmatpush.msra.mxu0 0.0
      %1241 = vmatpush.msra.mxu0 0.0
      %1242 = vmatpush.msra.mxu0 0.0
      %1243 = vmatpush.msra.mxu0 0.0
      %1244 = vmatpush.msra.mxu0 %v1178
      %1245 = vmatmul.f32.gmra.mxu0 %v1165
      %v1246 = vpop.f32.mrf.mxu0
      %v1247 = vadd.f32 %v1156, %v1246
      %1248 = vmatmul.f32.gmra.mxu0 %v1168
      %v1249 = vpop.f32.mrf.mxu0
      %v1250 = vadd.f32 %v1161, %v1249
      %1251 = vdwg.mxu0
      %1252 = vmatpush.msra.mxu0 0.0
      %1253 = vmatpush.msra.mxu0 0.0
      %1254 = vmatpush.msra.mxu0 0.0
      %1255 = vmatpush.msra.mxu0 0.0
      %1256 = vmatpush.msra.mxu0 0.0
      %1257 = vmatpush.msra.mxu0 0.0
      %1258 = vmatpush.msra.mxu0 0.0
      %1259 = vmatpush.msra.mxu0 0.0
      %1260 = vmatpush.msra.mxu0 0.0
      %1261 = vmatpush.msra.mxu0 0.0
      %1262 = vmatpush.msra.mxu0 0.0
      %1263 = vmatpush.msra.mxu0 0.0
      %1264 = vmatpush.msra.mxu0 0.0
      %1265 = vmatpush.msra.mxu0 0.0
      %1266 = vmatpush.msra.mxu0 0.0
      %1267 = vmatpush.msra.mxu0 %v1181
      %1268 = vmatmul.f32.gmra.mxu0 %v1165
      %v1269 = vpop.f32.mrf.mxu0
      %v1270 = vadd.f32 %v1156, %v1269
      %1271 = vmatmul.f32.gmra.mxu0 %v1168
      %v1272 = vpop.f32.mrf.mxu0
      %v1273 = vadd.f32 %v1161, %v1272
      %1274 = vdwg.mxu0
      %vm1275 = vcmp.gt.f32.partialorder %v1201, 0.0
      %vm1276 = vcmp.gt.f32.partialorder %v1224, 0.0
      %vm1277 = vcmp.gt.f32.partialorder %v1247, 0.0
      %vm1278 = vcmp.gt.f32.partialorder %v1270, 0.0
      %vm1279 = vcmp.gt.f32.partialorder %v1204, 0.0
      %vm1280 = vcmp.gt.f32.partialorder %v1227, 0.0
      %vm1281 = vcmp.gt.f32.partialorder %v1250, 0.0
      %vm1282 = vcmp.gt.f32.partialorder %v1273, 0.0
      %v1283 = vmin.f32 %v1201, 0.0
      %v1284 = vmin.f32 %v1224, 0.0
      %v1285 = vmin.f32 %v1247, 0.0
      %v1286 = vmin.f32 %v1270, 0.0
      %v1287 = vmin.f32 %v1204, 0.0
      %v1288 = vmin.f32 %v1227, 0.0
      %v1289 = vmin.f32 %v1250, 0.0
      %v1290 = vmin.f32 %v1273, 0.0
      %v1291 = vmul.f32 %v1283, 1.442695
      %v1292 = vpow.pop %v1291
      %v1293 = vmul.f32 %v1284, 1.442695
      %v1294 = vpow.pop %v1293
      %v1295 = vmul.f32 %v1285, 1.442695
      %v1296 = vpow.pop %v1295
      %v1297 = vmul.f32 %v1286, 1.442695
      %v1298 = vpow.pop %v1297
      %v1299 = vmul.f32 %v1287, 1.442695
      %v1300 = vpow.pop %v1299
      %v1301 = vmul.f32 %v1288, 1.442695
      %v1302 = vpow.pop %v1301
      %v1303 = vmul.f32 %v1289, 1.442695
      %v1304 = vpow.pop %v1303
      %v1305 = vmul.f32 %v1290, 1.442695
      %v1306 = vpow.pop %v1305
      %v1307 = vsub.f32 %v1292, 1.0
      %v1308 = vsub.f32 %v1294, 1.0
      %v1309 = vsub.f32 %v1296, 1.0
      %v1310 = vsub.f32 %v1298, 1.0
      %v1311 = vsub.f32 %v1300, 1.0
      %v1312 = vsub.f32 %v1302, 1.0
      %v1313 = vsub.f32 %v1304, 1.0
      %v1314 = vsub.f32 %v1306, 1.0
      %v1315 = vsel %vm1275, %v1201, %v1307
      %v1316 = vsel %vm1276, %v1224, %v1308
      %v1317 = vsel %vm1277, %v1247, %v1309
      %v1318 = vsel %vm1278, %v1270, %v1310
      %v1319 = vsel %vm1279, %v1204, %v1311
      %v1320 = vsel %vm1280, %v1227, %v1312
      %v1321 = vsel %vm1281, %v1250, %v1313
      %v1322 = vsel %vm1282, %v1273, %v1314
      %1324 = vset.pattern.permute.xlu0 0
      %1325 = vperm.xlu0 %1324, %v975
      %v1326 = vpop.permute.xlu0 %1325
      %1329 = vset.pattern.permute.xlu0 0
      %1330 = vperm.xlu0 %1329, %v976
      %v1331 = vpop.permute.xlu0 %1330
      %1334 = vset.pattern.permute.xlu0 0
      %1335 = vperm.xlu0 %1334, %v977
      %v1336 = vpop.permute.xlu0 %1335
      %1339 = vset.pattern.permute.xlu0 0
      %1340 = vperm.xlu0 %1339, %v978
      %v1341 = vpop.permute.xlu0 %1340
      %vm1343 = vcmask 130048
      %v1345 = vsel %vm1343, %v971, 0
      %v1348 = vsel %vm1343, %v972, 0
      %v1351 = vsel %vm1343, %v973, 0
      %v1354 = vsel %vm1343, %v974, 0
      %1356 = vmatpush.msra.mxu0 0.0
      %1357 = vmatpush.msra.mxu0 0.0
      %1358 = vmatpush.msra.mxu0 0.0
      %1359 = vmatpush.msra.mxu0 0.0
      %1360 = vmatpush.msra.mxu0 0.0
      %1361 = vmatpush.msra.mxu0 0.0
      %1362 = vmatpush.msra.mxu0 0.0
      %1363 = vmatpush.msra.mxu0 0.0
      %1364 = vmatpush.msra.mxu0 0.0
      %1365 = vmatpush.msra.mxu0 0.0
      %1366 = vmatpush.msra.mxu0 0.0
      %1367 = vmatpush.msra.mxu0 0.0
      %1368 = vmatpush.msra.mxu0 0.0
      %1369 = vmatpush.msra.mxu0 0.0
      %1370 = vmatpush.msra.mxu0 %v1319
      %1371 = vmatpush.msra.mxu0 %v1315
      %1372 = vmatmul.f32.gmra.mxu0 %v1345
      %v1373 = vpop.f32.mrf.mxu0
      %v1374 = vadd.f32 %v1326, %v1373
      %1375 = vmatmul.f32.gmra.mxu0 %v1348
      %v1376 = vpop.f32.mrf.mxu0
      %v1377 = vadd.f32 %v1331, %v1376
      %1378 = vmatmul.f32.gmra.mxu0 %v1351
      %v1379 = vpop.f32.mrf.mxu0
      %v1380 = vadd.f32 %v1336, %v1379
      %1381 = vmatmul.f32.gmra.mxu0 %v1354
      %v1382 = vpop.f32.mrf.mxu0
      %v1383 = vadd.f32 %v1341, %v1382
      %1384 = vdwg.mxu0
      %1385 = vmatpush.msra.mxu0 0.0
      %1386 = vmatpush.msra.mxu0 0.0
      %1387 = vmatpush.msra.mxu0 0.0
      %1388 = vmatpush.msra.mxu0 0.0
      %1389 = vmatpush.msra.mxu0 0.0
      %1390 = vmatpush.msra.mxu0 0.0
      %1391 = vmatpush.msra.mxu0 0.0
      %1392 = vmatpush.msra.mxu0 0.0
      %1393 = vmatpush.msra.mxu0 0.0
      %1394 = vmatpush.msra.mxu0 0.0
      %1395 = vmatpush.msra.mxu0 0.0
      %1396 = vmatpush.msra.mxu0 0.0
      %1397 = vmatpush.msra.mxu0 0.0
      %1398 = vmatpush.msra.mxu0 0.0
      %1399 = vmatpush.msra.mxu0 %v1320
      %1400 = vmatpush.msra.mxu0 %v1316
      %1401 = vmatmul.f32.gmra.mxu0 %v1345
      %v1402 = vpop.f32.mrf.mxu0
      %v1403 = vadd.f32 %v1326, %v1402
      %1404 = vmatmul.f32.gmra.mxu0 %v1348
      %v1405 = vpop.f32.mrf.mxu0
      %v1406 = vadd.f32 %v1331, %v1405
      %1407 = vmatmul.f32.gmra.mxu0 %v1351
      %v1408 = vpop.f32.mrf.mxu0
      %v1409 = vadd.f32 %v1336, %v1408
      %1410 = vmatmul.f32.gmra.mxu0 %v1354
      %v1411 = vpop.f32.mrf.mxu0
      %v1412 = vadd.f32 %v1341, %v1411
      %1413 = vdwg.mxu0
      %1414 = vmatpush.msra.mxu0 0.0
      %1415 = vmatpush.msra.mxu0 0.0
      %1416 = vmatpush.msra.mxu0 0.0
      %1417 = vmatpush.msra.mxu0 0.0
      %1418 = vmatpush.msra.mxu0 0.0
      %1419 = vmatpush.msra.mxu0 0.0
      %1420 = vmatpush.msra.mxu0 0.0
      %1421 = vmatpush.msra.mxu0 0.0
      %1422 = vmatpush.msra.mxu0 0.0
      %1423 = vmatpush.msra.mxu0 0.0
      %1424 = vmatpush.msra.mxu0 0.0
      %1425 = vmatpush.msra.mxu0 0.0
      %1426 = vmatpush.msra.mxu0 0.0
      %1427 = vmatpush.msra.mxu0 0.0
      %1428 = vmatpush.msra.mxu0 %v1321
      %1429 = vmatpush.msra.mxu0 %v1317
      %1430 = vmatmul.f32.gmra.mxu0 %v1345
      %v1431 = vpop.f32.mrf.mxu0
      %v1432 = vadd.f32 %v1326, %v1431
      %1433 = vmatmul.f32.gmra.mxu0 %v1348
      %v1434 = vpop.f32.mrf.mxu0
      %v1435 = vadd.f32 %v1331, %v1434
      %1436 = vmatmul.f32.gmra.mxu0 %v1351
      %v1437 = vpop.f32.mrf.mxu0
      %v1438 = vadd.f32 %v1336, %v1437
      %1439 = vmatmul.f32.gmra.mxu0 %v1354
      %v1440 = vpop.f32.mrf.mxu0
      %v1441 = vadd.f32 %v1341, %v1440
      %1442 = vdwg.mxu0
      %1443 = vmatpush.msra.mxu0 0.0
      %1444 = vmatpush.msra.mxu0 0.0
      %1445 = vmatpush.msra.mxu0 0.0
      %1446 = vmatpush.msra.mxu0 0.0
      %1447 = vmatpush.msra.mxu0 0.0
      %1448 = vmatpush.msra.mxu0 0.0
      %1449 = vmatpush.msra.mxu0 0.0
      %1450 = vmatpush.msra.mxu0 0.0
      %1451 = vmatpush.msra.mxu0 0.0
      %1452 = vmatpush.msra.mxu0 0.0
      %1453 = vmatpush.msra.mxu0 0.0
      %1454 = vmatpush.msra.mxu0 0.0
      %1455 = vmatpush.msra.mxu0 0.0
      %1456 = vmatpush.msra.mxu0 0.0
      %1457 = vmatpush.msra.mxu0 %v1322
      %1458 = vmatpush.msra.mxu0 %v1318
      %1459 = vmatmul.f32.gmra.mxu0 %v1345
      %v1460 = vpop.f32.mrf.mxu0
      %v1461 = vadd.f32 %v1326, %v1460
      %1462 = vmatmul.f32.gmra.mxu0 %v1348
      %v1463 = vpop.f32.mrf.mxu0
      %v1464 = vadd.f32 %v1331, %v1463
      %1465 = vmatmul.f32.gmra.mxu0 %v1351
      %v1466 = vpop.f32.mrf.mxu0
      %v1467 = vadd.f32 %v1336, %v1466
      %1468 = vmatmul.f32.gmra.mxu0 %v1354
      %v1469 = vpop.f32.mrf.mxu0
      %v1470 = vadd.f32 %v1341, %v1469
      %1471 = vdwg.mxu0
      %vm1472 = vcmp.gt.f32.partialorder %v1374, 0.0
      %vm1473 = vcmp.gt.f32.partialorder %v1403, 0.0
      %vm1474 = vcmp.gt.f32.partialorder %v1432, 0.0
      %vm1475 = vcmp.gt.f32.partialorder %v1461, 0.0
      %vm1476 = vcmp.gt.f32.partialorder %v1377, 0.0
      %vm1477 = vcmp.gt.f32.partialorder %v1406, 0.0
      %vm1478 = vcmp.gt.f32.partialorder %v1435, 0.0
      %vm1479 = vcmp.gt.f32.partialorder %v1464, 0.0
      %vm1480 = vcmp.gt.f32.partialorder %v1380, 0.0
      %vm1481 = vcmp.gt.f32.partialorder %v1409, 0.0
      %vm1482 = vcmp.gt.f32.partialorder %v1438, 0.0
      %vm1483 = vcmp.gt.f32.partialorder %v1467, 0.0
      %vm1484 = vcmp.gt.f32.partialorder %v1383, 0.0
      %vm1485 = vcmp.gt.f32.partialorder %v1412, 0.0
      %vm1486 = vcmp.gt.f32.partialorder %v1441, 0.0
      %vm1487 = vcmp.gt.f32.partialorder %v1470, 0.0
      %v1488 = vmin.f32 %v1374, 0.0
      %v1489 = vmin.f32 %v1403, 0.0
      %v1490 = vmin.f32 %v1432, 0.0
      %v1491 = vmin.f32 %v1461, 0.0
      %v1492 = vmin.f32 %v1377, 0.0
      %v1493 = vmin.f32 %v1406, 0.0
      %v1494 = vmin.f32 %v1435, 0.0
      %v1495 = vmin.f32 %v1464, 0.0
      %v1496 = vmin.f32 %v1380, 0.0
      %v1497 = vmin.f32 %v1409, 0.0
      %v1498 = vmin.f32 %v1438, 0.0
      %v1499 = vmin.f32 %v1467, 0.0
      %v1500 = vmin.f32 %v1383, 0.0
      %v1501 = vmin.f32 %v1412, 0.0
      %v1502 = vmin.f32 %v1441, 0.0
      %v1503 = vmin.f32 %v1470, 0.0
      %v1504 = vmul.f32 %v1488, 1.442695
      %v1505 = vpow.pop %v1504
      %v1506 = vmul.f32 %v1489, 1.442695
      %v1507 = vpow.pop %v1506
      %v1508 = vmul.f32 %v1490, 1.442695
      %v1509 = vpow.pop %v1508
      %v1510 = vmul.f32 %v1491, 1.442695
      %v1511 = vpow.pop %v1510
      %v1512 = vmul.f32 %v1492, 1.442695
      %v1513 = vpow.pop %v1512
      %v1514 = vmul.f32 %v1493, 1.442695
      %v1515 = vpow.pop %v1514
      %v1516 = vmul.f32 %v1494, 1.442695
      %v1517 = vpow.pop %v1516
      %v1518 = vmul.f32 %v1495, 1.442695
      %v1519 = vpow.pop %v1518
      %v1520 = vmul.f32 %v1496, 1.442695
      %v1521 = vpow.pop %v1520
      %v1522 = vmul.f32 %v1497, 1.442695
      %v1523 = vpow.pop %v1522
      %v1524 = vmul.f32 %v1498, 1.442695
      %v1525 = vpow.pop %v1524
      %v1526 = vmul.f32 %v1499, 1.442695
      %v1527 = vpow.pop %v1526
      %v1528 = vmul.f32 %v1500, 1.442695
      %v1529 = vpow.pop %v1528
      %v1530 = vmul.f32 %v1501, 1.442695
      %v1531 = vpow.pop %v1530
      %v1532 = vmul.f32 %v1502, 1.442695
      %v1533 = vpow.pop %v1532
      %v1534 = vmul.f32 %v1503, 1.442695
      %v1535 = vpow.pop %v1534
      %v1536 = vsub.f32 %v1505, 1.0
      %v1537 = vsub.f32 %v1507, 1.0
      %v1538 = vsub.f32 %v1509, 1.0
      %v1539 = vsub.f32 %v1511, 1.0
      %v1540 = vsub.f32 %v1513, 1.0
      %v1541 = vsub.f32 %v1515, 1.0
      %v1542 = vsub.f32 %v1517, 1.0
      %v1543 = vsub.f32 %v1519, 1.0
      %v1544 = vsub.f32 %v1521, 1.0
      %v1545 = vsub.f32 %v1523, 1.0
      %v1546 = vsub.f32 %v1525, 1.0
      %v1547 = vsub.f32 %v1527, 1.0
      %v1548 = vsub.f32 %v1529, 1.0
      %v1549 = vsub.f32 %v1531, 1.0
      %v1550 = vsub.f32 %v1533, 1.0
      %v1551 = vsub.f32 %v1535, 1.0
      %v1552 = vsel %vm1472, %v1374, %v1536
      %v1553 = vsel %vm1473, %v1403, %v1537
      %v1554 = vsel %vm1474, %v1432, %v1538
      %v1555 = vsel %vm1475, %v1461, %v1539
      %v1556 = vsel %vm1476, %v1377, %v1540
      %v1557 = vsel %vm1477, %v1406, %v1541
      %v1558 = vsel %vm1478, %v1435, %v1542
      %v1559 = vsel %vm1479, %v1464, %v1543
      %v1560 = vsel %vm1480, %v1380, %v1544
      %v1561 = vsel %vm1481, %v1409, %v1545
      %v1562 = vsel %vm1482, %v1438, %v1546
      %v1563 = vsel %vm1483, %v1467, %v1547
      %v1564 = vsel %vm1484, %v1383, %v1548
      %v1565 = vsel %vm1485, %v1412, %v1549
      %v1566 = vsel %vm1486, %v1441, %v1550
      %v1567 = vsel %vm1487, %v1470, %v1551
      %v1568 = vadd.f32 %v1552, %v1556
      %v1569 = vadd.f32 %v1568, %v1560
      %v1570 = vadd.f32 %v1569, %v1564
      %v1571 = vrot.slane %v1570, 4
      %v1572 = vadd.f32 %v1570, %v1571
      %v1573 = vrot.slane %v1572, 2
      %v1574 = vadd.f32 %v1572, %v1573
      %v1575 = vrot.slane %v1574, 1
      %v1576 = vadd.f32 %v1574, %v1575
      %v1577 = vadd.f32 %v1553, %v1557
      %v1578 = vadd.f32 %v1577, %v1561
      %v1579 = vadd.f32 %v1578, %v1565
      %v1580 = vrot.slane %v1579, 4
      %v1581 = vadd.f32 %v1579, %v1580
      %v1582 = vrot.slane %v1581, 2
      %v1583 = vadd.f32 %v1581, %v1582
      %v1584 = vrot.slane %v1583, 1
      %v1585 = vadd.f32 %v1583, %v1584
      %v1586 = vadd.f32 %v1554, %v1558
      %v1587 = vadd.f32 %v1586, %v1562
      %v1588 = vadd.f32 %v1587, %v1566
      %v1589 = vrot.slane %v1588, 4
      %v1590 = vadd.f32 %v1588, %v1589
      %v1591 = vrot.slane %v1590, 2
      %v1592 = vadd.f32 %v1590, %v1591
      %v1593 = vrot.slane %v1592, 1
      %v1594 = vadd.f32 %v1592, %v1593
      %v1595 = vadd.f32 %v1555, %v1559
      %v1596 = vadd.f32 %v1595, %v1563
      %v1597 = vadd.f32 %v1596, %v1567
      %v1598 = vrot.slane %v1597, 4
      %v1599 = vadd.f32 %v1597, %v1598
      %v1600 = vrot.slane %v1599, 2
      %v1601 = vadd.f32 %v1599, %v1600
      %v1602 = vrot.slane %v1601, 1
      %v1603 = vadd.f32 %v1601, %v1602
      %v1604 = vrcp.pop 32.0
      %v1605 = vmul.f32 32.0, %v1604
      %v1606 = vsub.f32 1.0, %v1605
      %v1607 = vmul.f32 %v1604, %v1606
      %v1608 = vadd.f32 %v1604, %v1607
      %vm1609 = vweird.f32 %v1604
      %v1610 = vsel %vm1609, %v1604, %v1608
      %v1611 = vmul.f32 %v1576, %v1610
      %v1612 = vmul.f32 %v1585, %v1610
      %v1613 = vmul.f32 %v1594, %v1610
      %v1614 = vmul.f32 %v1603, %v1610
      %v1615 = vsub.f32 %v1552, %v1611
      %v1616 = vsub.f32 %v1553, %v1612
      %v1617 = vsub.f32 %v1554, %v1613
      %v1618 = vsub.f32 %v1555, %v1614
      %v1619 = vsub.f32 %v1556, %v1611
      %v1620 = vsub.f32 %v1557, %v1612
      %v1621 = vsub.f32 %v1558, %v1613
      %v1622 = vsub.f32 %v1559, %v1614
      %v1623 = vsub.f32 %v1560, %v1611
      %v1624 = vsub.f32 %v1561, %v1612
      %v1625 = vsub.f32 %v1562, %v1613
      %v1626 = vsub.f32 %v1563, %v1614
      %v1627 = vsub.f32 %v1564, %v1611
      %v1628 = vsub.f32 %v1565, %v1612
      %v1629 = vsub.f32 %v1566, %v1613
      %v1630 = vsub.f32 %v1567, %v1614
      %v1631 = vmul.f32 %v1615, %v1615
      %v1632 = vmul.f32 %v1616, %v1616
      %v1633 = vmul.f32 %v1617, %v1617
      %v1634 = vmul.f32 %v1618, %v1618
      %v1635 = vmul.f32 %v1619, %v1619
      %v1636 = vmul.f32 %v1620, %v1620
      %v1637 = vmul.f32 %v1621, %v1621
      %v1638 = vmul.f32 %v1622, %v1622
      %v1639 = vmul.f32 %v1623, %v1623
      %v1640 = vmul.f32 %v1624, %v1624
      %v1641 = vmul.f32 %v1625, %v1625
      %v1642 = vmul.f32 %v1626, %v1626
      %v1643 = vmul.f32 %v1627, %v1627
      %v1644 = vmul.f32 %v1628, %v1628
      %v1645 = vmul.f32 %v1629, %v1629
      %v1646 = vmul.f32 %v1630, %v1630
      %v1647 = vadd.f32 %v1631, %v1635
      %v1648 = vadd.f32 %v1647, %v1639
      %v1649 = vadd.f32 %v1648, %v1643
      %v1650 = vrot.slane %v1649, 4
      %v1651 = vadd.f32 %v1649, %v1650
      %v1652 = vrot.slane %v1651, 2
      %v1653 = vadd.f32 %v1651, %v1652
      %v1654 = vrot.slane %v1653, 1
      %v1655 = vadd.f32 %v1653, %v1654
      %v1656 = vadd.f32 %v1632, %v1636
      %v1657 = vadd.f32 %v1656, %v1640
      %v1658 = vadd.f32 %v1657, %v1644
      %v1659 = vrot.slane %v1658, 4
      %v1660 = vadd.f32 %v1658, %v1659
      %v1661 = vrot.slane %v1660, 2
      %v1662 = vadd.f32 %v1660, %v1661
      %v1663 = vrot.slane %v1662, 1
      %v1664 = vadd.f32 %v1662, %v1663
      %v1665 = vadd.f32 %v1633, %v1637
      %v1666 = vadd.f32 %v1665, %v1641
      %v1667 = vadd.f32 %v1666, %v1645
      %v1668 = vrot.slane %v1667, 4
      %v1669 = vadd.f32 %v1667, %v1668
      %v1670 = vrot.slane %v1669, 2
      %v1671 = vadd.f32 %v1669, %v1670
      %v1672 = vrot.slane %v1671, 1
      %v1673 = vadd.f32 %v1671, %v1672
      %v1674 = vadd.f32 %v1634, %v1638
      %v1675 = vadd.f32 %v1674, %v1642
      %v1676 = vadd.f32 %v1675, %v1646
      %v1677 = vrot.slane %v1676, 4
      %v1678 = vadd.f32 %v1676, %v1677
      %v1679 = vrot.slane %v1678, 2
      %v1680 = vadd.f32 %v1678, %v1679
      %v1681 = vrot.slane %v1680, 1
      %v1682 = vadd.f32 %v1680, %v1681
      %v1683 = vmul.f32 %v1655, %v1610
      %v1684 = vmul.f32 %v1664, %v1610
      %v1685 = vmul.f32 %v1673, %v1610
      %v1686 = vmul.f32 %v1682, %v1610
      %v1687 = vadd.f32 %v1683, 1e-05
      %v1688 = vadd.f32 %v1684, 1e-05
      %v1689 = vadd.f32 %v1685, 1e-05
      %v1690 = vadd.f32 %v1686, 1e-05
      %v1691 = vrsqrt.pop %v1687
      %v1692 = vmul.f32 %v1691, %v1687
      %v1693 = vmul.f32 %v1692, %v1691
      %v1694 = vmul.f32 0.5, %v1693
      %v1695 = vsub.f32 1.5, %v1694
      %v1696 = vmul.f32 %v1691, %v1695
      %vm1697 = vweird.f32 %v1687
      %vm1698 = vweird.f32 %v1691
      %vm1699 = vmor %vm1697, %vm1698
      %v1700 = vsel %vm1699, %v1691, %v1696
      %v1701 = vrsqrt.pop %v1688
      %v1702 = vmul.f32 %v1701, %v1688
      %v1703 = vmul.f32 %v1702, %v1701
      %v1704 = vmul.f32 0.5, %v1703
      %v1705 = vsub.f32 1.5, %v1704
      %v1706 = vmul.f32 %v1701, %v1705
      %vm1707 = vweird.f32 %v1688
      %vm1708 = vweird.f32 %v1701
      %vm1709 = vmor %vm1707, %vm1708
      %v1710 = vsel %vm1709, %v1701, %v1706
      %v1711 = vrsqrt.pop %v1689
      %v1712 = vmul.f32 %v1711, %v1689
      %v1713 = vmul.f32 %v1712, %v1711
      %v1714 = vmul.f32 0.5, %v1713
      %v1715 = vsub.f32 1.5, %v1714
      %v1716 = vmul.f32 %v1711, %v1715
      %vm1717 = vweird.f32 %v1689
      %vm1718 = vweird.f32 %v1711
      %vm1719 = vmor %vm1717, %vm1718
      %v1720 = vsel %vm1719, %v1711, %v1716
      %v1721 = vrsqrt.pop %v1690
      %v1722 = vmul.f32 %v1721, %v1690
      %v1723 = vmul.f32 %v1722, %v1721
      %v1724 = vmul.f32 0.5, %v1723
      %v1725 = vsub.f32 1.5, %v1724
      %v1726 = vmul.f32 %v1721, %v1725
      %vm1727 = vweird.f32 %v1690
      %vm1728 = vweird.f32 %v1721
      %vm1729 = vmor %vm1727, %vm1728
      %v1730 = vsel %vm1729, %v1721, %v1726
      %v1731 = vmul.f32 %v1615, %v1700
      %v1732 = vmul.f32 %v1616, %v1710
      %v1733 = vmul.f32 %v1617, %v1720
      %v1734 = vmul.f32 %v1618, %v1730
      %v1735 = vmul.f32 %v1619, %v1700
      %v1736 = vmul.f32 %v1620, %v1710
      %v1737 = vmul.f32 %v1621, %v1720
      %v1738 = vmul.f32 %v1622, %v1730
      %v1739 = vmul.f32 %v1623, %v1700
      %v1740 = vmul.f32 %v1624, %v1710
      %v1741 = vmul.f32 %v1625, %v1720
      %v1742 = vmul.f32 %v1626, %v1730
      %v1743 = vmul.f32 %v1627, %v1700
      %v1744 = vmul.f32 %v1628, %v1710
      %v1745 = vmul.f32 %v1629, %v1720
      %v1746 = vmul.f32 %v1630, %v1730
      %1748 = vset.pattern.permute.xlu0 0
      %1749 = vperm.xlu0 %1748, %v979
      %v1750 = vpop.permute.xlu0 %1749
      %1753 = vset.pattern.permute.xlu0 0
      %1754 = vperm.xlu0 %1753, %v980
      %v1755 = vpop.permute.xlu0 %1754
      %1758 = vset.pattern.permute.xlu0 0
      %1759 = vperm.xlu0 %1758, %v981
      %v1760 = vpop.permute.xlu0 %1759
      %1763 = vset.pattern.permute.xlu0 0
      %1764 = vperm.xlu0 %1763, %v982
      %v1765 = vpop.permute.xlu0 %1764
      %v1767 = vmul.f32 %v1731, %v1750
      %v1768 = vmul.f32 %v1732, %v1750
      %v1769 = vmul.f32 %v1733, %v1750
      %v1770 = vmul.f32 %v1734, %v1750
      %v1771 = vmul.f32 %v1735, %v1755
      %v1772 = vmul.f32 %v1736, %v1755
      %v1773 = vmul.f32 %v1737, %v1755
      %v1774 = vmul.f32 %v1738, %v1755
      %v1775 = vmul.f32 %v1739, %v1760
      %v1776 = vmul.f32 %v1740, %v1760
      %v1777 = vmul.f32 %v1741, %v1760
      %v1778 = vmul.f32 %v1742, %v1760
      %v1779 = vmul.f32 %v1743, %v1765
      %v1780 = vmul.f32 %v1744, %v1765
      %v1781 = vmul.f32 %v1745, %v1765
      %v1782 = vmul.f32 %v1746, %v1765
      %1784 = vset.pattern.permute.xlu0 0
      %1785 = vperm.xlu0 %1784, %v983
      %v1786 = vpop.permute.xlu0 %1785
      %1789 = vset.pattern.permute.xlu0 0
      %1790 = vperm.xlu0 %1789, %v984
      %v1791 = vpop.permute.xlu0 %1790
      %1794 = vset.pattern.permute.xlu0 0
      %1795 = vperm.xlu0 %1794, %v985
      %v1796 = vpop.permute.xlu0 %1795
      %1799 = vset.pattern.permute.xlu0 0
      %1800 = vperm.xlu0 %1799, %v986
      %v1801 = vpop.permute.xlu0 %1800
      %v1803 = vadd.f32 %v1767, %v1786
      %v1804 = vadd.f32 %v1768, %v1786
      %v1805 = vadd.f32 %v1769, %v1786
      %v1806 = vadd.f32 %v1770, %v1786
      %v1807 = vadd.f32 %v1771, %v1791
      %v1808 = vadd.f32 %v1772, %v1791
      %v1809 = vadd.f32 %v1773, %v1791
      %v1810 = vadd.f32 %v1774, %v1791
      %v1811 = vadd.f32 %v1775, %v1796
      %v1812 = vadd.f32 %v1776, %v1796
      %v1813 = vadd.f32 %v1777, %v1796
      %v1814 = vadd.f32 %v1778, %v1796
      %v1815 = vadd.f32 %v1779, %v1801
      %v1816 = vadd.f32 %v1780, %v1801
      %v1817 = vadd.f32 %v1781, %v1801
      %v1818 = vadd.f32 %v1782, %v1801
      %1820 = vset.pattern.permute.xlu0 0
      %1821 = vperm.xlu0 %1820, %v996
      %v1822 = vpop.permute.xlu0 %1821
      %1825 = vset.pattern.permute.xlu0 0
      %1826 = vperm.xlu0 %1825, %v997
      %v1827 = vpop.permute.xlu0 %1826
      %1830 = vset.pattern.permute.xlu0 0
      %1831 = vperm.xlu0 %1830, %v998
      %v1832 = vpop.permute.xlu0 %1831
      %1835 = vset.pattern.permute.xlu0 0
      %1836 = vperm.xlu0 %1835, %v999
      %v1837 = vpop.permute.xlu0 %1836
      %1840 = vset.pattern.permute.xlu0 0
      %1841 = vperm.xlu0 %1840, %v1000
      %v1842 = vpop.permute.xlu0 %1841
      %1845 = vset.pattern.permute.xlu0 0
      %1846 = vperm.xlu0 %1845, %v1001
      %v1847 = vpop.permute.xlu0 %1846
      %1850 = vset.pattern.permute.xlu0 0
      %1851 = vperm.xlu0 %1850, %v1002
      %v1852 = vpop.permute.xlu0 %1851
      %1855 = vset.pattern.permute.xlu0 0
      %1856 = vperm.xlu0 %1855, %v1003
      %v1857 = vpop.permute.xlu0 %1856
      %1860 = vset.pattern.permute.xlu0 0
      %1861 = vperm.xlu0 %1860, %v1004
      %v1862 = vpop.permute.xlu0 %1861
      %vm1864 = vcmask 261120
      %v1866 = vsel %vm1864, %v987, 0
      %v1869 = vsel %vm1864, %v988, 0
      %v1872 = vsel %vm1864, %v989, 0
      %v1875 = vsel %vm1864, %v990, 0
      %v1878 = vsel %vm1864, %v991, 0
      %v1881 = vsel %vm1864, %v992, 0
      %v1884 = vsel %vm1864, %v993, 0
      %v1887 = vsel %vm1864, %v994, 0
      %v1890 = vsel %vm1864, %v995, 0
      %1892 = vmatpush.msra.mxu0 0.0
      %1893 = vmatpush.msra.mxu0 0.0
      %1894 = vmatpush.msra.mxu0 0.0
      %1895 = vmatpush.msra.mxu0 0.0
      %1896 = vmatpush.msra.mxu0 0.0
      %1897 = vmatpush.msra.mxu0 0.0
      %1898 = vmatpush.msra.mxu0 0.0
      %1899 = vmatpush.msra.mxu0 0.0
      %1900 = vmatpush.msra.mxu0 0.0
      %1901 = vmatpush.msra.mxu0 0.0
      %1902 = vmatpush.msra.mxu0 0.0
      %1903 = vmatpush.msra.mxu0 0.0
      %1904 = vmatpush.msra.mxu0 %v1815
      %1905 = vmatpush.msra.mxu0 %v1811
      %1906 = vmatpush.msra.mxu0 %v1807
      %1907 = vmatpush.msra.mxu0 %v1803
      %1908 = vmatmul.f32.gmra.mxu0 %v1866
      %v1909 = vpop.f32.mrf.mxu0
      %v1910 = vadd.f32 %v1822, %v1909
      %1911 = vmatmul.f32.gmra.mxu0 %v1869
      %v1912 = vpop.f32.mrf.mxu0
      %v1913 = vadd.f32 %v1827, %v1912
      %1914 = vmatmul.f32.gmra.mxu0 %v1872
      %v1915 = vpop.f32.mrf.mxu0
      %v1916 = vadd.f32 %v1832, %v1915
      %1917 = vmatmul.f32.gmra.mxu0 %v1875
      %v1918 = vpop.f32.mrf.mxu0
      %v1919 = vadd.f32 %v1837, %v1918
      %1920 = vmatmul.f32.gmra.mxu0 %v1878
      %v1921 = vpop.f32.mrf.mxu0
      %v1922 = vadd.f32 %v1842, %v1921
      %1923 = vmatmul.f32.gmra.mxu0 %v1881
      %v1924 = vpop.f32.mrf.mxu0
      %v1925 = vadd.f32 %v1847, %v1924
      %1926 = vmatmul.f32.gmra.mxu0 %v1884
      %v1927 = vpop.f32.mrf.mxu0
      %v1928 = vadd.f32 %v1852, %v1927
      %1929 = vmatmul.f32.gmra.mxu0 %v1887
      %v1930 = vpop.f32.mrf.mxu0
      %v1931 = vadd.f32 %v1857, %v1930
      %1932 = vmatmul.f32.gmra.mxu0 %v1890
      %v1933 = vpop.f32.mrf.mxu0
      %v1934 = vadd.f32 %v1862, %v1933
      %1935 = vdwg.mxu0
      %1936 = vmatpush.msra.mxu0 0.0
      %1937 = vmatpush.msra.mxu0 0.0
      %1938 = vmatpush.msra.mxu0 0.0
      %1939 = vmatpush.msra.mxu0 0.0
      %1940 = vmatpush.msra.mxu0 0.0
      %1941 = vmatpush.msra.mxu0 0.0
      %1942 = vmatpush.msra.mxu0 0.0
      %1943 = vmatpush.msra.mxu0 0.0
      %1944 = vmatpush.msra.mxu0 0.0
      %1945 = vmatpush.msra.mxu0 0.0
      %1946 = vmatpush.msra.mxu0 0.0
      %1947 = vmatpush.msra.mxu0 0.0
      %1948 = vmatpush.msra.mxu0 %v1816
      %1949 = vmatpush.msra.mxu0 %v1812
      %1950 = vmatpush.msra.mxu0 %v1808
      %1951 = vmatpush.msra.mxu0 %v1804
      %1952 = vmatmul.f32.gmra.mxu0 %v1866
      %v1953 = vpop.f32.mrf.mxu0
      %v1954 = vadd.f32 %v1822, %v1953
      %1955 = vmatmul.f32.gmra.mxu0 %v1869
      %v1956 = vpop.f32.mrf.mxu0
      %v1957 = vadd.f32 %v1827, %v1956
      %1958 = vmatmul.f32.gmra.mxu0 %v1872
      %v1959 = vpop.f32.mrf.mxu0
      %v1960 = vadd.f32 %v1832, %v1959
      %1961 = vmatmul.f32.gmra.mxu0 %v1875
      %v1962 = vpop.f32.mrf.mxu0
      %v1963 = vadd.f32 %v1837, %v1962
      %1964 = vmatmul.f32.gmra.mxu0 %v1878
      %v1965 = vpop.f32.mrf.mxu0
      %v1966 = vadd.f32 %v1842, %v1965
      %1967 = vmatmul.f32.gmra.mxu0 %v1881
      %v1968 = vpop.f32.mrf.mxu0
      %v1969 = vadd.f32 %v1847, %v1968
      %1970 = vmatmul.f32.gmra.mxu0 %v1884
      %v1971 = vpop.f32.mrf.mxu0
      %v1972 = vadd.f32 %v1852, %v1971
      %1973 = vmatmul.f32.gmra.mxu0 %v1887
      %v1974 = vpop.f32.mrf.mxu0
      %v1975 = vadd.f32 %v1857, %v1974
      %1976 = vmatmul.f32.gmra.mxu0 %v1890
      %v1977 = vpop.f32.mrf.mxu0
      %v1978 = vadd.f32 %v1862, %v1977
      %1979 = vdwg.mxu0
      %1980 = vmatpush.msra.mxu0 0.0
      %1981 = vmatpush.msra.mxu0 0.0
      %1982 = vmatpush.msra.mxu0 0.0
      %1983 = vmatpush.msra.mxu0 0.0
      %1984 = vmatpush.msra.mxu0 0.0
      %1985 = vmatpush.msra.mxu0 0.0
      %1986 = vmatpush.msra.mxu0 0.0
      %1987 = vmatpush.msra.mxu0 0.0
      %1988 = vmatpush.msra.mxu0 0.0
      %1989 = vmatpush.msra.mxu0 0.0
      %1990 = vmatpush.msra.mxu0 0.0
      %1991 = vmatpush.msra.mxu0 0.0
      %1992 = vmatpush.msra.mxu0 %v1817
      %1993 = vmatpush.msra.mxu0 %v1813
      %1994 = vmatpush.msra.mxu0 %v1809
      %1995 = vmatpush.msra.mxu0 %v1805
      %1996 = vmatmul.f32.gmra.mxu0 %v1866
      %v1997 = vpop.f32.mrf.mxu0
      %v1998 = vadd.f32 %v1822, %v1997
      %1999 = vmatmul.f32.gmra.mxu0 %v1869
      %v2000 = vpop.f32.mrf.mxu0
      %v2001 = vadd.f32 %v1827, %v2000
      %2002 = vmatmul.f32.gmra.mxu0 %v1872
      %v2003 = vpop.f32.mrf.mxu0
      %v2004 = vadd.f32 %v1832, %v2003
      %2005 = vmatmul.f32.gmra.mxu0 %v1875
      %v2006 = vpop.f32.mrf.mxu0
      %v2007 = vadd.f32 %v1837, %v2006
      %2008 = vmatmul.f32.gmra.mxu0 %v1878
      %v2009 = vpop.f32.mrf.mxu0
      %v2010 = vadd.f32 %v1842, %v2009
      %2011 = vmatmul.f32.gmra.mxu0 %v1881
      %v2012 = vpop.f32.mrf.mxu0
      %v2013 = vadd.f32 %v1847, %v2012
      %2014 = vmatmul.f32.gmra.mxu0 %v1884
      %v2015 = vpop.f32.mrf.mxu0
      %v2016 = vadd.f32 %v1852, %v2015
      %2017 = vmatmul.f32.gmra.mxu0 %v1887
      %v2018 = vpop.f32.mrf.mxu0
      %v2019 = vadd.f32 %v1857, %v2018
      %2020 = vmatmul.f32.gmra.mxu0 %v1890
      %v2021 = vpop.f32.mrf.mxu0
      %v2022 = vadd.f32 %v1862, %v2021
      %2023 = vdwg.mxu0
      %2024 = vmatpush.msra.mxu0 0.0
      %2025 = vmatpush.msra.mxu0 0.0
      %2026 = vmatpush.msra.mxu0 0.0
      %2027 = vmatpush.msra.mxu0 0.0
      %2028 = vmatpush.msra.mxu0 0.0
      %2029 = vmatpush.msra.mxu0 0.0
      %2030 = vmatpush.msra.mxu0 0.0
      %2031 = vmatpush.msra.mxu0 0.0
      %2032 = vmatpush.msra.mxu0 0.0
      %2033 = vmatpush.msra.mxu0 0.0
      %2034 = vmatpush.msra.mxu0 0.0
      %2035 = vmatpush.msra.mxu0 0.0
      %2036 = vmatpush.msra.mxu0 %v1818
      %2037 = vmatpush.msra.mxu0 %v1814
      %2038 = vmatpush.msra.mxu0 %v1810
      %2039 = vmatpush.msra.mxu0 %v1806
      %2040 = vmatmul.f32.gmra.mxu0 %v1866
      %v2041 = vpop.f32.mrf.mxu0
      %v2042 = vadd.f32 %v1822, %v2041
      %2043 = vmatmul.f32.gmra.mxu0 %v1869
      %v2044 = vpop.f32.mrf.mxu0
      %v2045 = vadd.f32 %v1827, %v2044
      %2046 = vmatmul.f32.gmra.mxu0 %v1872
      %v2047 = vpop.f32.mrf.mxu0
      %v2048 = vadd.f32 %v1832, %v2047
      %2049 = vmatmul.f32.gmra.mxu0 %v1875
      %v2050 = vpop.f32.mrf.mxu0
      %v2051 = vadd.f32 %v1837, %v2050
      %2052 = vmatmul.f32.gmra.mxu0 %v1878
      %v2053 = vpop.f32.mrf.mxu0
      %v2054 = vadd.f32 %v1842, %v2053
      %2055 = vmatmul.f32.gmra.mxu0 %v1881
      %v2056 = vpop.f32.mrf.mxu0
      %v2057 = vadd.f32 %v1847, %v2056
      %2058 = vmatmul.f32.gmra.mxu0 %v1884
      %v2059 = vpop.f32.mrf.mxu0
      %v2060 = vadd.f32 %v1852, %v2059
      %2061 = vmatmul.f32.gmra.mxu0 %v1887
      %v2062 = vpop.f32.mrf.mxu0
      %v2063 = vadd.f32 %v1857, %v2062
      %2064 = vmatmul.f32.gmra.mxu0 %v1890
      %v2065 = vpop.f32.mrf.mxu0
      %v2066 = vadd.f32 %v1862, %v2065
      %2067 = vdwg.mxu0
      %vm2068 = vcmask 1043456
      %v2069 = vsel %vm2068, %v1934, -inf
      %v2070 = vsel %vm2068, %v1978, -inf
      %v2071 = vsel %vm2068, %v2022, -inf
      %v2072 = vsel %vm2068, %v2066, -inf
      %v2073 = vmax.f32 %v2069, %v2070
      %v2074 = vmax.f32 %v2071, %v2072
      %v2075 = vmax.f32 %v2073, %v2074
      %2076 = vmax.xlane.f32.xlu0 %v2075
      %v2077 = vpop.xlane.xlu0 %2076
      %v2078 = vsub.f32 %v1934, %v2077
      %v2079 = vsub.f32 %v1978, %v2077
      %v2080 = vsub.f32 %v2022, %v2077
      %v2081 = vsub.f32 %v2066, %v2077
      %v2082 = vmul.f32 %v2078, 1.442695
      %v2083 = vpow.pop %v2082
      %v2084 = vmul.f32 %v2079, 1.442695
      %v2085 = vpow.pop %v2084
      %v2086 = vmul.f32 %v2080, 1.442695
      %v2087 = vpow.pop %v2086
      %v2088 = vmul.f32 %v2081, 1.442695
      %v2089 = vpow.pop %v2088
      %v2090 = vsel %vm2068, %v2083, 0.0
      %v2091 = vsel %vm2068, %v2085, 0.0
      %v2092 = vadd.f32 %v2090, %v2091
      %v2093 = vsel %vm2068, %v2087, 0.0
      %v2094 = vadd.f32 %v2092, %v2093
      %v2095 = vsel %vm2068, %v2089, 0.0
      %v2096 = vadd.f32 %v2094, %v2095
      %2097 = vadd.xlane.f32.xlu0 %v2096
      %v2098 = vpop.xlane.xlu0 %2097
      %v2099 = vrcp.pop %v2098
      %v2100 = vmul.f32 %v2098, %v2099
      %v2101 = vsub.f32 1.0, %v2100
      %v2102 = vmul.f32 %v2099, %v2101
      %v2103 = vadd.f32 %v2099, %v2102
      %vm2104 = vweird.f32 %v2098
      %vm2105 = vweird.f32 %v2099
      %vm2106 = vmor %vm2104, %vm2105
      %v2107 = vsel %vm2106, %v2099, %v2103
      %v2108 = vand.u32 2147483647, %v2098
      %vm2109 = vcmp.eq.f32.partialorder %v2108, 8.507059e+37
      %v2110 = vand.u32 %v2098, 2147483648
      %v2111 = vor.u32 1.1754944e-38, %v2110
      %v2112 = vsel %vm2109, %v2111, %v2107
      %v2113 = vmul.f32 %v2083, %v2112
      %v2114 = vmul.f32 %v2085, %v2112
      %v2115 = vmul.f32 %v2087, %v2112
      %v2116 = vmul.f32 %v2089, %v2112
      %v2117 = vperm.slane %v2113, 0
      %v2118 = vperm.slane %v2114, 0
      %v2119 = vperm.slane %v2115, 0
      %v2120 = vperm.slane %v2116, 0
      %v2121 = vmul.f32 %v1910, %v2117
      %v2122 = vmul.f32 %v1954, %v2118
      %v2123 = vmul.f32 %v1998, %v2119
      %v2124 = vmul.f32 %v2042, %v2120
      %v2125 = vadd.f32 %v2121, %v2122
      %v2126 = vadd.f32 %v2125, %v2123
      %v2127 = vadd.f32 %v2126, %v2124
      %2128 = vadd.xlane.f32.xlu0 %v2127
      %v2129 = vpop.xlane.xlu0 %2128
      %v2130 = vperm.slane %v2113, 1
      %v2131 = vperm.slane %v2114, 1
      %v2132 = vperm.slane %v2115, 1
      %v2133 = vperm.slane %v2116, 1
      %v2134 = vmul.f32 %v1913, %v2130
      %v2135 = vmul.f32 %v1957, %v2131
      %v2136 = vmul.f32 %v2001, %v2132
      %v2137 = vmul.f32 %v2045, %v2133
      %v2138 = vadd.f32 %v2134, %v2135
      %v2139 = vadd.f32 %v2138, %v2136
      %v2140 = vadd.f32 %v2139, %v2137
      %2141 = vadd.xlane.f32.xlu0 %v2140
      %v2142 = vpop.xlane.xlu0 %2141
      %v2143 = vperm.slane %v2113, 2
      %v2144 = vperm.slane %v2114, 2
      %v2145 = vperm.slane %v2115, 2
      %v2146 = vperm.slane %v2116, 2
      %v2147 = vmul.f32 %v1916, %v2143
      %v2148 = vmul.f32 %v1960, %v2144
      %v2149 = vmul.f32 %v2004, %v2145
      %v2150 = vmul.f32 %v2048, %v2146
      %v2151 = vadd.f32 %v2147, %v2148
      %v2152 = vadd.f32 %v2151, %v2149
      %v2153 = vadd.f32 %v2152, %v2150
      %2154 = vadd.xlane.f32.xlu0 %v2153
      %v2155 = vpop.xlane.xlu0 %2154
      %v2156 = vperm.slane %v2113, 3
      %v2157 = vperm.slane %v2114, 3
      %v2158 = vperm.slane %v2115, 3
      %v2159 = vperm.slane %v2116, 3
      %v2160 = vmul.f32 %v1919, %v2156
      %v2161 = vmul.f32 %v1963, %v2157
      %v2162 = vmul.f32 %v2007, %v2158
      %v2163 = vmul.f32 %v2051, %v2159
      %v2164 = vadd.f32 %v2160, %v2161
      %v2165 = vadd.f32 %v2164, %v2162
      %v2166 = vadd.f32 %v2165, %v2163
      %2167 = vadd.xlane.f32.xlu0 %v2166
      %v2168 = vpop.xlane.xlu0 %2167
      %v2169 = vmax.f32 %v1922, 0.0
      %v2170 = vmax.f32 %v1966, 0.0
      %v2171 = vmax.f32 %v2010, 0.0
      %v2172 = vmax.f32 %v2054, 0.0
      %v2173 = vmax.f32 %v1925, 0.0
      %v2174 = vmax.f32 %v1969, 0.0
      %v2175 = vmax.f32 %v2013, 0.0
      %v2176 = vmax.f32 %v2057, 0.0
      %v2177 = vmax.f32 %v1928, 0.0
      %v2178 = vmax.f32 %v1972, 0.0
      %v2179 = vmax.f32 %v2016, 0.0
      %v2180 = vmax.f32 %v2060, 0.0
      %v2181 = vmax.f32 %v1931, 0.0
      %v2182 = vmax.f32 %v1975, 0.0
      %v2183 = vmax.f32 %v2019, 0.0
      %v2184 = vmax.f32 %v2063, 0.0
      %2186 = vset.pattern.permute.xlu0 0
      %2187 = vperm.xlu0 %2186, %v2129
      %v2188 = vpop.permute.xlu0 %2187
      %2191 = vset.pattern.permute.xlu0 0
      %2192 = vperm.xlu0 %2191, %v2142
      %v2193 = vpop.permute.xlu0 %2192
      %2196 = vset.pattern.permute.xlu0 0
      %2197 = vperm.xlu0 %2196, %v2155
      %v2198 = vpop.permute.xlu0 %2197
      %2201 = vset.pattern.permute.xlu0 0
      %2202 = vperm.xlu0 %2201, %v2168
      %v2203 = vpop.permute.xlu0 %2202
      %v2205 = vmul.f32 %v2169, %v2188
      %v2206 = vmul.f32 %v2170, %v2188
      %v2207 = vmul.f32 %v2171, %v2188
      %v2208 = vmul.f32 %v2172, %v2188
      %v2209 = vmul.f32 %v2173, %v2193
      %v2210 = vmul.f32 %v2174, %v2193
      %v2211 = vmul.f32 %v2175, %v2193
      %v2212 = vmul.f32 %v2176, %v2193
      %v2213 = vmul.f32 %v2177, %v2198
      %v2214 = vmul.f32 %v2178, %v2198
      %v2215 = vmul.f32 %v2179, %v2198
      %v2216 = vmul.f32 %v2180, %v2198
      %v2217 = vmul.f32 %v2181, %v2203
      %v2218 = vmul.f32 %v2182, %v2203
      %v2219 = vmul.f32 %v2183, %v2203
      %v2220 = vmul.f32 %v2184, %v2203
      %2222 = vset.pattern.permute.xlu0 0
      %2223 = vperm.xlu0 %2222, %v1009
      %v2224 = vpop.permute.xlu0 %2223
      %2227 = vset.pattern.permute.xlu0 0
      %2228 = vperm.xlu0 %2227, %v1010
      %v2229 = vpop.permute.xlu0 %2228
      %2232 = vset.pattern.permute.xlu0 0
      %2233 = vperm.xlu0 %2232, %v1011
      %v2234 = vpop.permute.xlu0 %2233
      %2237 = vset.pattern.permute.xlu0 0
      %2238 = vperm.xlu0 %2237, %v1012
      %v2239 = vpop.permute.xlu0 %2238
      %v2242 = vsel %vm1864, %v1005, 0
      %v2245 = vsel %vm1864, %v1006, 0
      %v2248 = vsel %vm1864, %v1007, 0
      %v2251 = vsel %vm1864, %v1008, 0
      %2253 = vmatpush.msra.mxu0 0.0
      %2254 = vmatpush.msra.mxu0 0.0
      %2255 = vmatpush.msra.mxu0 0.0
      %2256 = vmatpush.msra.mxu0 0.0
      %2257 = vmatpush.msra.mxu0 0.0
      %2258 = vmatpush.msra.mxu0 0.0
      %2259 = vmatpush.msra.mxu0 0.0
      %2260 = vmatpush.msra.mxu0 0.0
      %2261 = vmatpush.msra.mxu0 0.0
      %2262 = vmatpush.msra.mxu0 0.0
      %2263 = vmatpush.msra.mxu0 0.0
      %2264 = vmatpush.msra.mxu0 0.0
      %2265 = vmatpush.msra.mxu0 %v2217
      %2266 = vmatpush.msra.mxu0 %v2213
      %2267 = vmatpush.msra.mxu0 %v2209
      %2268 = vmatpush.msra.mxu0 %v2205
      %2269 = vmatmul.f32.gmra.mxu0 %v2242
      %v2270 = vpop.f32.mrf.mxu0
      %v2271 = vadd.f32 %v2224, %v2270
      %2272 = vmatmul.f32.gmra.mxu0 %v2245
      %v2273 = vpop.f32.mrf.mxu0
      %v2274 = vadd.f32 %v2229, %v2273
      %2275 = vmatmul.f32.gmra.mxu0 %v2248
      %v2276 = vpop.f32.mrf.mxu0
      %v2277 = vadd.f32 %v2234, %v2276
      %2278 = vmatmul.f32.gmra.mxu0 %v2251
      %v2279 = vpop.f32.mrf.mxu0
      %v2280 = vadd.f32 %v2239, %v2279
      %2281 = vdwg.mxu0
      %2282 = vmatpush.msra.mxu0 0.0
      %2283 = vmatpush.msra.mxu0 0.0
      %2284 = vmatpush.msra.mxu0 0.0
      %2285 = vmatpush.msra.mxu0 0.0
      %2286 = vmatpush.msra.mxu0 0.0
      %2287 = vmatpush.msra.mxu0 0.0
      %2288 = vmatpush.msra.mxu0 0.0
      %2289 = vmatpush.msra.mxu0 0.0
      %2290 = vmatpush.msra.mxu0 0.0
      %2291 = vmatpush.msra.mxu0 0.0
      %2292 = vmatpush.msra.mxu0 0.0
      %2293 = vmatpush.msra.mxu0 0.0
      %2294 = vmatpush.msra.mxu0 %v2218
      %2295 = vmatpush.msra.mxu0 %v2214
      %2296 = vmatpush.msra.mxu0 %v2210
      %2297 = vmatpush.msra.mxu0 %v2206
      %2298 = vmatmul.f32.gmra.mxu0 %v2242
      %v2299 = vpop.f32.mrf.mxu0
      %v2300 = vadd.f32 %v2224, %v2299
      %2301 = vmatmul.f32.gmra.mxu0 %v2245
      %v2302 = vpop.f32.mrf.mxu0
      %v2303 = vadd.f32 %v2229, %v2302
      %2304 = vmatmul.f32.gmra.mxu0 %v2248
      %v2305 = vpop.f32.mrf.mxu0
      %v2306 = vadd.f32 %v2234, %v2305
      %2307 = vmatmul.f32.gmra.mxu0 %v2251
      %v2308 = vpop.f32.mrf.mxu0
      %v2309 = vadd.f32 %v2239, %v2308
      %2310 = vdwg.mxu0
      %2311 = vmatpush.msra.mxu0 0.0
      %2312 = vmatpush.msra.mxu0 0.0
      %2313 = vmatpush.msra.mxu0 0.0
      %2314 = vmatpush.msra.mxu0 0.0
      %2315 = vmatpush.msra.mxu0 0.0
      %2316 = vmatpush.msra.mxu0 0.0
      %2317 = vmatpush.msra.mxu0 0.0
      %2318 = vmatpush.msra.mxu0 0.0
      %2319 = vmatpush.msra.mxu0 0.0
      %2320 = vmatpush.msra.mxu0 0.0
      %2321 = vmatpush.msra.mxu0 0.0
      %2322 = vmatpush.msra.mxu0 0.0
      %2323 = vmatpush.msra.mxu0 %v2219
      %2324 = vmatpush.msra.mxu0 %v2215
      %2325 = vmatpush.msra.mxu0 %v2211
      %2326 = vmatpush.msra.mxu0 %v2207
      %2327 = vmatmul.f32.gmra.mxu0 %v2242
      %v2328 = vpop.f32.mrf.mxu0
      %v2329 = vadd.f32 %v2224, %v2328
      %2330 = vmatmul.f32.gmra.mxu0 %v2245
      %v2331 = vpop.f32.mrf.mxu0
      %v2332 = vadd.f32 %v2229, %v2331
      %2333 = vmatmul.f32.gmra.mxu0 %v2248
      %v2334 = vpop.f32.mrf.mxu0
      %v2335 = vadd.f32 %v2234, %v2334
      %2336 = vmatmul.f32.gmra.mxu0 %v2251
      %v2337 = vpop.f32.mrf.mxu0
      %v2338 = vadd.f32 %v2239, %v2337
      %2339 = vdwg.mxu0
      %2340 = vmatpush.msra.mxu0 0.0
      %2341 = vmatpush.msra.mxu0 0.0
      %2342 = vmatpush.msra.mxu0 0.0
      %2343 = vmatpush.msra.mxu0 0.0
      %2344 = vmatpush.msra.mxu0 0.0
      %2345 = vmatpush.msra.mxu0 0.0
      %2346 = vmatpush.msra.mxu0 0.0
      %2347 = vmatpush.msra.mxu0 0.0
      %2348 = vmatpush.msra.mxu0 0.0
      %2349 = vmatpush.msra.mxu0 0.0
      %2350 = vmatpush.msra.mxu0 0.0
      %2351 = vmatpush.msra.mxu0 0.0
      %2352 = vmatpush.msra.mxu0 %v2220
      %2353 = vmatpush.msra.mxu0 %v2216
      %2354 = vmatpush.msra.mxu0 %v2212
      %2355 = vmatpush.msra.mxu0 %v2208
      %2356 = vmatmul.f32.gmra.mxu0 %v2242
      %v2357 = vpop.f32.mrf.mxu0
      %v2358 = vadd.f32 %v2224, %v2357
      %2359 = vmatmul.f32.gmra.mxu0 %v2245
      %v2360 = vpop.f32.mrf.mxu0
      %v2361 = vadd.f32 %v2229, %v2360
      %2362 = vmatmul.f32.gmra.mxu0 %v2248
      %v2363 = vpop.f32.mrf.mxu0
      %v2364 = vadd.f32 %v2234, %v2363
      %2365 = vmatmul.f32.gmra.mxu0 %v2251
      %v2366 = vpop.f32.mrf.mxu0
      %v2367 = vadd.f32 %v2239, %v2366
      %2368 = vdwg.mxu0
      %v2369 = vmul.f32 %v2271, 0.5
      %v2370 = vmul.f32 %v2300, 0.5
      %v2371 = vmul.f32 %v2329, 0.5
      %v2372 = vmul.f32 %v2358, 0.5
      %v2373 = vmul.f32 %v2274, 0.5
      %v2374 = vmul.f32 %v2303, 0.5
      %v2375 = vmul.f32 %v2332, 0.5
      %v2376 = vmul.f32 %v2361, 0.5
      %v2377 = vmul.f32 %v2277, 0.5
      %v2378 = vmul.f32 %v2306, 0.5
      %v2379 = vmul.f32 %v2335, 0.5
      %v2380 = vmul.f32 %v2364, 0.5
      %v2381 = vmul.f32 %v2280, 0.5
      %v2382 = vmul.f32 %v2309, 0.5
      %v2383 = vmul.f32 %v2338, 0.5
      %v2384 = vmul.f32 %v2367, 0.5
      %v2385 = vmul.f32 %v1552, 0.5
      %v2386 = vmul.f32 %v1553, 0.5
      %v2387 = vmul.f32 %v1554, 0.5
      %v2388 = vmul.f32 %v1555, 0.5
      %v2389 = vmul.f32 %v1556, 0.5
      %v2390 = vmul.f32 %v1557, 0.5
      %v2391 = vmul.f32 %v1558, 0.5
      %v2392 = vmul.f32 %v1559, 0.5
      %v2393 = vmul.f32 %v1560, 0.5
      %v2394 = vmul.f32 %v1561, 0.5
      %v2395 = vmul.f32 %v1562, 0.5
      %v2396 = vmul.f32 %v1563, 0.5
      %v2397 = vmul.f32 %v1564, 0.5
      %v2398 = vmul.f32 %v1565, 0.5
      %v2399 = vmul.f32 %v1566, 0.5
      %v2400 = vmul.f32 %v1567, 0.5
      %v2401 = vadd.f32 %v2369, %v2385
      %v2402 = vadd.f32 %v2370, %v2386
      %v2403 = vadd.f32 %v2371, %v2387
      %v2404 = vadd.f32 %v2372, %v2388
      %v2405 = vadd.f32 %v2373, %v2389
      %v2406 = vadd.f32 %v2374, %v2390
      %v2407 = vadd.f32 %v2375, %v2391
      %v2408 = vadd.f32 %v2376, %v2392
      %v2409 = vadd.f32 %v2377, %v2393
      %v2410 = vadd.f32 %v2378, %v2394
      %v2411 = vadd.f32 %v2379, %v2395
      %v2412 = vadd.f32 %v2380, %v2396
      %v2413 = vadd.f32 %v2381, %v2397
      %v2414 = vadd.f32 %v2382, %v2398
      %v2415 = vadd.f32 %v2383, %v2399
      %v2416 = vadd.f32 %v2384, %v2400
      %v2417 = vadd.f32 %v2401, %v2405
      %v2418 = vadd.f32 %v2417, %v2409
      %v2419 = vadd.f32 %v2418, %v2413
      %v2420 = vrot.slane %v2419, 4
      %v2421 = vadd.f32 %v2419, %v2420
      %v2422 = vrot.slane %v2421, 2
      %v2423 = vadd.f32 %v2421, %v2422
      %v2424 = vrot.slane %v2423, 1
      %v2425 = vadd.f32 %v2423, %v2424
      %v2426 = vadd.f32 %v2402, %v2406
      %v2427 = vadd.f32 %v2426, %v2410
      %v2428 = vadd.f32 %v2427, %v2414
      %v2429 = vrot.slane %v2428, 4
      %v2430 = vadd.f32 %v2428, %v2429
      %v2431 = vrot.slane %v2430, 2
      %v2432 = vadd.f32 %v2430, %v2431
      %v2433 = vrot.slane %v2432, 1
      %v2434 = vadd.f32 %v2432, %v2433
      %v2435 = vadd.f32 %v2403, %v2407
      %v2436 = vadd.f32 %v2435, %v2411
      %v2437 = vadd.f32 %v2436, %v2415
      %v2438 = vrot.slane %v2437, 4
      %v2439 = vadd.f32 %v2437, %v2438
      %v2440 = vrot.slane %v2439, 2
      %v2441 = vadd.f32 %v2439, %v2440
      %v2442 = vrot.slane %v2441, 1
      %v2443 = vadd.f32 %v2441, %v2442
      %v2444 = vadd.f32 %v2404, %v2408
      %v2445 = vadd.f32 %v2444, %v2412
      %v2446 = vadd.f32 %v2445, %v2416
      %v2447 = vrot.slane %v2446, 4
      %v2448 = vadd.f32 %v2446, %v2447
      %v2449 = vrot.slane %v2448, 2
      %v2450 = vadd.f32 %v2448, %v2449
      %v2451 = vrot.slane %v2450, 1
      %v2452 = vadd.f32 %v2450, %v2451
      %v2453 = vmul.f32 %v2425, %v1610
      %v2454 = vmul.f32 %v2434, %v1610
      %v2455 = vmul.f32 %v2443, %v1610
      %v2456 = vmul.f32 %v2452, %v1610
      %v2457 = vsub.f32 %v2401, %v2453
      %v2458 = vsub.f32 %v2402, %v2454
      %v2459 = vsub.f32 %v2403, %v2455
      %v2460 = vsub.f32 %v2404, %v2456
      %v2461 = vsub.f32 %v2405, %v2453
      %v2462 = vsub.f32 %v2406, %v2454
      %v2463 = vsub.f32 %v2407, %v2455
      %v2464 = vsub.f32 %v2408, %v2456
      %v2465 = vsub.f32 %v2409, %v2453
      %v2466 = vsub.f32 %v2410, %v2454
      %v2467 = vsub.f32 %v2411, %v2455
      %v2468 = vsub.f32 %v2412, %v2456
      %v2469 = vsub.f32 %v2413, %v2453
      %v2470 = vsub.f32 %v2414, %v2454
      %v2471 = vsub.f32 %v2415, %v2455
      %v2472 = vsub.f32 %v2416, %v2456
      %v2473 = vmul.f32 %v2457, %v2457
      %v2474 = vmul.f32 %v2458, %v2458
      %v2475 = vmul.f32 %v2459, %v2459
      %v2476 = vmul.f32 %v2460, %v2460
      %v2477 = vmul.f32 %v2461, %v2461
      %v2478 = vmul.f32 %v2462, %v2462
      %v2479 = vmul.f32 %v2463, %v2463
      %v2480 = vmul.f32 %v2464, %v2464
      %v2481 = vmul.f32 %v2465, %v2465
      %v2482 = vmul.f32 %v2466, %v2466
      %v2483 = vmul.f32 %v2467, %v2467
      %v2484 = vmul.f32 %v2468, %v2468
      %v2485 = vmul.f32 %v2469, %v2469
      %v2486 = vmul.f32 %v2470, %v2470
      %v2487 = vmul.f32 %v2471, %v2471
      %v2488 = vmul.f32 %v2472, %v2472
      %v2489 = vadd.f32 %v2473, %v2477
      %v2490 = vadd.f32 %v2489, %v2481
      %v2491 = vadd.f32 %v2490, %v2485
      %v2492 = vrot.slane %v2491, 4
      %v2493 = vadd.f32 %v2491, %v2492
      %v2494 = vrot.slane %v2493, 2
      %v2495 = vadd.f32 %v2493, %v2494
      %v2496 = vrot.slane %v2495, 1
      %v2497 = vadd.f32 %v2495, %v2496
      %v2498 = vadd.f32 %v2474, %v2478
      %v2499 = vadd.f32 %v2498, %v2482
      %v2500 = vadd.f32 %v2499, %v2486
      %v2501 = vrot.slane %v2500, 4
      %v2502 = vadd.f32 %v2500, %v2501
      %v2503 = vrot.slane %v2502, 2
      %v2504 = vadd.f32 %v2502, %v2503
      %v2505 = vrot.slane %v2504, 1
      %v2506 = vadd.f32 %v2504, %v2505
      %v2507 = vadd.f32 %v2475, %v2479
      %v2508 = vadd.f32 %v2507, %v2483
      %v2509 = vadd.f32 %v2508, %v2487
      %v2510 = vrot.slane %v2509, 4
      %v2511 = vadd.f32 %v2509, %v2510
      %v2512 = vrot.slane %v2511, 2
      %v2513 = vadd.f32 %v2511, %v2512
      %v2514 = vrot.slane %v2513, 1
      %v2515 = vadd.f32 %v2513, %v2514
      %v2516 = vadd.f32 %v2476, %v2480
      %v2517 = vadd.f32 %v2516, %v2484
      %v2518 = vadd.f32 %v2517, %v2488
      %v2519 = vrot.slane %v2518, 4
      %v2520 = vadd.f32 %v2518, %v2519
      %v2521 = vrot.slane %v2520, 2
      %v2522 = vadd.f32 %v2520, %v2521
      %v2523 = vrot.slane %v2522, 1
      %v2524 = vadd.f32 %v2522, %v2523
      %v2525 = vmul.f32 %v2497, %v1610
      %v2526 = vmul.f32 %v2506, %v1610
      %v2527 = vmul.f32 %v2515, %v1610
      %v2528 = vmul.f32 %v2524, %v1610
      %v2529 = vadd.f32 %v2525, 1e-05
      %v2530 = vadd.f32 %v2526, 1e-05
      %v2531 = vadd.f32 %v2527, 1e-05
      %v2532 = vadd.f32 %v2528, 1e-05
      %v2533 = vrsqrt.pop %v2529
      %v2534 = vmul.f32 %v2533, %v2529
      %v2535 = vmul.f32 %v2534, %v2533
      %v2536 = vmul.f32 0.5, %v2535
      %v2537 = vsub.f32 1.5, %v2536
      %v2538 = vmul.f32 %v2533, %v2537
      %vm2539 = vweird.f32 %v2529
      %vm2540 = vweird.f32 %v2533
      %vm2541 = vmor %vm2539, %vm2540
      %v2542 = vsel %vm2541, %v2533, %v2538
      %v2543 = vrsqrt.pop %v2530
      %v2544 = vmul.f32 %v2543, %v2530
      %v2545 = vmul.f32 %v2544, %v2543
      %v2546 = vmul.f32 0.5, %v2545
      %v2547 = vsub.f32 1.5, %v2546
      %v2548 = vmul.f32 %v2543, %v2547
      %vm2549 = vweird.f32 %v2530
      %vm2550 = vweird.f32 %v2543
      %vm2551 = vmor %vm2549, %vm2550
      %v2552 = vsel %vm2551, %v2543, %v2548
      %v2553 = vrsqrt.pop %v2531
      %v2554 = vmul.f32 %v2553, %v2531
      %v2555 = vmul.f32 %v2554, %v2553
      %v2556 = vmul.f32 0.5, %v2555
      %v2557 = vsub.f32 1.5, %v2556
      %v2558 = vmul.f32 %v2553, %v2557
      %vm2559 = vweird.f32 %v2531
      %vm2560 = vweird.f32 %v2553
      %vm2561 = vmor %vm2559, %vm2560
      %v2562 = vsel %vm2561, %v2553, %v2558
      %v2563 = vrsqrt.pop %v2532
      %v2564 = vmul.f32 %v2563, %v2532
      %v2565 = vmul.f32 %v2564, %v2563
      %v2566 = vmul.f32 0.5, %v2565
      %v2567 = vsub.f32 1.5, %v2566
      %v2568 = vmul.f32 %v2563, %v2567
      %vm2569 = vweird.f32 %v2532
      %vm2570 = vweird.f32 %v2563
      %vm2571 = vmor %vm2569, %vm2570
      %v2572 = vsel %vm2571, %v2563, %v2568
      %v2573 = vmul.f32 %v2457, %v2542
      %v2574 = vmul.f32 %v2458, %v2552
      %v2575 = vmul.f32 %v2459, %v2562
      %v2576 = vmul.f32 %v2460, %v2572
      %v2577 = vmul.f32 %v2461, %v2542
      %v2578 = vmul.f32 %v2462, %v2552
      %v2579 = vmul.f32 %v2463, %v2562
      %v2580 = vmul.f32 %v2464, %v2572
      %v2581 = vmul.f32 %v2465, %v2542
      %v2582 = vmul.f32 %v2466, %v2552
      %v2583 = vmul.f32 %v2467, %v2562
      %v2584 = vmul.f32 %v2468, %v2572
      %v2585 = vmul.f32 %v2469, %v2542
      %v2586 = vmul.f32 %v2470, %v2552
      %v2587 = vmul.f32 %v2471, %v2562
      %v2588 = vmul.f32 %v2472, %v2572
      %2590 = vset.pattern.permute.xlu0 0
      %2591 = vperm.xlu0 %2590, %v1013
      %v2592 = vpop.permute.xlu0 %2591
      %2595 = vset.pattern.permute.xlu0 0
      %2596 = vperm.xlu0 %2595, %v1014
      %v2597 = vpop.permute.xlu0 %2596
      %2600 = vset.pattern.permute.xlu0 0
      %2601 = vperm.xlu0 %2600, %v1015
      %v2602 = vpop.permute.xlu0 %2601
      %2605 = vset.pattern.permute.xlu0 0
      %2606 = vperm.xlu0 %2605, %v1016
      %v2607 = vpop.permute.xlu0 %2606
      %v2609 = vmul.f32 %v2573, %v2592
      %v2610 = vmul.f32 %v2574, %v2592
      %v2611 = vmul.f32 %v2575, %v2592
      %v2612 = vmul.f32 %v2576, %v2592
      %v2613 = vmul.f32 %v2577, %v2597
      %v2614 = vmul.f32 %v2578, %v2597
      %v2615 = vmul.f32 %v2579, %v2597
      %v2616 = vmul.f32 %v2580, %v2597
      %v2617 = vmul.f32 %v2581, %v2602
      %v2618 = vmul.f32 %v2582, %v2602
      %v2619 = vmul.f32 %v2583, %v2602
      %v2620 = vmul.f32 %v2584, %v2602
      %v2621 = vmul.f32 %v2585, %v2607
      %v2622 = vmul.f32 %v2586, %v2607
      %v2623 = vmul.f32 %v2587, %v2607
      %v2624 = vmul.f32 %v2588, %v2607
      %2626 = vset.pattern.permute.xlu0 0
      %2627 = vperm.xlu0 %2626, %v1017
      %v2628 = vpop.permute.xlu0 %2627
      %2631 = vset.pattern.permute.xlu0 0
      %2632 = vperm.xlu0 %2631, %v1018
      %v2633 = vpop.permute.xlu0 %2632
      %2636 = vset.pattern.permute.xlu0 0
      %2637 = vperm.xlu0 %2636, %v1019
      %v2638 = vpop.permute.xlu0 %2637
      %2641 = vset.pattern.permute.xlu0 0
      %2642 = vperm.xlu0 %2641, %v1020
      %v2643 = vpop.permute.xlu0 %2642
      %v2645 = vadd.f32 %v2609, %v2628
      %v2646 = vadd.f32 %v2610, %v2628
      %v2647 = vadd.f32 %v2611, %v2628
      %v2648 = vadd.f32 %v2612, %v2628
      %v2649 = vadd.f32 %v2613, %v2633
      %v2650 = vadd.f32 %v2614, %v2633
      %v2651 = vadd.f32 %v2615, %v2633
      %v2652 = vadd.f32 %v2616, %v2633
      %v2653 = vadd.f32 %v2617, %v2638
      %v2654 = vadd.f32 %v2618, %v2638
      %v2655 = vadd.f32 %v2619, %v2638
      %v2656 = vadd.f32 %v2620, %v2638
      %v2657 = vadd.f32 %v2621, %v2643
      %v2658 = vadd.f32 %v2622, %v2643
      %v2659 = vadd.f32 %v2623, %v2643
      %v2660 = vadd.f32 %v2624, %v2643
      %2662 = vset.pattern.permute.xlu0 0
      %2663 = vperm.xlu0 %2662, %v1022
      %v2664 = vpop.permute.xlu0 %2663
      %v2667 = vsel %vm1864, %v1021, 0
      %2669 = vmatpush.msra.mxu0 0.0
      %2670 = vmatpush.msra.mxu0 0.0
      %2671 = vmatpush.msra.mxu0 0.0
      %2672 = vmatpush.msra.mxu0 0.0
      %2673 = vmatpush.msra.mxu0 0.0
      %2674 = vmatpush.msra.mxu0 0.0
      %2675 = vmatpush.msra.mxu0 0.0
      %2676 = vmatpush.msra.mxu0 0.0
      %2677 = vmatpush.msra.mxu0 0.0
      %2678 = vmatpush.msra.mxu0 0.0
      %2679 = vmatpush.msra.mxu0 0.0
      %2680 = vmatpush.msra.mxu0 0.0
      %2681 = vmatpush.msra.mxu0 %v2657
      %2682 = vmatpush.msra.mxu0 %v2653
      %2683 = vmatpush.msra.mxu0 %v2649
      %2684 = vmatpush.msra.mxu0 %v2645
      %2685 = vmatmul.f32.gmra.mxu0 %v2667
      %v2686 = vpop.f32.mrf.mxu0
      %v2687 = vadd.f32 %v2664, %v2686
      %2688 = vdwg.mxu0
      %2689 = vmatpush.msra.mxu0 0.0
      %2690 = vmatpush.msra.mxu0 0.0
      %2691 = vmatpush.msra.mxu0 0.0
      %2692 = vmatpush.msra.mxu0 0.0
      %2693 = vmatpush.msra.mxu0 0.0
      %2694 = vmatpush.msra.mxu0 0.0
      %2695 = vmatpush.msra.mxu0 0.0
      %2696 = vmatpush.msra.mxu0 0.0
      %2697 = vmatpush.msra.mxu0 0.0
      %2698 = vmatpush.msra.mxu0 0.0
      %2699 = vmatpush.msra.mxu0 0.0
      %2700 = vmatpush.msra.mxu0 0.0
      %2701 = vmatpush.msra.mxu0 %v2658
      %2702 = vmatpush.msra.mxu0 %v2654
      %2703 = vmatpush.msra.mxu0 %v2650
      %2704 = vmatpush.msra.mxu0 %v2646
      %2705 = vmatmul.f32.gmra.mxu0 %v2667
      %v2706 = vpop.f32.mrf.mxu0
      %v2707 = vadd.f32 %v2664, %v2706
      %2708 = vdwg.mxu0
      %2709 = vmatpush.msra.mxu0 0.0
      %2710 = vmatpush.msra.mxu0 0.0
      %2711 = vmatpush.msra.mxu0 0.0
      %2712 = vmatpush.msra.mxu0 0.0
      %2713 = vmatpush.msra.mxu0 0.0
      %2714 = vmatpush.msra.mxu0 0.0
      %2715 = vmatpush.msra.mxu0 0.0
      %2716 = vmatpush.msra.mxu0 0.0
      %2717 = vmatpush.msra.mxu0 0.0
      %2718 = vmatpush.msra.mxu0 0.0
      %2719 = vmatpush.msra.mxu0 0.0
      %2720 = vmatpush.msra.mxu0 0.0
      %2721 = vmatpush.msra.mxu0 %v2659
      %2722 = vmatpush.msra.mxu0 %v2655
      %2723 = vmatpush.msra.mxu0 %v2651
      %2724 = vmatpush.msra.mxu0 %v2647
      %2725 = vmatmul.f32.gmra.mxu0 %v2667
      %v2726 = vpop.f32.mrf.mxu0
      %v2727 = vadd.f32 %v2664, %v2726
      %2728 = vdwg.mxu0
      %2729 = vmatpush.msra.mxu0 0.0
      %2730 = vmatpush.msra.mxu0 0.0
      %2731 = vmatpush.msra.mxu0 0.0
      %2732 = vmatpush.msra.mxu0 0.0
      %2733 = vmatpush.msra.mxu0 0.0
      %2734 = vmatpush.msra.mxu0 0.0
      %2735 = vmatpush.msra.mxu0 0.0
      %2736 = vmatpush.msra.mxu0 0.0
      %2737 = vmatpush.msra.mxu0 0.0
      %2738 = vmatpush.msra.mxu0 0.0
      %2739 = vmatpush.msra.mxu0 0.0
      %2740 = vmatpush.msra.mxu0 0.0
      %2741 = vmatpush.msra.mxu0 %v2660
      %2742 = vmatpush.msra.mxu0 %v2656
      %2743 = vmatpush.msra.mxu0 %v2652
      %2744 = vmatpush.msra.mxu0 %v2648
      %2745 = vmatmul.f32.gmra.mxu0 %v2667
      %v2746 = vpop.f32.mrf.mxu0
      %v2747 = vadd.f32 %v2664, %v2746
      %2748 = vdwg.mxu0
      %vm2749 = vcmp.gt.f32.partialorder %v2687, 0.0
      %vm2750 = vcmp.gt.f32.partialorder %v2707, 0.0
      %vm2751 = vcmp.gt.f32.partialorder %v2727, 0.0
      %vm2752 = vcmp.gt.f32.partialorder %v2747, 0.0
      %v2753 = vmin.f32 %v2687, 0.0
      %v2754 = vmin.f32 %v2707, 0.0
      %v2755 = vmin.f32 %v2727, 0.0
      %v2756 = vmin.f32 %v2747, 0.0
      %v2757 = vmul.f32 %v2753, 1.442695
      %v2758 = vpow.pop %v2757
      %v2759 = vmul.f32 %v2754, 1.442695
      %v2760 = vpow.pop %v2759
      %v2761 = vmul.f32 %v2755, 1.442695
      %v2762 = vpow.pop %v2761
      %v2763 = vmul.f32 %v2756, 1.442695
      %v2764 = vpow.pop %v2763
      %v2765 = vsub.f32 %v2758, 1.0
      %v2766 = vsub.f32 %v2760, 1.0
      %v2767 = vsub.f32 %v2762, 1.0
      %v2768 = vsub.f32 %v2764, 1.0
      %v2769 = vsel %vm2749, %v2687, %v2765
      %v2770 = vsel %vm2750, %v2707, %v2766
      %v2771 = vsel %vm2751, %v2727, %v2767
      %v2772 = vsel %vm2752, %v2747, %v2768
      %2774 = vset.pattern.permute.xlu0 0
      %2775 = vperm.xlu0 %2774, %v1027
      %v2776 = vpop.permute.xlu0 %2775
      %2779 = vset.pattern.permute.xlu0 0
      %2780 = vperm.xlu0 %2779, %v1028
      %v2781 = vpop.permute.xlu0 %2780
      %2784 = vset.pattern.permute.xlu0 0
      %2785 = vperm.xlu0 %2784, %v1029
      %v2786 = vpop.permute.xlu0 %2785
      %2789 = vset.pattern.permute.xlu0 0
      %2790 = vperm.xlu0 %2789, %v1030
      %v2791 = vpop.permute.xlu0 %2790
      %vm2793 = vcmask 64512
      %v2795 = vsel %vm2793, %v1023, 0
      %v2798 = vsel %vm2793, %v1024, 0
      %v2801 = vsel %vm2793, %v1025, 0
      %v2804 = vsel %vm2793, %v1026, 0
      %2806 = vmatpush.msra.mxu0 0.0
      %2807 = vmatpush.msra.mxu0 0.0
      %2808 = vmatpush.msra.mxu0 0.0
      %2809 = vmatpush.msra.mxu0 0.0
      %2810 = vmatpush.msra.mxu0 0.0
      %2811 = vmatpush.msra.mxu0 0.0
      %2812 = vmatpush.msra.mxu0 0.0
      %2813 = vmatpush.msra.mxu0 0.0
      %2814 = vmatpush.msra.mxu0 0.0
      %2815 = vmatpush.msra.mxu0 0.0
      %2816 = vmatpush.msra.mxu0 0.0
      %2817 = vmatpush.msra.mxu0 0.0
      %2818 = vmatpush.msra.mxu0 0.0
      %2819 = vmatpush.msra.mxu0 0.0
      %2820 = vmatpush.msra.mxu0 0.0
      %2821 = vmatpush.msra.mxu0 %v2769
      %2822 = vmatmul.f32.gmra.mxu0 %v2795
      %v2823 = vpop.f32.mrf.mxu0
      %v2824 = vadd.f32 %v2776, %v2823
      %2825 = vmatmul.f32.gmra.mxu0 %v2798
      %v2826 = vpop.f32.mrf.mxu0
      %v2827 = vadd.f32 %v2781, %v2826
      %2828 = vmatmul.f32.gmra.mxu0 %v2801
      %v2829 = vpop.f32.mrf.mxu0
      %v2830 = vadd.f32 %v2786, %v2829
      %2831 = vmatmul.f32.gmra.mxu0 %v2804
      %v2832 = vpop.f32.mrf.mxu0
      %v2833 = vadd.f32 %v2791, %v2832
      %2834 = vdwg.mxu0
      %2835 = vmatpush.msra.mxu0 0.0
      %2836 = vmatpush.msra.mxu0 0.0
      %2837 = vmatpush.msra.mxu0 0.0
      %2838 = vmatpush.msra.mxu0 0.0
      %2839 = vmatpush.msra.mxu0 0.0
      %2840 = vmatpush.msra.mxu0 0.0
      %2841 = vmatpush.msra.mxu0 0.0
      %2842 = vmatpush.msra.mxu0 0.0
      %2843 = vmatpush.msra.mxu0 0.0
      %2844 = vmatpush.msra.mxu0 0.0
      %2845 = vmatpush.msra.mxu0 0.0
      %2846 = vmatpush.msra.mxu0 0.0
      %2847 = vmatpush.msra.mxu0 0.0
      %2848 = vmatpush.msra.mxu0 0.0
      %2849 = vmatpush.msra.mxu0 0.0
      %2850 = vmatpush.msra.mxu0 %v2770
      %2851 = vmatmul.f32.gmra.mxu0 %v2795
      %v2852 = vpop.f32.mrf.mxu0
      %v2853 = vadd.f32 %v2776, %v2852
      %2854 = vmatmul.f32.gmra.mxu0 %v2798
      %v2855 = vpop.f32.mrf.mxu0
      %v2856 = vadd.f32 %v2781, %v2855
      %2857 = vmatmul.f32.gmra.mxu0 %v2801
      %v2858 = vpop.f32.mrf.mxu0
      %v2859 = vadd.f32 %v2786, %v2858
      %2860 = vmatmul.f32.gmra.mxu0 %v2804
      %v2861 = vpop.f32.mrf.mxu0
      %v2862 = vadd.f32 %v2791, %v2861
      %2863 = vdwg.mxu0
      %2864 = vmatpush.msra.mxu0 0.0
      %2865 = vmatpush.msra.mxu0 0.0
      %2866 = vmatpush.msra.mxu0 0.0
      %2867 = vmatpush.msra.mxu0 0.0
      %2868 = vmatpush.msra.mxu0 0.0
      %2869 = vmatpush.msra.mxu0 0.0
      %2870 = vmatpush.msra.mxu0 0.0
      %2871 = vmatpush.msra.mxu0 0.0
      %2872 = vmatpush.msra.mxu0 0.0
      %2873 = vmatpush.msra.mxu0 0.0
      %2874 = vmatpush.msra.mxu0 0.0
      %2875 = vmatpush.msra.mxu0 0.0
      %2876 = vmatpush.msra.mxu0 0.0
      %2877 = vmatpush.msra.mxu0 0.0
      %2878 = vmatpush.msra.mxu0 0.0
      %2879 = vmatpush.msra.mxu0 %v2771
      %2880 = vmatmul.f32.gmra.mxu0 %v2795
      %v2881 = vpop.f32.mrf.mxu0
      %v2882 = vadd.f32 %v2776, %v2881
      %2883 = vmatmul.f32.gmra.mxu0 %v2798
      %v2884 = vpop.f32.mrf.mxu0
      %v2885 = vadd.f32 %v2781, %v2884
      %2886 = vmatmul.f32.gmra.mxu0 %v2801
      %v2887 = vpop.f32.mrf.mxu0
      %v2888 = vadd.f32 %v2786, %v2887
      %2889 = vmatmul.f32.gmra.mxu0 %v2804
      %v2890 = vpop.f32.mrf.mxu0
      %v2891 = vadd.f32 %v2791, %v2890
      %2892 = vdwg.mxu0
      %2893 = vmatpush.msra.mxu0 0.0
      %2894 = vmatpush.msra.mxu0 0.0
      %2895 = vmatpush.msra.mxu0 0.0
      %2896 = vmatpush.msra.mxu0 0.0
      %2897 = vmatpush.msra.mxu0 0.0
      %2898 = vmatpush.msra.mxu0 0.0
      %2899 = vmatpush.msra.mxu0 0.0
      %2900 = vmatpush.msra.mxu0 0.0
      %2901 = vmatpush.msra.mxu0 0.0
      %2902 = vmatpush.msra.mxu0 0.0
      %2903 = vmatpush.msra.mxu0 0.0
      %2904 = vmatpush.msra.mxu0 0.0
      %2905 = vmatpush.msra.mxu0 0.0
      %2906 = vmatpush.msra.mxu0 0.0
      %2907 = vmatpush.msra.mxu0 0.0
      %2908 = vmatpush.msra.mxu0 %v2772
      %2909 = vmatmul.f32.gmra.mxu0 %v2795
      %v2910 = vpop.f32.mrf.mxu0
      %v2911 = vadd.f32 %v2776, %v2910
      %2912 = vmatmul.f32.gmra.mxu0 %v2798
      %v2913 = vpop.f32.mrf.mxu0
      %v2914 = vadd.f32 %v2781, %v2913
      %2915 = vmatmul.f32.gmra.mxu0 %v2801
      %v2916 = vpop.f32.mrf.mxu0
      %v2917 = vadd.f32 %v2786, %v2916
      %2918 = vmatmul.f32.gmra.mxu0 %v2804
      %v2919 = vpop.f32.mrf.mxu0
      %v2920 = vadd.f32 %v2791, %v2919
      %2921 = vdwg.mxu0
      %v2922 = vmul.f32 %v2824, 0.5
      %v2923 = vmul.f32 %v2853, 0.5
      %v2924 = vmul.f32 %v2882, 0.5
      %v2925 = vmul.f32 %v2911, 0.5
      %v2926 = vmul.f32 %v2827, 0.5
      %v2927 = vmul.f32 %v2856, 0.5
      %v2928 = vmul.f32 %v2885, 0.5
      %v2929 = vmul.f32 %v2914, 0.5
      %v2930 = vmul.f32 %v2830, 0.5
      %v2931 = vmul.f32 %v2859, 0.5
      %v2932 = vmul.f32 %v2888, 0.5
      %v2933 = vmul.f32 %v2917, 0.5
      %v2934 = vmul.f32 %v2833, 0.5
      %v2935 = vmul.f32 %v2862, 0.5
      %v2936 = vmul.f32 %v2891, 0.5
      %v2937 = vmul.f32 %v2920, 0.5
      %v2938 = vmul.f32 %v2401, 0.5
      %v2939 = vmul.f32 %v2402, 0.5
      %v2940 = vmul.f32 %v2403, 0.5
      %v2941 = vmul.f32 %v2404, 0.5
      %v2942 = vmul.f32 %v2405, 0.5
      %v2943 = vmul.f32 %v2406, 0.5
      %v2944 = vmul.f32 %v2407, 0.5
      %v2945 = vmul.f32 %v2408, 0.5
      %v2946 = vmul.f32 %v2409, 0.5
      %v2947 = vmul.f32 %v2410, 0.5
      %v2948 = vmul.f32 %v2411, 0.5
      %v2949 = vmul.f32 %v2412, 0.5
      %v2950 = vmul.f32 %v2413, 0.5
      %v2951 = vmul.f32 %v2414, 0.5
      %v2952 = vmul.f32 %v2415, 0.5
      %v2953 = vmul.f32 %v2416, 0.5
      %v2954 = vadd.f32 %v2922, %v2938
      %v2955 = vadd.f32 %v2923, %v2939
      %v2956 = vadd.f32 %v2924, %v2940
      %v2957 = vadd.f32 %v2925, %v2941
      %v2958 = vadd.f32 %v2926, %v2942
      %v2959 = vadd.f32 %v2927, %v2943
      %v2960 = vadd.f32 %v2928, %v2944
      %v2961 = vadd.f32 %v2929, %v2945
      %v2962 = vadd.f32 %v2930, %v2946
      %v2963 = vadd.f32 %v2931, %v2947
      %v2964 = vadd.f32 %v2932, %v2948
      %v2965 = vadd.f32 %v2933, %v2949
      %v2966 = vadd.f32 %v2934, %v2950
      %v2967 = vadd.f32 %v2935, %v2951
      %v2968 = vadd.f32 %v2936, %v2952
      %v2969 = vadd.f32 %v2937, %v2953
      %2971 = vset.pattern.permute.xlu0 0
      %2972 = vperm.xlu0 %2971, %v1039
      %v2973 = vpop.permute.xlu0 %2972
      %2976 = vset.pattern.permute.xlu0 0
      %2977 = vperm.xlu0 %2976, %v1040
      %v2978 = vpop.permute.xlu0 %2977
      %2981 = vset.pattern.permute.xlu0 0
      %2982 = vperm.xlu0 %2981, %v1041
      %v2983 = vpop.permute.xlu0 %2982
      %2986 = vset.pattern.permute.xlu0 0
      %2987 = vperm.xlu0 %2986, %v1042
      %v2988 = vpop.permute.xlu0 %2987
      %2991 = vset.pattern.permute.xlu0 0
      %2992 = vperm.xlu0 %2991, %v1043
      %v2993 = vpop.permute.xlu0 %2992
      %2996 = vset.pattern.permute.xlu0 0
      %2997 = vperm.xlu0 %2996, %v1044
      %v2998 = vpop.permute.xlu0 %2997
      %3001 = vset.pattern.permute.xlu0 0
      %3002 = vperm.xlu0 %3001, %v1045
      %v3003 = vpop.permute.xlu0 %3002
      %3006 = vset.pattern.permute.xlu0 0
      %3007 = vperm.xlu0 %3006, %v1046
      %v3008 = vpop.permute.xlu0 %3007
      %v3011 = vsel %vm1864, %v1031, 0
      %v3014 = vsel %vm1864, %v1032, 0
      %v3017 = vsel %vm1864, %v1033, 0
      %v3020 = vsel %vm1864, %v1034, 0
      %v3023 = vsel %vm1864, %v1035, 0
      %v3026 = vsel %vm1864, %v1036, 0
      %v3029 = vsel %vm1864, %v1037, 0
      %v3032 = vsel %vm1864, %v1038, 0
      %3034 = vmatpush.msra.mxu0 0.0
      %3035 = vmatpush.msra.mxu0 0.0
      %3036 = vmatpush.msra.mxu0 0.0
      %3037 = vmatpush.msra.mxu0 0.0
      %3038 = vmatpush.msra.mxu0 0.0
      %3039 = vmatpush.msra.mxu0 0.0
      %3040 = vmatpush.msra.mxu0 0.0
      %3041 = vmatpush.msra.mxu0 0.0
      %3042 = vmatpush.msra.mxu0 0.0
      %3043 = vmatpush.msra.mxu0 0.0
      %3044 = vmatpush.msra.mxu0 0.0
      %3045 = vmatpush.msra.mxu0 0.0
      %3046 = vmatpush.msra.mxu0 %v2966
      %3047 = vmatpush.msra.mxu0 %v2962
      %3048 = vmatpush.msra.mxu0 %v2958
      %3049 = vmatpush.msra.mxu0 %v2954
      %3050 = vmatmul.f32.gmra.mxu0 %v3011
      %v3051 = vpop.f32.mrf.mxu0
      %v3052 = vadd.f32 %v2973, %v3051
      %3053 = vmatmul.f32.gmra.mxu0 %v3014
      %v3054 = vpop.f32.mrf.mxu0
      %v3055 = vadd.f32 %v2978, %v3054
      %3056 = vmatmul.f32.gmra.mxu0 %v3017
      %v3057 = vpop.f32.mrf.mxu0
      %v3058 = vadd.f32 %v2983, %v3057
      %3059 = vmatmul.f32.gmra.mxu0 %v3020
      %v3060 = vpop.f32.mrf.mxu0
      %v3061 = vadd.f32 %v2988, %v3060
      %3062 = vmatmul.f32.gmra.mxu0 %v3023
      %v3063 = vpop.f32.mrf.mxu0
      %v3064 = vadd.f32 %v2993, %v3063
      %3065 = vmatmul.f32.gmra.mxu0 %v3026
      %v3066 = vpop.f32.mrf.mxu0
      %v3067 = vadd.f32 %v2998, %v3066
      %3068 = vmatmul.f32.gmra.mxu0 %v3029
      %v3069 = vpop.f32.mrf.mxu0
      %v3070 = vadd.f32 %v3003, %v3069
      %3071 = vmatmul.f32.gmra.mxu0 %v3032
      %v3072 = vpop.f32.mrf.mxu0
      %v3073 = vadd.f32 %v3008, %v3072
      %3074 = vdwg.mxu0
      %3075 = vmatpush.msra.mxu0 0.0
      %3076 = vmatpush.msra.mxu0 0.0
      %3077 = vmatpush.msra.mxu0 0.0
      %3078 = vmatpush.msra.mxu0 0.0
      %3079 = vmatpush.msra.mxu0 0.0
      %3080 = vmatpush.msra.mxu0 0.0
      %3081 = vmatpush.msra.mxu0 0.0
      %3082 = vmatpush.msra.mxu0 0.0
      %3083 = vmatpush.msra.mxu0 0.0
      %3084 = vmatpush.msra.mxu0 0.0
      %3085 = vmatpush.msra.mxu0 0.0
      %3086 = vmatpush.msra.mxu0 0.0
      %3087 = vmatpush.msra.mxu0 %v2967
      %3088 = vmatpush.msra.mxu0 %v2963
      %3089 = vmatpush.msra.mxu0 %v2959
      %3090 = vmatpush.msra.mxu0 %v2955
      %3091 = vmatmul.f32.gmra.mxu0 %v3011
      %v3092 = vpop.f32.mrf.mxu0
      %v3093 = vadd.f32 %v2973, %v3092
      %3094 = vmatmul.f32.gmra.mxu0 %v3014
      %v3095 = vpop.f32.mrf.mxu0
      %v3096 = vadd.f32 %v2978, %v3095
      %3097 = vmatmul.f32.gmra.mxu0 %v3017
      %v3098 = vpop.f32.mrf.mxu0
      %v3099 = vadd.f32 %v2983, %v3098
      %3100 = vmatmul.f32.gmra.mxu0 %v3020
      %v3101 = vpop.f32.mrf.mxu0
      %v3102 = vadd.f32 %v2988, %v3101
      %3103 = vmatmul.f32.gmra.mxu0 %v3023
      %v3104 = vpop.f32.mrf.mxu0
      %v3105 = vadd.f32 %v2993, %v3104
      %3106 = vmatmul.f32.gmra.mxu0 %v3026
      %v3107 = vpop.f32.mrf.mxu0
      %v3108 = vadd.f32 %v2998, %v3107
      %3109 = vmatmul.f32.gmra.mxu0 %v3029
      %v3110 = vpop.f32.mrf.mxu0
      %v3111 = vadd.f32 %v3003, %v3110
      %3112 = vmatmul.f32.gmra.mxu0 %v3032
      %v3113 = vpop.f32.mrf.mxu0
      %v3114 = vadd.f32 %v3008, %v3113
      %3115 = vdwg.mxu0
      %3116 = vmatpush.msra.mxu0 0.0
      %3117 = vmatpush.msra.mxu0 0.0
      %3118 = vmatpush.msra.mxu0 0.0
      %3119 = vmatpush.msra.mxu0 0.0
      %3120 = vmatpush.msra.mxu0 0.0
      %3121 = vmatpush.msra.mxu0 0.0
      %3122 = vmatpush.msra.mxu0 0.0
      %3123 = vmatpush.msra.mxu0 0.0
      %3124 = vmatpush.msra.mxu0 0.0
      %3125 = vmatpush.msra.mxu0 0.0
      %3126 = vmatpush.msra.mxu0 0.0
      %3127 = vmatpush.msra.mxu0 0.0
      %3128 = vmatpush.msra.mxu0 %v2968
      %3129 = vmatpush.msra.mxu0 %v2964
      %3130 = vmatpush.msra.mxu0 %v2960
      %3131 = vmatpush.msra.mxu0 %v2956
      %3132 = vmatmul.f32.gmra.mxu0 %v3011
      %v3133 = vpop.f32.mrf.mxu0
      %v3134 = vadd.f32 %v2973, %v3133
      %3135 = vmatmul.f32.gmra.mxu0 %v3014
      %v3136 = vpop.f32.mrf.mxu0
      %v3137 = vadd.f32 %v2978, %v3136
      %3138 = vmatmul.f32.gmra.mxu0 %v3017
      %v3139 = vpop.f32.mrf.mxu0
      %v3140 = vadd.f32 %v2983, %v3139
      %3141 = vmatmul.f32.gmra.mxu0 %v3020
      %v3142 = vpop.f32.mrf.mxu0
      %v3143 = vadd.f32 %v2988, %v3142
      %3144 = vmatmul.f32.gmra.mxu0 %v3023
      %v3145 = vpop.f32.mrf.mxu0
      %v3146 = vadd.f32 %v2993, %v3145
      %3147 = vmatmul.f32.gmra.mxu0 %v3026
      %v3148 = vpop.f32.mrf.mxu0
      %v3149 = vadd.f32 %v2998, %v3148
      %3150 = vmatmul.f32.gmra.mxu0 %v3029
      %v3151 = vpop.f32.mrf.mxu0
      %v3152 = vadd.f32 %v3003, %v3151
      %3153 = vmatmul.f32.gmra.mxu0 %v3032
      %v3154 = vpop.f32.mrf.mxu0
      %v3155 = vadd.f32 %v3008, %v3154
      %3156 = vdwg.mxu0
      %3157 = vmatpush.msra.mxu0 0.0
      %3158 = vmatpush.msra.mxu0 0.0
      %3159 = vmatpush.msra.mxu0 0.0
      %3160 = vmatpush.msra.mxu0 0.0
      %3161 = vmatpush.msra.mxu0 0.0
      %3162 = vmatpush.msra.mxu0 0.0
      %3163 = vmatpush.msra.mxu0 0.0
      %3164 = vmatpush.msra.mxu0 0.0
      %3165 = vmatpush.msra.mxu0 0.0
      %3166 = vmatpush.msra.mxu0 0.0
      %3167 = vmatpush.msra.mxu0 0.0
      %3168 = vmatpush.msra.mxu0 0.0
      %3169 = vmatpush.msra.mxu0 %v2969
      %3170 = vmatpush.msra.mxu0 %v2965
      %3171 = vmatpush.msra.mxu0 %v2961
      %3172 = vmatpush.msra.mxu0 %v2957
      %3173 = vmatmul.f32.gmra.mxu0 %v3011
      %v3174 = vpop.f32.mrf.mxu0
      %v3175 = vadd.f32 %v2973, %v3174
      %3176 = vmatmul.f32.gmra.mxu0 %v3014
      %v3177 = vpop.f32.mrf.mxu0
      %v3178 = vadd.f32 %v2978, %v3177
      %3179 = vmatmul.f32.gmra.mxu0 %v3017
      %v3180 = vpop.f32.mrf.mxu0
      %v3181 = vadd.f32 %v2983, %v3180
      %3182 = vmatmul.f32.gmra.mxu0 %v3020
      %v3183 = vpop.f32.mrf.mxu0
      %v3184 = vadd.f32 %v2988, %v3183
      %3185 = vmatmul.f32.gmra.mxu0 %v3023
      %v3186 = vpop.f32.mrf.mxu0
      %v3187 = vadd.f32 %v2993, %v3186
      %3188 = vmatmul.f32.gmra.mxu0 %v3026
      %v3189 = vpop.f32.mrf.mxu0
      %v3190 = vadd.f32 %v2998, %v3189
      %3191 = vmatmul.f32.gmra.mxu0 %v3029
      %v3192 = vpop.f32.mrf.mxu0
      %v3193 = vadd.f32 %v3003, %v3192
      %3194 = vmatmul.f32.gmra.mxu0 %v3032
      %v3195 = vpop.f32.mrf.mxu0
      %v3196 = vadd.f32 %v3008, %v3195
      %3197 = vdwg.mxu0
      %vm3198 = vcmp.gt.f32.partialorder %v3052, 0.0
      %vm3199 = vcmp.gt.f32.partialorder %v3093, 0.0
      %vm3200 = vcmp.gt.f32.partialorder %v3134, 0.0
      %vm3201 = vcmp.gt.f32.partialorder %v3175, 0.0
      %vm3202 = vcmp.gt.f32.partialorder %v3055, 0.0
      %vm3203 = vcmp.gt.f32.partialorder %v3096, 0.0
      %vm3204 = vcmp.gt.f32.partialorder %v3137, 0.0
      %vm3205 = vcmp.gt.f32.partialorder %v3178, 0.0
      %vm3206 = vcmp.gt.f32.partialorder %v3058, 0.0
      %vm3207 = vcmp.gt.f32.partialorder %v3099, 0.0
      %vm3208 = vcmp.gt.f32.partialorder %v3140, 0.0
      %vm3209 = vcmp.gt.f32.partialorder %v3181, 0.0
      %vm3210 = vcmp.gt.f32.partialorder %v3061, 0.0
      %vm3211 = vcmp.gt.f32.partialorder %v3102, 0.0
      %vm3212 = vcmp.gt.f32.partialorder %v3143, 0.0
      %vm3213 = vcmp.gt.f32.partialorder %v3184, 0.0
      %vm3214 = vcmp.gt.f32.partialorder %v3064, 0.0
      %vm3215 = vcmp.gt.f32.partialorder %v3105, 0.0
      %vm3216 = vcmp.gt.f32.partialorder %v3146, 0.0
      %vm3217 = vcmp.gt.f32.partialorder %v3187, 0.0
      %vm3218 = vcmp.gt.f32.partialorder %v3067, 0.0
      %vm3219 = vcmp.gt.f32.partialorder %v3108, 0.0
      %vm3220 = vcmp.gt.f32.partialorder %v3149, 0.0
      %vm3221 = vcmp.gt.f32.partialorder %v3190, 0.0
      %vm3222 = vcmp.gt.f32.partialorder %v3070, 0.0
      %vm3223 = vcmp.gt.f32.partialorder %v3111, 0.0
      %vm3224 = vcmp.gt.f32.partialorder %v3152, 0.0
      %vm3225 = vcmp.gt.f32.partialorder %v3193, 0.0
      %vm3226 = vcmp.gt.f32.partialorder %v3073, 0.0
      %vm3227 = vcmp.gt.f32.partialorder %v3114, 0.0
      %vm3228 = vcmp.gt.f32.partialorder %v3155, 0.0
      %vm3229 = vcmp.gt.f32.partialorder %v3196, 0.0
      %v3230 = vmin.f32 %v3052, 0.0
      %v3231 = vmin.f32 %v3093, 0.0
      %v3232 = vmin.f32 %v3134, 0.0
      %v3233 = vmin.f32 %v3175, 0.0
      %v3234 = vmin.f32 %v3055, 0.0
      %v3235 = vmin.f32 %v3096, 0.0
      %v3236 = vmin.f32 %v3137, 0.0
      %v3237 = vmin.f32 %v3178, 0.0
      %v3238 = vmin.f32 %v3058, 0.0
      %v3239 = vmin.f32 %v3099, 0.0
      %v3240 = vmin.f32 %v3140, 0.0
      %v3241 = vmin.f32 %v3181, 0.0
      %v3242 = vmin.f32 %v3061, 0.0
      %v3243 = vmin.f32 %v3102, 0.0
      %v3244 = vmin.f32 %v3143, 0.0
      %v3245 = vmin.f32 %v3184, 0.0
      %v3246 = vmin.f32 %v3064, 0.0
      %v3247 = vmin.f32 %v3105, 0.0
      %v3248 = vmin.f32 %v3146, 0.0
      %v3249 = vmin.f32 %v3187, 0.0
      %v3250 = vmin.f32 %v3067, 0.0
      %v3251 = vmin.f32 %v3108, 0.0
      %v3252 = vmin.f32 %v3149, 0.0
      %v3253 = vmin.f32 %v3190, 0.0
      %v3254 = vmin.f32 %v3070, 0.0
      %v3255 = vmin.f32 %v3111, 0.0
      %v3256 = vmin.f32 %v3152, 0.0
      %v3257 = vmin.f32 %v3193, 0.0
      %v3258 = vmin.f32 %v3073, 0.0
      %v3259 = vmin.f32 %v3114, 0.0
      %v3260 = vmin.f32 %v3155, 0.0
      %v3261 = vmin.f32 %v3196, 0.0
      %v3262 = vmul.f32 %v3230, 1.442695
      %v3263 = vpow.pop %v3262
      %v3264 = vmul.f32 %v3231, 1.442695
      %v3265 = vpow.pop %v3264
      %v3266 = vmul.f32 %v3232, 1.442695
      %v3267 = vpow.pop %v3266
      %v3268 = vmul.f32 %v3233, 1.442695
      %v3269 = vpow.pop %v3268
      %v3270 = vmul.f32 %v3234, 1.442695
      %v3271 = vpow.pop %v3270
      %v3272 = vmul.f32 %v3235, 1.442695
      %v3273 = vpow.pop %v3272
      %v3274 = vmul.f32 %v3236, 1.442695
      %v3275 = vpow.pop %v3274
      %v3276 = vmul.f32 %v3237, 1.442695
      %v3277 = vpow.pop %v3276
      %v3278 = vmul.f32 %v3238, 1.442695
      %v3279 = vpow.pop %v3278
      %v3280 = vmul.f32 %v3239, 1.442695
      %v3281 = vpow.pop %v3280
      %v3282 = vmul.f32 %v3240, 1.442695
      %v3283 = vpow.pop %v3282
      %v3284 = vmul.f32 %v3241, 1.442695
      %v3285 = vpow.pop %v3284
      %v3286 = vmul.f32 %v3242, 1.442695
      %v3287 = vpow.pop %v3286
      %v3288 = vmul.f32 %v3243, 1.442695
      %v3289 = vpow.pop %v3288
      %v3290 = vmul.f32 %v3244, 1.442695
      %v3291 = vpow.pop %v3290
      %v3292 = vmul.f32 %v3245, 1.442695
      %v3293 = vpow.pop %v3292
      %v3294 = vmul.f32 %v3246, 1.442695
      %v3295 = vpow.pop %v3294
      %v3296 = vmul.f32 %v3247, 1.442695
      %v3297 = vpow.pop %v3296
      %v3298 = vmul.f32 %v3248, 1.442695
      %v3299 = vpow.pop %v3298
      %v3300 = vmul.f32 %v3249, 1.442695
      %v3301 = vpow.pop %v3300
      %v3302 = vmul.f32 %v3250, 1.442695
      %v3303 = vpow.pop %v3302
      %v3304 = vmul.f32 %v3251, 1.442695
      %v3305 = vpow.pop %v3304
      %v3306 = vmul.f32 %v3252, 1.442695
      %v3307 = vpow.pop %v3306
      %v3308 = vmul.f32 %v3253, 1.442695
      %v3309 = vpow.pop %v3308
      %v3310 = vmul.f32 %v3254, 1.442695
      %v3311 = vpow.pop %v3310
      %v3312 = vmul.f32 %v3255, 1.442695
      %v3313 = vpow.pop %v3312
      %v3314 = vmul.f32 %v3256, 1.442695
      %v3315 = vpow.pop %v3314
      %v3316 = vmul.f32 %v3257, 1.442695
      %v3317 = vpow.pop %v3316
      %v3318 = vmul.f32 %v3258, 1.442695
      %v3319 = vpow.pop %v3318
      %v3320 = vmul.f32 %v3259, 1.442695
      %v3321 = vpow.pop %v3320
      %v3322 = vmul.f32 %v3260, 1.442695
      %v3323 = vpow.pop %v3322
      %v3324 = vmul.f32 %v3261, 1.442695
      %v3325 = vpow.pop %v3324
      %v3326 = vsub.f32 %v3263, 1.0
      %v3327 = vsub.f32 %v3265, 1.0
      %v3328 = vsub.f32 %v3267, 1.0
      %v3329 = vsub.f32 %v3269, 1.0
      %v3330 = vsub.f32 %v3271, 1.0
      %v3331 = vsub.f32 %v3273, 1.0
      %v3332 = vsub.f32 %v3275, 1.0
      %v3333 = vsub.f32 %v3277, 1.0
      %v3334 = vsub.f32 %v3279, 1.0
      %v3335 = vsub.f32 %v3281, 1.0
      %v3336 = vsub.f32 %v3283, 1.0
      %v3337 = vsub.f32 %v3285, 1.0
      %v3338 = vsub.f32 %v3287, 1.0
      %v3339 = vsub.f32 %v3289, 1.0
      %v3340 = vsub.f32 %v3291, 1.0
      %v3341 = vsub.f32 %v3293, 1.0
      %v3342 = vsub.f32 %v3295, 1.0
      %v3343 = vsub.f32 %v3297, 1.0
      %v3344 = vsub.f32 %v3299, 1.0
      %v3345 = vsub.f32 %v3301, 1.0
      %v3346 = vsub.f32 %v3303, 1.0
      %v3347 = vsub.f32 %v3305, 1.0
      %v3348 = vsub.f32 %v3307, 1.0
      %v3349 = vsub.f32 %v3309, 1.0
      %v3350 = vsub.f32 %v3311, 1.0
      %v3351 = vsub.f32 %v3313, 1.0
      %v3352 = vsub.f32 %v3315, 1.0
      %v3353 = vsub.f32 %v3317, 1.0
      %v3354 = vsub.f32 %v3319, 1.0
      %v3355 = vsub.f32 %v3321, 1.0
      %v3356 = vsub.f32 %v3323, 1.0
      %v3357 = vsub.f32 %v3325, 1.0
      %v3358 = vsel %vm3198, %v3052, %v3326
      %v3359 = vsel %vm3199, %v3093, %v3327
      %v3360 = vsel %vm3200, %v3134, %v3328
      %v3361 = vsel %vm3201, %v3175, %v3329
      %v3362 = vsel %vm3202, %v3055, %v3330
      %v3363 = vsel %vm3203, %v3096, %v3331
      %v3364 = vsel %vm3204, %v3137, %v3332
      %v3365 = vsel %vm3205, %v3178, %v3333
      %v3366 = vsel %vm3206, %v3058, %v3334
      %v3367 = vsel %vm3207, %v3099, %v3335
      %v3368 = vsel %vm3208, %v3140, %v3336
      %v3369 = vsel %vm3209, %v3181, %v3337
      %v3370 = vsel %vm3210, %v3061, %v3338
      %v3371 = vsel %vm3211, %v3102, %v3339
      %v3372 = vsel %vm3212, %v3143, %v3340
      %v3373 = vsel %vm3213, %v3184, %v3341
      %v3374 = vsel %vm3214, %v3064, %v3342
      %v3375 = vsel %vm3215, %v3105, %v3343
      %v3376 = vsel %vm3216, %v3146, %v3344
      %v3377 = vsel %vm3217, %v3187, %v3345
      %v3378 = vsel %vm3218, %v3067, %v3346
      %v3379 = vsel %vm3219, %v3108, %v3347
      %v3380 = vsel %vm3220, %v3149, %v3348
      %v3381 = vsel %vm3221, %v3190, %v3349
      %v3382 = vsel %vm3222, %v3070, %v3350
      %v3383 = vsel %vm3223, %v3111, %v3351
      %v3384 = vsel %vm3224, %v3152, %v3352
      %v3385 = vsel %vm3225, %v3193, %v3353
      %v3386 = vsel %vm3226, %v3073, %v3354
      %v3387 = vsel %vm3227, %v3114, %v3355
      %v3388 = vsel %vm3228, %v3155, %v3356
      %v3389 = vsel %vm3229, %v3196, %v3357
      %v3390 = vadd.f32 %v3358, %v3362
      %v3391 = vadd.f32 %v3390, %v3366
      %v3392 = vadd.f32 %v3391, %v3370
      %v3393 = vadd.f32 %v3392, %v3374
      %v3394 = vadd.f32 %v3393, %v3378
      %v3395 = vadd.f32 %v3394, %v3382
      %v3396 = vadd.f32 %v3395, %v3386
      %v3397 = vrot.slane %v3396, 4
      %v3398 = vadd.f32 %v3396, %v3397
      %v3399 = vrot.slane %v3398, 2
      %v3400 = vadd.f32 %v3398, %v3399
      %v3401 = vrot.slane %v3400, 1
      %v3402 = vadd.f32 %v3400, %v3401
      %v3403 = vadd.f32 %v3359, %v3363
      %v3404 = vadd.f32 %v3403, %v3367
      %v3405 = vadd.f32 %v3404, %v3371
      %v3406 = vadd.f32 %v3405, %v3375
      %v3407 = vadd.f32 %v3406, %v3379
      %v3408 = vadd.f32 %v3407, %v3383
      %v3409 = vadd.f32 %v3408, %v3387
      %v3410 = vrot.slane %v3409, 4
      %v3411 = vadd.f32 %v3409, %v3410
      %v3412 = vrot.slane %v3411, 2
      %v3413 = vadd.f32 %v3411, %v3412
      %v3414 = vrot.slane %v3413, 1
      %v3415 = vadd.f32 %v3413, %v3414
      %v3416 = vadd.f32 %v3360, %v3364
      %v3417 = vadd.f32 %v3416, %v3368
      %v3418 = vadd.f32 %v3417, %v3372
      %v3419 = vadd.f32 %v3418, %v3376
      %v3420 = vadd.f32 %v3419, %v3380
      %v3421 = vadd.f32 %v3420, %v3384
      %v3422 = vadd.f32 %v3421, %v3388
      %v3423 = vrot.slane %v3422, 4
      %v3424 = vadd.f32 %v3422, %v3423
      %v3425 = vrot.slane %v3424, 2
      %v3426 = vadd.f32 %v3424, %v3425
      %v3427 = vrot.slane %v3426, 1
      %v3428 = vadd.f32 %v3426, %v3427
      %v3429 = vadd.f32 %v3361, %v3365
      %v3430 = vadd.f32 %v3429, %v3369
      %v3431 = vadd.f32 %v3430, %v3373
      %v3432 = vadd.f32 %v3431, %v3377
      %v3433 = vadd.f32 %v3432, %v3381
      %v3434 = vadd.f32 %v3433, %v3385
      %v3435 = vadd.f32 %v3434, %v3389
      %v3436 = vrot.slane %v3435, 4
      %v3437 = vadd.f32 %v3435, %v3436
      %v3438 = vrot.slane %v3437, 2
      %v3439 = vadd.f32 %v3437, %v3438
      %v3440 = vrot.slane %v3439, 1
      %v3441 = vadd.f32 %v3439, %v3440
      %v3442 = vrcp.pop 64.0
      %v3443 = vmul.f32 64.0, %v3442
      %v3444 = vsub.f32 1.0, %v3443
      %v3445 = vmul.f32 %v3442, %v3444
      %v3446 = vadd.f32 %v3442, %v3445
      %vm3447 = vweird.f32 %v3442
      %v3448 = vsel %vm3447, %v3442, %v3446
      %v3449 = vmul.f32 %v3402, %v3448
      %v3450 = vmul.f32 %v3415, %v3448
      %v3451 = vmul.f32 %v3428, %v3448
      %v3452 = vmul.f32 %v3441, %v3448
      %v3453 = vsub.f32 %v3358, %v3449
      %v3454 = vsub.f32 %v3359, %v3450
      %v3455 = vsub.f32 %v3360, %v3451
      %v3456 = vsub.f32 %v3361, %v3452
      %v3457 = vsub.f32 %v3362, %v3449
      %v3458 = vsub.f32 %v3363, %v3450
      %v3459 = vsub.f32 %v3364, %v3451
      %v3460 = vsub.f32 %v3365, %v3452
      %v3461 = vsub.f32 %v3366, %v3449
      %v3462 = vsub.f32 %v3367, %v3450
      %v3463 = vsub.f32 %v3368, %v3451
      %v3464 = vsub.f32 %v3369, %v3452
      %v3465 = vsub.f32 %v3370, %v3449
      %v3466 = vsub.f32 %v3371, %v3450
      %v3467 = vsub.f32 %v3372, %v3451
      %v3468 = vsub.f32 %v3373, %v3452
      %v3469 = vsub.f32 %v3374, %v3449
      %v3470 = vsub.f32 %v3375, %v3450
      %v3471 = vsub.f32 %v3376, %v3451
      %v3472 = vsub.f32 %v3377, %v3452
      %v3473 = vsub.f32 %v3378, %v3449
      %v3474 = vsub.f32 %v3379, %v3450
      %v3475 = vsub.f32 %v3380, %v3451
      %v3476 = vsub.f32 %v3381, %v3452
      %v3477 = vsub.f32 %v3382, %v3449
      %v3478 = vsub.f32 %v3383, %v3450
      %v3479 = vsub.f32 %v3384, %v3451
      %v3480 = vsub.f32 %v3385, %v3452
      %v3481 = vsub.f32 %v3386, %v3449
      %v3482 = vsub.f32 %v3387, %v3450
      %v3483 = vsub.f32 %v3388, %v3451
      %v3484 = vsub.f32 %v3389, %v3452
      %v3485 = vmul.f32 %v3453, %v3453
      %v3486 = vmul.f32 %v3454, %v3454
      %v3487 = vmul.f32 %v3455, %v3455
      %v3488 = vmul.f32 %v3456, %v3456
      %v3489 = vmul.f32 %v3457, %v3457
      %v3490 = vmul.f32 %v3458, %v3458
      %v3491 = vmul.f32 %v3459, %v3459
      %v3492 = vmul.f32 %v3460, %v3460
      %v3493 = vmul.f32 %v3461, %v3461
      %v3494 = vmul.f32 %v3462, %v3462
      %v3495 = vmul.f32 %v3463, %v3463
      %v3496 = vmul.f32 %v3464, %v3464
      %v3497 = vmul.f32 %v3465, %v3465
      %v3498 = vmul.f32 %v3466, %v3466
      %v3499 = vmul.f32 %v3467, %v3467
      %v3500 = vmul.f32 %v3468, %v3468
      %v3501 = vmul.f32 %v3469, %v3469
      %v3502 = vmul.f32 %v3470, %v3470
      %v3503 = vmul.f32 %v3471, %v3471
      %v3504 = vmul.f32 %v3472, %v3472
      %v3505 = vmul.f32 %v3473, %v3473
      %v3506 = vmul.f32 %v3474, %v3474
      %v3507 = vmul.f32 %v3475, %v3475
      %v3508 = vmul.f32 %v3476, %v3476
      %v3509 = vmul.f32 %v3477, %v3477
      %v3510 = vmul.f32 %v3478, %v3478
      %v3511 = vmul.f32 %v3479, %v3479
      %v3512 = vmul.f32 %v3480, %v3480
      %v3513 = vmul.f32 %v3481, %v3481
      %v3514 = vmul.f32 %v3482, %v3482
      %v3515 = vmul.f32 %v3483, %v3483
      %v3516 = vmul.f32 %v3484, %v3484
      %v3517 = vadd.f32 %v3485, %v3489
      %v3518 = vadd.f32 %v3517, %v3493
      %v3519 = vadd.f32 %v3518, %v3497
      %v3520 = vadd.f32 %v3519, %v3501
      %v3521 = vadd.f32 %v3520, %v3505
      %v3522 = vadd.f32 %v3521, %v3509
      %v3523 = vadd.f32 %v3522, %v3513
      %v3524 = vrot.slane %v3523, 4
      %v3525 = vadd.f32 %v3523, %v3524
      %v3526 = vrot.slane %v3525, 2
      %v3527 = vadd.f32 %v3525, %v3526
      %v3528 = vrot.slane %v3527, 1
      %v3529 = vadd.f32 %v3527, %v3528
      %v3530 = vadd.f32 %v3486, %v3490
      %v3531 = vadd.f32 %v3530, %v3494
      %v3532 = vadd.f32 %v3531, %v3498
      %v3533 = vadd.f32 %v3532, %v3502
      %v3534 = vadd.f32 %v3533, %v3506
      %v3535 = vadd.f32 %v3534, %v3510
      %v3536 = vadd.f32 %v3535, %v3514
      %v3537 = vrot.slane %v3536, 4
      %v3538 = vadd.f32 %v3536, %v3537
      %v3539 = vrot.slane %v3538, 2
      %v3540 = vadd.f32 %v3538, %v3539
      %v3541 = vrot.slane %v3540, 1
      %v3542 = vadd.f32 %v3540, %v3541
      %v3543 = vadd.f32 %v3487, %v3491
      %v3544 = vadd.f32 %v3543, %v3495
      %v3545 = vadd.f32 %v3544, %v3499
      %v3546 = vadd.f32 %v3545, %v3503
      %v3547 = vadd.f32 %v3546, %v3507
      %v3548 = vadd.f32 %v3547, %v3511
      %v3549 = vadd.f32 %v3548, %v3515
      %v3550 = vrot.slane %v3549, 4
      %v3551 = vadd.f32 %v3549, %v3550
      %v3552 = vrot.slane %v3551, 2
      %v3553 = vadd.f32 %v3551, %v3552
      %v3554 = vrot.slane %v3553, 1
      %v3555 = vadd.f32 %v3553, %v3554
      %v3556 = vadd.f32 %v3488, %v3492
      %v3557 = vadd.f32 %v3556, %v3496
      %v3558 = vadd.f32 %v3557, %v3500
      %v3559 = vadd.f32 %v3558, %v3504
      %v3560 = vadd.f32 %v3559, %v3508
      %v3561 = vadd.f32 %v3560, %v3512
      %v3562 = vadd.f32 %v3561, %v3516
      %v3563 = vrot.slane %v3562, 4
      %v3564 = vadd.f32 %v3562, %v3563
      %v3565 = vrot.slane %v3564, 2
      %v3566 = vadd.f32 %v3564, %v3565
      %v3567 = vrot.slane %v3566, 1
      %v3568 = vadd.f32 %v3566, %v3567
      %v3569 = vmul.f32 %v3529, %v3448
      %v3570 = vmul.f32 %v3542, %v3448
      %v3571 = vmul.f32 %v3555, %v3448
      %v3572 = vmul.f32 %v3568, %v3448
      %v3573 = vadd.f32 %v3569, 1e-05
      %v3574 = vadd.f32 %v3570, 1e-05
      %v3575 = vadd.f32 %v3571, 1e-05
      %v3576 = vadd.f32 %v3572, 1e-05
      %v3577 = vrsqrt.pop %v3573
      %v3578 = vmul.f32 %v3577, %v3573
      %v3579 = vmul.f32 %v3578, %v3577
      %v3580 = vmul.f32 0.5, %v3579
      %v3581 = vsub.f32 1.5, %v3580
      %v3582 = vmul.f32 %v3577, %v3581
      %vm3583 = vweird.f32 %v3573
      %vm3584 = vweird.f32 %v3577
      %vm3585 = vmor %vm3583, %vm3584
      %v3586 = vsel %vm3585, %v3577, %v3582
      %v3587 = vrsqrt.pop %v3574
      %v3588 = vmul.f32 %v3587, %v3574
      %v3589 = vmul.f32 %v3588, %v3587
      %v3590 = vmul.f32 0.5, %v3589
      %v3591 = vsub.f32 1.5, %v3590
      %v3592 = vmul.f32 %v3587, %v3591
      %vm3593 = vweird.f32 %v3574
      %vm3594 = vweird.f32 %v3587
      %vm3595 = vmor %vm3593, %vm3594
      %v3596 = vsel %vm3595, %v3587, %v3592
      %v3597 = vrsqrt.pop %v3575
      %v3598 = vmul.f32 %v3597, %v3575
      %v3599 = vmul.f32 %v3598, %v3597
      %v3600 = vmul.f32 0.5, %v3599
      %v3601 = vsub.f32 1.5, %v3600
      %v3602 = vmul.f32 %v3597, %v3601
      %vm3603 = vweird.f32 %v3575
      %vm3604 = vweird.f32 %v3597
      %vm3605 = vmor %vm3603, %vm3604
      %v3606 = vsel %vm3605, %v3597, %v3602
      %v3607 = vrsqrt.pop %v3576
      %v3608 = vmul.f32 %v3607, %v3576
      %v3609 = vmul.f32 %v3608, %v3607
      %v3610 = vmul.f32 0.5, %v3609
      %v3611 = vsub.f32 1.5, %v3610
      %v3612 = vmul.f32 %v3607, %v3611
      %vm3613 = vweird.f32 %v3576
      %vm3614 = vweird.f32 %v3607
      %vm3615 = vmor %vm3613, %vm3614
      %v3616 = vsel %vm3615, %v3607, %v3612
      %v3617 = vmul.f32 %v3453, %v3586
      %v3618 = vmul.f32 %v3454, %v3596
      %v3619 = vmul.f32 %v3455, %v3606
      %v3620 = vmul.f32 %v3456, %v3616
      %v3621 = vmul.f32 %v3457, %v3586
      %v3622 = vmul.f32 %v3458, %v3596
      %v3623 = vmul.f32 %v3459, %v3606
      %v3624 = vmul.f32 %v3460, %v3616
      %v3625 = vmul.f32 %v3461, %v3586
      %v3626 = vmul.f32 %v3462, %v3596
      %v3627 = vmul.f32 %v3463, %v3606
      %v3628 = vmul.f32 %v3464, %v3616
      %v3629 = vmul.f32 %v3465, %v3586
      %v3630 = vmul.f32 %v3466, %v3596
      %v3631 = vmul.f32 %v3467, %v3606
      %v3632 = vmul.f32 %v3468, %v3616
      %v3633 = vmul.f32 %v3469, %v3586
      %v3634 = vmul.f32 %v3470, %v3596
      %v3635 = vmul.f32 %v3471, %v3606
      %v3636 = vmul.f32 %v3472, %v3616
      %v3637 = vmul.f32 %v3473, %v3586
      %v3638 = vmul.f32 %v3474, %v3596
      %v3639 = vmul.f32 %v3475, %v3606
      %v3640 = vmul.f32 %v3476, %v3616
      %v3641 = vmul.f32 %v3477, %v3586
      %v3642 = vmul.f32 %v3478, %v3596
      %v3643 = vmul.f32 %v3479, %v3606
      %v3644 = vmul.f32 %v3480, %v3616
      %v3645 = vmul.f32 %v3481, %v3586
      %v3646 = vmul.f32 %v3482, %v3596
      %v3647 = vmul.f32 %v3483, %v3606
      %v3648 = vmul.f32 %v3484, %v3616
      %3650 = vset.pattern.permute.xlu0 0
      %3651 = vperm.xlu0 %3650, %v1047
      %v3652 = vpop.permute.xlu0 %3651
      %3655 = vset.pattern.permute.xlu0 0
      %3656 = vperm.xlu0 %3655, %v1048
      %v3657 = vpop.permute.xlu0 %3656
      %3660 = vset.pattern.permute.xlu0 0
      %3661 = vperm.xlu0 %3660, %v1049
      %v3662 = vpop.permute.xlu0 %3661
      %3665 = vset.pattern.permute.xlu0 0
      %3666 = vperm.xlu0 %3665, %v1050
      %v3667 = vpop.permute.xlu0 %3666
      %3670 = vset.pattern.permute.xlu0 0
      %3671 = vperm.xlu0 %3670, %v1051
      %v3672 = vpop.permute.xlu0 %3671
      %3675 = vset.pattern.permute.xlu0 0
      %3676 = vperm.xlu0 %3675, %v1052
      %v3677 = vpop.permute.xlu0 %3676
      %3680 = vset.pattern.permute.xlu0 0
      %3681 = vperm.xlu0 %3680, %v1053
      %v3682 = vpop.permute.xlu0 %3681
      %3685 = vset.pattern.permute.xlu0 0
      %3686 = vperm.xlu0 %3685, %v1054
      %v3687 = vpop.permute.xlu0 %3686
      %v3689 = vmul.f32 %v3617, %v3652
      %v3690 = vmul.f32 %v3618, %v3652
      %v3691 = vmul.f32 %v3619, %v3652
      %v3692 = vmul.f32 %v3620, %v3652
      %v3693 = vmul.f32 %v3621, %v3657
      %v3694 = vmul.f32 %v3622, %v3657
      %v3695 = vmul.f32 %v3623, %v3657
      %v3696 = vmul.f32 %v3624, %v3657
      %v3697 = vmul.f32 %v3625, %v3662
      %v3698 = vmul.f32 %v3626, %v3662
      %v3699 = vmul.f32 %v3627, %v3662
      %v3700 = vmul.f32 %v3628, %v3662
      %v3701 = vmul.f32 %v3629, %v3667
      %v3702 = vmul.f32 %v3630, %v3667
      %v3703 = vmul.f32 %v3631, %v3667
      %v3704 = vmul.f32 %v3632, %v3667
      %v3705 = vmul.f32 %v3633, %v3672
      %v3706 = vmul.f32 %v3634, %v3672
      %v3707 = vmul.f32 %v3635, %v3672
      %v3708 = vmul.f32 %v3636, %v3672
      %v3709 = vmul.f32 %v3637, %v3677
      %v3710 = vmul.f32 %v3638, %v3677
      %v3711 = vmul.f32 %v3639, %v3677
      %v3712 = vmul.f32 %v3640, %v3677
      %v3713 = vmul.f32 %v3641, %v3682
      %v3714 = vmul.f32 %v3642, %v3682
      %v3715 = vmul.f32 %v3643, %v3682
      %v3716 = vmul.f32 %v3644, %v3682
      %v3717 = vmul.f32 %v3645, %v3687
      %v3718 = vmul.f32 %v3646, %v3687
      %v3719 = vmul.f32 %v3647, %v3687
      %v3720 = vmul.f32 %v3648, %v3687
      %3722 = vset.pattern.permute.xlu0 0
      %3723 = vperm.xlu0 %3722, %v1055
      %v3724 = vpop.permute.xlu0 %3723
      %3727 = vset.pattern.permute.xlu0 0
      %3728 = vperm.xlu0 %3727, %v1056
      %v3729 = vpop.permute.xlu0 %3728
      %3732 = vset.pattern.permute.xlu0 0
      %3733 = vperm.xlu0 %3732, %v1057
      %v3734 = vpop.permute.xlu0 %3733
      %3737 = vset.pattern.permute.xlu0 0
      %3738 = vperm.xlu0 %3737, %v1058
      %v3739 = vpop.permute.xlu0 %3738
      %3742 = vset.pattern.permute.xlu0 0
      %3743 = vperm.xlu0 %3742, %v1059
      %v3744 = vpop.permute.xlu0 %3743
      %3747 = vset.pattern.permute.xlu0 0
      %3748 = vperm.xlu0 %3747, %v1060
      %v3749 = vpop.permute.xlu0 %3748
      %3752 = vset.pattern.permute.xlu0 0
      %3753 = vperm.xlu0 %3752, %v1061
      %v3754 = vpop.permute.xlu0 %3753
      %3757 = vset.pattern.permute.xlu0 0
      %3758 = vperm.xlu0 %3757, %v1062
      %v3759 = vpop.permute.xlu0 %3758
      %v3761 = vadd.f32 %v3689, %v3724
      %v3762 = vadd.f32 %v3690, %v3724
      %v3763 = vadd.f32 %v3691, %v3724
      %v3764 = vadd.f32 %v3692, %v3724
      %v3765 = vadd.f32 %v3693, %v3729
      %v3766 = vadd.f32 %v3694, %v3729
      %v3767 = vadd.f32 %v3695, %v3729
      %v3768 = vadd.f32 %v3696, %v3729
      %v3769 = vadd.f32 %v3697, %v3734
      %v3770 = vadd.f32 %v3698, %v3734
      %v3771 = vadd.f32 %v3699, %v3734
      %v3772 = vadd.f32 %v3700, %v3734
      %v3773 = vadd.f32 %v3701, %v3739
      %v3774 = vadd.f32 %v3702, %v3739
      %v3775 = vadd.f32 %v3703, %v3739
      %v3776 = vadd.f32 %v3704, %v3739
      %v3777 = vadd.f32 %v3705, %v3744
      %v3778 = vadd.f32 %v3706, %v3744
      %v3779 = vadd.f32 %v3707, %v3744
      %v3780 = vadd.f32 %v3708, %v3744
      %v3781 = vadd.f32 %v3709, %v3749
      %v3782 = vadd.f32 %v3710, %v3749
      %v3783 = vadd.f32 %v3711, %v3749
      %v3784 = vadd.f32 %v3712, %v3749
      %v3785 = vadd.f32 %v3713, %v3754
      %v3786 = vadd.f32 %v3714, %v3754
      %v3787 = vadd.f32 %v3715, %v3754
      %v3788 = vadd.f32 %v3716, %v3754
      %v3789 = vadd.f32 %v3717, %v3759
      %v3790 = vadd.f32 %v3718, %v3759
      %v3791 = vadd.f32 %v3719, %v3759
      %v3792 = vadd.f32 %v3720, %v3759
      %3794 = vset.pattern.permute.xlu0 0
      %3795 = vperm.xlu0 %3794, %v1080
      %v3796 = vpop.permute.xlu0 %3795
      %3799 = vset.pattern.permute.xlu0 0
      %3800 = vperm.xlu0 %3799, %v1081
      %v3801 = vpop.permute.xlu0 %3800
      %3804 = vset.pattern.permute.xlu0 0
      %3805 = vperm.xlu0 %3804, %v1082
      %v3806 = vpop.permute.xlu0 %3805
      %3809 = vset.pattern.permute.xlu0 0
      %3810 = vperm.xlu0 %3809, %v1083
      %v3811 = vpop.permute.xlu0 %3810
      %3814 = vset.pattern.permute.xlu0 0
      %3815 = vperm.xlu0 %3814, %v1084
      %v3816 = vpop.permute.xlu0 %3815
      %3819 = vset.pattern.permute.xlu0 0
      %3820 = vperm.xlu0 %3819, %v1085
      %v3821 = vpop.permute.xlu0 %3820
      %3824 = vset.pattern.permute.xlu0 0
      %3825 = vperm.xlu0 %3824, %v1086
      %v3826 = vpop.permute.xlu0 %3825
      %3829 = vset.pattern.permute.xlu0 0
      %3830 = vperm.xlu0 %3829, %v1087
      %v3831 = vpop.permute.xlu0 %3830
      %3834 = vset.pattern.permute.xlu0 0
      %3835 = vperm.xlu0 %3834, %v1088
      %v3836 = vpop.permute.xlu0 %3835
      %3839 = vset.pattern.permute.xlu0 0
      %3840 = vperm.xlu0 %3839, %v1089
      %v3841 = vpop.permute.xlu0 %3840
      %3844 = vset.pattern.permute.xlu0 0
      %3845 = vperm.xlu0 %3844, %v1090
      %v3846 = vpop.permute.xlu0 %3845
      %3849 = vset.pattern.permute.xlu0 0
      %3850 = vperm.xlu0 %3849, %v1091
      %v3851 = vpop.permute.xlu0 %3850
      %3854 = vset.pattern.permute.xlu0 0
      %3855 = vperm.xlu0 %3854, %v1092
      %v3856 = vpop.permute.xlu0 %3855
      %3859 = vset.pattern.permute.xlu0 0
      %3860 = vperm.xlu0 %3859, %v1093
      %v3861 = vpop.permute.xlu0 %3860
      %3864 = vset.pattern.permute.xlu0 0
      %3865 = vperm.xlu0 %3864, %v1094
      %v3866 = vpop.permute.xlu0 %3865
      %3869 = vset.pattern.permute.xlu0 0
      %3870 = vperm.xlu0 %3869, %v1095
      %v3871 = vpop.permute.xlu0 %3870
      %3874 = vset.pattern.permute.xlu0 0
      %3875 = vperm.xlu0 %3874, %v1096
      %v3876 = vpop.permute.xlu0 %3875
      %vm3878 = vcmask 523264
      %v3880 = vsel %vm3878, %v1063, 0
      %v3883 = vsel %vm3878, %v1064, 0
      %v3886 = vsel %vm3878, %v1065, 0
      %v3889 = vsel %vm3878, %v1066, 0
      %v3892 = vsel %vm3878, %v1067, 0
      %v3895 = vsel %vm3878, %v1068, 0
      %v3898 = vsel %vm3878, %v1069, 0
      %v3901 = vsel %vm3878, %v1070, 0
      %v3904 = vsel %vm3878, %v1071, 0
      %v3907 = vsel %vm3878, %v1072, 0
      %v3910 = vsel %vm3878, %v1073, 0
      %v3913 = vsel %vm3878, %v1074, 0
      %v3916 = vsel %vm3878, %v1075, 0
      %v3919 = vsel %vm3878, %v1076, 0
      %v3922 = vsel %vm3878, %v1077, 0
      %v3925 = vsel %vm3878, %v1078, 0
      %v3928 = vsel %vm3878, %v1079, 0
      %3930 = vmatpush.msra.mxu0 0.0
      %3931 = vmatpush.msra.mxu0 0.0
      %3932 = vmatpush.msra.mxu0 0.0
      %3933 = vmatpush.msra.mxu0 0.0
      %3934 = vmatpush.msra.mxu0 0.0
      %3935 = vmatpush.msra.mxu0 0.0
      %3936 = vmatpush.msra.mxu0 0.0
      %3937 = vmatpush.msra.mxu0 0.0
      %3938 = vmatpush.msra.mxu0 %v3789
      %3939 = vmatpush.msra.mxu0 %v3785
      %3940 = vmatpush.msra.mxu0 %v3781
      %3941 = vmatpush.msra.mxu0 %v3777
      %3942 = vmatpush.msra.mxu0 %v3773
      %3943 = vmatpush.msra.mxu0 %v3769
      %3944 = vmatpush.msra.mxu0 %v3765
      %3945 = vmatpush.msra.mxu0 %v3761
      %3946 = vmatmul.f32.gmra.mxu0 %v3880
      %v3947 = vpop.f32.mrf.mxu0
      %v3948 = vadd.f32 %v3796, %v3947
      %3949 = vmatmul.f32.gmra.mxu0 %v3883
      %v3950 = vpop.f32.mrf.mxu0
      %v3951 = vadd.f32 %v3801, %v3950
      %3952 = vmatmul.f32.gmra.mxu0 %v3886
      %v3953 = vpop.f32.mrf.mxu0
      %v3954 = vadd.f32 %v3806, %v3953
      %3955 = vmatmul.f32.gmra.mxu0 %v3889
      %v3956 = vpop.f32.mrf.mxu0
      %v3957 = vadd.f32 %v3811, %v3956
      %3958 = vmatmul.f32.gmra.mxu0 %v3892
      %v3959 = vpop.f32.mrf.mxu0
      %v3960 = vadd.f32 %v3816, %v3959
      %3961 = vmatmul.f32.gmra.mxu0 %v3895
      %v3962 = vpop.f32.mrf.mxu0
      %v3963 = vadd.f32 %v3821, %v3962
      %3964 = vmatmul.f32.gmra.mxu0 %v3898
      %v3965 = vpop.f32.mrf.mxu0
      %v3966 = vadd.f32 %v3826, %v3965
      %3967 = vmatmul.f32.gmra.mxu0 %v3901
      %v3968 = vpop.f32.mrf.mxu0
      %v3969 = vadd.f32 %v3831, %v3968
      %3970 = vmatmul.f32.gmra.mxu0 %v3904
      %v3971 = vpop.f32.mrf.mxu0
      %v3972 = vadd.f32 %v3836, %v3971
      %3973 = vmatmul.f32.gmra.mxu0 %v3907
      %v3974 = vpop.f32.mrf.mxu0
      %v3975 = vadd.f32 %v3841, %v3974
      %3976 = vmatmul.f32.gmra.mxu0 %v3910
      %v3977 = vpop.f32.mrf.mxu0
      %v3978 = vadd.f32 %v3846, %v3977
      %3979 = vmatmul.f32.gmra.mxu0 %v3913
      %v3980 = vpop.f32.mrf.mxu0
      %v3981 = vadd.f32 %v3851, %v3980
      %3982 = vmatmul.f32.gmra.mxu0 %v3916
      %v3983 = vpop.f32.mrf.mxu0
      %v3984 = vadd.f32 %v3856, %v3983
      %3985 = vmatmul.f32.gmra.mxu0 %v3919
      %v3986 = vpop.f32.mrf.mxu0
      %v3987 = vadd.f32 %v3861, %v3986
      %3988 = vmatmul.f32.gmra.mxu0 %v3922
      %v3989 = vpop.f32.mrf.mxu0
      %v3990 = vadd.f32 %v3866, %v3989
      %3991 = vmatmul.f32.gmra.mxu0 %v3925
      %v3992 = vpop.f32.mrf.mxu0
      %v3993 = vadd.f32 %v3871, %v3992
      %3994 = vmatmul.f32.gmra.mxu0 %v3928
      %v3995 = vpop.f32.mrf.mxu0
      %v3996 = vadd.f32 %v3876, %v3995
      %3997 = vdwg.mxu0
      %3998 = vmatpush.msra.mxu0 0.0
      %3999 = vmatpush.msra.mxu0 0.0
      %4000 = vmatpush.msra.mxu0 0.0
      %4001 = vmatpush.msra.mxu0 0.0
      %4002 = vmatpush.msra.mxu0 0.0
      %4003 = vmatpush.msra.mxu0 0.0
      %4004 = vmatpush.msra.mxu0 0.0
      %4005 = vmatpush.msra.mxu0 0.0
      %4006 = vmatpush.msra.mxu0 %v3790
      %4007 = vmatpush.msra.mxu0 %v3786
      %4008 = vmatpush.msra.mxu0 %v3782
      %4009 = vmatpush.msra.mxu0 %v3778
      %4010 = vmatpush.msra.mxu0 %v3774
      %4011 = vmatpush.msra.mxu0 %v3770
      %4012 = vmatpush.msra.mxu0 %v3766
      %4013 = vmatpush.msra.mxu0 %v3762
      %4014 = vmatmul.f32.gmra.mxu0 %v3880
      %v4015 = vpop.f32.mrf.mxu0
      %v4016 = vadd.f32 %v3796, %v4015
      %4017 = vmatmul.f32.gmra.mxu0 %v3883
      %v4018 = vpop.f32.mrf.mxu0
      %v4019 = vadd.f32 %v3801, %v4018
      %4020 = vmatmul.f32.gmra.mxu0 %v3886
      %v4021 = vpop.f32.mrf.mxu0
      %v4022 = vadd.f32 %v3806, %v4021
      %4023 = vmatmul.f32.gmra.mxu0 %v3889
      %v4024 = vpop.f32.mrf.mxu0
      %v4025 = vadd.f32 %v3811, %v4024
      %4026 = vmatmul.f32.gmra.mxu0 %v3892
      %v4027 = vpop.f32.mrf.mxu0
      %v4028 = vadd.f32 %v3816, %v4027
      %4029 = vmatmul.f32.gmra.mxu0 %v3895
      %v4030 = vpop.f32.mrf.mxu0
      %v4031 = vadd.f32 %v3821, %v4030
      %4032 = vmatmul.f32.gmra.mxu0 %v3898
      %v4033 = vpop.f32.mrf.mxu0
      %v4034 = vadd.f32 %v3826, %v4033
      %4035 = vmatmul.f32.gmra.mxu0 %v3901
      %v4036 = vpop.f32.mrf.mxu0
      %v4037 = vadd.f32 %v3831, %v4036
      %4038 = vmatmul.f32.gmra.mxu0 %v3904
      %v4039 = vpop.f32.mrf.mxu0
      %v4040 = vadd.f32 %v3836, %v4039
      %4041 = vmatmul.f32.gmra.mxu0 %v3907
      %v4042 = vpop.f32.mrf.mxu0
      %v4043 = vadd.f32 %v3841, %v4042
      %4044 = vmatmul.f32.gmra.mxu0 %v3910
      %v4045 = vpop.f32.mrf.mxu0
      %v4046 = vadd.f32 %v3846, %v4045
      %4047 = vmatmul.f32.gmra.mxu0 %v3913
      %v4048 = vpop.f32.mrf.mxu0
      %v4049 = vadd.f32 %v3851, %v4048
      %4050 = vmatmul.f32.gmra.mxu0 %v3916
      %v4051 = vpop.f32.mrf.mxu0
      %v4052 = vadd.f32 %v3856, %v4051
      %4053 = vmatmul.f32.gmra.mxu0 %v3919
      %v4054 = vpop.f32.mrf.mxu0
      %v4055 = vadd.f32 %v3861, %v4054
      %4056 = vmatmul.f32.gmra.mxu0 %v3922
      %v4057 = vpop.f32.mrf.mxu0
      %v4058 = vadd.f32 %v3866, %v4057
      %4059 = vmatmul.f32.gmra.mxu0 %v3925
      %v4060 = vpop.f32.mrf.mxu0
      %v4061 = vadd.f32 %v3871, %v4060
      %4062 = vmatmul.f32.gmra.mxu0 %v3928
      %v4063 = vpop.f32.mrf.mxu0
      %v4064 = vadd.f32 %v3876, %v4063
      %4065 = vdwg.mxu0
      %4066 = vmatpush.msra.mxu0 0.0
      %4067 = vmatpush.msra.mxu0 0.0
      %4068 = vmatpush.msra.mxu0 0.0
      %4069 = vmatpush.msra.mxu0 0.0
      %4070 = vmatpush.msra.mxu0 0.0
      %4071 = vmatpush.msra.mxu0 0.0
      %4072 = vmatpush.msra.mxu0 0.0
      %4073 = vmatpush.msra.mxu0 0.0
      %4074 = vmatpush.msra.mxu0 %v3791
      %4075 = vmatpush.msra.mxu0 %v3787
      %4076 = vmatpush.msra.mxu0 %v3783
      %4077 = vmatpush.msra.mxu0 %v3779
      %4078 = vmatpush.msra.mxu0 %v3775
      %4079 = vmatpush.msra.mxu0 %v3771
      %4080 = vmatpush.msra.mxu0 %v3767
      %4081 = vmatpush.msra.mxu0 %v3763
      %4082 = vmatmul.f32.gmra.mxu0 %v3880
      %v4083 = vpop.f32.mrf.mxu0
      %v4084 = vadd.f32 %v3796, %v4083
      %4085 = vmatmul.f32.gmra.mxu0 %v3883
      %v4086 = vpop.f32.mrf.mxu0
      %v4087 = vadd.f32 %v3801, %v4086
      %4088 = vmatmul.f32.gmra.mxu0 %v3886
      %v4089 = vpop.f32.mrf.mxu0
      %v4090 = vadd.f32 %v3806, %v4089
      %4091 = vmatmul.f32.gmra.mxu0 %v3889
      %v4092 = vpop.f32.mrf.mxu0
      %v4093 = vadd.f32 %v3811, %v4092
      %4094 = vmatmul.f32.gmra.mxu0 %v3892
      %v4095 = vpop.f32.mrf.mxu0
      %v4096 = vadd.f32 %v3816, %v4095
      %4097 = vmatmul.f32.gmra.mxu0 %v3895
      %v4098 = vpop.f32.mrf.mxu0
      %v4099 = vadd.f32 %v3821, %v4098
      %4100 = vmatmul.f32.gmra.mxu0 %v3898
      %v4101 = vpop.f32.mrf.mxu0
      %v4102 = vadd.f32 %v3826, %v4101
      %4103 = vmatmul.f32.gmra.mxu0 %v3901
      %v4104 = vpop.f32.mrf.mxu0
      %v4105 = vadd.f32 %v3831, %v4104
      %4106 = vmatmul.f32.gmra.mxu0 %v3904
      %v4107 = vpop.f32.mrf.mxu0
      %v4108 = vadd.f32 %v3836, %v4107
      %4109 = vmatmul.f32.gmra.mxu0 %v3907
      %v4110 = vpop.f32.mrf.mxu0
      %v4111 = vadd.f32 %v3841, %v4110
      %4112 = vmatmul.f32.gmra.mxu0 %v3910
      %v4113 = vpop.f32.mrf.mxu0
      %v4114 = vadd.f32 %v3846, %v4113
      %4115 = vmatmul.f32.gmra.mxu0 %v3913
      %v4116 = vpop.f32.mrf.mxu0
      %v4117 = vadd.f32 %v3851, %v4116
      %4118 = vmatmul.f32.gmra.mxu0 %v3916
      %v4119 = vpop.f32.mrf.mxu0
      %v4120 = vadd.f32 %v3856, %v4119
      %4121 = vmatmul.f32.gmra.mxu0 %v3919
      %v4122 = vpop.f32.mrf.mxu0
      %v4123 = vadd.f32 %v3861, %v4122
      %4124 = vmatmul.f32.gmra.mxu0 %v3922
      %v4125 = vpop.f32.mrf.mxu0
      %v4126 = vadd.f32 %v3866, %v4125
      %4127 = vmatmul.f32.gmra.mxu0 %v3925
      %v4128 = vpop.f32.mrf.mxu0
      %v4129 = vadd.f32 %v3871, %v4128
      %4130 = vmatmul.f32.gmra.mxu0 %v3928
      %v4131 = vpop.f32.mrf.mxu0
      %v4132 = vadd.f32 %v3876, %v4131
      %4133 = vdwg.mxu0
      %4134 = vmatpush.msra.mxu0 0.0
      %4135 = vmatpush.msra.mxu0 0.0
      %4136 = vmatpush.msra.mxu0 0.0
      %4137 = vmatpush.msra.mxu0 0.0
      %4138 = vmatpush.msra.mxu0 0.0
      %4139 = vmatpush.msra.mxu0 0.0
      %4140 = vmatpush.msra.mxu0 0.0
      %4141 = vmatpush.msra.mxu0 0.0
      %4142 = vmatpush.msra.mxu0 %v3792
      %4143 = vmatpush.msra.mxu0 %v3788
      %4144 = vmatpush.msra.mxu0 %v3784
      %4145 = vmatpush.msra.mxu0 %v3780
      %4146 = vmatpush.msra.mxu0 %v3776
      %4147 = vmatpush.msra.mxu0 %v3772
      %4148 = vmatpush.msra.mxu0 %v3768
      %4149 = vmatpush.msra.mxu0 %v3764
      %4150 = vmatmul.f32.gmra.mxu0 %v3880
      %v4151 = vpop.f32.mrf.mxu0
      %v4152 = vadd.f32 %v3796, %v4151
      %4153 = vmatmul.f32.gmra.mxu0 %v3883
      %v4154 = vpop.f32.mrf.mxu0
      %v4155 = vadd.f32 %v3801, %v4154
      %4156 = vmatmul.f32.gmra.mxu0 %v3886
      %v4157 = vpop.f32.mrf.mxu0
      %v4158 = vadd.f32 %v3806, %v4157
      %4159 = vmatmul.f32.gmra.mxu0 %v3889
      %v4160 = vpop.f32.mrf.mxu0
      %v4161 = vadd.f32 %v3811, %v4160
      %4162 = vmatmul.f32.gmra.mxu0 %v3892
      %v4163 = vpop.f32.mrf.mxu0
      %v4164 = vadd.f32 %v3816, %v4163
      %4165 = vmatmul.f32.gmra.mxu0 %v3895
      %v4166 = vpop.f32.mrf.mxu0
      %v4167 = vadd.f32 %v3821, %v4166
      %4168 = vmatmul.f32.gmra.mxu0 %v3898
      %v4169 = vpop.f32.mrf.mxu0
      %v4170 = vadd.f32 %v3826, %v4169
      %4171 = vmatmul.f32.gmra.mxu0 %v3901
      %v4172 = vpop.f32.mrf.mxu0
      %v4173 = vadd.f32 %v3831, %v4172
      %4174 = vmatmul.f32.gmra.mxu0 %v3904
      %v4175 = vpop.f32.mrf.mxu0
      %v4176 = vadd.f32 %v3836, %v4175
      %4177 = vmatmul.f32.gmra.mxu0 %v3907
      %v4178 = vpop.f32.mrf.mxu0
      %v4179 = vadd.f32 %v3841, %v4178
      %4180 = vmatmul.f32.gmra.mxu0 %v3910
      %v4181 = vpop.f32.mrf.mxu0
      %v4182 = vadd.f32 %v3846, %v4181
      %4183 = vmatmul.f32.gmra.mxu0 %v3913
      %v4184 = vpop.f32.mrf.mxu0
      %v4185 = vadd.f32 %v3851, %v4184
      %4186 = vmatmul.f32.gmra.mxu0 %v3916
      %v4187 = vpop.f32.mrf.mxu0
      %v4188 = vadd.f32 %v3856, %v4187
      %4189 = vmatmul.f32.gmra.mxu0 %v3919
      %v4190 = vpop.f32.mrf.mxu0
      %v4191 = vadd.f32 %v3861, %v4190
      %4192 = vmatmul.f32.gmra.mxu0 %v3922
      %v4193 = vpop.f32.mrf.mxu0
      %v4194 = vadd.f32 %v3866, %v4193
      %4195 = vmatmul.f32.gmra.mxu0 %v3925
      %v4196 = vpop.f32.mrf.mxu0
      %v4197 = vadd.f32 %v3871, %v4196
      %4198 = vmatmul.f32.gmra.mxu0 %v3928
      %v4199 = vpop.f32.mrf.mxu0
      %v4200 = vadd.f32 %v3876, %v4199
      %4201 = vdwg.mxu0
      %v4202 = vsel %vm2068, %v3996, -inf
      %v4203 = vsel %vm2068, %v4064, -inf
      %v4204 = vsel %vm2068, %v4132, -inf
      %v4205 = vsel %vm2068, %v4200, -inf
      %v4206 = vmax.f32 %v4202, %v4203
      %v4207 = vmax.f32 %v4204, %v4205
      %v4208 = vmax.f32 %v4206, %v4207
      %4209 = vmax.xlane.f32.xlu0 %v4208
      %v4210 = vpop.xlane.xlu0 %4209
      %v4211 = vsub.f32 %v3996, %v4210
      %v4212 = vsub.f32 %v4064, %v4210
      %v4213 = vsub.f32 %v4132, %v4210
      %v4214 = vsub.f32 %v4200, %v4210
      %v4215 = vmul.f32 %v4211, 1.442695
      %v4216 = vpow.pop %v4215
      %v4217 = vmul.f32 %v4212, 1.442695
      %v4218 = vpow.pop %v4217
      %v4219 = vmul.f32 %v4213, 1.442695
      %v4220 = vpow.pop %v4219
      %v4221 = vmul.f32 %v4214, 1.442695
      %v4222 = vpow.pop %v4221
      %v4223 = vsel %vm2068, %v4216, 0.0
      %v4224 = vsel %vm2068, %v4218, 0.0
      %v4225 = vadd.f32 %v4223, %v4224
      %v4226 = vsel %vm2068, %v4220, 0.0
      %v4227 = vadd.f32 %v4225, %v4226
      %v4228 = vsel %vm2068, %v4222, 0.0
      %v4229 = vadd.f32 %v4227, %v4228
      %4230 = vadd.xlane.f32.xlu0 %v4229
      %v4231 = vpop.xlane.xlu0 %4230
      %v4232 = vrcp.pop %v4231
      %v4233 = vmul.f32 %v4231, %v4232
      %v4234 = vsub.f32 1.0, %v4233
      %v4235 = vmul.f32 %v4232, %v4234
      %v4236 = vadd.f32 %v4232, %v4235
      %vm4237 = vweird.f32 %v4231
      %vm4238 = vweird.f32 %v4232
      %vm4239 = vmor %vm4237, %vm4238
      %v4240 = vsel %vm4239, %v4232, %v4236
      %v4241 = vand.u32 2147483647, %v4231
      %vm4242 = vcmp.eq.f32.partialorder %v4241, 8.507059e+37
      %v4243 = vand.u32 %v4231, 2147483648
      %v4244 = vor.u32 1.1754944e-38, %v4243
      %v4245 = vsel %vm4242, %v4244, %v4240
      %v4246 = vmul.f32 %v4216, %v4245
      %v4247 = vmul.f32 %v4218, %v4245
      %v4248 = vmul.f32 %v4220, %v4245
      %v4249 = vmul.f32 %v4222, %v4245
      %v4250 = vperm.slane %v4246, 0
      %v4251 = vperm.slane %v4247, 0
      %v4252 = vperm.slane %v4248, 0
      %v4253 = vperm.slane %v4249, 0
      %v4254 = vmul.f32 %v3948, %v4250
      %v4255 = vmul.f32 %v4016, %v4251
      %v4256 = vmul.f32 %v4084, %v4252
      %v4257 = vmul.f32 %v4152, %v4253
      %v4258 = vmul.f32 %v3951, %v4250
      %v4259 = vmul.f32 %v4019, %v4251
      %v4260 = vmul.f32 %v4087, %v4252
      %v4261 = vmul.f32 %v4155, %v4253
      %v4262 = vadd.f32 %v4254, %v4255
      %v4263 = vadd.f32 %v4262, %v4256
      %v4264 = vadd.f32 %v4263, %v4257
      %4265 = vadd.xlane.f32.xlu0 %v4264
      %v4266 = vpop.xlane.xlu0 %4265
      %v4267 = vadd.f32 %v4258, %v4259
      %v4268 = vadd.f32 %v4267, %v4260
      %v4269 = vadd.f32 %v4268, %v4261
      %4270 = vadd.xlane.f32.xlu0 %v4269
      %v4271 = vpop.xlane.xlu0 %4270
      %v4272 = vperm.slane %v4246, 1
      %v4273 = vperm.slane %v4247, 1
      %v4274 = vperm.slane %v4248, 1
      %v4275 = vperm.slane %v4249, 1
      %v4276 = vmul.f32 %v3954, %v4272
      %v4277 = vmul.f32 %v4022, %v4273
      %v4278 = vmul.f32 %v4090, %v4274
      %v4279 = vmul.f32 %v4158, %v4275
      %v4280 = vmul.f32 %v3957, %v4272
      %v4281 = vmul.f32 %v4025, %v4273
      %v4282 = vmul.f32 %v4093, %v4274
      %v4283 = vmul.f32 %v4161, %v4275
      %v4284 = vadd.f32 %v4276, %v4277
      %v4285 = vadd.f32 %v4284, %v4278
      %v4286 = vadd.f32 %v4285, %v4279
      %4287 = vadd.xlane.f32.xlu0 %v4286
      %v4288 = vpop.xlane.xlu0 %4287
      %v4289 = vadd.f32 %v4280, %v4281
      %v4290 = vadd.f32 %v4289, %v4282
      %v4291 = vadd.f32 %v4290, %v4283
      %4292 = vadd.xlane.f32.xlu0 %v4291
      %v4293 = vpop.xlane.xlu0 %4292
      %v4294 = vperm.slane %v4246, 2
      %v4295 = vperm.slane %v4247, 2
      %v4296 = vperm.slane %v4248, 2
      %v4297 = vperm.slane %v4249, 2
      %v4298 = vmul.f32 %v3960, %v4294
      %v4299 = vmul.f32 %v4028, %v4295
      %v4300 = vmul.f32 %v4096, %v4296
      %v4301 = vmul.f32 %v4164, %v4297
      %v4302 = vmul.f32 %v3963, %v4294
      %v4303 = vmul.f32 %v4031, %v4295
      %v4304 = vmul.f32 %v4099, %v4296
      %v4305 = vmul.f32 %v4167, %v4297
      %v4306 = vadd.f32 %v4298, %v4299
      %v4307 = vadd.f32 %v4306, %v4300
      %v4308 = vadd.f32 %v4307, %v4301
      %4309 = vadd.xlane.f32.xlu0 %v4308
      %v4310 = vpop.xlane.xlu0 %4309
      %v4311 = vadd.f32 %v4302, %v4303
      %v4312 = vadd.f32 %v4311, %v4304
      %v4313 = vadd.f32 %v4312, %v4305
      %4314 = vadd.xlane.f32.xlu0 %v4313
      %v4315 = vpop.xlane.xlu0 %4314
      %v4316 = vperm.slane %v4246, 3
      %v4317 = vperm.slane %v4247, 3
      %v4318 = vperm.slane %v4248, 3
      %v4319 = vperm.slane %v4249, 3
      %v4320 = vmul.f32 %v3966, %v4316
      %v4321 = vmul.f32 %v4034, %v4317
      %v4322 = vmul.f32 %v4102, %v4318
      %v4323 = vmul.f32 %v4170, %v4319
      %v4324 = vmul.f32 %v3969, %v4316
      %v4325 = vmul.f32 %v4037, %v4317
      %v4326 = vmul.f32 %v4105, %v4318
      %v4327 = vmul.f32 %v4173, %v4319
      %v4328 = vadd.f32 %v4320, %v4321
      %v4329 = vadd.f32 %v4328, %v4322
      %v4330 = vadd.f32 %v4329, %v4323
      %4331 = vadd.xlane.f32.xlu0 %v4330
      %v4332 = vpop.xlane.xlu0 %4331
      %v4333 = vadd.f32 %v4324, %v4325
      %v4334 = vadd.f32 %v4333, %v4326
      %v4335 = vadd.f32 %v4334, %v4327
      %4336 = vadd.xlane.f32.xlu0 %v4335
      %v4337 = vpop.xlane.xlu0 %4336
      %v4338 = vmax.f32 %v3972, 0.0
      %v4339 = vmax.f32 %v4040, 0.0
      %v4340 = vmax.f32 %v4108, 0.0
      %v4341 = vmax.f32 %v4176, 0.0
      %v4342 = vmax.f32 %v3975, 0.0
      %v4343 = vmax.f32 %v4043, 0.0
      %v4344 = vmax.f32 %v4111, 0.0
      %v4345 = vmax.f32 %v4179, 0.0
      %v4346 = vmax.f32 %v3978, 0.0
      %v4347 = vmax.f32 %v4046, 0.0
      %v4348 = vmax.f32 %v4114, 0.0
      %v4349 = vmax.f32 %v4182, 0.0
      %v4350 = vmax.f32 %v3981, 0.0
      %v4351 = vmax.f32 %v4049, 0.0
      %v4352 = vmax.f32 %v4117, 0.0
      %v4353 = vmax.f32 %v4185, 0.0
      %v4354 = vmax.f32 %v3984, 0.0
      %v4355 = vmax.f32 %v4052, 0.0
      %v4356 = vmax.f32 %v4120, 0.0
      %v4357 = vmax.f32 %v4188, 0.0
      %v4358 = vmax.f32 %v3987, 0.0
      %v4359 = vmax.f32 %v4055, 0.0
      %v4360 = vmax.f32 %v4123, 0.0
      %v4361 = vmax.f32 %v4191, 0.0
      %v4362 = vmax.f32 %v3990, 0.0
      %v4363 = vmax.f32 %v4058, 0.0
      %v4364 = vmax.f32 %v4126, 0.0
      %v4365 = vmax.f32 %v4194, 0.0
      %v4366 = vmax.f32 %v3993, 0.0
      %v4367 = vmax.f32 %v4061, 0.0
      %v4368 = vmax.f32 %v4129, 0.0
      %v4369 = vmax.f32 %v4197, 0.0
      %4371 = vset.pattern.permute.xlu0 0
      %4372 = vperm.xlu0 %4371, %v4266
      %v4373 = vpop.permute.xlu0 %4372
      %4376 = vset.pattern.permute.xlu0 0
      %4377 = vperm.xlu0 %4376, %v4271
      %v4378 = vpop.permute.xlu0 %4377
      %4381 = vset.pattern.permute.xlu0 0
      %4382 = vperm.xlu0 %4381, %v4288
      %v4383 = vpop.permute.xlu0 %4382
      %4386 = vset.pattern.permute.xlu0 0
      %4387 = vperm.xlu0 %4386, %v4293
      %v4388 = vpop.permute.xlu0 %4387
      %4391 = vset.pattern.permute.xlu0 0
      %4392 = vperm.xlu0 %4391, %v4310
      %v4393 = vpop.permute.xlu0 %4392
      %4396 = vset.pattern.permute.xlu0 0
      %4397 = vperm.xlu0 %4396, %v4315
      %v4398 = vpop.permute.xlu0 %4397
      %4401 = vset.pattern.permute.xlu0 0
      %4402 = vperm.xlu0 %4401, %v4332
      %v4403 = vpop.permute.xlu0 %4402
      %4406 = vset.pattern.permute.xlu0 0
      %4407 = vperm.xlu0 %4406, %v4337
      %v4408 = vpop.permute.xlu0 %4407
      %v4410 = vmul.f32 %v4338, %v4373
      %v4411 = vmul.f32 %v4339, %v4373
      %v4412 = vmul.f32 %v4340, %v4373
      %v4413 = vmul.f32 %v4341, %v4373
      %v4414 = vmul.f32 %v4342, %v4378
      %v4415 = vmul.f32 %v4343, %v4378
      %v4416 = vmul.f32 %v4344, %v4378
      %v4417 = vmul.f32 %v4345, %v4378
      %v4418 = vmul.f32 %v4346, %v4383
      %v4419 = vmul.f32 %v4347, %v4383
      %v4420 = vmul.f32 %v4348, %v4383
      %v4421 = vmul.f32 %v4349, %v4383
      %v4422 = vmul.f32 %v4350, %v4388
      %v4423 = vmul.f32 %v4351, %v4388
      %v4424 = vmul.f32 %v4352, %v4388
      %v4425 = vmul.f32 %v4353, %v4388
      %v4426 = vmul.f32 %v4354, %v4393
      %v4427 = vmul.f32 %v4355, %v4393
      %v4428 = vmul.f32 %v4356, %v4393
      %v4429 = vmul.f32 %v4357, %v4393
      %v4430 = vmul.f32 %v4358, %v4398
      %v4431 = vmul.f32 %v4359, %v4398
      %v4432 = vmul.f32 %v4360, %v4398
      %v4433 = vmul.f32 %v4361, %v4398
      %v4434 = vmul.f32 %v4362, %v4403
      %v4435 = vmul.f32 %v4363, %v4403
      %v4436 = vmul.f32 %v4364, %v4403
      %v4437 = vmul.f32 %v4365, %v4403
      %v4438 = vmul.f32 %v4366, %v4408
      %v4439 = vmul.f32 %v4367, %v4408
      %v4440 = vmul.f32 %v4368, %v4408
      %v4441 = vmul.f32 %v4369, %v4408
      %4443 = vset.pattern.permute.xlu0 0
      %4444 = vperm.xlu0 %4443, %v1105
      %v4445 = vpop.permute.xlu0 %4444
      %4448 = vset.pattern.permute.xlu0 0
      %4449 = vperm.xlu0 %4448, %v1106
      %v4450 = vpop.permute.xlu0 %4449
      %4453 = vset.pattern.permute.xlu0 0
      %4454 = vperm.xlu0 %4453, %v1107
      %v4455 = vpop.permute.xlu0 %4454
      %4458 = vset.pattern.permute.xlu0 0
      %4459 = vperm.xlu0 %4458, %v1108
      %v4460 = vpop.permute.xlu0 %4459
      %4463 = vset.pattern.permute.xlu0 0
      %4464 = vperm.xlu0 %4463, %v1109
      %v4465 = vpop.permute.xlu0 %4464
      %4468 = vset.pattern.permute.xlu0 0
      %4469 = vperm.xlu0 %4468, %v1110
      %v4470 = vpop.permute.xlu0 %4469
      %4473 = vset.pattern.permute.xlu0 0
      %4474 = vperm.xlu0 %4473, %v1111
      %v4475 = vpop.permute.xlu0 %4474
      %4478 = vset.pattern.permute.xlu0 0
      %4479 = vperm.xlu0 %4478, %v1112
      %v4480 = vpop.permute.xlu0 %4479
      %v4483 = vsel %vm3878, %v1097, 0
      %v4486 = vsel %vm3878, %v1098, 0
      %v4489 = vsel %vm3878, %v1099, 0
      %v4492 = vsel %vm3878, %v1100, 0
      %v4495 = vsel %vm3878, %v1101, 0
      %v4498 = vsel %vm3878, %v1102, 0
      %v4501 = vsel %vm3878, %v1103, 0
      %v4504 = vsel %vm3878, %v1104, 0
      %4506 = vmatpush.msra.mxu0 0.0
      %4507 = vmatpush.msra.mxu0 0.0
      %4508 = vmatpush.msra.mxu0 0.0
      %4509 = vmatpush.msra.mxu0 0.0
      %4510 = vmatpush.msra.mxu0 0.0
      %4511 = vmatpush.msra.mxu0 0.0
      %4512 = vmatpush.msra.mxu0 0.0
      %4513 = vmatpush.msra.mxu0 0.0
      %4514 = vmatpush.msra.mxu0 %v4438
      %4515 = vmatpush.msra.mxu0 %v4434
      %4516 = vmatpush.msra.mxu0 %v4430
      %4517 = vmatpush.msra.mxu0 %v4426
      %4518 = vmatpush.msra.mxu0 %v4422
      %4519 = vmatpush.msra.mxu0 %v4418
      %4520 = vmatpush.msra.mxu0 %v4414
      %4521 = vmatpush.msra.mxu0 %v4410
      %4522 = vmatmul.f32.gmra.mxu0 %v4483
      %v4523 = vpop.f32.mrf.mxu0
      %v4524 = vadd.f32 %v4445, %v4523
      %4525 = vmatmul.f32.gmra.mxu0 %v4486
      %v4526 = vpop.f32.mrf.mxu0
      %v4527 = vadd.f32 %v4450, %v4526
      %4528 = vmatmul.f32.gmra.mxu0 %v4489
      %v4529 = vpop.f32.mrf.mxu0
      %v4530 = vadd.f32 %v4455, %v4529
      %4531 = vmatmul.f32.gmra.mxu0 %v4492
      %v4532 = vpop.f32.mrf.mxu0
      %v4533 = vadd.f32 %v4460, %v4532
      %4534 = vmatmul.f32.gmra.mxu0 %v4495
      %v4535 = vpop.f32.mrf.mxu0
      %v4536 = vadd.f32 %v4465, %v4535
      %4537 = vmatmul.f32.gmra.mxu0 %v4498
      %v4538 = vpop.f32.mrf.mxu0
      %v4539 = vadd.f32 %v4470, %v4538
      %4540 = vmatmul.f32.gmra.mxu0 %v4501
      %v4541 = vpop.f32.mrf.mxu0
      %v4542 = vadd.f32 %v4475, %v4541
      %4543 = vmatmul.f32.gmra.mxu0 %v4504
      %v4544 = vpop.f32.mrf.mxu0
      %v4545 = vadd.f32 %v4480, %v4544
      %4546 = vdwg.mxu0
      %4547 = vmatpush.msra.mxu0 0.0
      %4548 = vmatpush.msra.mxu0 0.0
      %4549 = vmatpush.msra.mxu0 0.0
      %4550 = vmatpush.msra.mxu0 0.0
      %4551 = vmatpush.msra.mxu0 0.0
      %4552 = vmatpush.msra.mxu0 0.0
      %4553 = vmatpush.msra.mxu0 0.0
      %4554 = vmatpush.msra.mxu0 0.0
      %4555 = vmatpush.msra.mxu0 %v4439
      %4556 = vmatpush.msra.mxu0 %v4435
      %4557 = vmatpush.msra.mxu0 %v4431
      %4558 = vmatpush.msra.mxu0 %v4427
      %4559 = vmatpush.msra.mxu0 %v4423
      %4560 = vmatpush.msra.mxu0 %v4419
      %4561 = vmatpush.msra.mxu0 %v4415
      %4562 = vmatpush.msra.mxu0 %v4411
      %4563 = vmatmul.f32.gmra.mxu0 %v4483
      %v4564 = vpop.f32.mrf.mxu0
      %v4565 = vadd.f32 %v4445, %v4564
      %4566 = vmatmul.f32.gmra.mxu0 %v4486
      %v4567 = vpop.f32.mrf.mxu0
      %v4568 = vadd.f32 %v4450, %v4567
      %4569 = vmatmul.f32.gmra.mxu0 %v4489
      %v4570 = vpop.f32.mrf.mxu0
      %v4571 = vadd.f32 %v4455, %v4570
      %4572 = vmatmul.f32.gmra.mxu0 %v4492
      %v4573 = vpop.f32.mrf.mxu0
      %v4574 = vadd.f32 %v4460, %v4573
      %4575 = vmatmul.f32.gmra.mxu0 %v4495
      %v4576 = vpop.f32.mrf.mxu0
      %v4577 = vadd.f32 %v4465, %v4576
      %4578 = vmatmul.f32.gmra.mxu0 %v4498
      %v4579 = vpop.f32.mrf.mxu0
      %v4580 = vadd.f32 %v4470, %v4579
      %4581 = vmatmul.f32.gmra.mxu0 %v4501
      %v4582 = vpop.f32.mrf.mxu0
      %v4583 = vadd.f32 %v4475, %v4582
      %4584 = vmatmul.f32.gmra.mxu0 %v4504
      %v4585 = vpop.f32.mrf.mxu0
      %v4586 = vadd.f32 %v4480, %v4585
      %4587 = vdwg.mxu0
      %4588 = vmatpush.msra.mxu0 0.0
      %4589 = vmatpush.msra.mxu0 0.0
      %4590 = vmatpush.msra.mxu0 0.0
      %4591 = vmatpush.msra.mxu0 0.0
      %4592 = vmatpush.msra.mxu0 0.0
      %4593 = vmatpush.msra.mxu0 0.0
      %4594 = vmatpush.msra.mxu0 0.0
      %4595 = vmatpush.msra.mxu0 0.0
      %4596 = vmatpush.msra.mxu0 %v4440
      %4597 = vmatpush.msra.mxu0 %v4436
      %4598 = vmatpush.msra.mxu0 %v4432
      %4599 = vmatpush.msra.mxu0 %v4428
      %4600 = vmatpush.msra.mxu0 %v4424
      %4601 = vmatpush.msra.mxu0 %v4420
      %4602 = vmatpush.msra.mxu0 %v4416
      %4603 = vmatpush.msra.mxu0 %v4412
      %4604 = vmatmul.f32.gmra.mxu0 %v4483
      %v4605 = vpop.f32.mrf.mxu0
      %v4606 = vadd.f32 %v4445, %v4605
      %4607 = vmatmul.f32.gmra.mxu0 %v4486
      %v4608 = vpop.f32.mrf.mxu0
      %v4609 = vadd.f32 %v4450, %v4608
      %4610 = vmatmul.f32.gmra.mxu0 %v4489
      %v4611 = vpop.f32.mrf.mxu0
      %v4612 = vadd.f32 %v4455, %v4611
      %4613 = vmatmul.f32.gmra.mxu0 %v4492
      %v4614 = vpop.f32.mrf.mxu0
      %v4615 = vadd.f32 %v4460, %v4614
      %4616 = vmatmul.f32.gmra.mxu0 %v4495
      %v4617 = vpop.f32.mrf.mxu0
      %v4618 = vadd.f32 %v4465, %v4617
      %4619 = vmatmul.f32.gmra.mxu0 %v4498
      %v4620 = vpop.f32.mrf.mxu0
      %v4621 = vadd.f32 %v4470, %v4620
      %4622 = vmatmul.f32.gmra.mxu0 %v4501
      %v4623 = vpop.f32.mrf.mxu0
      %v4624 = vadd.f32 %v4475, %v4623
      %4625 = vmatmul.f32.gmra.mxu0 %v4504
      %v4626 = vpop.f32.mrf.mxu0
      %v4627 = vadd.f32 %v4480, %v4626
      %4628 = vdwg.mxu0
      %4629 = vmatpush.msra.mxu0 0.0
      %4630 = vmatpush.msra.mxu0 0.0
      %4631 = vmatpush.msra.mxu0 0.0
      %4632 = vmatpush.msra.mxu0 0.0
      %4633 = vmatpush.msra.mxu0 0.0
      %4634 = vmatpush.msra.mxu0 0.0
      %4635 = vmatpush.msra.mxu0 0.0
      %4636 = vmatpush.msra.mxu0 0.0
      %4637 = vmatpush.msra.mxu0 %v4441
      %4638 = vmatpush.msra.mxu0 %v4437
      %4639 = vmatpush.msra.mxu0 %v4433
      %4640 = vmatpush.msra.mxu0 %v4429
      %4641 = vmatpush.msra.mxu0 %v4425
      %4642 = vmatpush.msra.mxu0 %v4421
      %4643 = vmatpush.msra.mxu0 %v4417
      %4644 = vmatpush.msra.mxu0 %v4413
      %4645 = vmatmul.f32.gmra.mxu0 %v4483
      %v4646 = vpop.f32.mrf.mxu0
      %v4647 = vadd.f32 %v4445, %v4646
      %4648 = vmatmul.f32.gmra.mxu0 %v4486
      %v4649 = vpop.f32.mrf.mxu0
      %v4650 = vadd.f32 %v4450, %v4649
      %4651 = vmatmul.f32.gmra.mxu0 %v4489
      %v4652 = vpop.f32.mrf.mxu0
      %v4653 = vadd.f32 %v4455, %v4652
      %4654 = vmatmul.f32.gmra.mxu0 %v4492
      %v4655 = vpop.f32.mrf.mxu0
      %v4656 = vadd.f32 %v4460, %v4655
      %4657 = vmatmul.f32.gmra.mxu0 %v4495
      %v4658 = vpop.f32.mrf.mxu0
      %v4659 = vadd.f32 %v4465, %v4658
      %4660 = vmatmul.f32.gmra.mxu0 %v4498
      %v4661 = vpop.f32.mrf.mxu0
      %v4662 = vadd.f32 %v4470, %v4661
      %4663 = vmatmul.f32.gmra.mxu0 %v4501
      %v4664 = vpop.f32.mrf.mxu0
      %v4665 = vadd.f32 %v4475, %v4664
      %4666 = vmatmul.f32.gmra.mxu0 %v4504
      %v4667 = vpop.f32.mrf.mxu0
      %v4668 = vadd.f32 %v4480, %v4667
      %4669 = vdwg.mxu0
      %v4670 = vmul.f32 %v4524, 0.5
      %v4671 = vmul.f32 %v4565, 0.5
      %v4672 = vmul.f32 %v4606, 0.5
      %v4673 = vmul.f32 %v4647, 0.5
      %v4674 = vmul.f32 %v4527, 0.5
      %v4675 = vmul.f32 %v4568, 0.5
      %v4676 = vmul.f32 %v4609, 0.5
      %v4677 = vmul.f32 %v4650, 0.5
      %v4678 = vmul.f32 %v4530, 0.5
      %v4679 = vmul.f32 %v4571, 0.5
      %v4680 = vmul.f32 %v4612, 0.5
      %v4681 = vmul.f32 %v4653, 0.5
      %v4682 = vmul.f32 %v4533, 0.5
      %v4683 = vmul.f32 %v4574, 0.5
      %v4684 = vmul.f32 %v4615, 0.5
      %v4685 = vmul.f32 %v4656, 0.5
      %v4686 = vmul.f32 %v4536, 0.5
      %v4687 = vmul.f32 %v4577, 0.5
      %v4688 = vmul.f32 %v4618, 0.5
      %v4689 = vmul.f32 %v4659, 0.5
      %v4690 = vmul.f32 %v4539, 0.5
      %v4691 = vmul.f32 %v4580, 0.5
      %v4692 = vmul.f32 %v4621, 0.5
      %v4693 = vmul.f32 %v4662, 0.5
      %v4694 = vmul.f32 %v4542, 0.5
      %v4695 = vmul.f32 %v4583, 0.5
      %v4696 = vmul.f32 %v4624, 0.5
      %v4697 = vmul.f32 %v4665, 0.5
      %v4698 = vmul.f32 %v4545, 0.5
      %v4699 = vmul.f32 %v4586, 0.5
      %v4700 = vmul.f32 %v4627, 0.5
      %v4701 = vmul.f32 %v4668, 0.5
      %v4702 = vmul.f32 %v3358, 0.5
      %v4703 = vmul.f32 %v3359, 0.5
      %v4704 = vmul.f32 %v3360, 0.5
      %v4705 = vmul.f32 %v3361, 0.5
      %v4706 = vmul.f32 %v3362, 0.5
      %v4707 = vmul.f32 %v3363, 0.5
      %v4708 = vmul.f32 %v3364, 0.5
      %v4709 = vmul.f32 %v3365, 0.5
      %v4710 = vmul.f32 %v3366, 0.5
      %v4711 = vmul.f32 %v3367, 0.5
      %v4712 = vmul.f32 %v3368, 0.5
      %v4713 = vmul.f32 %v3369, 0.5
      %v4714 = vmul.f32 %v3370, 0.5
      %v4715 = vmul.f32 %v3371, 0.5
      %v4716 = vmul.f32 %v3372, 0.5
      %v4717 = vmul.f32 %v3373, 0.5
      %v4718 = vmul.f32 %v3374, 0.5
      %v4719 = vmul.f32 %v3375, 0.5
      %v4720 = vmul.f32 %v3376, 0.5
      %v4721 = vmul.f32 %v3377, 0.5
      %v4722 = vmul.f32 %v3378, 0.5
      %v4723 = vmul.f32 %v3379, 0.5
      %v4724 = vmul.f32 %v3380, 0.5
      %v4725 = vmul.f32 %v3381, 0.5
      %v4726 = vmul.f32 %v3382, 0.5
      %v4727 = vmul.f32 %v3383, 0.5
      %v4728 = vmul.f32 %v3384, 0.5
      %v4729 = vmul.f32 %v3385, 0.5
      %v4730 = vmul.f32 %v3386, 0.5
      %v4731 = vmul.f32 %v3387, 0.5
      %v4732 = vmul.f32 %v3388, 0.5
      %v4733 = vmul.f32 %v3389, 0.5
      %v4734 = vadd.f32 %v4670, %v4702
      %v4735 = vadd.f32 %v4671, %v4703
      %v4736 = vadd.f32 %v4672, %v4704
      %v4737 = vadd.f32 %v4673, %v4705
      %v4738 = vadd.f32 %v4674, %v4706
      %v4739 = vadd.f32 %v4675, %v4707
      %v4740 = vadd.f32 %v4676, %v4708
      %v4741 = vadd.f32 %v4677, %v4709
      %v4742 = vadd.f32 %v4678, %v4710
      %v4743 = vadd.f32 %v4679, %v4711
      %v4744 = vadd.f32 %v4680, %v4712
      %v4745 = vadd.f32 %v4681, %v4713
      %v4746 = vadd.f32 %v4682, %v4714
      %v4747 = vadd.f32 %v4683, %v4715
      %v4748 = vadd.f32 %v4684, %v4716
      %v4749 = vadd.f32 %v4685, %v4717
      %v4750 = vadd.f32 %v4686, %v4718
      %v4751 = vadd.f32 %v4687, %v4719
      %v4752 = vadd.f32 %v4688, %v4720
      %v4753 = vadd.f32 %v4689, %v4721
      %v4754 = vadd.f32 %v4690, %v4722
      %v4755 = vadd.f32 %v4691, %v4723
      %v4756 = vadd.f32 %v4692, %v4724
      %v4757 = vadd.f32 %v4693, %v4725
      %v4758 = vadd.f32 %v4694, %v4726
      %v4759 = vadd.f32 %v4695, %v4727
      %v4760 = vadd.f32 %v4696, %v4728
      %v4761 = vadd.f32 %v4697, %v4729
      %v4762 = vadd.f32 %v4698, %v4730
      %v4763 = vadd.f32 %v4699, %v4731
      %v4764 = vadd.f32 %v4700, %v4732
      %v4765 = vadd.f32 %v4701, %v4733
      %v4766 = vadd.f32 %v4734, %v4738
      %v4767 = vadd.f32 %v4766, %v4742
      %v4768 = vadd.f32 %v4767, %v4746
      %v4769 = vadd.f32 %v4768, %v4750
      %v4770 = vadd.f32 %v4769, %v4754
      %v4771 = vadd.f32 %v4770, %v4758
      %v4772 = vadd.f32 %v4771, %v4762
      %v4773 = vrot.slane %v4772, 4
      %v4774 = vadd.f32 %v4772, %v4773
      %v4775 = vrot.slane %v4774, 2
      %v4776 = vadd.f32 %v4774, %v4775
      %v4777 = vrot.slane %v4776, 1
      %v4778 = vadd.f32 %v4776, %v4777
      %v4779 = vadd.f32 %v4735, %v4739
      %v4780 = vadd.f32 %v4779, %v4743
      %v4781 = vadd.f32 %v4780, %v4747
      %v4782 = vadd.f32 %v4781, %v4751
      %v4783 = vadd.f32 %v4782, %v4755
      %v4784 = vadd.f32 %v4783, %v4759
      %v4785 = vadd.f32 %v4784, %v4763
      %v4786 = vrot.slane %v4785, 4
      %v4787 = vadd.f32 %v4785, %v4786
      %v4788 = vrot.slane %v4787, 2
      %v4789 = vadd.f32 %v4787, %v4788
      %v4790 = vrot.slane %v4789, 1
      %v4791 = vadd.f32 %v4789, %v4790
      %v4792 = vadd.f32 %v4736, %v4740
      %v4793 = vadd.f32 %v4792, %v4744
      %v4794 = vadd.f32 %v4793, %v4748
      %v4795 = vadd.f32 %v4794, %v4752
      %v4796 = vadd.f32 %v4795, %v4756
      %v4797 = vadd.f32 %v4796, %v4760
      %v4798 = vadd.f32 %v4797, %v4764
      %v4799 = vrot.slane %v4798, 4
      %v4800 = vadd.f32 %v4798, %v4799
      %v4801 = vrot.slane %v4800, 2
      %v4802 = vadd.f32 %v4800, %v4801
      %v4803 = vrot.slane %v4802, 1
      %v4804 = vadd.f32 %v4802, %v4803
      %v4805 = vadd.f32 %v4737, %v4741
      %v4806 = vadd.f32 %v4805, %v4745
      %v4807 = vadd.f32 %v4806, %v4749
      %v4808 = vadd.f32 %v4807, %v4753
      %v4809 = vadd.f32 %v4808, %v4757
      %v4810 = vadd.f32 %v4809, %v4761
      %v4811 = vadd.f32 %v4810, %v4765
      %v4812 = vrot.slane %v4811, 4
      %v4813 = vadd.f32 %v4811, %v4812
      %v4814 = vrot.slane %v4813, 2
      %v4815 = vadd.f32 %v4813, %v4814
      %v4816 = vrot.slane %v4815, 1
      %v4817 = vadd.f32 %v4815, %v4816
      %v4818 = vmul.f32 %v4778, %v3448
      %v4819 = vmul.f32 %v4791, %v3448
      %v4820 = vmul.f32 %v4804, %v3448
      %v4821 = vmul.f32 %v4817, %v3448
      %v4822 = vsub.f32 %v4734, %v4818
      %v4823 = vsub.f32 %v4735, %v4819
      %v4824 = vsub.f32 %v4736, %v4820
      %v4825 = vsub.f32 %v4737, %v4821
      %v4826 = vsub.f32 %v4738, %v4818
      %v4827 = vsub.f32 %v4739, %v4819
      %v4828 = vsub.f32 %v4740, %v4820
      %v4829 = vsub.f32 %v4741, %v4821
      %v4830 = vsub.f32 %v4742, %v4818
      %v4831 = vsub.f32 %v4743, %v4819
      %v4832 = vsub.f32 %v4744, %v4820
      %v4833 = vsub.f32 %v4745, %v4821
      %v4834 = vsub.f32 %v4746, %v4818
      %v4835 = vsub.f32 %v4747, %v4819
      %v4836 = vsub.f32 %v4748, %v4820
      %v4837 = vsub.f32 %v4749, %v4821
      %v4838 = vsub.f32 %v4750, %v4818
      %v4839 = vsub.f32 %v4751, %v4819
      %v4840 = vsub.f32 %v4752, %v4820
      %v4841 = vsub.f32 %v4753, %v4821
      %v4842 = vsub.f32 %v4754, %v4818
      %v4843 = vsub.f32 %v4755, %v4819
      %v4844 = vsub.f32 %v4756, %v4820
      %v4845 = vsub.f32 %v4757, %v4821
      %v4846 = vsub.f32 %v4758, %v4818
      %v4847 = vsub.f32 %v4759, %v4819
      %v4848 = vsub.f32 %v4760, %v4820
      %v4849 = vsub.f32 %v4761, %v4821
      %v4850 = vsub.f32 %v4762, %v4818
      %v4851 = vsub.f32 %v4763, %v4819
      %v4852 = vsub.f32 %v4764, %v4820
      %v4853 = vsub.f32 %v4765, %v4821
      %v4854 = vmul.f32 %v4822, %v4822
      %v4855 = vmul.f32 %v4823, %v4823
      %v4856 = vmul.f32 %v4824, %v4824
      %v4857 = vmul.f32 %v4825, %v4825
      %v4858 = vmul.f32 %v4826, %v4826
      %v4859 = vmul.f32 %v4827, %v4827
      %v4860 = vmul.f32 %v4828, %v4828
      %v4861 = vmul.f32 %v4829, %v4829
      %v4862 = vmul.f32 %v4830, %v4830
      %v4863 = vmul.f32 %v4831, %v4831
      %v4864 = vmul.f32 %v4832, %v4832
      %v4865 = vmul.f32 %v4833, %v4833
      %v4866 = vmul.f32 %v4834, %v4834
      %v4867 = vmul.f32 %v4835, %v4835
      %v4868 = vmul.f32 %v4836, %v4836
      %v4869 = vmul.f32 %v4837, %v4837
      %v4870 = vmul.f32 %v4838, %v4838
      %v4871 = vmul.f32 %v4839, %v4839
      %v4872 = vmul.f32 %v4840, %v4840
      %v4873 = vmul.f32 %v4841, %v4841
      %v4874 = vmul.f32 %v4842, %v4842
      %v4875 = vmul.f32 %v4843, %v4843
      %v4876 = vmul.f32 %v4844, %v4844
      %v4877 = vmul.f32 %v4845, %v4845
      %v4878 = vmul.f32 %v4846, %v4846
      %v4879 = vmul.f32 %v4847, %v4847
      %v4880 = vmul.f32 %v4848, %v4848
      %v4881 = vmul.f32 %v4849, %v4849
      %v4882 = vmul.f32 %v4850, %v4850
      %v4883 = vmul.f32 %v4851, %v4851
      %v4884 = vmul.f32 %v4852, %v4852
      %v4885 = vmul.f32 %v4853, %v4853
      %v4886 = vadd.f32 %v4854, %v4858
      %v4887 = vadd.f32 %v4886, %v4862
      %v4888 = vadd.f32 %v4887, %v4866
      %v4889 = vadd.f32 %v4888, %v4870
      %v4890 = vadd.f32 %v4889, %v4874
      %v4891 = vadd.f32 %v4890, %v4878
      %v4892 = vadd.f32 %v4891, %v4882
      %v4893 = vrot.slane %v4892, 4
      %v4894 = vadd.f32 %v4892, %v4893
      %v4895 = vrot.slane %v4894, 2
      %v4896 = vadd.f32 %v4894, %v4895
      %v4897 = vrot.slane %v4896, 1
      %v4898 = vadd.f32 %v4896, %v4897
      %v4899 = vadd.f32 %v4855, %v4859
      %v4900 = vadd.f32 %v4899, %v4863
      %v4901 = vadd.f32 %v4900, %v4867
      %v4902 = vadd.f32 %v4901, %v4871
      %v4903 = vadd.f32 %v4902, %v4875
      %v4904 = vadd.f32 %v4903, %v4879
      %v4905 = vadd.f32 %v4904, %v4883
      %v4906 = vrot.slane %v4905, 4
      %v4907 = vadd.f32 %v4905, %v4906
      %v4908 = vrot.slane %v4907, 2
      %v4909 = vadd.f32 %v4907, %v4908
      %v4910 = vrot.slane %v4909, 1
      %v4911 = vadd.f32 %v4909, %v4910
      %v4912 = vadd.f32 %v4856, %v4860
      %v4913 = vadd.f32 %v4912, %v4864
      %v4914 = vadd.f32 %v4913, %v4868
      %v4915 = vadd.f32 %v4914, %v4872
      %v4916 = vadd.f32 %v4915, %v4876
      %v4917 = vadd.f32 %v4916, %v4880
      %v4918 = vadd.f32 %v4917, %v4884
      %v4919 = vrot.slane %v4918, 4
      %v4920 = vadd.f32 %v4918, %v4919
      %v4921 = vrot.slane %v4920, 2
      %v4922 = vadd.f32 %v4920, %v4921
      %v4923 = vrot.slane %v4922, 1
      %v4924 = vadd.f32 %v4922, %v4923
      %v4925 = vadd.f32 %v4857, %v4861
      %v4926 = vadd.f32 %v4925, %v4865
      %v4927 = vadd.f32 %v4926, %v4869
      %v4928 = vadd.f32 %v4927, %v4873
      %v4929 = vadd.f32 %v4928, %v4877
      %v4930 = vadd.f32 %v4929, %v4881
      %v4931 = vadd.f32 %v4930, %v4885
      %v4932 = vrot.slane %v4931, 4
      %v4933 = vadd.f32 %v4931, %v4932
      %v4934 = vrot.slane %v4933, 2
      %v4935 = vadd.f32 %v4933, %v4934
      %v4936 = vrot.slane %v4935, 1
      %v4937 = vadd.f32 %v4935, %v4936
      %v4938 = vmul.f32 %v4898, %v3448
      %v4939 = vmul.f32 %v4911, %v3448
      %v4940 = vmul.f32 %v4924, %v3448
      %v4941 = vmul.f32 %v4937, %v3448
      %v4942 = vadd.f32 %v4938, 1e-05
      %v4943 = vadd.f32 %v4939, 1e-05
      %v4944 = vadd.f32 %v4940, 1e-05
      %v4945 = vadd.f32 %v4941, 1e-05
      %v4946 = vrsqrt.pop %v4942
      %v4947 = vmul.f32 %v4946, %v4942
      %v4948 = vmul.f32 %v4947, %v4946
      %v4949 = vmul.f32 0.5, %v4948
      %v4950 = vsub.f32 1.5, %v4949
      %v4951 = vmul.f32 %v4946, %v4950
      %vm4952 = vweird.f32 %v4942
      %vm4953 = vweird.f32 %v4946
      %vm4954 = vmor %vm4952, %vm4953
      %v4955 = vsel %vm4954, %v4946, %v4951
      %v4956 = vrsqrt.pop %v4943
      %v4957 = vmul.f32 %v4956, %v4943
      %v4958 = vmul.f32 %v4957, %v4956
      %v4959 = vmul.f32 0.5, %v4958
      %v4960 = vsub.f32 1.5, %v4959
      %v4961 = vmul.f32 %v4956, %v4960
      %vm4962 = vweird.f32 %v4943
      %vm4963 = vweird.f32 %v4956
      %vm4964 = vmor %vm4962, %vm4963
      %v4965 = vsel %vm4964, %v4956, %v4961
      %v4966 = vrsqrt.pop %v4944
      %v4967 = vmul.f32 %v4966, %v4944
      %v4968 = vmul.f32 %v4967, %v4966
      %v4969 = vmul.f32 0.5, %v4968
      %v4970 = vsub.f32 1.5, %v4969
      %v4971 = vmul.f32 %v4966, %v4970
      %vm4972 = vweird.f32 %v4944
      %vm4973 = vweird.f32 %v4966
      %vm4974 = vmor %vm4972, %vm4973
      %v4975 = vsel %vm4974, %v4966, %v4971
      %v4976 = vrsqrt.pop %v4945
      %v4977 = vmul.f32 %v4976, %v4945
      %v4978 = vmul.f32 %v4977, %v4976
      %v4979 = vmul.f32 0.5, %v4978
      %v4980 = vsub.f32 1.5, %v4979
      %v4981 = vmul.f32 %v4976, %v4980
      %vm4982 = vweird.f32 %v4945
      %vm4983 = vweird.f32 %v4976
      %vm4984 = vmor %vm4982, %vm4983
      %v4985 = vsel %vm4984, %v4976, %v4981
      %v4986 = vmul.f32 %v4822, %v4955
      %v4987 = vmul.f32 %v4823, %v4965
      %v4988 = vmul.f32 %v4824, %v4975
      %v4989 = vmul.f32 %v4825, %v4985
      %v4990 = vmul.f32 %v4826, %v4955
      %v4991 = vmul.f32 %v4827, %v4965
      %v4992 = vmul.f32 %v4828, %v4975
      %v4993 = vmul.f32 %v4829, %v4985
      %v4994 = vmul.f32 %v4830, %v4955
      %v4995 = vmul.f32 %v4831, %v4965
      %v4996 = vmul.f32 %v4832, %v4975
      %v4997 = vmul.f32 %v4833, %v4985
      %v4998 = vmul.f32 %v4834, %v4955
      %v4999 = vmul.f32 %v4835, %v4965
      %v5000 = vmul.f32 %v4836, %v4975
      %v5001 = vmul.f32 %v4837, %v4985
      %v5002 = vmul.f32 %v4838, %v4955
      %v5003 = vmul.f32 %v4839, %v4965
      %v5004 = vmul.f32 %v4840, %v4975
      %v5005 = vmul.f32 %v4841, %v4985
      %v5006 = vmul.f32 %v4842, %v4955
      %v5007 = vmul.f32 %v4843, %v4965
      %v5008 = vmul.f32 %v4844, %v4975
      %v5009 = vmul.f32 %v4845, %v4985
      %v5010 = vmul.f32 %v4846, %v4955
      %v5011 = vmul.f32 %v4847, %v4965
      %v5012 = vmul.f32 %v4848, %v4975
      %v5013 = vmul.f32 %v4849, %v4985
      %v5014 = vmul.f32 %v4850, %v4955
      %v5015 = vmul.f32 %v4851, %v4965
      %v5016 = vmul.f32 %v4852, %v4975
      %v5017 = vmul.f32 %v4853, %v4985
      %5019 = vset.pattern.permute.xlu0 0
      %5020 = vperm.xlu0 %5019, %v1113
      %v5021 = vpop.permute.xlu0 %5020
      %5024 = vset.pattern.permute.xlu0 0
      %5025 = vperm.xlu0 %5024, %v1114
      %v5026 = vpop.permute.xlu0 %5025
      %5029 = vset.pattern.permute.xlu0 0
      %5030 = vperm.xlu0 %5029, %v1115
      %v5031 = vpop.permute.xlu0 %5030
      %5034 = vset.pattern.permute.xlu0 0
      %5035 = vperm.xlu0 %5034, %v1116
      %v5036 = vpop.permute.xlu0 %5035
      %5039 = vset.pattern.permute.xlu0 0
      %5040 = vperm.xlu0 %5039, %v1117
      %v5041 = vpop.permute.xlu0 %5040
      %5044 = vset.pattern.permute.xlu0 0
      %5045 = vperm.xlu0 %5044, %v1118
      %v5046 = vpop.permute.xlu0 %5045
      %5049 = vset.pattern.permute.xlu0 0
      %5050 = vperm.xlu0 %5049, %v1119
      %v5051 = vpop.permute.xlu0 %5050
      %5054 = vset.pattern.permute.xlu0 0
      %5055 = vperm.xlu0 %5054, %v1120
      %v5056 = vpop.permute.xlu0 %5055
      %v5058 = vmul.f32 %v4986, %v5021
      %v5059 = vmul.f32 %v4987, %v5021
      %v5060 = vmul.f32 %v4988, %v5021
      %v5061 = vmul.f32 %v4989, %v5021
      %v5062 = vmul.f32 %v4990, %v5026
      %v5063 = vmul.f32 %v4991, %v5026
      %v5064 = vmul.f32 %v4992, %v5026
      %v5065 = vmul.f32 %v4993, %v5026
      %v5066 = vmul.f32 %v4994, %v5031
      %v5067 = vmul.f32 %v4995, %v5031
      %v5068 = vmul.f32 %v4996, %v5031
      %v5069 = vmul.f32 %v4997, %v5031
      %v5070 = vmul.f32 %v4998, %v5036
      %v5071 = vmul.f32 %v4999, %v5036
      %v5072 = vmul.f32 %v5000, %v5036
      %v5073 = vmul.f32 %v5001, %v5036
      %v5074 = vmul.f32 %v5002, %v5041
      %v5075 = vmul.f32 %v5003, %v5041
      %v5076 = vmul.f32 %v5004, %v5041
      %v5077 = vmul.f32 %v5005, %v5041
      %v5078 = vmul.f32 %v5006, %v5046
      %v5079 = vmul.f32 %v5007, %v5046
      %v5080 = vmul.f32 %v5008, %v5046
      %v5081 = vmul.f32 %v5009, %v5046
      %v5082 = vmul.f32 %v5010, %v5051
      %v5083 = vmul.f32 %v5011, %v5051
      %v5084 = vmul.f32 %v5012, %v5051
      %v5085 = vmul.f32 %v5013, %v5051
      %v5086 = vmul.f32 %v5014, %v5056
      %v5087 = vmul.f32 %v5015, %v5056
      %v5088 = vmul.f32 %v5016, %v5056
      %v5089 = vmul.f32 %v5017, %v5056
      %5091 = vset.pattern.permute.xlu0 0
      %5092 = vperm.xlu0 %5091, %v1121
      %v5093 = vpop.permute.xlu0 %5092
      %5096 = vset.pattern.permute.xlu0 0
      %5097 = vperm.xlu0 %5096, %v1122
      %v5098 = vpop.permute.xlu0 %5097
      %5101 = vset.pattern.permute.xlu0 0
      %5102 = vperm.xlu0 %5101, %v1123
      %v5103 = vpop.permute.xlu0 %5102
      %5106 = vset.pattern.permute.xlu0 0
      %5107 = vperm.xlu0 %5106, %v1124
      %v5108 = vpop.permute.xlu0 %5107
      %5111 = vset.pattern.permute.xlu0 0
      %5112 = vperm.xlu0 %5111, %v1125
      %v5113 = vpop.permute.xlu0 %5112
      %5116 = vset.pattern.permute.xlu0 0
      %5117 = vperm.xlu0 %5116, %v1126
      %v5118 = vpop.permute.xlu0 %5117
      %5121 = vset.pattern.permute.xlu0 0
      %5122 = vperm.xlu0 %5121, %v1127
      %v5123 = vpop.permute.xlu0 %5122
      %5126 = vset.pattern.permute.xlu0 0
      %5127 = vperm.xlu0 %5126, %v1128
      %v5128 = vpop.permute.xlu0 %5127
      %v5130 = vadd.f32 %v5058, %v5093
      %v5131 = vadd.f32 %v5059, %v5093
      %v5132 = vadd.f32 %v5060, %v5093
      %v5133 = vadd.f32 %v5061, %v5093
      %v5134 = vadd.f32 %v5062, %v5098
      %v5135 = vadd.f32 %v5063, %v5098
      %v5136 = vadd.f32 %v5064, %v5098
      %v5137 = vadd.f32 %v5065, %v5098
      %v5138 = vadd.f32 %v5066, %v5103
      %v5139 = vadd.f32 %v5067, %v5103
      %v5140 = vadd.f32 %v5068, %v5103
      %v5141 = vadd.f32 %v5069, %v5103
      %v5142 = vadd.f32 %v5070, %v5108
      %v5143 = vadd.f32 %v5071, %v5108
      %v5144 = vadd.f32 %v5072, %v5108
      %v5145 = vadd.f32 %v5073, %v5108
      %v5146 = vadd.f32 %v5074, %v5113
      %v5147 = vadd.f32 %v5075, %v5113
      %v5148 = vadd.f32 %v5076, %v5113
      %v5149 = vadd.f32 %v5077, %v5113
      %v5150 = vadd.f32 %v5078, %v5118
      %v5151 = vadd.f32 %v5079, %v5118
      %v5152 = vadd.f32 %v5080, %v5118
      %v5153 = vadd.f32 %v5081, %v5118
      %v5154 = vadd.f32 %v5082, %v5123
      %v5155 = vadd.f32 %v5083, %v5123
      %v5156 = vadd.f32 %v5084, %v5123
      %v5157 = vadd.f32 %v5085, %v5123
      %v5158 = vadd.f32 %v5086, %v5128
      %v5159 = vadd.f32 %v5087, %v5128
      %v5160 = vadd.f32 %v5088, %v5128
      %v5161 = vadd.f32 %v5089, %v5128
      %5163 = vset.pattern.permute.xlu0 0
      %5164 = vperm.xlu0 %5163, %v1131
      %v5165 = vpop.permute.xlu0 %5164
      %5168 = vset.pattern.permute.xlu0 0
      %5169 = vperm.xlu0 %5168, %v1132
      %v5170 = vpop.permute.xlu0 %5169
      %v5173 = vsel %vm3878, %v1129, 0
      %v5176 = vsel %vm3878, %v1130, 0
      %5178 = vmatpush.msra.mxu0 0.0
      %5179 = vmatpush.msra.mxu0 0.0
      %5180 = vmatpush.msra.mxu0 0.0
      %5181 = vmatpush.msra.mxu0 0.0
      %5182 = vmatpush.msra.mxu0 0.0
      %5183 = vmatpush.msra.mxu0 0.0
      %5184 = vmatpush.msra.mxu0 0.0
      %5185 = vmatpush.msra.mxu0 0.0
      %5186 = vmatpush.msra.mxu0 %v5158
      %5187 = vmatpush.msra.mxu0 %v5154
      %5188 = vmatpush.msra.mxu0 %v5150
      %5189 = vmatpush.msra.mxu0 %v5146
      %5190 = vmatpush.msra.mxu0 %v5142
      %5191 = vmatpush.msra.mxu0 %v5138
      %5192 = vmatpush.msra.mxu0 %v5134
      %5193 = vmatpush.msra.mxu0 %v5130
      %5194 = vmatmul.f32.gmra.mxu0 %v5173
      %v5195 = vpop.f32.mrf.mxu0
      %v5196 = vadd.f32 %v5165, %v5195
      %5197 = vmatmul.f32.gmra.mxu0 %v5176
      %v5198 = vpop.f32.mrf.mxu0
      %v5199 = vadd.f32 %v5170, %v5198
      %5200 = vdwg.mxu0
      %5201 = vmatpush.msra.mxu0 0.0
      %5202 = vmatpush.msra.mxu0 0.0
      %5203 = vmatpush.msra.mxu0 0.0
      %5204 = vmatpush.msra.mxu0 0.0
      %5205 = vmatpush.msra.mxu0 0.0
      %5206 = vmatpush.msra.mxu0 0.0
      %5207 = vmatpush.msra.mxu0 0.0
      %5208 = vmatpush.msra.mxu0 0.0
      %5209 = vmatpush.msra.mxu0 %v5159
      %5210 = vmatpush.msra.mxu0 %v5155
      %5211 = vmatpush.msra.mxu0 %v5151
      %5212 = vmatpush.msra.mxu0 %v5147
      %5213 = vmatpush.msra.mxu0 %v5143
      %5214 = vmatpush.msra.mxu0 %v5139
      %5215 = vmatpush.msra.mxu0 %v5135
      %5216 = vmatpush.msra.mxu0 %v5131
      %5217 = vmatmul.f32.gmra.mxu0 %v5173
      %v5218 = vpop.f32.mrf.mxu0
      %v5219 = vadd.f32 %v5165, %v5218
      %5220 = vmatmul.f32.gmra.mxu0 %v5176
      %v5221 = vpop.f32.mrf.mxu0
      %v5222 = vadd.f32 %v5170, %v5221
      %5223 = vdwg.mxu0
      %5224 = vmatpush.msra.mxu0 0.0
      %5225 = vmatpush.msra.mxu0 0.0
      %5226 = vmatpush.msra.mxu0 0.0
      %5227 = vmatpush.msra.mxu0 0.0
      %5228 = vmatpush.msra.mxu0 0.0
      %5229 = vmatpush.msra.mxu0 0.0
      %5230 = vmatpush.msra.mxu0 0.0
      %5231 = vmatpush.msra.mxu0 0.0
      %5232 = vmatpush.msra.mxu0 %v5160
      %5233 = vmatpush.msra.mxu0 %v5156
      %5234 = vmatpush.msra.mxu0 %v5152
      %5235 = vmatpush.msra.mxu0 %v5148
      %5236 = vmatpush.msra.mxu0 %v5144
      %5237 = vmatpush.msra.mxu0 %v5140
      %5238 = vmatpush.msra.mxu0 %v5136
      %5239 = vmatpush.msra.mxu0 %v5132
      %5240 = vmatmul.f32.gmra.mxu0 %v5173
      %v5241 = vpop.f32.mrf.mxu0
      %v5242 = vadd.f32 %v5165, %v5241
      %5243 = vmatmul.f32.gmra.mxu0 %v5176
      %v5244 = vpop.f32.mrf.mxu0
      %v5245 = vadd.f32 %v5170, %v5244
      %5246 = vdwg.mxu0
      %5247 = vmatpush.msra.mxu0 0.0
      %5248 = vmatpush.msra.mxu0 0.0
      %5249 = vmatpush.msra.mxu0 0.0
      %5250 = vmatpush.msra.mxu0 0.0
      %5251 = vmatpush.msra.mxu0 0.0
      %5252 = vmatpush.msra.mxu0 0.0
      %5253 = vmatpush.msra.mxu0 0.0
      %5254 = vmatpush.msra.mxu0 0.0
      %5255 = vmatpush.msra.mxu0 %v5161
      %5256 = vmatpush.msra.mxu0 %v5157
      %5257 = vmatpush.msra.mxu0 %v5153
      %5258 = vmatpush.msra.mxu0 %v5149
      %5259 = vmatpush.msra.mxu0 %v5145
      %5260 = vmatpush.msra.mxu0 %v5141
      %5261 = vmatpush.msra.mxu0 %v5137
      %5262 = vmatpush.msra.mxu0 %v5133
      %5263 = vmatmul.f32.gmra.mxu0 %v5173
      %v5264 = vpop.f32.mrf.mxu0
      %v5265 = vadd.f32 %v5165, %v5264
      %5266 = vmatmul.f32.gmra.mxu0 %v5176
      %v5267 = vpop.f32.mrf.mxu0
      %v5268 = vadd.f32 %v5170, %v5267
      %5269 = vdwg.mxu0
      %vm5270 = vcmp.gt.f32.partialorder %v5196, 0.0
      %vm5271 = vcmp.gt.f32.partialorder %v5219, 0.0
      %vm5272 = vcmp.gt.f32.partialorder %v5242, 0.0
      %vm5273 = vcmp.gt.f32.partialorder %v5265, 0.0
      %vm5274 = vcmp.gt.f32.partialorder %v5199, 0.0
      %vm5275 = vcmp.gt.f32.partialorder %v5222, 0.0
      %vm5276 = vcmp.gt.f32.partialorder %v5245, 0.0
      %vm5277 = vcmp.gt.f32.partialorder %v5268, 0.0
      %v5278 = vmin.f32 %v5196, 0.0
      %v5279 = vmin.f32 %v5219, 0.0
      %v5280 = vmin.f32 %v5242, 0.0
      %v5281 = vmin.f32 %v5265, 0.0
      %v5282 = vmin.f32 %v5199, 0.0
      %v5283 = vmin.f32 %v5222, 0.0
      %v5284 = vmin.f32 %v5245, 0.0
      %v5285 = vmin.f32 %v5268, 0.0
      %v5286 = vmul.f32 %v5278, 1.442695
      %v5287 = vpow.pop %v5286
      %v5288 = vmul.f32 %v5279, 1.442695
      %v5289 = vpow.pop %v5288
      %v5290 = vmul.f32 %v5280, 1.442695
      %v5291 = vpow.pop %v5290
      %v5292 = vmul.f32 %v5281, 1.442695
      %v5293 = vpow.pop %v5292
      %v5294 = vmul.f32 %v5282, 1.442695
      %v5295 = vpow.pop %v5294
      %v5296 = vmul.f32 %v5283, 1.442695
      %v5297 = vpow.pop %v5296
      %v5298 = vmul.f32 %v5284, 1.442695
      %v5299 = vpow.pop %v5298
      %v5300 = vmul.f32 %v5285, 1.442695
      %v5301 = vpow.pop %v5300
      %v5302 = vsub.f32 %v5287, 1.0
      %v5303 = vsub.f32 %v5289, 1.0
      %v5304 = vsub.f32 %v5291, 1.0
      %v5305 = vsub.f32 %v5293, 1.0
      %v5306 = vsub.f32 %v5295, 1.0
      %v5307 = vsub.f32 %v5297, 1.0
      %v5308 = vsub.f32 %v5299, 1.0
      %v5309 = vsub.f32 %v5301, 1.0
      %v5310 = vsel %vm5270, %v5196, %v5302
      %v5311 = vsel %vm5271, %v5219, %v5303
      %v5312 = vsel %vm5272, %v5242, %v5304
      %v5313 = vsel %vm5273, %v5265, %v5305
      %v5314 = vsel %vm5274, %v5199, %v5306
      %v5315 = vsel %vm5275, %v5222, %v5307
      %v5316 = vsel %vm5276, %v5245, %v5308
      %v5317 = vsel %vm5277, %v5268, %v5309
      %5319 = vset.pattern.permute.xlu0 0
      %5320 = vperm.xlu0 %5319, %v1141
      %v5321 = vpop.permute.xlu0 %5320
      %5324 = vset.pattern.permute.xlu0 0
      %5325 = vperm.xlu0 %5324, %v1142
      %v5326 = vpop.permute.xlu0 %5325
      %5329 = vset.pattern.permute.xlu0 0
      %5330 = vperm.xlu0 %5329, %v1143
      %v5331 = vpop.permute.xlu0 %5330
      %5334 = vset.pattern.permute.xlu0 0
      %5335 = vperm.xlu0 %5334, %v1144
      %v5336 = vpop.permute.xlu0 %5335
      %5339 = vset.pattern.permute.xlu0 0
      %5340 = vperm.xlu0 %5339, %v1145
      %v5341 = vpop.permute.xlu0 %5340
      %5344 = vset.pattern.permute.xlu0 0
      %5345 = vperm.xlu0 %5344, %v1146
      %v5346 = vpop.permute.xlu0 %5345
      %5349 = vset.pattern.permute.xlu0 0
      %5350 = vperm.xlu0 %5349, %v1147
      %v5351 = vpop.permute.xlu0 %5350
      %5354 = vset.pattern.permute.xlu0 0
      %5355 = vperm.xlu0 %5354, %v1148
      %v5356 = vpop.permute.xlu0 %5355
      %v5359 = vsel %vm1343, %v1133, 0
      %v5362 = vsel %vm1343, %v1134, 0
      %v5365 = vsel %vm1343, %v1135, 0
      %v5368 = vsel %vm1343, %v1136, 0
      %v5371 = vsel %vm1343, %v1137, 0
      %v5374 = vsel %vm1343, %v1138, 0
      %v5377 = vsel %vm1343, %v1139, 0
      %v5380 = vsel %vm1343, %v1140, 0
      %5382 = vmatpush.msra.mxu0 0.0
      %5383 = vmatpush.msra.mxu0 0.0
      %5384 = vmatpush.msra.mxu0 0.0
      %5385 = vmatpush.msra.mxu0 0.0
      %5386 = vmatpush.msra.mxu0 0.0
      %5387 = vmatpush.msra.mxu0 0.0
      %5388 = vmatpush.msra.mxu0 0.0
      %5389 = vmatpush.msra.mxu0 0.0
      %5390 = vmatpush.msra.mxu0 0.0
      %5391 = vmatpush.msra.mxu0 0.0
      %5392 = vmatpush.msra.mxu0 0.0
      %5393 = vmatpush.msra.mxu0 0.0
      %5394 = vmatpush.msra.mxu0 0.0
      %5395 = vmatpush.msra.mxu0 0.0
      %5396 = vmatpush.msra.mxu0 %v5314
      %5397 = vmatpush.msra.mxu0 %v5310
      %5398 = vmatmul.f32.gmra.mxu0 %v5359
      %v5399 = vpop.f32.mrf.mxu0
      %v5400 = vadd.f32 %v5321, %v5399
      %5401 = vmatmul.f32.gmra.mxu0 %v5362
      %v5402 = vpop.f32.mrf.mxu0
      %v5403 = vadd.f32 %v5326, %v5402
      %5404 = vmatmul.f32.gmra.mxu0 %v5365
      %v5405 = vpop.f32.mrf.mxu0
      %v5406 = vadd.f32 %v5331, %v5405
      %5407 = vmatmul.f32.gmra.mxu0 %v5368
      %v5408 = vpop.f32.mrf.mxu0
      %v5409 = vadd.f32 %v5336, %v5408
      %5410 = vmatmul.f32.gmra.mxu0 %v5371
      %v5411 = vpop.f32.mrf.mxu0
      %v5412 = vadd.f32 %v5341, %v5411
      %5413 = vmatmul.f32.gmra.mxu0 %v5374
      %v5414 = vpop.f32.mrf.mxu0
      %v5415 = vadd.f32 %v5346, %v5414
      %5416 = vmatmul.f32.gmra.mxu0 %v5377
      %v5417 = vpop.f32.mrf.mxu0
      %v5418 = vadd.f32 %v5351, %v5417
      %5419 = vmatmul.f32.gmra.mxu0 %v5380
      %v5420 = vpop.f32.mrf.mxu0
      %v5421 = vadd.f32 %v5356, %v5420
      %5422 = vdwg.mxu0
      %5423 = vmatpush.msra.mxu0 0.0
      %5424 = vmatpush.msra.mxu0 0.0
      %5425 = vmatpush.msra.mxu0 0.0
      %5426 = vmatpush.msra.mxu0 0.0
      %5427 = vmatpush.msra.mxu0 0.0
      %5428 = vmatpush.msra.mxu0 0.0
      %5429 = vmatpush.msra.mxu0 0.0
      %5430 = vmatpush.msra.mxu0 0.0
      %5431 = vmatpush.msra.mxu0 0.0
      %5432 = vmatpush.msra.mxu0 0.0
      %5433 = vmatpush.msra.mxu0 0.0
      %5434 = vmatpush.msra.mxu0 0.0
      %5435 = vmatpush.msra.mxu0 0.0
      %5436 = vmatpush.msra.mxu0 0.0
      %5437 = vmatpush.msra.mxu0 %v5315
      %5438 = vmatpush.msra.mxu0 %v5311
      %5439 = vmatmul.f32.gmra.mxu0 %v5359
      %v5440 = vpop.f32.mrf.mxu0
      %v5441 = vadd.f32 %v5321, %v5440
      %5442 = vmatmul.f32.gmra.mxu0 %v5362
      %v5443 = vpop.f32.mrf.mxu0
      %v5444 = vadd.f32 %v5326, %v5443
      %5445 = vmatmul.f32.gmra.mxu0 %v5365
      %v5446 = vpop.f32.mrf.mxu0
      %v5447 = vadd.f32 %v5331, %v5446
      %5448 = vmatmul.f32.gmra.mxu0 %v5368
      %v5449 = vpop.f32.mrf.mxu0
      %v5450 = vadd.f32 %v5336, %v5449
      %5451 = vmatmul.f32.gmra.mxu0 %v5371
      %v5452 = vpop.f32.mrf.mxu0
      %v5453 = vadd.f32 %v5341, %v5452
      %5454 = vmatmul.f32.gmra.mxu0 %v5374
      %v5455 = vpop.f32.mrf.mxu0
      %v5456 = vadd.f32 %v5346, %v5455
      %5457 = vmatmul.f32.gmra.mxu0 %v5377
      %v5458 = vpop.f32.mrf.mxu0
      %v5459 = vadd.f32 %v5351, %v5458
      %5460 = vmatmul.f32.gmra.mxu0 %v5380
      %v5461 = vpop.f32.mrf.mxu0
      %v5462 = vadd.f32 %v5356, %v5461
      %5463 = vdwg.mxu0
      %5464 = vmatpush.msra.mxu0 0.0
      %5465 = vmatpush.msra.mxu0 0.0
      %5466 = vmatpush.msra.mxu0 0.0
      %5467 = vmatpush.msra.mxu0 0.0
      %5468 = vmatpush.msra.mxu0 0.0
      %5469 = vmatpush.msra.mxu0 0.0
      %5470 = vmatpush.msra.mxu0 0.0
      %5471 = vmatpush.msra.mxu0 0.0
      %5472 = vmatpush.msra.mxu0 0.0
      %5473 = vmatpush.msra.mxu0 0.0
      %5474 = vmatpush.msra.mxu0 0.0
      %5475 = vmatpush.msra.mxu0 0.0
      %5476 = vmatpush.msra.mxu0 0.0
      %5477 = vmatpush.msra.mxu0 0.0
      %5478 = vmatpush.msra.mxu0 %v5316
      %5479 = vmatpush.msra.mxu0 %v5312
      %5480 = vmatmul.f32.gmra.mxu0 %v5359
      %v5481 = vpop.f32.mrf.mxu0
      %v5482 = vadd.f32 %v5321, %v5481
      %5483 = vmatmul.f32.gmra.mxu0 %v5362
      %v5484 = vpop.f32.mrf.mxu0
      %v5485 = vadd.f32 %v5326, %v5484
      %5486 = vmatmul.f32.gmra.mxu0 %v5365
      %v5487 = vpop.f32.mrf.mxu0
      %v5488 = vadd.f32 %v5331, %v5487
      %5489 = vmatmul.f32.gmra.mxu0 %v5368
      %v5490 = vpop.f32.mrf.mxu0
      %v5491 = vadd.f32 %v5336, %v5490
      %5492 = vmatmul.f32.gmra.mxu0 %v5371
      %v5493 = vpop.f32.mrf.mxu0
      %v5494 = vadd.f32 %v5341, %v5493
      %5495 = vmatmul.f32.gmra.mxu0 %v5374
      %v5496 = vpop.f32.mrf.mxu0
      %v5497 = vadd.f32 %v5346, %v5496
      %5498 = vmatmul.f32.gmra.mxu0 %v5377
      %v5499 = vpop.f32.mrf.mxu0
      %v5500 = vadd.f32 %v5351, %v5499
      %5501 = vmatmul.f32.gmra.mxu0 %v5380
      %v5502 = vpop.f32.mrf.mxu0
      %v5503 = vadd.f32 %v5356, %v5502
      %5504 = vdwg.mxu0
      %5505 = vmatpush.msra.mxu0 0.0
      %5506 = vmatpush.msra.mxu0 0.0
      %5507 = vmatpush.msra.mxu0 0.0
      %5508 = vmatpush.msra.mxu0 0.0
      %5509 = vmatpush.msra.mxu0 0.0
      %5510 = vmatpush.msra.mxu0 0.0
      %5511 = vmatpush.msra.mxu0 0.0
      %5512 = vmatpush.msra.mxu0 0.0
      %5513 = vmatpush.msra.mxu0 0.0
      %5514 = vmatpush.msra.mxu0 0.0
      %5515 = vmatpush.msra.mxu0 0.0
      %5516 = vmatpush.msra.mxu0 0.0
      %5517 = vmatpush.msra.mxu0 0.0
      %5518 = vmatpush.msra.mxu0 0.0
      %5519 = vmatpush.msra.mxu0 %v5317
      %5520 = vmatpush.msra.mxu0 %v5313
      %5521 = vmatmul.f32.gmra.mxu0 %v5359
      %v5522 = vpop.f32.mrf.mxu0
      %v5523 = vadd.f32 %v5321, %v5522
      %5524 = vmatmul.f32.gmra.mxu0 %v5362
      %v5525 = vpop.f32.mrf.mxu0
      %v5526 = vadd.f32 %v5326, %v5525
      %5527 = vmatmul.f32.gmra.mxu0 %v5365
      %v5528 = vpop.f32.mrf.mxu0
      %v5529 = vadd.f32 %v5331, %v5528
      %5530 = vmatmul.f32.gmra.mxu0 %v5368
      %v5531 = vpop.f32.mrf.mxu0
      %v5532 = vadd.f32 %v5336, %v5531
      %5533 = vmatmul.f32.gmra.mxu0 %v5371
      %v5534 = vpop.f32.mrf.mxu0
      %v5535 = vadd.f32 %v5341, %v5534
      %5536 = vmatmul.f32.gmra.mxu0 %v5374
      %v5537 = vpop.f32.mrf.mxu0
      %v5538 = vadd.f32 %v5346, %v5537
      %5539 = vmatmul.f32.gmra.mxu0 %v5377
      %v5540 = vpop.f32.mrf.mxu0
      %v5541 = vadd.f32 %v5351, %v5540
      %5542 = vmatmul.f32.gmra.mxu0 %v5380
      %v5543 = vpop.f32.mrf.mxu0
      %v5544 = vadd.f32 %v5356, %v5543
      %5545 = vdwg.mxu0
      %v5546 = vmul.f32 %v5400, 0.5
      %v5547 = vmul.f32 %v5441, 0.5
      %v5548 = vmul.f32 %v5482, 0.5
      %v5549 = vmul.f32 %v5523, 0.5
      %v5550 = vmul.f32 %v5403, 0.5
      %v5551 = vmul.f32 %v5444, 0.5
      %v5552 = vmul.f32 %v5485, 0.5
      %v5553 = vmul.f32 %v5526, 0.5
      %v5554 = vmul.f32 %v5406, 0.5
      %v5555 = vmul.f32 %v5447, 0.5
      %v5556 = vmul.f32 %v5488, 0.5
      %v5557 = vmul.f32 %v5529, 0.5
      %v5558 = vmul.f32 %v5409, 0.5
      %v5559 = vmul.f32 %v5450, 0.5
      %v5560 = vmul.f32 %v5491, 0.5
      %v5561 = vmul.f32 %v5532, 0.5
      %v5562 = vmul.f32 %v5412, 0.5
      %v5563 = vmul.f32 %v5453, 0.5
      %v5564 = vmul.f32 %v5494, 0.5
      %v5565 = vmul.f32 %v5535, 0.5
      %v5566 = vmul.f32 %v5415, 0.5
      %v5567 = vmul.f32 %v5456, 0.5
      %v5568 = vmul.f32 %v5497, 0.5
      %v5569 = vmul.f32 %v5538, 0.5
      %v5570 = vmul.f32 %v5418, 0.5
      %v5571 = vmul.f32 %v5459, 0.5
      %v5572 = vmul.f32 %v5500, 0.5
      %v5573 = vmul.f32 %v5541, 0.5
      %v5574 = vmul.f32 %v5421, 0.5
      %v5575 = vmul.f32 %v5462, 0.5
      %v5576 = vmul.f32 %v5503, 0.5
      %v5577 = vmul.f32 %v5544, 0.5
      %v5578 = vmul.f32 %v4734, 0.5
      %v5579 = vmul.f32 %v4735, 0.5
      %v5580 = vmul.f32 %v4736, 0.5
      %v5581 = vmul.f32 %v4737, 0.5
      %v5582 = vmul.f32 %v4738, 0.5
      %v5583 = vmul.f32 %v4739, 0.5
      %v5584 = vmul.f32 %v4740, 0.5
      %v5585 = vmul.f32 %v4741, 0.5
      %v5586 = vmul.f32 %v4742, 0.5
      %v5587 = vmul.f32 %v4743, 0.5
      %v5588 = vmul.f32 %v4744, 0.5
      %v5589 = vmul.f32 %v4745, 0.5
      %v5590 = vmul.f32 %v4746, 0.5
      %v5591 = vmul.f32 %v4747, 0.5
      %v5592 = vmul.f32 %v4748, 0.5
      %v5593 = vmul.f32 %v4749, 0.5
      %v5594 = vmul.f32 %v4750, 0.5
      %v5595 = vmul.f32 %v4751, 0.5
      %v5596 = vmul.f32 %v4752, 0.5
      %v5597 = vmul.f32 %v4753, 0.5
      %v5598 = vmul.f32 %v4754, 0.5
      %v5599 = vmul.f32 %v4755, 0.5
      %v5600 = vmul.f32 %v4756, 0.5
      %v5601 = vmul.f32 %v4757, 0.5
      %v5602 = vmul.f32 %v4758, 0.5
      %v5603 = vmul.f32 %v4759, 0.5
      %v5604 = vmul.f32 %v4760, 0.5
      %v5605 = vmul.f32 %v4761, 0.5
      %v5606 = vmul.f32 %v4762, 0.5
      %v5607 = vmul.f32 %v4763, 0.5
      %v5608 = vmul.f32 %v4764, 0.5
      %v5609 = vmul.f32 %v4765, 0.5
      %v5610 = vadd.f32 %v5546, %v5578
      %v5611 = vadd.f32 %v5547, %v5579
      %v5612 = vadd.f32 %v5548, %v5580
      %v5613 = vadd.f32 %v5549, %v5581
      %v5614 = vadd.f32 %v5550, %v5582
      %v5615 = vadd.f32 %v5551, %v5583
      %v5616 = vadd.f32 %v5552, %v5584
      %v5617 = vadd.f32 %v5553, %v5585
      %v5618 = vadd.f32 %v5554, %v5586
      %v5619 = vadd.f32 %v5555, %v5587
      %v5620 = vadd.f32 %v5556, %v5588
      %v5621 = vadd.f32 %v5557, %v5589
      %v5622 = vadd.f32 %v5558, %v5590
      %v5623 = vadd.f32 %v5559, %v5591
      %v5624 = vadd.f32 %v5560, %v5592
      %v5625 = vadd.f32 %v5561, %v5593
      %v5626 = vadd.f32 %v5562, %v5594
      %v5627 = vadd.f32 %v5563, %v5595
      %v5628 = vadd.f32 %v5564, %v5596
      %v5629 = vadd.f32 %v5565, %v5597
      %v5630 = vadd.f32 %v5566, %v5598
      %v5631 = vadd.f32 %v5567, %v5599
      %v5632 = vadd.f32 %v5568, %v5600
      %v5633 = vadd.f32 %v5569, %v5601
      %v5634 = vadd.f32 %v5570, %v5602
      %v5635 = vadd.f32 %v5571, %v5603
      %v5636 = vadd.f32 %v5572, %v5604
      %v5637 = vadd.f32 %v5573, %v5605
      %v5638 = vadd.f32 %v5574, %v5606
      %v5639 = vadd.f32 %v5575, %v5607
      %v5640 = vadd.f32 %v5576, %v5608
      %v5641 = vadd.f32 %v5577, %v5609
      %v5642 = vadd.f32 %v5610, %v5611
      %v5643 = vadd.f32 %v5642, %v5612
      %v5644 = vadd.f32 %v5643, %v5613
      %5645 = vadd.xlane.f32.xlu0 %v5644
      %v5646 = vpop.xlane.xlu0 %5645
      %v5647 = vadd.f32 %v5614, %v5615
      %v5648 = vadd.f32 %v5647, %v5616
      %v5649 = vadd.f32 %v5648, %v5617
      %5650 = vadd.xlane.f32.xlu0 %v5649
      %v5651 = vpop.xlane.xlu0 %5650
      %v5652 = vadd.f32 %v5618, %v5619
      %v5653 = vadd.f32 %v5652, %v5620
      %v5654 = vadd.f32 %v5653, %v5621
      %5655 = vadd.xlane.f32.xlu0 %v5654
      %v5656 = vpop.xlane.xlu0 %5655
      %v5657 = vadd.f32 %v5622, %v5623
      %v5658 = vadd.f32 %v5657, %v5624
      %v5659 = vadd.f32 %v5658, %v5625
      %5660 = vadd.xlane.f32.xlu0 %v5659
      %v5661 = vpop.xlane.xlu0 %5660
      %v5662 = vadd.f32 %v5626, %v5627
      %v5663 = vadd.f32 %v5662, %v5628
      %v5664 = vadd.f32 %v5663, %v5629
      %5665 = vadd.xlane.f32.xlu0 %v5664
      %v5666 = vpop.xlane.xlu0 %5665
      %v5667 = vadd.f32 %v5630, %v5631
      %v5668 = vadd.f32 %v5667, %v5632
      %v5669 = vadd.f32 %v5668, %v5633
      %5670 = vadd.xlane.f32.xlu0 %v5669
      %v5671 = vpop.xlane.xlu0 %5670
      %v5672 = vadd.f32 %v5634, %v5635
      %v5673 = vadd.f32 %v5672, %v5636
      %v5674 = vadd.f32 %v5673, %v5637
      %5675 = vadd.xlane.f32.xlu0 %v5674
      %v5676 = vpop.xlane.xlu0 %5675
      %v5677 = vadd.f32 %v5638, %v5639
      %v5678 = vadd.f32 %v5677, %v5640
      %v5679 = vadd.f32 %v5678, %v5641
      %5680 = vadd.xlane.f32.xlu0 %v5679
      %v5681 = vpop.xlane.xlu0 %5680
      %v5682 = vrcp.pop 512.0
      %v5683 = vmul.f32 512.0, %v5682
      %v5684 = vsub.f32 1.0, %v5683
      %v5685 = vmul.f32 %v5682, %v5684
      %v5686 = vadd.f32 %v5682, %v5685
      %vm5687 = vweird.f32 %v5682
      %v5688 = vsel %vm5687, %v5682, %v5686
      %v5689 = vmul.f32 %v5646, %v5688
      %v5690 = vmul.f32 %v5651, %v5688
      %v5691 = vmul.f32 %v5656, %v5688
      %v5692 = vmul.f32 %v5661, %v5688
      %v5693 = vmul.f32 %v5666, %v5688
      %v5694 = vmul.f32 %v5671, %v5688
      %v5695 = vmul.f32 %v5676, %v5688
      %v5696 = vmul.f32 %v5681, %v5688
      %vm5697 = vcmask 7168
      %5698 = vst.msk [vmem:[%s965] sm:$0xff] %vm5697, %v5689
      %5699 = vst.msk [vmem:[%s965 + $0x8] sm:$0xff] %vm5697, %v5690
      %5700 = vst.msk [vmem:[%s965 + $0x10] sm:$0xff] %vm5697, %v5691
      %5701 = vst.msk [vmem:[%s965 + $0x18] sm:$0xff] %vm5697, %v5692
      %5702 = vst.msk [vmem:[%s965 + $0x20] sm:$0xff] %vm5697, %v5693
      %5703 = vst.msk [vmem:[%s965 + $0x28] sm:$0xff] %vm5697, %v5694
      %5704 = vst.msk [vmem:[%s965 + $0x30] sm:$0xff] %vm5697, %v5695
      %5705 = vst.msk [vmem:[%s965 + $0x38] sm:$0xff] %vm5697, %v5696
      %s5706 = scalar_lea.vmem %s958, 32
      %v5707 = vld [vmem:[%s5706] sm:$0x3f]
      %v5708 = vld [vmem:[%s5706 + $0x8] sm:$0x3f]
      %v5709 = vld [vmem:[%s5706 + $0x10] sm:$0x3f]
      %v5710 = vld [vmem:[%s5706 + $0x18] sm:$0x3f]
      %v5712 = vsel %vm1170, %v5707, 0
      %v5715 = vsel %vm1170, %v5708, 0
      %v5718 = vsel %vm1170, %v5709, 0
      %v5721 = vsel %vm1170, %v5710, 0
      %5723 = vmatpush.msra.mxu0 0.0
      %5724 = vmatpush.msra.mxu0 0.0
      %5725 = vmatpush.msra.mxu0 0.0
      %5726 = vmatpush.msra.mxu0 0.0
      %5727 = vmatpush.msra.mxu0 0.0
      %5728 = vmatpush.msra.mxu0 0.0
      %5729 = vmatpush.msra.mxu0 0.0
      %5730 = vmatpush.msra.mxu0 0.0
      %5731 = vmatpush.msra.mxu0 0.0
      %5732 = vmatpush.msra.mxu0 0.0
      %5733 = vmatpush.msra.mxu0 0.0
      %5734 = vmatpush.msra.mxu0 0.0
      %5735 = vmatpush.msra.mxu0 0.0
      %5736 = vmatpush.msra.mxu0 0.0
      %5737 = vmatpush.msra.mxu0 0.0
      %5738 = vmatpush.msra.mxu0 %v5712
      %5739 = vmatmul.f32.gmra.mxu0 %v1165
      %v5740 = vpop.f32.mrf.mxu0
      %v5741 = vadd.f32 %v1156, %v5740
      %5742 = vmatmul.f32.gmra.mxu0 %v1168
      %v5743 = vpop.f32.mrf.mxu0
      %v5744 = vadd.f32 %v1161, %v5743
      %5745 = vdwg.mxu0
      %5746 = vmatpush.msra.mxu0 0.0
      %5747 = vmatpush.msra.mxu0 0.0
      %5748 = vmatpush.msra.mxu0 0.0
      %5749 = vmatpush.msra.mxu0 0.0
      %5750 = vmatpush.msra.mxu0 0.0
      %5751 = vmatpush.msra.mxu0 0.0
      %5752 = vmatpush.msra.mxu0 0.0
      %5753 = vmatpush.msra.mxu0 0.0
      %5754 = vmatpush.msra.mxu0 0.0
      %5755 = vmatpush.msra.mxu0 0.0
      %5756 = vmatpush.msra.mxu0 0.0
      %5757 = vmatpush.msra.mxu0 0.0
      %5758 = vmatpush.msra.mxu0 0.0
      %5759 = vmatpush.msra.mxu0 0.0
      %5760 = vmatpush.msra.mxu0 0.0
      %5761 = vmatpush.msra.mxu0 %v5715
      %5762 = vmatmul.f32.gmra.mxu0 %v1165
      %v5763 = vpop.f32.mrf.mxu0
      %v5764 = vadd.f32 %v1156, %v5763
      %5765 = vmatmul.f32.gmra.mxu0 %v1168
      %v5766 = vpop.f32.mrf.mxu0
      %v5767 = vadd.f32 %v1161, %v5766
      %5768 = vdwg.mxu0
      %5769 = vmatpush.msra.mxu0 0.0
      %5770 = vmatpush.msra.mxu0 0.0
      %5771 = vmatpush.msra.mxu0 0.0
      %5772 = vmatpush.msra.mxu0 0.0
      %5773 = vmatpush.msra.mxu0 0.0
      %5774 = vmatpush.msra.mxu0 0.0
      %5775 = vmatpush.msra.mxu0 0.0
      %5776 = vmatpush.msra.mxu0 0.0
      %5777 = vmatpush.msra.mxu0 0.0
      %5778 = vmatpush.msra.mxu0 0.0
      %5779 = vmatpush.msra.mxu0 0.0
      %5780 = vmatpush.msra.mxu0 0.0
      %5781 = vmatpush.msra.mxu0 0.0
      %5782 = vmatpush.msra.mxu0 0.0
      %5783 = vmatpush.msra.mxu0 0.0
      %5784 = vmatpush.msra.mxu0 %v5718
      %5785 = vmatmul.f32.gmra.mxu0 %v1165
      %v5786 = vpop.f32.mrf.mxu0
      %v5787 = vadd.f32 %v1156, %v5786
      %5788 = vmatmul.f32.gmra.mxu0 %v1168
      %v5789 = vpop.f32.mrf.mxu0
      %v5790 = vadd.f32 %v1161, %v5789
      %5791 = vdwg.mxu0
      %5792 = vmatpush.msra.mxu0 0.0
      %5793 = vmatpush.msra.mxu0 0.0
      %5794 = vmatpush.msra.mxu0 0.0
      %5795 = vmatpush.msra.mxu0 0.0
      %5796 = vmatpush.msra.mxu0 0.0
      %5797 = vmatpush.msra.mxu0 0.0
      %5798 = vmatpush.msra.mxu0 0.0
      %5799 = vmatpush.msra.mxu0 0.0
      %5800 = vmatpush.msra.mxu0 0.0
      %5801 = vmatpush.msra.mxu0 0.0
      %5802 = vmatpush.msra.mxu0 0.0
      %5803 = vmatpush.msra.mxu0 0.0
      %5804 = vmatpush.msra.mxu0 0.0
      %5805 = vmatpush.msra.mxu0 0.0
      %5806 = vmatpush.msra.mxu0 0.0
      %5807 = vmatpush.msra.mxu0 %v5721
      %5808 = vmatmul.f32.gmra.mxu0 %v1165
      %v5809 = vpop.f32.mrf.mxu0
      %v5810 = vadd.f32 %v1156, %v5809
      %5811 = vmatmul.f32.gmra.mxu0 %v1168
      %v5812 = vpop.f32.mrf.mxu0
      %v5813 = vadd.f32 %v1161, %v5812
      %5814 = vdwg.mxu0
      %vm5815 = vcmp.gt.f32.partialorder %v5741, 0.0
      %vm5816 = vcmp.gt.f32.partialorder %v5764, 0.0
      %vm5817 = vcmp.gt.f32.partialorder %v5787, 0.0
      %vm5818 = vcmp.gt.f32.partialorder %v5810, 0.0
      %vm5819 = vcmp.gt.f32.partialorder %v5744, 0.0
      %vm5820 = vcmp.gt.f32.partialorder %v5767, 0.0
      %vm5821 = vcmp.gt.f32.partialorder %v5790, 0.0
      %vm5822 = vcmp.gt.f32.partialorder %v5813, 0.0
      %v5823 = vmin.f32 %v5741, 0.0
      %v5824 = vmin.f32 %v5764, 0.0
      %v5825 = vmin.f32 %v5787, 0.0
      %v5826 = vmin.f32 %v5810, 0.0
      %v5827 = vmin.f32 %v5744, 0.0
      %v5828 = vmin.f32 %v5767, 0.0
      %v5829 = vmin.f32 %v5790, 0.0
      %v5830 = vmin.f32 %v5813, 0.0
      %v5831 = vmul.f32 %v5823, 1.442695
      %v5832 = vpow.pop %v5831
      %v5833 = vmul.f32 %v5824, 1.442695
      %v5834 = vpow.pop %v5833
      %v5835 = vmul.f32 %v5825, 1.442695
      %v5836 = vpow.pop %v5835
      %v5837 = vmul.f32 %v5826, 1.442695
      %v5838 = vpow.pop %v5837
      %v5839 = vmul.f32 %v5827, 1.442695
      %v5840 = vpow.pop %v5839
      %v5841 = vmul.f32 %v5828, 1.442695
      %v5842 = vpow.pop %v5841
      %v5843 = vmul.f32 %v5829, 1.442695
      %v5844 = vpow.pop %v5843
      %v5845 = vmul.f32 %v5830, 1.442695
      %v5846 = vpow.pop %v5845
      %v5847 = vsub.f32 %v5832, 1.0
      %v5848 = vsub.f32 %v5834, 1.0
      %v5849 = vsub.f32 %v5836, 1.0
      %v5850 = vsub.f32 %v5838, 1.0
      %v5851 = vsub.f32 %v5840, 1.0
      %v5852 = vsub.f32 %v5842, 1.0
      %v5853 = vsub.f32 %v5844, 1.0
      %v5854 = vsub.f32 %v5846, 1.0
      %v5855 = vsel %vm5815, %v5741, %v5847
      %v5856 = vsel %vm5816, %v5764, %v5848
      %v5857 = vsel %vm5817, %v5787, %v5849
      %v5858 = vsel %vm5818, %v5810, %v5850
      %v5859 = vsel %vm5819, %v5744, %v5851
      %v5860 = vsel %vm5820, %v5767, %v5852
      %v5861 = vsel %vm5821, %v5790, %v5853
      %v5862 = vsel %vm5822, %v5813, %v5854
      %5863 = vmatpush.msra.mxu0 0.0
      %5864 = vmatpush.msra.mxu0 0.0
      %5865 = vmatpush.msra.mxu0 0.0
      %5866 = vmatpush.msra.mxu0 0.0
      %5867 = vmatpush.msra.mxu0 0.0
      %5868 = vmatpush.msra.mxu0 0.0
      %5869 = vmatpush.msra.mxu0 0.0
      %5870 = vmatpush.msra.mxu0 0.0
      %5871 = vmatpush.msra.mxu0 0.0
      %5872 = vmatpush.msra.mxu0 0.0
      %5873 = vmatpush.msra.mxu0 0.0
      %5874 = vmatpush.msra.mxu0 0.0
      %5875 = vmatpush.msra.mxu0 0.0
      %5876 = vmatpush.msra.mxu0 0.0
      %5877 = vmatpush.msra.mxu0 %v5859
      %5878 = vmatpush.msra.mxu0 %v5855
      %5879 = vmatmul.f32.gmra.mxu0 %v1345
      %v5880 = vpop.f32.mrf.mxu0
      %v5881 = vadd.f32 %v1326, %v5880
      %5882 = vmatmul.f32.gmra.mxu0 %v1348
      %v5883 = vpop.f32.mrf.mxu0
      %v5884 = vadd.f32 %v1331, %v5883
      %5885 = vmatmul.f32.gmra.mxu0 %v1351
      %v5886 = vpop.f32.mrf.mxu0
      %v5887 = vadd.f32 %v1336, %v5886
      %5888 = vmatmul.f32.gmra.mxu0 %v1354
      %v5889 = vpop.f32.mrf.mxu0
      %v5890 = vadd.f32 %v1341, %v5889
      %5891 = vdwg.mxu0
      %5892 = vmatpush.msra.mxu0 0.0
      %5893 = vmatpush.msra.mxu0 0.0
      %5894 = vmatpush.msra.mxu0 0.0
      %5895 = vmatpush.msra.mxu0 0.0
      %5896 = vmatpush.msra.mxu0 0.0
      %5897 = vmatpush.msra.mxu0 0.0
      %5898 = vmatpush.msra.mxu0 0.0
      %5899 = vmatpush.msra.mxu0 0.0
      %5900 = vmatpush.msra.mxu0 0.0
      %5901 = vmatpush.msra.mxu0 0.0
      %5902 = vmatpush.msra.mxu0 0.0
      %5903 = vmatpush.msra.mxu0 0.0
      %5904 = vmatpush.msra.mxu0 0.0
      %5905 = vmatpush.msra.mxu0 0.0
      %5906 = vmatpush.msra.mxu0 %v5860
      %5907 = vmatpush.msra.mxu0 %v5856
      %5908 = vmatmul.f32.gmra.mxu0 %v1345
      %v5909 = vpop.f32.mrf.mxu0
      %v5910 = vadd.f32 %v1326, %v5909
      %5911 = vmatmul.f32.gmra.mxu0 %v1348
      %v5912 = vpop.f32.mrf.mxu0
      %v5913 = vadd.f32 %v1331, %v5912
      %5914 = vmatmul.f32.gmra.mxu0 %v1351
      %v5915 = vpop.f32.mrf.mxu0
      %v5916 = vadd.f32 %v1336, %v5915
      %5917 = vmatmul.f32.gmra.mxu0 %v1354
      %v5918 = vpop.f32.mrf.mxu0
      %v5919 = vadd.f32 %v1341, %v5918
      %5920 = vdwg.mxu0
      %5921 = vmatpush.msra.mxu0 0.0
      %5922 = vmatpush.msra.mxu0 0.0
      %5923 = vmatpush.msra.mxu0 0.0
      %5924 = vmatpush.msra.mxu0 0.0
      %5925 = vmatpush.msra.mxu0 0.0
      %5926 = vmatpush.msra.mxu0 0.0
      %5927 = vmatpush.msra.mxu0 0.0
      %5928 = vmatpush.msra.mxu0 0.0
      %5929 = vmatpush.msra.mxu0 0.0
      %5930 = vmatpush.msra.mxu0 0.0
      %5931 = vmatpush.msra.mxu0 0.0
      %5932 = vmatpush.msra.mxu0 0.0
      %5933 = vmatpush.msra.mxu0 0.0
      %5934 = vmatpush.msra.mxu0 0.0
      %5935 = vmatpush.msra.mxu0 %v5861
      %5936 = vmatpush.msra.mxu0 %v5857
      %5937 = vmatmul.f32.gmra.mxu0 %v1345
      %v5938 = vpop.f32.mrf.mxu0
      %v5939 = vadd.f32 %v1326, %v5938
      %5940 = vmatmul.f32.gmra.mxu0 %v1348
      %v5941 = vpop.f32.mrf.mxu0
      %v5942 = vadd.f32 %v1331, %v5941
      %5943 = vmatmul.f32.gmra.mxu0 %v1351
      %v5944 = vpop.f32.mrf.mxu0
      %v5945 = vadd.f32 %v1336, %v5944
      %5946 = vmatmul.f32.gmra.mxu0 %v1354
      %v5947 = vpop.f32.mrf.mxu0
      %v5948 = vadd.f32 %v1341, %v5947
      %5949 = vdwg.mxu0
      %5950 = vmatpush.msra.mxu0 0.0
      %5951 = vmatpush.msra.mxu0 0.0
      %5952 = vmatpush.msra.mxu0 0.0
      %5953 = vmatpush.msra.mxu0 0.0
      %5954 = vmatpush.msra.mxu0 0.0
      %5955 = vmatpush.msra.mxu0 0.0
      %5956 = vmatpush.msra.mxu0 0.0
      %5957 = vmatpush.msra.mxu0 0.0
      %5958 = vmatpush.msra.mxu0 0.0
      %5959 = vmatpush.msra.mxu0 0.0
      %5960 = vmatpush.msra.mxu0 0.0
      %5961 = vmatpush.msra.mxu0 0.0
      %5962 = vmatpush.msra.mxu0 0.0
      %5963 = vmatpush.msra.mxu0 0.0
      %5964 = vmatpush.msra.mxu0 %v5862
      %5965 = vmatpush.msra.mxu0 %v5858
      %5966 = vmatmul.f32.gmra.mxu0 %v1345
      %v5967 = vpop.f32.mrf.mxu0
      %v5968 = vadd.f32 %v1326, %v5967
      %5969 = vmatmul.f32.gmra.mxu0 %v1348
      %v5970 = vpop.f32.mrf.mxu0
      %v5971 = vadd.f32 %v1331, %v5970
      %5972 = vmatmul.f32.gmra.mxu0 %v1351
      %v5973 = vpop.f32.mrf.mxu0
      %v5974 = vadd.f32 %v1336, %v5973
      %5975 = vmatmul.f32.gmra.mxu0 %v1354
      %v5976 = vpop.f32.mrf.mxu0
      %v5977 = vadd.f32 %v1341, %v5976
      %5978 = vdwg.mxu0
      %vm5979 = vcmp.gt.f32.partialorder %v5881, 0.0
      %vm5980 = vcmp.gt.f32.partialorder %v5910, 0.0
      %vm5981 = vcmp.gt.f32.partialorder %v5939, 0.0
      %vm5982 = vcmp.gt.f32.partialorder %v5968, 0.0
      %vm5983 = vcmp.gt.f32.partialorder %v5884, 0.0
      %vm5984 = vcmp.gt.f32.partialorder %v5913, 0.0
      %vm5985 = vcmp.gt.f32.partialorder %v5942, 0.0
      %vm5986 = vcmp.gt.f32.partialorder %v5971, 0.0
      %vm5987 = vcmp.gt.f32.partialorder %v5887, 0.0
      %vm5988 = vcmp.gt.f32.partialorder %v5916, 0.0
      %vm5989 = vcmp.gt.f32.partialorder %v5945, 0.0
      %vm5990 = vcmp.gt.f32.partialorder %v5974, 0.0
      %vm5991 = vcmp.gt.f32.partialorder %v5890, 0.0
      %vm5992 = vcmp.gt.f32.partialorder %v5919, 0.0
      %vm5993 = vcmp.gt.f32.partialorder %v5948, 0.0
      %vm5994 = vcmp.gt.f32.partialorder %v5977, 0.0
      %v5995 = vmin.f32 %v5881, 0.0
      %v5996 = vmin.f32 %v5910, 0.0
      %v5997 = vmin.f32 %v5939, 0.0
      %v5998 = vmin.f32 %v5968, 0.0
      %v5999 = vmin.f32 %v5884, 0.0
      %v6000 = vmin.f32 %v5913, 0.0
      %v6001 = vmin.f32 %v5942, 0.0
      %v6002 = vmin.f32 %v5971, 0.0
      %v6003 = vmin.f32 %v5887, 0.0
      %v6004 = vmin.f32 %v5916, 0.0
      %v6005 = vmin.f32 %v5945, 0.0
      %v6006 = vmin.f32 %v5974, 0.0
      %v6007 = vmin.f32 %v5890, 0.0
      %v6008 = vmin.f32 %v5919, 0.0
      %v6009 = vmin.f32 %v5948, 0.0
      %v6010 = vmin.f32 %v5977, 0.0
      %v6011 = vmul.f32 %v5995, 1.442695
      %v6012 = vpow.pop %v6011
      %v6013 = vmul.f32 %v5996, 1.442695
      %v6014 = vpow.pop %v6013
      %v6015 = vmul.f32 %v5997, 1.442695
      %v6016 = vpow.pop %v6015
      %v6017 = vmul.f32 %v5998, 1.442695
      %v6018 = vpow.pop %v6017
      %v6019 = vmul.f32 %v5999, 1.442695
      %v6020 = vpow.pop %v6019
      %v6021 = vmul.f32 %v6000, 1.442695
      %v6022 = vpow.pop %v6021
      %v6023 = vmul.f32 %v6001, 1.442695
      %v6024 = vpow.pop %v6023
      %v6025 = vmul.f32 %v6002, 1.442695
      %v6026 = vpow.pop %v6025
      %v6027 = vmul.f32 %v6003, 1.442695
      %v6028 = vpow.pop %v6027
      %v6029 = vmul.f32 %v6004, 1.442695
      %v6030 = vpow.pop %v6029
      %v6031 = vmul.f32 %v6005, 1.442695
      %v6032 = vpow.pop %v6031
      %v6033 = vmul.f32 %v6006, 1.442695
      %v6034 = vpow.pop %v6033
      %v6035 = vmul.f32 %v6007, 1.442695
      %v6036 = vpow.pop %v6035
      %v6037 = vmul.f32 %v6008, 1.442695
      %v6038 = vpow.pop %v6037
      %v6039 = vmul.f32 %v6009, 1.442695
      %v6040 = vpow.pop %v6039
      %v6041 = vmul.f32 %v6010, 1.442695
      %v6042 = vpow.pop %v6041
      %v6043 = vsub.f32 %v6012, 1.0
      %v6044 = vsub.f32 %v6014, 1.0
      %v6045 = vsub.f32 %v6016, 1.0
      %v6046 = vsub.f32 %v6018, 1.0
      %v6047 = vsub.f32 %v6020, 1.0
      %v6048 = vsub.f32 %v6022, 1.0
      %v6049 = vsub.f32 %v6024, 1.0
      %v6050 = vsub.f32 %v6026, 1.0
      %v6051 = vsub.f32 %v6028, 1.0
      %v6052 = vsub.f32 %v6030, 1.0
      %v6053 = vsub.f32 %v6032, 1.0
      %v6054 = vsub.f32 %v6034, 1.0
      %v6055 = vsub.f32 %v6036, 1.0
      %v6056 = vsub.f32 %v6038, 1.0
      %v6057 = vsub.f32 %v6040, 1.0
      %v6058 = vsub.f32 %v6042, 1.0
      %v6059 = vsel %vm5979, %v5881, %v6043
      %v6060 = vsel %vm5980, %v5910, %v6044
      %v6061 = vsel %vm5981, %v5939, %v6045
      %v6062 = vsel %vm5982, %v5968, %v6046
      %v6063 = vsel %vm5983, %v5884, %v6047
      %v6064 = vsel %vm5984, %v5913, %v6048
      %v6065 = vsel %vm5985, %v5942, %v6049
      %v6066 = vsel %vm5986, %v5971, %v6050
      %v6067 = vsel %vm5987, %v5887, %v6051
      %v6068 = vsel %vm5988, %v5916, %v6052
      %v6069 = vsel %vm5989, %v5945, %v6053
      %v6070 = vsel %vm5990, %v5974, %v6054
      %v6071 = vsel %vm5991, %v5890, %v6055
      %v6072 = vsel %vm5992, %v5919, %v6056
      %v6073 = vsel %vm5993, %v5948, %v6057
      %v6074 = vsel %vm5994, %v5977, %v6058
      %v6075 = vadd.f32 %v6059, %v6063
      %v6076 = vadd.f32 %v6075, %v6067
      %v6077 = vadd.f32 %v6076, %v6071
      %v6078 = vrot.slane %v6077, 4
      %v6079 = vadd.f32 %v6077, %v6078
      %v6080 = vrot.slane %v6079, 2
      %v6081 = vadd.f32 %v6079, %v6080
      %v6082 = vrot.slane %v6081, 1
      %v6083 = vadd.f32 %v6081, %v6082
      %v6084 = vadd.f32 %v6060, %v6064
      %v6085 = vadd.f32 %v6084, %v6068
      %v6086 = vadd.f32 %v6085, %v6072
      %v6087 = vrot.slane %v6086, 4
      %v6088 = vadd.f32 %v6086, %v6087
      %v6089 = vrot.slane %v6088, 2
      %v6090 = vadd.f32 %v6088, %v6089
      %v6091 = vrot.slane %v6090, 1
      %v6092 = vadd.f32 %v6090, %v6091
      %v6093 = vadd.f32 %v6061, %v6065
      %v6094 = vadd.f32 %v6093, %v6069
      %v6095 = vadd.f32 %v6094, %v6073
      %v6096 = vrot.slane %v6095, 4
      %v6097 = vadd.f32 %v6095, %v6096
      %v6098 = vrot.slane %v6097, 2
      %v6099 = vadd.f32 %v6097, %v6098
      %v6100 = vrot.slane %v6099, 1
      %v6101 = vadd.f32 %v6099, %v6100
      %v6102 = vadd.f32 %v6062, %v6066
      %v6103 = vadd.f32 %v6102, %v6070
      %v6104 = vadd.f32 %v6103, %v6074
      %v6105 = vrot.slane %v6104, 4
      %v6106 = vadd.f32 %v6104, %v6105
      %v6107 = vrot.slane %v6106, 2
      %v6108 = vadd.f32 %v6106, %v6107
      %v6109 = vrot.slane %v6108, 1
      %v6110 = vadd.f32 %v6108, %v6109
      %v6111 = vmul.f32 %v6083, %v1610
      %v6112 = vmul.f32 %v6092, %v1610
      %v6113 = vmul.f32 %v6101, %v1610
      %v6114 = vmul.f32 %v6110, %v1610
      %v6115 = vsub.f32 %v6059, %v6111
      %v6116 = vsub.f32 %v6060, %v6112
      %v6117 = vsub.f32 %v6061, %v6113
      %v6118 = vsub.f32 %v6062, %v6114
      %v6119 = vsub.f32 %v6063, %v6111
      %v6120 = vsub.f32 %v6064, %v6112
      %v6121 = vsub.f32 %v6065, %v6113
      %v6122 = vsub.f32 %v6066, %v6114
      %v6123 = vsub.f32 %v6067, %v6111
      %v6124 = vsub.f32 %v6068, %v6112
      %v6125 = vsub.f32 %v6069, %v6113
      %v6126 = vsub.f32 %v6070, %v6114
      %v6127 = vsub.f32 %v6071, %v6111
      %v6128 = vsub.f32 %v6072, %v6112
      %v6129 = vsub.f32 %v6073, %v6113
      %v6130 = vsub.f32 %v6074, %v6114
      %v6131 = vmul.f32 %v6115, %v6115
      %v6132 = vmul.f32 %v6116, %v6116
      %v6133 = vmul.f32 %v6117, %v6117
      %v6134 = vmul.f32 %v6118, %v6118
      %v6135 = vmul.f32 %v6119, %v6119
      %v6136 = vmul.f32 %v6120, %v6120
      %v6137 = vmul.f32 %v6121, %v6121
      %v6138 = vmul.f32 %v6122, %v6122
      %v6139 = vmul.f32 %v6123, %v6123
      %v6140 = vmul.f32 %v6124, %v6124
      %v6141 = vmul.f32 %v6125, %v6125
      %v6142 = vmul.f32 %v6126, %v6126
      %v6143 = vmul.f32 %v6127, %v6127
      %v6144 = vmul.f32 %v6128, %v6128
      %v6145 = vmul.f32 %v6129, %v6129
      %v6146 = vmul.f32 %v6130, %v6130
      %v6147 = vadd.f32 %v6131, %v6135
      %v6148 = vadd.f32 %v6147, %v6139
      %v6149 = vadd.f32 %v6148, %v6143
      %v6150 = vrot.slane %v6149, 4
      %v6151 = vadd.f32 %v6149, %v6150
      %v6152 = vrot.slane %v6151, 2
      %v6153 = vadd.f32 %v6151, %v6152
      %v6154 = vrot.slane %v6153, 1
      %v6155 = vadd.f32 %v6153, %v6154
      %v6156 = vadd.f32 %v6132, %v6136
      %v6157 = vadd.f32 %v6156, %v6140
      %v6158 = vadd.f32 %v6157, %v6144
      %v6159 = vrot.slane %v6158, 4
      %v6160 = vadd.f32 %v6158, %v6159
      %v6161 = vrot.slane %v6160, 2
      %v6162 = vadd.f32 %v6160, %v6161
      %v6163 = vrot.slane %v6162, 1
      %v6164 = vadd.f32 %v6162, %v6163
      %v6165 = vadd.f32 %v6133, %v6137
      %v6166 = vadd.f32 %v6165, %v6141
      %v6167 = vadd.f32 %v6166, %v6145
      %v6168 = vrot.slane %v6167, 4
      %v6169 = vadd.f32 %v6167, %v6168
      %v6170 = vrot.slane %v6169, 2
      %v6171 = vadd.f32 %v6169, %v6170
      %v6172 = vrot.slane %v6171, 1
      %v6173 = vadd.f32 %v6171, %v6172
      %v6174 = vadd.f32 %v6134, %v6138
      %v6175 = vadd.f32 %v6174, %v6142
      %v6176 = vadd.f32 %v6175, %v6146
      %v6177 = vrot.slane %v6176, 4
      %v6178 = vadd.f32 %v6176, %v6177
      %v6179 = vrot.slane %v6178, 2
      %v6180 = vadd.f32 %v6178, %v6179
      %v6181 = vrot.slane %v6180, 1
      %v6182 = vadd.f32 %v6180, %v6181
      %v6183 = vmul.f32 %v6155, %v1610
      %v6184 = vmul.f32 %v6164, %v1610
      %v6185 = vmul.f32 %v6173, %v1610
      %v6186 = vmul.f32 %v6182, %v1610
      %v6187 = vadd.f32 %v6183, 1e-05
      %v6188 = vadd.f32 %v6184, 1e-05
      %v6189 = vadd.f32 %v6185, 1e-05
      %v6190 = vadd.f32 %v6186, 1e-05
      %v6191 = vrsqrt.pop %v6187
      %v6192 = vmul.f32 %v6191, %v6187
      %v6193 = vmul.f32 %v6192, %v6191
      %v6194 = vmul.f32 0.5, %v6193
      %v6195 = vsub.f32 1.5, %v6194
      %v6196 = vmul.f32 %v6191, %v6195
      %vm6197 = vweird.f32 %v6187
      %vm6198 = vweird.f32 %v6191
      %vm6199 = vmor %vm6197, %vm6198
      %v6200 = vsel %vm6199, %v6191, %v6196
      %v6201 = vrsqrt.pop %v6188
      %v6202 = vmul.f32 %v6201, %v6188
      %v6203 = vmul.f32 %v6202, %v6201
      %v6204 = vmul.f32 0.5, %v6203
      %v6205 = vsub.f32 1.5, %v6204
      %v6206 = vmul.f32 %v6201, %v6205
      %vm6207 = vweird.f32 %v6188
      %vm6208 = vweird.f32 %v6201
      %vm6209 = vmor %vm6207, %vm6208
      %v6210 = vsel %vm6209, %v6201, %v6206
      %v6211 = vrsqrt.pop %v6189
      %v6212 = vmul.f32 %v6211, %v6189
      %v6213 = vmul.f32 %v6212, %v6211
      %v6214 = vmul.f32 0.5, %v6213
      %v6215 = vsub.f32 1.5, %v6214
      %v6216 = vmul.f32 %v6211, %v6215
      %vm6217 = vweird.f32 %v6189
      %vm6218 = vweird.f32 %v6211
      %vm6219 = vmor %vm6217, %vm6218
      %v6220 = vsel %vm6219, %v6211, %v6216
      %v6221 = vrsqrt.pop %v6190
      %v6222 = vmul.f32 %v6221, %v6190
      %v6223 = vmul.f32 %v6222, %v6221
      %v6224 = vmul.f32 0.5, %v6223
      %v6225 = vsub.f32 1.5, %v6224
      %v6226 = vmul.f32 %v6221, %v6225
      %vm6227 = vweird.f32 %v6190
      %vm6228 = vweird.f32 %v6221
      %vm6229 = vmor %vm6227, %vm6228
      %v6230 = vsel %vm6229, %v6221, %v6226
      %v6231 = vmul.f32 %v6115, %v6200
      %v6232 = vmul.f32 %v6116, %v6210
      %v6233 = vmul.f32 %v6117, %v6220
      %v6234 = vmul.f32 %v6118, %v6230
      %v6235 = vmul.f32 %v6119, %v6200
      %v6236 = vmul.f32 %v6120, %v6210
      %v6237 = vmul.f32 %v6121, %v6220
      %v6238 = vmul.f32 %v6122, %v6230
      %v6239 = vmul.f32 %v6123, %v6200
      %v6240 = vmul.f32 %v6124, %v6210
      %v6241 = vmul.f32 %v6125, %v6220
      %v6242 = vmul.f32 %v6126, %v6230
      %v6243 = vmul.f32 %v6127, %v6200
      %v6244 = vmul.f32 %v6128, %v6210
      %v6245 = vmul.f32 %v6129, %v6220
      %v6246 = vmul.f32 %v6130, %v6230
      %v6247 = vmul.f32 %v6231, %v1750
      %v6248 = vmul.f32 %v6232, %v1750
      %v6249 = vmul.f32 %v6233, %v1750
      %v6250 = vmul.f32 %v6234, %v1750
      %v6251 = vmul.f32 %v6235, %v1755
      %v6252 = vmul.f32 %v6236, %v1755
      %v6253 = vmul.f32 %v6237, %v1755
      %v6254 = vmul.f32 %v6238, %v1755
      %v6255 = vmul.f32 %v6239, %v1760
      %v6256 = vmul.f32 %v6240, %v1760
      %v6257 = vmul.f32 %v6241, %v1760
      %v6258 = vmul.f32 %v6242, %v1760
      %v6259 = vmul.f32 %v6243, %v1765
      %v6260 = vmul.f32 %v6244, %v1765
      %v6261 = vmul.f32 %v6245, %v1765
      %v6262 = vmul.f32 %v6246, %v1765
      %v6263 = vadd.f32 %v6247, %v1786
      %v6264 = vadd.f32 %v6248, %v1786
      %v6265 = vadd.f32 %v6249, %v1786
      %v6266 = vadd.f32 %v6250, %v1786
      %v6267 = vadd.f32 %v6251, %v1791
      %v6268 = vadd.f32 %v6252, %v1791
      %v6269 = vadd.f32 %v6253, %v1791
      %v6270 = vadd.f32 %v6254, %v1791
      %v6271 = vadd.f32 %v6255, %v1796
      %v6272 = vadd.f32 %v6256, %v1796
      %v6273 = vadd.f32 %v6257, %v1796
      %v6274 = vadd.f32 %v6258, %v1796
      %v6275 = vadd.f32 %v6259, %v1801
      %v6276 = vadd.f32 %v6260, %v1801
      %v6277 = vadd.f32 %v6261, %v1801
      %v6278 = vadd.f32 %v6262, %v1801
      %6279 = vmatpush.msra.mxu0 0.0
      %6280 = vmatpush.msra.mxu0 0.0
      %6281 = vmatpush.msra.mxu0 0.0
      %6282 = vmatpush.msra.mxu0 0.0
      %6283 = vmatpush.msra.mxu0 0.0
      %6284 = vmatpush.msra.mxu0 0.0
      %6285 = vmatpush.msra.mxu0 0.0
      %6286 = vmatpush.msra.mxu0 0.0
      %6287 = vmatpush.msra.mxu0 0.0
      %6288 = vmatpush.msra.mxu0 0.0
      %6289 = vmatpush.msra.mxu0 0.0
      %6290 = vmatpush.msra.mxu0 0.0
      %6291 = vmatpush.msra.mxu0 %v6275
      %6292 = vmatpush.msra.mxu0 %v6271
      %6293 = vmatpush.msra.mxu0 %v6267
      %6294 = vmatpush.msra.mxu0 %v6263
      %6295 = vmatmul.f32.gmra.mxu0 %v1866
      %v6296 = vpop.f32.mrf.mxu0
      %v6297 = vadd.f32 %v1822, %v6296
      %6298 = vmatmul.f32.gmra.mxu0 %v1869
      %v6299 = vpop.f32.mrf.mxu0
      %v6300 = vadd.f32 %v1827, %v6299
      %6301 = vmatmul.f32.gmra.mxu0 %v1872
      %v6302 = vpop.f32.mrf.mxu0
      %v6303 = vadd.f32 %v1832, %v6302
      %6304 = vmatmul.f32.gmra.mxu0 %v1875
      %v6305 = vpop.f32.mrf.mxu0
      %v6306 = vadd.f32 %v1837, %v6305
      %6307 = vmatmul.f32.gmra.mxu0 %v1878
      %v6308 = vpop.f32.mrf.mxu0
      %v6309 = vadd.f32 %v1842, %v6308
      %6310 = vmatmul.f32.gmra.mxu0 %v1881
      %v6311 = vpop.f32.mrf.mxu0
      %v6312 = vadd.f32 %v1847, %v6311
      %6313 = vmatmul.f32.gmra.mxu0 %v1884
      %v6314 = vpop.f32.mrf.mxu0
      %v6315 = vadd.f32 %v1852, %v6314
      %6316 = vmatmul.f32.gmra.mxu0 %v1887
      %v6317 = vpop.f32.mrf.mxu0
      %v6318 = vadd.f32 %v1857, %v6317
      %6319 = vmatmul.f32.gmra.mxu0 %v1890
      %v6320 = vpop.f32.mrf.mxu0
      %v6321 = vadd.f32 %v1862, %v6320
      %6322 = vdwg.mxu0
      %6323 = vmatpush.msra.mxu0 0.0
      %6324 = vmatpush.msra.mxu0 0.0
      %6325 = vmatpush.msra.mxu0 0.0
      %6326 = vmatpush.msra.mxu0 0.0
      %6327 = vmatpush.msra.mxu0 0.0
      %6328 = vmatpush.msra.mxu0 0.0
      %6329 = vmatpush.msra.mxu0 0.0
      %6330 = vmatpush.msra.mxu0 0.0
      %6331 = vmatpush.msra.mxu0 0.0
      %6332 = vmatpush.msra.mxu0 0.0
      %6333 = vmatpush.msra.mxu0 0.0
      %6334 = vmatpush.msra.mxu0 0.0
      %6335 = vmatpush.msra.mxu0 %v6276
      %6336 = vmatpush.msra.mxu0 %v6272
      %6337 = vmatpush.msra.mxu0 %v6268
      %6338 = vmatpush.msra.mxu0 %v6264
      %6339 = vmatmul.f32.gmra.mxu0 %v1866
      %v6340 = vpop.f32.mrf.mxu0
      %v6341 = vadd.f32 %v1822, %v6340
      %6342 = vmatmul.f32.gmra.mxu0 %v1869
      %v6343 = vpop.f32.mrf.mxu0
      %v6344 = vadd.f32 %v1827, %v6343
      %6345 = vmatmul.f32.gmra.mxu0 %v1872
      %v6346 = vpop.f32.mrf.mxu0
      %v6347 = vadd.f32 %v1832, %v6346
      %6348 = vmatmul.f32.gmra.mxu0 %v1875
      %v6349 = vpop.f32.mrf.mxu0
      %v6350 = vadd.f32 %v1837, %v6349
      %6351 = vmatmul.f32.gmra.mxu0 %v1878
      %v6352 = vpop.f32.mrf.mxu0
      %v6353 = vadd.f32 %v1842, %v6352
      %6354 = vmatmul.f32.gmra.mxu0 %v1881
      %v6355 = vpop.f32.mrf.mxu0
      %v6356 = vadd.f32 %v1847, %v6355
      %6357 = vmatmul.f32.gmra.mxu0 %v1884
      %v6358 = vpop.f32.mrf.mxu0
      %v6359 = vadd.f32 %v1852, %v6358
      %6360 = vmatmul.f32.gmra.mxu0 %v1887
      %v6361 = vpop.f32.mrf.mxu0
      %v6362 = vadd.f32 %v1857, %v6361
      %6363 = vmatmul.f32.gmra.mxu0 %v1890
      %v6364 = vpop.f32.mrf.mxu0
      %v6365 = vadd.f32 %v1862, %v6364
      %6366 = vdwg.mxu0
      %6367 = vmatpush.msra.mxu0 0.0
      %6368 = vmatpush.msra.mxu0 0.0
      %6369 = vmatpush.msra.mxu0 0.0
      %6370 = vmatpush.msra.mxu0 0.0
      %6371 = vmatpush.msra.mxu0 0.0
      %6372 = vmatpush.msra.mxu0 0.0
      %6373 = vmatpush.msra.mxu0 0.0
      %6374 = vmatpush.msra.mxu0 0.0
      %6375 = vmatpush.msra.mxu0 0.0
      %6376 = vmatpush.msra.mxu0 0.0
      %6377 = vmatpush.msra.mxu0 0.0
      %6378 = vmatpush.msra.mxu0 0.0
      %6379 = vmatpush.msra.mxu0 %v6277
      %6380 = vmatpush.msra.mxu0 %v6273
      %6381 = vmatpush.msra.mxu0 %v6269
      %6382 = vmatpush.msra.mxu0 %v6265
      %6383 = vmatmul.f32.gmra.mxu0 %v1866
      %v6384 = vpop.f32.mrf.mxu0
      %v6385 = vadd.f32 %v1822, %v6384
      %6386 = vmatmul.f32.gmra.mxu0 %v1869
      %v6387 = vpop.f32.mrf.mxu0
      %v6388 = vadd.f32 %v1827, %v6387
      %6389 = vmatmul.f32.gmra.mxu0 %v1872
      %v6390 = vpop.f32.mrf.mxu0
      %v6391 = vadd.f32 %v1832, %v6390
      %6392 = vmatmul.f32.gmra.mxu0 %v1875
      %v6393 = vpop.f32.mrf.mxu0
      %v6394 = vadd.f32 %v1837, %v6393
      %6395 = vmatmul.f32.gmra.mxu0 %v1878
      %v6396 = vpop.f32.mrf.mxu0
      %v6397 = vadd.f32 %v1842, %v6396
      %6398 = vmatmul.f32.gmra.mxu0 %v1881
      %v6399 = vpop.f32.mrf.mxu0
      %v6400 = vadd.f32 %v1847, %v6399
      %6401 = vmatmul.f32.gmra.mxu0 %v1884
      %v6402 = vpop.f32.mrf.mxu0
      %v6403 = vadd.f32 %v1852, %v6402
      %6404 = vmatmul.f32.gmra.mxu0 %v1887
      %v6405 = vpop.f32.mrf.mxu0
      %v6406 = vadd.f32 %v1857, %v6405
      %6407 = vmatmul.f32.gmra.mxu0 %v1890
      %v6408 = vpop.f32.mrf.mxu0
      %v6409 = vadd.f32 %v1862, %v6408
      %6410 = vdwg.mxu0
      %6411 = vmatpush.msra.mxu0 0.0
      %6412 = vmatpush.msra.mxu0 0.0
      %6413 = vmatpush.msra.mxu0 0.0
      %6414 = vmatpush.msra.mxu0 0.0
      %6415 = vmatpush.msra.mxu0 0.0
      %6416 = vmatpush.msra.mxu0 0.0
      %6417 = vmatpush.msra.mxu0 0.0
      %6418 = vmatpush.msra.mxu0 0.0
      %6419 = vmatpush.msra.mxu0 0.0
      %6420 = vmatpush.msra.mxu0 0.0
      %6421 = vmatpush.msra.mxu0 0.0
      %6422 = vmatpush.msra.mxu0 0.0
      %6423 = vmatpush.msra.mxu0 %v6278
      %6424 = vmatpush.msra.mxu0 %v6274
      %6425 = vmatpush.msra.mxu0 %v6270
      %6426 = vmatpush.msra.mxu0 %v6266
      %6427 = vmatmul.f32.gmra.mxu0 %v1866
      %v6428 = vpop.f32.mrf.mxu0
      %v6429 = vadd.f32 %v1822, %v6428
      %6430 = vmatmul.f32.gmra.mxu0 %v1869
      %v6431 = vpop.f32.mrf.mxu0
      %v6432 = vadd.f32 %v1827, %v6431
      %6433 = vmatmul.f32.gmra.mxu0 %v1872
      %v6434 = vpop.f32.mrf.mxu0
      %v6435 = vadd.f32 %v1832, %v6434
      %6436 = vmatmul.f32.gmra.mxu0 %v1875
      %v6437 = vpop.f32.mrf.mxu0
      %v6438 = vadd.f32 %v1837, %v6437
      %6439 = vmatmul.f32.gmra.mxu0 %v1878
      %v6440 = vpop.f32.mrf.mxu0
      %v6441 = vadd.f32 %v1842, %v6440
      %6442 = vmatmul.f32.gmra.mxu0 %v1881
      %v6443 = vpop.f32.mrf.mxu0
      %v6444 = vadd.f32 %v1847, %v6443
      %6445 = vmatmul.f32.gmra.mxu0 %v1884
      %v6446 = vpop.f32.mrf.mxu0
      %v6447 = vadd.f32 %v1852, %v6446
      %6448 = vmatmul.f32.gmra.mxu0 %v1887
      %v6449 = vpop.f32.mrf.mxu0
      %v6450 = vadd.f32 %v1857, %v6449
      %6451 = vmatmul.f32.gmra.mxu0 %v1890
      %v6452 = vpop.f32.mrf.mxu0
      %v6453 = vadd.f32 %v1862, %v6452
      %6454 = vdwg.mxu0
      %v6455 = vsel %vm2068, %v6321, -inf
      %v6456 = vsel %vm2068, %v6365, -inf
      %v6457 = vsel %vm2068, %v6409, -inf
      %v6458 = vsel %vm2068, %v6453, -inf
      %v6459 = vmax.f32 %v6455, %v6456
      %v6460 = vmax.f32 %v6457, %v6458
      %v6461 = vmax.f32 %v6459, %v6460
      %6462 = vmax.xlane.f32.xlu0 %v6461
      %v6463 = vpop.xlane.xlu0 %6462
      %v6464 = vsub.f32 %v6321, %v6463
      %v6465 = vsub.f32 %v6365, %v6463
      %v6466 = vsub.f32 %v6409, %v6463
      %v6467 = vsub.f32 %v6453, %v6463
      %v6468 = vmul.f32 %v6464, 1.442695
      %v6469 = vpow.pop %v6468
      %v6470 = vmul.f32 %v6465, 1.442695
      %v6471 = vpow.pop %v6470
      %v6472 = vmul.f32 %v6466, 1.442695
      %v6473 = vpow.pop %v6472
      %v6474 = vmul.f32 %v6467, 1.442695
      %v6475 = vpow.pop %v6474
      %v6476 = vsel %vm2068, %v6469, 0.0
      %v6477 = vsel %vm2068, %v6471, 0.0
      %v6478 = vadd.f32 %v6476, %v6477
      %v6479 = vsel %vm2068, %v6473, 0.0
      %v6480 = vadd.f32 %v6478, %v6479
      %v6481 = vsel %vm2068, %v6475, 0.0
      %v6482 = vadd.f32 %v6480, %v6481
      %6483 = vadd.xlane.f32.xlu0 %v6482
      %v6484 = vpop.xlane.xlu0 %6483
      %v6485 = vrcp.pop %v6484
      %v6486 = vmul.f32 %v6484, %v6485
      %v6487 = vsub.f32 1.0, %v6486
      %v6488 = vmul.f32 %v6485, %v6487
      %v6489 = vadd.f32 %v6485, %v6488
      %vm6490 = vweird.f32 %v6484
      %vm6491 = vweird.f32 %v6485
      %vm6492 = vmor %vm6490, %vm6491
      %v6493 = vsel %vm6492, %v6485, %v6489
      %v6494 = vand.u32 2147483647, %v6484
      %vm6495 = vcmp.eq.f32.partialorder %v6494, 8.507059e+37
      %v6496 = vand.u32 %v6484, 2147483648
      %v6497 = vor.u32 1.1754944e-38, %v6496
      %v6498 = vsel %vm6495, %v6497, %v6493
      %v6499 = vmul.f32 %v6469, %v6498
      %v6500 = vmul.f32 %v6471, %v6498
      %v6501 = vmul.f32 %v6473, %v6498
      %v6502 = vmul.f32 %v6475, %v6498
      %v6503 = vperm.slane %v6499, 0
      %v6504 = vperm.slane %v6500, 0
      %v6505 = vperm.slane %v6501, 0
      %v6506 = vperm.slane %v6502, 0
      %v6507 = vmul.f32 %v6297, %v6503
      %v6508 = vmul.f32 %v6341, %v6504
      %v6509 = vmul.f32 %v6385, %v6505
      %v6510 = vmul.f32 %v6429, %v6506
      %v6511 = vadd.f32 %v6507, %v6508
      %v6512 = vadd.f32 %v6511, %v6509
      %v6513 = vadd.f32 %v6512, %v6510
      %6514 = vadd.xlane.f32.xlu0 %v6513
      %v6515 = vpop.xlane.xlu0 %6514
      %v6516 = vperm.slane %v6499, 1
      %v6517 = vperm.slane %v6500, 1
      %v6518 = vperm.slane %v6501, 1
      %v6519 = vperm.slane %v6502, 1
      %v6520 = vmul.f32 %v6300, %v6516
      %v6521 = vmul.f32 %v6344, %v6517
      %v6522 = vmul.f32 %v6388, %v6518
      %v6523 = vmul.f32 %v6432, %v6519
      %v6524 = vadd.f32 %v6520, %v6521
      %v6525 = vadd.f32 %v6524, %v6522
      %v6526 = vadd.f32 %v6525, %v6523
      %6527 = vadd.xlane.f32.xlu0 %v6526
      %v6528 = vpop.xlane.xlu0 %6527
      %v6529 = vperm.slane %v6499, 2
      %v6530 = vperm.slane %v6500, 2
      %v6531 = vperm.slane %v6501, 2
      %v6532 = vperm.slane %v6502, 2
      %v6533 = vmul.f32 %v6303, %v6529
      %v6534 = vmul.f32 %v6347, %v6530
      %v6535 = vmul.f32 %v6391, %v6531
      %v6536 = vmul.f32 %v6435, %v6532
      %v6537 = vadd.f32 %v6533, %v6534
      %v6538 = vadd.f32 %v6537, %v6535
      %v6539 = vadd.f32 %v6538, %v6536
      %6540 = vadd.xlane.f32.xlu0 %v6539
      %v6541 = vpop.xlane.xlu0 %6540
      %v6542 = vperm.slane %v6499, 3
      %v6543 = vperm.slane %v6500, 3
      %v6544 = vperm.slane %v6501, 3
      %v6545 = vperm.slane %v6502, 3
      %v6546 = vmul.f32 %v6306, %v6542
      %v6547 = vmul.f32 %v6350, %v6543
      %v6548 = vmul.f32 %v6394, %v6544
      %v6549 = vmul.f32 %v6438, %v6545
      %v6550 = vadd.f32 %v6546, %v6547
      %v6551 = vadd.f32 %v6550, %v6548
      %v6552 = vadd.f32 %v6551, %v6549
      %6553 = vadd.xlane.f32.xlu0 %v6552
      %v6554 = vpop.xlane.xlu0 %6553
      %v6555 = vmax.f32 %v6309, 0.0
      %v6556 = vmax.f32 %v6353, 0.0
      %v6557 = vmax.f32 %v6397, 0.0
      %v6558 = vmax.f32 %v6441, 0.0
      %v6559 = vmax.f32 %v6312, 0.0
      %v6560 = vmax.f32 %v6356, 0.0
      %v6561 = vmax.f32 %v6400, 0.0
      %v6562 = vmax.f32 %v6444, 0.0
      %v6563 = vmax.f32 %v6315, 0.0
      %v6564 = vmax.f32 %v6359, 0.0
      %v6565 = vmax.f32 %v6403, 0.0
      %v6566 = vmax.f32 %v6447, 0.0
      %v6567 = vmax.f32 %v6318, 0.0
      %v6568 = vmax.f32 %v6362, 0.0
      %v6569 = vmax.f32 %v6406, 0.0
      %v6570 = vmax.f32 %v6450, 0.0
      %6572 = vset.pattern.permute.xlu0 0
      %6573 = vperm.xlu0 %6572, %v6515
      %v6574 = vpop.permute.xlu0 %6573
      %6577 = vset.pattern.permute.xlu0 0
      %6578 = vperm.xlu0 %6577, %v6528
      %v6579 = vpop.permute.xlu0 %6578
      %6582 = vset.pattern.permute.xlu0 0
      %6583 = vperm.xlu0 %6582, %v6541
      %v6584 = vpop.permute.xlu0 %6583
      %6587 = vset.pattern.permute.xlu0 0
      %6588 = vperm.xlu0 %6587, %v6554
      %v6589 = vpop.permute.xlu0 %6588
      %v6591 = vmul.f32 %v6555, %v6574
      %v6592 = vmul.f32 %v6556, %v6574
      %v6593 = vmul.f32 %v6557, %v6574
      %v6594 = vmul.f32 %v6558, %v6574
      %v6595 = vmul.f32 %v6559, %v6579
      %v6596 = vmul.f32 %v6560, %v6579
      %v6597 = vmul.f32 %v6561, %v6579
      %v6598 = vmul.f32 %v6562, %v6579
      %v6599 = vmul.f32 %v6563, %v6584
      %v6600 = vmul.f32 %v6564, %v6584
      %v6601 = vmul.f32 %v6565, %v6584
      %v6602 = vmul.f32 %v6566, %v6584
      %v6603 = vmul.f32 %v6567, %v6589
      %v6604 = vmul.f32 %v6568, %v6589
      %v6605 = vmul.f32 %v6569, %v6589
      %v6606 = vmul.f32 %v6570, %v6589
      %6607 = vmatpush.msra.mxu0 0.0
      %6608 = vmatpush.msra.mxu0 0.0
      %6609 = vmatpush.msra.mxu0 0.0
      %6610 = vmatpush.msra.mxu0 0.0
      %6611 = vmatpush.msra.mxu0 0.0
      %6612 = vmatpush.msra.mxu0 0.0
      %6613 = vmatpush.msra.mxu0 0.0
      %6614 = vmatpush.msra.mxu0 0.0
      %6615 = vmatpush.msra.mxu0 0.0
      %6616 = vmatpush.msra.mxu0 0.0
      %6617 = vmatpush.msra.mxu0 0.0
      %6618 = vmatpush.msra.mxu0 0.0
      %6619 = vmatpush.msra.mxu0 %v6603
      %6620 = vmatpush.msra.mxu0 %v6599
      %6621 = vmatpush.msra.mxu0 %v6595
      %6622 = vmatpush.msra.mxu0 %v6591
      %6623 = vmatmul.f32.gmra.mxu0 %v2242
      %v6624 = vpop.f32.mrf.mxu0
      %v6625 = vadd.f32 %v2224, %v6624
      %6626 = vmatmul.f32.gmra.mxu0 %v2245
      %v6627 = vpop.f32.mrf.mxu0
      %v6628 = vadd.f32 %v2229, %v6627
      %6629 = vmatmul.f32.gmra.mxu0 %v2248
      %v6630 = vpop.f32.mrf.mxu0
      %v6631 = vadd.f32 %v2234, %v6630
      %6632 = vmatmul.f32.gmra.mxu0 %v2251
      %v6633 = vpop.f32.mrf.mxu0
      %v6634 = vadd.f32 %v2239, %v6633
      %6635 = vdwg.mxu0
      %6636 = vmatpush.msra.mxu0 0.0
      %6637 = vmatpush.msra.mxu0 0.0
      %6638 = vmatpush.msra.mxu0 0.0
      %6639 = vmatpush.msra.mxu0 0.0
      %6640 = vmatpush.msra.mxu0 0.0
      %6641 = vmatpush.msra.mxu0 0.0
      %6642 = vmatpush.msra.mxu0 0.0
      %6643 = vmatpush.msra.mxu0 0.0
      %6644 = vmatpush.msra.mxu0 0.0
      %6645 = vmatpush.msra.mxu0 0.0
      %6646 = vmatpush.msra.mxu0 0.0
      %6647 = vmatpush.msra.mxu0 0.0
      %6648 = vmatpush.msra.mxu0 %v6604
      %6649 = vmatpush.msra.mxu0 %v6600
      %6650 = vmatpush.msra.mxu0 %v6596
      %6651 = vmatpush.msra.mxu0 %v6592
      %6652 = vmatmul.f32.gmra.mxu0 %v2242
      %v6653 = vpop.f32.mrf.mxu0
      %v6654 = vadd.f32 %v2224, %v6653
      %6655 = vmatmul.f32.gmra.mxu0 %v2245
      %v6656 = vpop.f32.mrf.mxu0
      %v6657 = vadd.f32 %v2229, %v6656
      %6658 = vmatmul.f32.gmra.mxu0 %v2248
      %v6659 = vpop.f32.mrf.mxu0
      %v6660 = vadd.f32 %v2234, %v6659
      %6661 = vmatmul.f32.gmra.mxu0 %v2251
      %v6662 = vpop.f32.mrf.mxu0
      %v6663 = vadd.f32 %v2239, %v6662
      %6664 = vdwg.mxu0
      %6665 = vmatpush.msra.mxu0 0.0
      %6666 = vmatpush.msra.mxu0 0.0
      %6667 = vmatpush.msra.mxu0 0.0
      %6668 = vmatpush.msra.mxu0 0.0
      %6669 = vmatpush.msra.mxu0 0.0
      %6670 = vmatpush.msra.mxu0 0.0
      %6671 = vmatpush.msra.mxu0 0.0
      %6672 = vmatpush.msra.mxu0 0.0
      %6673 = vmatpush.msra.mxu0 0.0
      %6674 = vmatpush.msra.mxu0 0.0
      %6675 = vmatpush.msra.mxu0 0.0
      %6676 = vmatpush.msra.mxu0 0.0
      %6677 = vmatpush.msra.mxu0 %v6605
      %6678 = vmatpush.msra.mxu0 %v6601
      %6679 = vmatpush.msra.mxu0 %v6597
      %6680 = vmatpush.msra.mxu0 %v6593
      %6681 = vmatmul.f32.gmra.mxu0 %v2242
      %v6682 = vpop.f32.mrf.mxu0
      %v6683 = vadd.f32 %v2224, %v6682
      %6684 = vmatmul.f32.gmra.mxu0 %v2245
      %v6685 = vpop.f32.mrf.mxu0
      %v6686 = vadd.f32 %v2229, %v6685
      %6687 = vmatmul.f32.gmra.mxu0 %v2248
      %v6688 = vpop.f32.mrf.mxu0
      %v6689 = vadd.f32 %v2234, %v6688
      %6690 = vmatmul.f32.gmra.mxu0 %v2251
      %v6691 = vpop.f32.mrf.mxu0
      %v6692 = vadd.f32 %v2239, %v6691
      %6693 = vdwg.mxu0
      %6694 = vmatpush.msra.mxu0 0.0
      %6695 = vmatpush.msra.mxu0 0.0
      %6696 = vmatpush.msra.mxu0 0.0
      %6697 = vmatpush.msra.mxu0 0.0
      %6698 = vmatpush.msra.mxu0 0.0
      %6699 = vmatpush.msra.mxu0 0.0
      %6700 = vmatpush.msra.mxu0 0.0
      %6701 = vmatpush.msra.mxu0 0.0
      %6702 = vmatpush.msra.mxu0 0.0
      %6703 = vmatpush.msra.mxu0 0.0
      %6704 = vmatpush.msra.mxu0 0.0
      %6705 = vmatpush.msra.mxu0 0.0
      %6706 = vmatpush.msra.mxu0 %v6606
      %6707 = vmatpush.msra.mxu0 %v6602
      %6708 = vmatpush.msra.mxu0 %v6598
      %6709 = vmatpush.msra.mxu0 %v6594
      %6710 = vmatmul.f32.gmra.mxu0 %v2242
      %v6711 = vpop.f32.mrf.mxu0
      %v6712 = vadd.f32 %v2224, %v6711
      %6713 = vmatmul.f32.gmra.mxu0 %v2245
      %v6714 = vpop.f32.mrf.mxu0
      %v6715 = vadd.f32 %v2229, %v6714
      %6716 = vmatmul.f32.gmra.mxu0 %v2248
      %v6717 = vpop.f32.mrf.mxu0
      %v6718 = vadd.f32 %v2234, %v6717
      %6719 = vmatmul.f32.gmra.mxu0 %v2251
      %v6720 = vpop.f32.mrf.mxu0
      %v6721 = vadd.f32 %v2239, %v6720
      %6722 = vdwg.mxu0
      %v6723 = vmul.f32 %v6625, 0.5
      %v6724 = vmul.f32 %v6654, 0.5
      %v6725 = vmul.f32 %v6683, 0.5
      %v6726 = vmul.f32 %v6712, 0.5
      %v6727 = vmul.f32 %v6628, 0.5
      %v6728 = vmul.f32 %v6657, 0.5
      %v6729 = vmul.f32 %v6686, 0.5
      %v6730 = vmul.f32 %v6715, 0.5
      %v6731 = vmul.f32 %v6631, 0.5
      %v6732 = vmul.f32 %v6660, 0.5
      %v6733 = vmul.f32 %v6689, 0.5
      %v6734 = vmul.f32 %v6718, 0.5
      %v6735 = vmul.f32 %v6634, 0.5
      %v6736 = vmul.f32 %v6663, 0.5
      %v6737 = vmul.f32 %v6692, 0.5
      %v6738 = vmul.f32 %v6721, 0.5
      %v6739 = vmul.f32 %v6059, 0.5
      %v6740 = vmul.f32 %v6060, 0.5
      %v6741 = vmul.f32 %v6061, 0.5
      %v6742 = vmul.f32 %v6062, 0.5
      %v6743 = vmul.f32 %v6063, 0.5
      %v6744 = vmul.f32 %v6064, 0.5
      %v6745 = vmul.f32 %v6065, 0.5
      %v6746 = vmul.f32 %v6066, 0.5
      %v6747 = vmul.f32 %v6067, 0.5
      %v6748 = vmul.f32 %v6068, 0.5
      %v6749 = vmul.f32 %v6069, 0.5
      %v6750 = vmul.f32 %v6070, 0.5
      %v6751 = vmul.f32 %v6071, 0.5
      %v6752 = vmul.f32 %v6072, 0.5
      %v6753 = vmul.f32 %v6073, 0.5
      %v6754 = vmul.f32 %v6074, 0.5
      %v6755 = vadd.f32 %v6723, %v6739
      %v6756 = vadd.f32 %v6724, %v6740
      %v6757 = vadd.f32 %v6725, %v6741
      %v6758 = vadd.f32 %v6726, %v6742
      %v6759 = vadd.f32 %v6727, %v6743
      %v6760 = vadd.f32 %v6728, %v6744
      %v6761 = vadd.f32 %v6729, %v6745
      %v6762 = vadd.f32 %v6730, %v6746
      %v6763 = vadd.f32 %v6731, %v6747
      %v6764 = vadd.f32 %v6732, %v6748
      %v6765 = vadd.f32 %v6733, %v6749
      %v6766 = vadd.f32 %v6734, %v6750
      %v6767 = vadd.f32 %v6735, %v6751
      %v6768 = vadd.f32 %v6736, %v6752
      %v6769 = vadd.f32 %v6737, %v6753
      %v6770 = vadd.f32 %v6738, %v6754
      %v6771 = vadd.f32 %v6755, %v6759
      %v6772 = vadd.f32 %v6771, %v6763
      %v6773 = vadd.f32 %v6772, %v6767
      %v6774 = vrot.slane %v6773, 4
      %v6775 = vadd.f32 %v6773, %v6774
      %v6776 = vrot.slane %v6775, 2
      %v6777 = vadd.f32 %v6775, %v6776
      %v6778 = vrot.slane %v6777, 1
      %v6779 = vadd.f32 %v6777, %v6778
      %v6780 = vadd.f32 %v6756, %v6760
      %v6781 = vadd.f32 %v6780, %v6764
      %v6782 = vadd.f32 %v6781, %v6768
      %v6783 = vrot.slane %v6782, 4
      %v6784 = vadd.f32 %v6782, %v6783
      %v6785 = vrot.slane %v6784, 2
      %v6786 = vadd.f32 %v6784, %v6785
      %v6787 = vrot.slane %v6786, 1
      %v6788 = vadd.f32 %v6786, %v6787
      %v6789 = vadd.f32 %v6757, %v6761
      %v6790 = vadd.f32 %v6789, %v6765
      %v6791 = vadd.f32 %v6790, %v6769
      %v6792 = vrot.slane %v6791, 4
      %v6793 = vadd.f32 %v6791, %v6792
      %v6794 = vrot.slane %v6793, 2
      %v6795 = vadd.f32 %v6793, %v6794
      %v6796 = vrot.slane %v6795, 1
      %v6797 = vadd.f32 %v6795, %v6796
      %v6798 = vadd.f32 %v6758, %v6762
      %v6799 = vadd.f32 %v6798, %v6766
      %v6800 = vadd.f32 %v6799, %v6770
      %v6801 = vrot.slane %v6800, 4
      %v6802 = vadd.f32 %v6800, %v6801
      %v6803 = vrot.slane %v6802, 2
      %v6804 = vadd.f32 %v6802, %v6803
      %v6805 = vrot.slane %v6804, 1
      %v6806 = vadd.f32 %v6804, %v6805
      %v6807 = vmul.f32 %v6779, %v1610
      %v6808 = vmul.f32 %v6788, %v1610
      %v6809 = vmul.f32 %v6797, %v1610
      %v6810 = vmul.f32 %v6806, %v1610
      %v6811 = vsub.f32 %v6755, %v6807
      %v6812 = vsub.f32 %v6756, %v6808
      %v6813 = vsub.f32 %v6757, %v6809
      %v6814 = vsub.f32 %v6758, %v6810
      %v6815 = vsub.f32 %v6759, %v6807
      %v6816 = vsub.f32 %v6760, %v6808
      %v6817 = vsub.f32 %v6761, %v6809
      %v6818 = vsub.f32 %v6762, %v6810
      %v6819 = vsub.f32 %v6763, %v6807
      %v6820 = vsub.f32 %v6764, %v6808
      %v6821 = vsub.f32 %v6765, %v6809
      %v6822 = vsub.f32 %v6766, %v6810
      %v6823 = vsub.f32 %v6767, %v6807
      %v6824 = vsub.f32 %v6768, %v6808
      %v6825 = vsub.f32 %v6769, %v6809
      %v6826 = vsub.f32 %v6770, %v6810
      %v6827 = vmul.f32 %v6811, %v6811
      %v6828 = vmul.f32 %v6812, %v6812
      %v6829 = vmul.f32 %v6813, %v6813
      %v6830 = vmul.f32 %v6814, %v6814
      %v6831 = vmul.f32 %v6815, %v6815
      %v6832 = vmul.f32 %v6816, %v6816
      %v6833 = vmul.f32 %v6817, %v6817
      %v6834 = vmul.f32 %v6818, %v6818
      %v6835 = vmul.f32 %v6819, %v6819
      %v6836 = vmul.f32 %v6820, %v6820
      %v6837 = vmul.f32 %v6821, %v6821
      %v6838 = vmul.f32 %v6822, %v6822
      %v6839 = vmul.f32 %v6823, %v6823
      %v6840 = vmul.f32 %v6824, %v6824
      %v6841 = vmul.f32 %v6825, %v6825
      %v6842 = vmul.f32 %v6826, %v6826
      %v6843 = vadd.f32 %v6827, %v6831
      %v6844 = vadd.f32 %v6843, %v6835
      %v6845 = vadd.f32 %v6844, %v6839
      %v6846 = vrot.slane %v6845, 4
      %v6847 = vadd.f32 %v6845, %v6846
      %v6848 = vrot.slane %v6847, 2
      %v6849 = vadd.f32 %v6847, %v6848
      %v6850 = vrot.slane %v6849, 1
      %v6851 = vadd.f32 %v6849, %v6850
      %v6852 = vadd.f32 %v6828, %v6832
      %v6853 = vadd.f32 %v6852, %v6836
      %v6854 = vadd.f32 %v6853, %v6840
      %v6855 = vrot.slane %v6854, 4
      %v6856 = vadd.f32 %v6854, %v6855
      %v6857 = vrot.slane %v6856, 2
      %v6858 = vadd.f32 %v6856, %v6857
      %v6859 = vrot.slane %v6858, 1
      %v6860 = vadd.f32 %v6858, %v6859
      %v6861 = vadd.f32 %v6829, %v6833
      %v6862 = vadd.f32 %v6861, %v6837
      %v6863 = vadd.f32 %v6862, %v6841
      %v6864 = vrot.slane %v6863, 4
      %v6865 = vadd.f32 %v6863, %v6864
      %v6866 = vrot.slane %v6865, 2
      %v6867 = vadd.f32 %v6865, %v6866
      %v6868 = vrot.slane %v6867, 1
      %v6869 = vadd.f32 %v6867, %v6868
      %v6870 = vadd.f32 %v6830, %v6834
      %v6871 = vadd.f32 %v6870, %v6838
      %v6872 = vadd.f32 %v6871, %v6842
      %v6873 = vrot.slane %v6872, 4
      %v6874 = vadd.f32 %v6872, %v6873
      %v6875 = vrot.slane %v6874, 2
      %v6876 = vadd.f32 %v6874, %v6875
      %v6877 = vrot.slane %v6876, 1
      %v6878 = vadd.f32 %v6876, %v6877
      %v6879 = vmul.f32 %v6851, %v1610
      %v6880 = vmul.f32 %v6860, %v1610
      %v6881 = vmul.f32 %v6869, %v1610
      %v6882 = vmul.f32 %v6878, %v1610
      %v6883 = vadd.f32 %v6879, 1e-05
      %v6884 = vadd.f32 %v6880, 1e-05
      %v6885 = vadd.f32 %v6881, 1e-05
      %v6886 = vadd.f32 %v6882, 1e-05
      %v6887 = vrsqrt.pop %v6883
      %v6888 = vmul.f32 %v6887, %v6883
      %v6889 = vmul.f32 %v6888, %v6887
      %v6890 = vmul.f32 0.5, %v6889
      %v6891 = vsub.f32 1.5, %v6890
      %v6892 = vmul.f32 %v6887, %v6891
      %vm6893 = vweird.f32 %v6883
      %vm6894 = vweird.f32 %v6887
      %vm6895 = vmor %vm6893, %vm6894
      %v6896 = vsel %vm6895, %v6887, %v6892
      %v6897 = vrsqrt.pop %v6884
      %v6898 = vmul.f32 %v6897, %v6884
      %v6899 = vmul.f32 %v6898, %v6897
      %v6900 = vmul.f32 0.5, %v6899
      %v6901 = vsub.f32 1.5, %v6900
      %v6902 = vmul.f32 %v6897, %v6901
      %vm6903 = vweird.f32 %v6884
      %vm6904 = vweird.f32 %v6897
      %vm6905 = vmor %vm6903, %vm6904
      %v6906 = vsel %vm6905, %v6897, %v6902
      %v6907 = vrsqrt.pop %v6885
      %v6908 = vmul.f32 %v6907, %v6885
      %v6909 = vmul.f32 %v6908, %v6907
      %v6910 = vmul.f32 0.5, %v6909
      %v6911 = vsub.f32 1.5, %v6910
      %v6912 = vmul.f32 %v6907, %v6911
      %vm6913 = vweird.f32 %v6885
      %vm6914 = vweird.f32 %v6907
      %vm6915 = vmor %vm6913, %vm6914
      %v6916 = vsel %vm6915, %v6907, %v6912
      %v6917 = vrsqrt.pop %v6886
      %v6918 = vmul.f32 %v6917, %v6886
      %v6919 = vmul.f32 %v6918, %v6917
      %v6920 = vmul.f32 0.5, %v6919
      %v6921 = vsub.f32 1.5, %v6920
      %v6922 = vmul.f32 %v6917, %v6921
      %vm6923 = vweird.f32 %v6886
      %vm6924 = vweird.f32 %v6917
      %vm6925 = vmor %vm6923, %vm6924
      %v6926 = vsel %vm6925, %v6917, %v6922
      %v6927 = vmul.f32 %v6811, %v6896
      %v6928 = vmul.f32 %v6812, %v6906
      %v6929 = vmul.f32 %v6813, %v6916
      %v6930 = vmul.f32 %v6814, %v6926
      %v6931 = vmul.f32 %v6815, %v6896
      %v6932 = vmul.f32 %v6816, %v6906
      %v6933 = vmul.f32 %v6817, %v6916
      %v6934 = vmul.f32 %v6818, %v6926
      %v6935 = vmul.f32 %v6819, %v6896
      %v6936 = vmul.f32 %v6820, %v6906
      %v6937 = vmul.f32 %v6821, %v6916
      %v6938 = vmul.f32 %v6822, %v6926
      %v6939 = vmul.f32 %v6823, %v6896
      %v6940 = vmul.f32 %v6824, %v6906
      %v6941 = vmul.f32 %v6825, %v6916
      %v6942 = vmul.f32 %v6826, %v6926
      %v6943 = vmul.f32 %v6927, %v2592
      %v6944 = vmul.f32 %v6928, %v2592
      %v6945 = vmul.f32 %v6929, %v2592
      %v6946 = vmul.f32 %v6930, %v2592
      %v6947 = vmul.f32 %v6931, %v2597
      %v6948 = vmul.f32 %v6932, %v2597
      %v6949 = vmul.f32 %v6933, %v2597
      %v6950 = vmul.f32 %v6934, %v2597
      %v6951 = vmul.f32 %v6935, %v2602
      %v6952 = vmul.f32 %v6936, %v2602
      %v6953 = vmul.f32 %v6937, %v2602
      %v6954 = vmul.f32 %v6938, %v2602
      %v6955 = vmul.f32 %v6939, %v2607
      %v6956 = vmul.f32 %v6940, %v2607
      %v6957 = vmul.f32 %v6941, %v2607
      %v6958 = vmul.f32 %v6942, %v2607
      %v6959 = vadd.f32 %v6943, %v2628
      %v6960 = vadd.f32 %v6944, %v2628
      %v6961 = vadd.f32 %v6945, %v2628
      %v6962 = vadd.f32 %v6946, %v2628
      %v6963 = vadd.f32 %v6947, %v2633
      %v6964 = vadd.f32 %v6948, %v2633
      %v6965 = vadd.f32 %v6949, %v2633
      %v6966 = vadd.f32 %v6950, %v2633
      %v6967 = vadd.f32 %v6951, %v2638
      %v6968 = vadd.f32 %v6952, %v2638
      %v6969 = vadd.f32 %v6953, %v2638
      %v6970 = vadd.f32 %v6954, %v2638
      %v6971 = vadd.f32 %v6955, %v2643
      %v6972 = vadd.f32 %v6956, %v2643
      %v6973 = vadd.f32 %v6957, %v2643
      %v6974 = vadd.f32 %v6958, %v2643
      %6975 = vmatpush.msra.mxu0 0.0
      %6976 = vmatpush.msra.mxu0 0.0
      %6977 = vmatpush.msra.mxu0 0.0
      %6978 = vmatpush.msra.mxu0 0.0
      %6979 = vmatpush.msra.mxu0 0.0
      %6980 = vmatpush.msra.mxu0 0.0
      %6981 = vmatpush.msra.mxu0 0.0
      %6982 = vmatpush.msra.mxu0 0.0
      %6983 = vmatpush.msra.mxu0 0.0
      %6984 = vmatpush.msra.mxu0 0.0
      %6985 = vmatpush.msra.mxu0 0.0
      %6986 = vmatpush.msra.mxu0 0.0
      %6987 = vmatpush.msra.mxu0 %v6971
      %6988 = vmatpush.msra.mxu0 %v6967
      %6989 = vmatpush.msra.mxu0 %v6963
      %6990 = vmatpush.msra.mxu0 %v6959
      %6991 = vmatmul.f32.gmra.mxu0 %v2667
      %v6992 = vpop.f32.mrf.mxu0
      %v6993 = vadd.f32 %v2664, %v6992
      %6994 = vdwg.mxu0
      %6995 = vmatpush.msra.mxu0 0.0
      %6996 = vmatpush.msra.mxu0 0.0
      %6997 = vmatpush.msra.mxu0 0.0
      %6998 = vmatpush.msra.mxu0 0.0
      %6999 = vmatpush.msra.mxu0 0.0
      %7000 = vmatpush.msra.mxu0 0.0
      %7001 = vmatpush.msra.mxu0 0.0
      %7002 = vmatpush.msra.mxu0 0.0
      %7003 = vmatpush.msra.mxu0 0.0
      %7004 = vmatpush.msra.mxu0 0.0
      %7005 = vmatpush.msra.mxu0 0.0
      %7006 = vmatpush.msra.mxu0 0.0
      %7007 = vmatpush.msra.mxu0 %v6972
      %7008 = vmatpush.msra.mxu0 %v6968
      %7009 = vmatpush.msra.mxu0 %v6964
      %7010 = vmatpush.msra.mxu0 %v6960
      %7011 = vmatmul.f32.gmra.mxu0 %v2667
      %v7012 = vpop.f32.mrf.mxu0
      %v7013 = vadd.f32 %v2664, %v7012
      %7014 = vdwg.mxu0
      %7015 = vmatpush.msra.mxu0 0.0
      %7016 = vmatpush.msra.mxu0 0.0
      %7017 = vmatpush.msra.mxu0 0.0
      %7018 = vmatpush.msra.mxu0 0.0
      %7019 = vmatpush.msra.mxu0 0.0
      %7020 = vmatpush.msra.mxu0 0.0
      %7021 = vmatpush.msra.mxu0 0.0
      %7022 = vmatpush.msra.mxu0 0.0
      %7023 = vmatpush.msra.mxu0 0.0
      %7024 = vmatpush.msra.mxu0 0.0
      %7025 = vmatpush.msra.mxu0 0.0
      %7026 = vmatpush.msra.mxu0 0.0
      %7027 = vmatpush.msra.mxu0 %v6973
      %7028 = vmatpush.msra.mxu0 %v6969
      %7029 = vmatpush.msra.mxu0 %v6965
      %7030 = vmatpush.msra.mxu0 %v6961
      %7031 = vmatmul.f32.gmra.mxu0 %v2667
      %v7032 = vpop.f32.mrf.mxu0
      %v7033 = vadd.f32 %v2664, %v7032
      %7034 = vdwg.mxu0
      %7035 = vmatpush.msra.mxu0 0.0
      %7036 = vmatpush.msra.mxu0 0.0
      %7037 = vmatpush.msra.mxu0 0.0
      %7038 = vmatpush.msra.mxu0 0.0
      %7039 = vmatpush.msra.mxu0 0.0
      %7040 = vmatpush.msra.mxu0 0.0
      %7041 = vmatpush.msra.mxu0 0.0
      %7042 = vmatpush.msra.mxu0 0.0
      %7043 = vmatpush.msra.mxu0 0.0
      %7044 = vmatpush.msra.mxu0 0.0
      %7045 = vmatpush.msra.mxu0 0.0
      %7046 = vmatpush.msra.mxu0 0.0
      %7047 = vmatpush.msra.mxu0 %v6974
      %7048 = vmatpush.msra.mxu0 %v6970
      %7049 = vmatpush.msra.mxu0 %v6966
      %7050 = vmatpush.msra.mxu0 %v6962
      %7051 = vmatmul.f32.gmra.mxu0 %v2667
      %v7052 = vpop.f32.mrf.mxu0
      %v7053 = vadd.f32 %v2664, %v7052
      %7054 = vdwg.mxu0
      %vm7055 = vcmp.gt.f32.partialorder %v6993, 0.0
      %vm7056 = vcmp.gt.f32.partialorder %v7013, 0.0
      %vm7057 = vcmp.gt.f32.partialorder %v7033, 0.0
      %vm7058 = vcmp.gt.f32.partialorder %v7053, 0.0
      %v7059 = vmin.f32 %v6993, 0.0
      %v7060 = vmin.f32 %v7013, 0.0
      %v7061 = vmin.f32 %v7033, 0.0
      %v7062 = vmin.f32 %v7053, 0.0
      %v7063 = vmul.f32 %v7059, 1.442695
      %v7064 = vpow.pop %v7063
      %v7065 = vmul.f32 %v7060, 1.442695
      %v7066 = vpow.pop %v7065
      %v7067 = vmul.f32 %v7061, 1.442695
      %v7068 = vpow.pop %v7067
      %v7069 = vmul.f32 %v7062, 1.442695
      %v7070 = vpow.pop %v7069
      %v7071 = vsub.f32 %v7064, 1.0
      %v7072 = vsub.f32 %v7066, 1.0
      %v7073 = vsub.f32 %v7068, 1.0
      %v7074 = vsub.f32 %v7070, 1.0
      %v7075 = vsel %vm7055, %v6993, %v7071
      %v7076 = vsel %vm7056, %v7013, %v7072
      %v7077 = vsel %vm7057, %v7033, %v7073
      %v7078 = vsel %vm7058, %v7053, %v7074
      %7079 = vmatpush.msra.mxu0 0.0
      %7080 = vmatpush.msra.mxu0 0.0
      %7081 = vmatpush.msra.mxu0 0.0
      %7082 = vmatpush.msra.mxu0 0.0
      %7083 = vmatpush.msra.mxu0 0.0
      %7084 = vmatpush.msra.mxu0 0.0
      %7085 = vmatpush.msra.mxu0 0.0
      %7086 = vmatpush.msra.mxu0 0.0
      %7087 = vmatpush.msra.mxu0 0.0
      %7088 = vmatpush.msra.mxu0 0.0
      %7089 = vmatpush.msra.mxu0 0.0
      %7090 = vmatpush.msra.mxu0 0.0
      %7091 = vmatpush.msra.mxu0 0.0
      %7092 = vmatpush.msra.mxu0 0.0
      %7093 = vmatpush.msra.mxu0 0.0
      %7094 = vmatpush.msra.mxu0 %v7075
      %7095 = vmatmul.f32.gmra.mxu0 %v2795
      %v7096 = vpop.f32.mrf.mxu0
      %v7097 = vadd.f32 %v2776, %v7096
      %7098 = vmatmul.f32.gmra.mxu0 %v2798
      %v7099 = vpop.f32.mrf.mxu0
      %v7100 = vadd.f32 %v2781, %v7099
      %7101 = vmatmul.f32.gmra.mxu0 %v2801
      %v7102 = vpop.f32.mrf.mxu0
      %v7103 = vadd.f32 %v2786, %v7102
      %7104 = vmatmul.f32.gmra.mxu0 %v2804
      %v7105 = vpop.f32.mrf.mxu0
      %v7106 = vadd.f32 %v2791, %v7105
      %7107 = vdwg.mxu0
      %7108 = vmatpush.msra.mxu0 0.0
      %7109 = vmatpush.msra.mxu0 0.0
      %7110 = vmatpush.msra.mxu0 0.0
      %7111 = vmatpush.msra.mxu0 0.0
      %7112 = vmatpush.msra.mxu0 0.0
      %7113 = vmatpush.msra.mxu0 0.0
      %7114 = vmatpush.msra.mxu0 0.0
      %7115 = vmatpush.msra.mxu0 0.0
      %7116 = vmatpush.msra.mxu0 0.0
      %7117 = vmatpush.msra.mxu0 0.0
      %7118 = vmatpush.msra.mxu0 0.0
      %7119 = vmatpush.msra.mxu0 0.0
      %7120 = vmatpush.msra.mxu0 0.0
      %7121 = vmatpush.msra.mxu0 0.0
      %7122 = vmatpush.msra.mxu0 0.0
      %7123 = vmatpush.msra.mxu0 %v7076
      %7124 = vmatmul.f32.gmra.mxu0 %v2795
      %v7125 = vpop.f32.mrf.mxu0
      %v7126 = vadd.f32 %v2776, %v7125
      %7127 = vmatmul.f32.gmra.mxu0 %v2798
      %v7128 = vpop.f32.mrf.mxu0
      %v7129 = vadd.f32 %v2781, %v7128
      %7130 = vmatmul.f32.gmra.mxu0 %v2801
      %v7131 = vpop.f32.mrf.mxu0
      %v7132 = vadd.f32 %v2786, %v7131
      %7133 = vmatmul.f32.gmra.mxu0 %v2804
      %v7134 = vpop.f32.mrf.mxu0
      %v7135 = vadd.f32 %v2791, %v7134
      %7136 = vdwg.mxu0
      %7137 = vmatpush.msra.mxu0 0.0
      %7138 = vmatpush.msra.mxu0 0.0
      %7139 = vmatpush.msra.mxu0 0.0
      %7140 = vmatpush.msra.mxu0 0.0
      %7141 = vmatpush.msra.mxu0 0.0
      %7142 = vmatpush.msra.mxu0 0.0
      %7143 = vmatpush.msra.mxu0 0.0
      %7144 = vmatpush.msra.mxu0 0.0
      %7145 = vmatpush.msra.mxu0 0.0
      %7146 = vmatpush.msra.mxu0 0.0
      %7147 = vmatpush.msra.mxu0 0.0
      %7148 = vmatpush.msra.mxu0 0.0
      %7149 = vmatpush.msra.mxu0 0.0
      %7150 = vmatpush.msra.mxu0 0.0
      %7151 = vmatpush.msra.mxu0 0.0
      %7152 = vmatpush.msra.mxu0 %v7077
      %7153 = vmatmul.f32.gmra.mxu0 %v2795
      %v7154 = vpop.f32.mrf.mxu0
      %v7155 = vadd.f32 %v2776, %v7154
      %7156 = vmatmul.f32.gmra.mxu0 %v2798
      %v7157 = vpop.f32.mrf.mxu0
      %v7158 = vadd.f32 %v2781, %v7157
      %7159 = vmatmul.f32.gmra.mxu0 %v2801
      %v7160 = vpop.f32.mrf.mxu0
      %v7161 = vadd.f32 %v2786, %v7160
      %7162 = vmatmul.f32.gmra.mxu0 %v2804
      %v7163 = vpop.f32.mrf.mxu0
      %v7164 = vadd.f32 %v2791, %v7163
      %7165 = vdwg.mxu0
      %7166 = vmatpush.msra.mxu0 0.0
      %7167 = vmatpush.msra.mxu0 0.0
      %7168 = vmatpush.msra.mxu0 0.0
      %7169 = vmatpush.msra.mxu0 0.0
      %7170 = vmatpush.msra.mxu0 0.0
      %7171 = vmatpush.msra.mxu0 0.0
      %7172 = vmatpush.msra.mxu0 0.0
      %7173 = vmatpush.msra.mxu0 0.0
      %7174 = vmatpush.msra.mxu0 0.0
      %7175 = vmatpush.msra.mxu0 0.0
      %7176 = vmatpush.msra.mxu0 0.0
      %7177 = vmatpush.msra.mxu0 0.0
      %7178 = vmatpush.msra.mxu0 0.0
      %7179 = vmatpush.msra.mxu0 0.0
      %7180 = vmatpush.msra.mxu0 0.0
      %7181 = vmatpush.msra.mxu0 %v7078
      %7182 = vmatmul.f32.gmra.mxu0 %v2795
      %v7183 = vpop.f32.mrf.mxu0
      %v7184 = vadd.f32 %v2776, %v7183
      %7185 = vmatmul.f32.gmra.mxu0 %v2798
      %v7186 = vpop.f32.mrf.mxu0
      %v7187 = vadd.f32 %v2781, %v7186
      %7188 = vmatmul.f32.gmra.mxu0 %v2801
      %v7189 = vpop.f32.mrf.mxu0
      %v7190 = vadd.f32 %v2786, %v7189
      %7191 = vmatmul.f32.gmra.mxu0 %v2804
      %v7192 = vpop.f32.mrf.mxu0
      %v7193 = vadd.f32 %v2791, %v7192
      %7194 = vdwg.mxu0
      %v7195 = vmul.f32 %v7097, 0.5
      %v7196 = vmul.f32 %v7126, 0.5
      %v7197 = vmul.f32 %v7155, 0.5
      %v7198 = vmul.f32 %v7184, 0.5
      %v7199 = vmul.f32 %v7100, 0.5
      %v7200 = vmul.f32 %v7129, 0.5
      %v7201 = vmul.f32 %v7158, 0.5
      %v7202 = vmul.f32 %v7187, 0.5
      %v7203 = vmul.f32 %v7103, 0.5
      %v7204 = vmul.f32 %v7132, 0.5
      %v7205 = vmul.f32 %v7161, 0.5
      %v7206 = vmul.f32 %v7190, 0.5
      %v7207 = vmul.f32 %v7106, 0.5
      %v7208 = vmul.f32 %v7135, 0.5
      %v7209 = vmul.f32 %v7164, 0.5
      %v7210 = vmul.f32 %v7193, 0.5
      %v7211 = vmul.f32 %v6755, 0.5
      %v7212 = vmul.f32 %v6756, 0.5
      %v7213 = vmul.f32 %v6757, 0.5
      %v7214 = vmul.f32 %v6758, 0.5
      %v7215 = vmul.f32 %v6759, 0.5
      %v7216 = vmul.f32 %v6760, 0.5
      %v7217 = vmul.f32 %v6761, 0.5
      %v7218 = vmul.f32 %v6762, 0.5
      %v7219 = vmul.f32 %v6763, 0.5
      %v7220 = vmul.f32 %v6764, 0.5
      %v7221 = vmul.f32 %v6765, 0.5
      %v7222 = vmul.f32 %v6766, 0.5
      %v7223 = vmul.f32 %v6767, 0.5
      %v7224 = vmul.f32 %v6768, 0.5
      %v7225 = vmul.f32 %v6769, 0.5
      %v7226 = vmul.f32 %v6770, 0.5
      %v7227 = vadd.f32 %v7195, %v7211
      %v7228 = vadd.f32 %v7196, %v7212
      %v7229 = vadd.f32 %v7197, %v7213
      %v7230 = vadd.f32 %v7198, %v7214
      %v7231 = vadd.f32 %v7199, %v7215
      %v7232 = vadd.f32 %v7200, %v7216
      %v7233 = vadd.f32 %v7201, %v7217
      %v7234 = vadd.f32 %v7202, %v7218
      %v7235 = vadd.f32 %v7203, %v7219
      %v7236 = vadd.f32 %v7204, %v7220
      %v7237 = vadd.f32 %v7205, %v7221
      %v7238 = vadd.f32 %v7206, %v7222
      %v7239 = vadd.f32 %v7207, %v7223
      %v7240 = vadd.f32 %v7208, %v7224
      %v7241 = vadd.f32 %v7209, %v7225
      %v7242 = vadd.f32 %v7210, %v7226
      %7243 = vmatpush.msra.mxu0 0.0
      %7244 = vmatpush.msra.mxu0 0.0
      %7245 = vmatpush.msra.mxu0 0.0
      %7246 = vmatpush.msra.mxu0 0.0
      %7247 = vmatpush.msra.mxu0 0.0
      %7248 = vmatpush.msra.mxu0 0.0
      %7249 = vmatpush.msra.mxu0 0.0
      %7250 = vmatpush.msra.mxu0 0.0
      %7251 = vmatpush.msra.mxu0 0.0
      %7252 = vmatpush.msra.mxu0 0.0
      %7253 = vmatpush.msra.mxu0 0.0
      %7254 = vmatpush.msra.mxu0 0.0
      %7255 = vmatpush.msra.mxu0 %v7239
      %7256 = vmatpush.msra.mxu0 %v7235
      %7257 = vmatpush.msra.mxu0 %v7231
      %7258 = vmatpush.msra.mxu0 %v7227
      %7259 = vmatmul.f32.gmra.mxu0 %v3011
      %v7260 = vpop.f32.mrf.mxu0
      %v7261 = vadd.f32 %v2973, %v7260
      %7262 = vmatmul.f32.gmra.mxu0 %v3014
      %v7263 = vpop.f32.mrf.mxu0
      %v7264 = vadd.f32 %v2978, %v7263
      %7265 = vmatmul.f32.gmra.mxu0 %v3017
      %v7266 = vpop.f32.mrf.mxu0
      %v7267 = vadd.f32 %v2983, %v7266
      %7268 = vmatmul.f32.gmra.mxu0 %v3020
      %v7269 = vpop.f32.mrf.mxu0
      %v7270 = vadd.f32 %v2988, %v7269
      %7271 = vmatmul.f32.gmra.mxu0 %v3023
      %v7272 = vpop.f32.mrf.mxu0
      %v7273 = vadd.f32 %v2993, %v7272
      %7274 = vmatmul.f32.gmra.mxu0 %v3026
      %v7275 = vpop.f32.mrf.mxu0
      %v7276 = vadd.f32 %v2998, %v7275
      %7277 = vmatmul.f32.gmra.mxu0 %v3029
      %v7278 = vpop.f32.mrf.mxu0
      %v7279 = vadd.f32 %v3003, %v7278
      %7280 = vmatmul.f32.gmra.mxu0 %v3032
      %v7281 = vpop.f32.mrf.mxu0
      %v7282 = vadd.f32 %v3008, %v7281
      %7283 = vdwg.mxu0
      %7284 = vmatpush.msra.mxu0 0.0
      %7285 = vmatpush.msra.mxu0 0.0
      %7286 = vmatpush.msra.mxu0 0.0
      %7287 = vmatpush.msra.mxu0 0.0
      %7288 = vmatpush.msra.mxu0 0.0
      %7289 = vmatpush.msra.mxu0 0.0
      %7290 = vmatpush.msra.mxu0 0.0
      %7291 = vmatpush.msra.mxu0 0.0
      %7292 = vmatpush.msra.mxu0 0.0
      %7293 = vmatpush.msra.mxu0 0.0
      %7294 = vmatpush.msra.mxu0 0.0
      %7295 = vmatpush.msra.mxu0 0.0
      %7296 = vmatpush.msra.mxu0 %v7240
      %7297 = vmatpush.msra.mxu0 %v7236
      %7298 = vmatpush.msra.mxu0 %v7232
      %7299 = vmatpush.msra.mxu0 %v7228
      %7300 = vmatmul.f32.gmra.mxu0 %v3011
      %v7301 = vpop.f32.mrf.mxu0
      %v7302 = vadd.f32 %v2973, %v7301
      %7303 = vmatmul.f32.gmra.mxu0 %v3014
      %v7304 = vpop.f32.mrf.mxu0
      %v7305 = vadd.f32 %v2978, %v7304
      %7306 = vmatmul.f32.gmra.mxu0 %v3017
      %v7307 = vpop.f32.mrf.mxu0
      %v7308 = vadd.f32 %v2983, %v7307
      %7309 = vmatmul.f32.gmra.mxu0 %v3020
      %v7310 = vpop.f32.mrf.mxu0
      %v7311 = vadd.f32 %v2988, %v7310
      %7312 = vmatmul.f32.gmra.mxu0 %v3023
      %v7313 = vpop.f32.mrf.mxu0
      %v7314 = vadd.f32 %v2993, %v7313
      %7315 = vmatmul.f32.gmra.mxu0 %v3026
      %v7316 = vpop.f32.mrf.mxu0
      %v7317 = vadd.f32 %v2998, %v7316
      %7318 = vmatmul.f32.gmra.mxu0 %v3029
      %v7319 = vpop.f32.mrf.mxu0
      %v7320 = vadd.f32 %v3003, %v7319
      %7321 = vmatmul.f32.gmra.mxu0 %v3032
      %v7322 = vpop.f32.mrf.mxu0
      %v7323 = vadd.f32 %v3008, %v7322
      %7324 = vdwg.mxu0
      %7325 = vmatpush.msra.mxu0 0.0
      %7326 = vmatpush.msra.mxu0 0.0
      %7327 = vmatpush.msra.mxu0 0.0
      %7328 = vmatpush.msra.mxu0 0.0
      %7329 = vmatpush.msra.mxu0 0.0
      %7330 = vmatpush.msra.mxu0 0.0
      %7331 = vmatpush.msra.mxu0 0.0
      %7332 = vmatpush.msra.mxu0 0.0
      %7333 = vmatpush.msra.mxu0 0.0
      %7334 = vmatpush.msra.mxu0 0.0
      %7335 = vmatpush.msra.mxu0 0.0
      %7336 = vmatpush.msra.mxu0 0.0
      %7337 = vmatpush.msra.mxu0 %v7241
      %7338 = vmatpush.msra.mxu0 %v7237
      %7339 = vmatpush.msra.mxu0 %v7233
      %7340 = vmatpush.msra.mxu0 %v7229
      %7341 = vmatmul.f32.gmra.mxu0 %v3011
      %v7342 = vpop.f32.mrf.mxu0
      %v7343 = vadd.f32 %v2973, %v7342
      %7344 = vmatmul.f32.gmra.mxu0 %v3014
      %v7345 = vpop.f32.mrf.mxu0
      %v7346 = vadd.f32 %v2978, %v7345
      %7347 = vmatmul.f32.gmra.mxu0 %v3017
      %v7348 = vpop.f32.mrf.mxu0
      %v7349 = vadd.f32 %v2983, %v7348
      %7350 = vmatmul.f32.gmra.mxu0 %v3020
      %v7351 = vpop.f32.mrf.mxu0
      %v7352 = vadd.f32 %v2988, %v7351
      %7353 = vmatmul.f32.gmra.mxu0 %v3023
      %v7354 = vpop.f32.mrf.mxu0
      %v7355 = vadd.f32 %v2993, %v7354
      %7356 = vmatmul.f32.gmra.mxu0 %v3026
      %v7357 = vpop.f32.mrf.mxu0
      %v7358 = vadd.f32 %v2998, %v7357
      %7359 = vmatmul.f32.gmra.mxu0 %v3029
      %v7360 = vpop.f32.mrf.mxu0
      %v7361 = vadd.f32 %v3003, %v7360
      %7362 = vmatmul.f32.gmra.mxu0 %v3032
      %v7363 = vpop.f32.mrf.mxu0
      %v7364 = vadd.f32 %v3008, %v7363
      %7365 = vdwg.mxu0
      %7366 = vmatpush.msra.mxu0 0.0
      %7367 = vmatpush.msra.mxu0 0.0
      %7368 = vmatpush.msra.mxu0 0.0
      %7369 = vmatpush.msra.mxu0 0.0
      %7370 = vmatpush.msra.mxu0 0.0
      %7371 = vmatpush.msra.mxu0 0.0
      %7372 = vmatpush.msra.mxu0 0.0
      %7373 = vmatpush.msra.mxu0 0.0
      %7374 = vmatpush.msra.mxu0 0.0
      %7375 = vmatpush.msra.mxu0 0.0
      %7376 = vmatpush.msra.mxu0 0.0
      %7377 = vmatpush.msra.mxu0 0.0
      %7378 = vmatpush.msra.mxu0 %v7242
      %7379 = vmatpush.msra.mxu0 %v7238
      %7380 = vmatpush.msra.mxu0 %v7234
      %7381 = vmatpush.msra.mxu0 %v7230
      %7382 = vmatmul.f32.gmra.mxu0 %v3011
      %v7383 = vpop.f32.mrf.mxu0
      %v7384 = vadd.f32 %v2973, %v7383
      %7385 = vmatmul.f32.gmra.mxu0 %v3014
      %v7386 = vpop.f32.mrf.mxu0
      %v7387 = vadd.f32 %v2978, %v7386
      %7388 = vmatmul.f32.gmra.mxu0 %v3017
      %v7389 = vpop.f32.mrf.mxu0
      %v7390 = vadd.f32 %v2983, %v7389
      %7391 = vmatmul.f32.gmra.mxu0 %v3020
      %v7392 = vpop.f32.mrf.mxu0
      %v7393 = vadd.f32 %v2988, %v7392
      %7394 = vmatmul.f32.gmra.mxu0 %v3023
      %v7395 = vpop.f32.mrf.mxu0
      %v7396 = vadd.f32 %v2993, %v7395
      %7397 = vmatmul.f32.gmra.mxu0 %v3026
      %v7398 = vpop.f32.mrf.mxu0
      %v7399 = vadd.f32 %v2998, %v7398
      %7400 = vmatmul.f32.gmra.mxu0 %v3029
      %v7401 = vpop.f32.mrf.mxu0
      %v7402 = vadd.f32 %v3003, %v7401
      %7403 = vmatmul.f32.gmra.mxu0 %v3032
      %v7404 = vpop.f32.mrf.mxu0
      %v7405 = vadd.f32 %v3008, %v7404
      %7406 = vdwg.mxu0
      %vm7407 = vcmp.gt.f32.partialorder %v7261, 0.0
      %vm7408 = vcmp.gt.f32.partialorder %v7302, 0.0
      %vm7409 = vcmp.gt.f32.partialorder %v7343, 0.0
      %vm7410 = vcmp.gt.f32.partialorder %v7384, 0.0
      %vm7411 = vcmp.gt.f32.partialorder %v7264, 0.0
      %vm7412 = vcmp.gt.f32.partialorder %v7305, 0.0
      %vm7413 = vcmp.gt.f32.partialorder %v7346, 0.0
      %vm7414 = vcmp.gt.f32.partialorder %v7387, 0.0
      %vm7415 = vcmp.gt.f32.partialorder %v7267, 0.0
      %vm7416 = vcmp.gt.f32.partialorder %v7308, 0.0
      %vm7417 = vcmp.gt.f32.partialorder %v7349, 0.0
      %vm7418 = vcmp.gt.f32.partialorder %v7390, 0.0
      %vm7419 = vcmp.gt.f32.partialorder %v7270, 0.0
      %vm7420 = vcmp.gt.f32.partialorder %v7311, 0.0
      %vm7421 = vcmp.gt.f32.partialorder %v7352, 0.0
      %vm7422 = vcmp.gt.f32.partialorder %v7393, 0.0
      %vm7423 = vcmp.gt.f32.partialorder %v7273, 0.0
      %vm7424 = vcmp.gt.f32.partialorder %v7314, 0.0
      %vm7425 = vcmp.gt.f32.partialorder %v7355, 0.0
      %vm7426 = vcmp.gt.f32.partialorder %v7396, 0.0
      %vm7427 = vcmp.gt.f32.partialorder %v7276, 0.0
      %vm7428 = vcmp.gt.f32.partialorder %v7317, 0.0
      %vm7429 = vcmp.gt.f32.partialorder %v7358, 0.0
      %vm7430 = vcmp.gt.f32.partialorder %v7399, 0.0
      %vm7431 = vcmp.gt.f32.partialorder %v7279, 0.0
      %vm7432 = vcmp.gt.f32.partialorder %v7320, 0.0
      %vm7433 = vcmp.gt.f32.partialorder %v7361, 0.0
      %vm7434 = vcmp.gt.f32.partialorder %v7402, 0.0
      %vm7435 = vcmp.gt.f32.partialorder %v7282, 0.0
      %vm7436 = vcmp.gt.f32.partialorder %v7323, 0.0
      %vm7437 = vcmp.gt.f32.partialorder %v7364, 0.0
      %vm7438 = vcmp.gt.f32.partialorder %v7405, 0.0
      %v7439 = vmin.f32 %v7261, 0.0
      %v7440 = vmin.f32 %v7302, 0.0
      %v7441 = vmin.f32 %v7343, 0.0
      %v7442 = vmin.f32 %v7384, 0.0
      %v7443 = vmin.f32 %v7264, 0.0
      %v7444 = vmin.f32 %v7305, 0.0
      %v7445 = vmin.f32 %v7346, 0.0
      %v7446 = vmin.f32 %v7387, 0.0
      %v7447 = vmin.f32 %v7267, 0.0
      %v7448 = vmin.f32 %v7308, 0.0
      %v7449 = vmin.f32 %v7349, 0.0
      %v7450 = vmin.f32 %v7390, 0.0
      %v7451 = vmin.f32 %v7270, 0.0
      %v7452 = vmin.f32 %v7311, 0.0
      %v7453 = vmin.f32 %v7352, 0.0
      %v7454 = vmin.f32 %v7393, 0.0
      %v7455 = vmin.f32 %v7273, 0.0
      %v7456 = vmin.f32 %v7314, 0.0
      %v7457 = vmin.f32 %v7355, 0.0
      %v7458 = vmin.f32 %v7396, 0.0
      %v7459 = vmin.f32 %v7276, 0.0
      %v7460 = vmin.f32 %v7317, 0.0
      %v7461 = vmin.f32 %v7358, 0.0
      %v7462 = vmin.f32 %v7399, 0.0
      %v7463 = vmin.f32 %v7279, 0.0
      %v7464 = vmin.f32 %v7320, 0.0
      %v7465 = vmin.f32 %v7361, 0.0
      %v7466 = vmin.f32 %v7402, 0.0
      %v7467 = vmin.f32 %v7282, 0.0
      %v7468 = vmin.f32 %v7323, 0.0
      %v7469 = vmin.f32 %v7364, 0.0
      %v7470 = vmin.f32 %v7405, 0.0
      %v7471 = vmul.f32 %v7439, 1.442695
      %v7472 = vpow.pop %v7471
      %v7473 = vmul.f32 %v7440, 1.442695
      %v7474 = vpow.pop %v7473
      %v7475 = vmul.f32 %v7441, 1.442695
      %v7476 = vpow.pop %v7475
      %v7477 = vmul.f32 %v7442, 1.442695
      %v7478 = vpow.pop %v7477
      %v7479 = vmul.f32 %v7443, 1.442695
      %v7480 = vpow.pop %v7479
      %v7481 = vmul.f32 %v7444, 1.442695
      %v7482 = vpow.pop %v7481
      %v7483 = vmul.f32 %v7445, 1.442695
      %v7484 = vpow.pop %v7483
      %v7485 = vmul.f32 %v7446, 1.442695
      %v7486 = vpow.pop %v7485
      %v7487 = vmul.f32 %v7447, 1.442695
      %v7488 = vpow.pop %v7487
      %v7489 = vmul.f32 %v7448, 1.442695
      %v7490 = vpow.pop %v7489
      %v7491 = vmul.f32 %v7449, 1.442695
      %v7492 = vpow.pop %v7491
      %v7493 = vmul.f32 %v7450, 1.442695
      %v7494 = vpow.pop %v7493
      %v7495 = vmul.f32 %v7451, 1.442695
      %v7496 = vpow.pop %v7495
      %v7497 = vmul.f32 %v7452, 1.442695
      %v7498 = vpow.pop %v7497
      %v7499 = vmul.f32 %v7453, 1.442695
      %v7500 = vpow.pop %v7499
      %v7501 = vmul.f32 %v7454, 1.442695
      %v7502 = vpow.pop %v7501
      %v7503 = vmul.f32 %v7455, 1.442695
      %v7504 = vpow.pop %v7503
      %v7505 = vmul.f32 %v7456, 1.442695
      %v7506 = vpow.pop %v7505
      %v7507 = vmul.f32 %v7457, 1.442695
      %v7508 = vpow.pop %v7507
      %v7509 = vmul.f32 %v7458, 1.442695
      %v7510 = vpow.pop %v7509
      %v7511 = vmul.f32 %v7459, 1.442695
      %v7512 = vpow.pop %v7511
      %v7513 = vmul.f32 %v7460, 1.442695
      %v7514 = vpow.pop %v7513
      %v7515 = vmul.f32 %v7461, 1.442695
      %v7516 = vpow.pop %v7515
      %v7517 = vmul.f32 %v7462, 1.442695
      %v7518 = vpow.pop %v7517
      %v7519 = vmul.f32 %v7463, 1.442695
      %v7520 = vpow.pop %v7519
      %v7521 = vmul.f32 %v7464, 1.442695
      %v7522 = vpow.pop %v7521
      %v7523 = vmul.f32 %v7465, 1.442695
      %v7524 = vpow.pop %v7523
      %v7525 = vmul.f32 %v7466, 1.442695
      %v7526 = vpow.pop %v7525
      %v7527 = vmul.f32 %v7467, 1.442695
      %v7528 = vpow.pop %v7527
      %v7529 = vmul.f32 %v7468, 1.442695
      %v7530 = vpow.pop %v7529
      %v7531 = vmul.f32 %v7469, 1.442695
      %v7532 = vpow.pop %v7531
      %v7533 = vmul.f32 %v7470, 1.442695
      %v7534 = vpow.pop %v7533
      %v7535 = vsub.f32 %v7472, 1.0
      %v7536 = vsub.f32 %v7474, 1.0
      %v7537 = vsub.f32 %v7476, 1.0
      %v7538 = vsub.f32 %v7478, 1.0
      %v7539 = vsub.f32 %v7480, 1.0
      %v7540 = vsub.f32 %v7482, 1.0
      %v7541 = vsub.f32 %v7484, 1.0
      %v7542 = vsub.f32 %v7486, 1.0
      %v7543 = vsub.f32 %v7488, 1.0
      %v7544 = vsub.f32 %v7490, 1.0
      %v7545 = vsub.f32 %v7492, 1.0
      %v7546 = vsub.f32 %v7494, 1.0
      %v7547 = vsub.f32 %v7496, 1.0
      %v7548 = vsub.f32 %v7498, 1.0
      %v7549 = vsub.f32 %v7500, 1.0
      %v7550 = vsub.f32 %v7502, 1.0
      %v7551 = vsub.f32 %v7504, 1.0
      %v7552 = vsub.f32 %v7506, 1.0
      %v7553 = vsub.f32 %v7508, 1.0
      %v7554 = vsub.f32 %v7510, 1.0
      %v7555 = vsub.f32 %v7512, 1.0
      %v7556 = vsub.f32 %v7514, 1.0
      %v7557 = vsub.f32 %v7516, 1.0
      %v7558 = vsub.f32 %v7518, 1.0
      %v7559 = vsub.f32 %v7520, 1.0
      %v7560 = vsub.f32 %v7522, 1.0
      %v7561 = vsub.f32 %v7524, 1.0
      %v7562 = vsub.f32 %v7526, 1.0
      %v7563 = vsub.f32 %v7528, 1.0
      %v7564 = vsub.f32 %v7530, 1.0
      %v7565 = vsub.f32 %v7532, 1.0
      %v7566 = vsub.f32 %v7534, 1.0
      %v7567 = vsel %vm7407, %v7261, %v7535
      %v7568 = vsel %vm7408, %v7302, %v7536
      %v7569 = vsel %vm7409, %v7343, %v7537
      %v7570 = vsel %vm7410, %v7384, %v7538
      %v7571 = vsel %vm7411, %v7264, %v7539
      %v7572 = vsel %vm7412, %v7305, %v7540
      %v7573 = vsel %vm7413, %v7346, %v7541
      %v7574 = vsel %vm7414, %v7387, %v7542
      %v7575 = vsel %vm7415, %v7267, %v7543
      %v7576 = vsel %vm7416, %v7308, %v7544
      %v7577 = vsel %vm7417, %v7349, %v7545
      %v7578 = vsel %vm7418, %v7390, %v7546
      %v7579 = vsel %vm7419, %v7270, %v7547
      %v7580 = vsel %vm7420, %v7311, %v7548
      %v7581 = vsel %vm7421, %v7352, %v7549
      %v7582 = vsel %vm7422, %v7393, %v7550
      %v7583 = vsel %vm7423, %v7273, %v7551
      %v7584 = vsel %vm7424, %v7314, %v7552
      %v7585 = vsel %vm7425, %v7355, %v7553
      %v7586 = vsel %vm7426, %v7396, %v7554
      %v7587 = vsel %vm7427, %v7276, %v7555
      %v7588 = vsel %vm7428, %v7317, %v7556
      %v7589 = vsel %vm7429, %v7358, %v7557
      %v7590 = vsel %vm7430, %v7399, %v7558
      %v7591 = vsel %vm7431, %v7279, %v7559
      %v7592 = vsel %vm7432, %v7320, %v7560
      %v7593 = vsel %vm7433, %v7361, %v7561
      %v7594 = vsel %vm7434, %v7402, %v7562
      %v7595 = vsel %vm7435, %v7282, %v7563
      %v7596 = vsel %vm7436, %v7323, %v7564
      %v7597 = vsel %vm7437, %v7364, %v7565
      %v7598 = vsel %vm7438, %v7405, %v7566
      %v7599 = vadd.f32 %v7567, %v7571
      %v7600 = vadd.f32 %v7599, %v7575
      %v7601 = vadd.f32 %v7600, %v7579
      %v7602 = vadd.f32 %v7601, %v7583
      %v7603 = vadd.f32 %v7602, %v7587
      %v7604 = vadd.f32 %v7603, %v7591
      %v7605 = vadd.f32 %v7604, %v7595
      %v7606 = vrot.slane %v7605, 4
      %v7607 = vadd.f32 %v7605, %v7606
      %v7608 = vrot.slane %v7607, 2
      %v7609 = vadd.f32 %v7607, %v7608
      %v7610 = vrot.slane %v7609, 1
      %v7611 = vadd.f32 %v7609, %v7610
      %v7612 = vadd.f32 %v7568, %v7572
      %v7613 = vadd.f32 %v7612, %v7576
      %v7614 = vadd.f32 %v7613, %v7580
      %v7615 = vadd.f32 %v7614, %v7584
      %v7616 = vadd.f32 %v7615, %v7588
      %v7617 = vadd.f32 %v7616, %v7592
      %v7618 = vadd.f32 %v7617, %v7596
      %v7619 = vrot.slane %v7618, 4
      %v7620 = vadd.f32 %v7618, %v7619
      %v7621 = vrot.slane %v7620, 2
      %v7622 = vadd.f32 %v7620, %v7621
      %v7623 = vrot.slane %v7622, 1
      %v7624 = vadd.f32 %v7622, %v7623
      %v7625 = vadd.f32 %v7569, %v7573
      %v7626 = vadd.f32 %v7625, %v7577
      %v7627 = vadd.f32 %v7626, %v7581
      %v7628 = vadd.f32 %v7627, %v7585
      %v7629 = vadd.f32 %v7628, %v7589
      %v7630 = vadd.f32 %v7629, %v7593
      %v7631 = vadd.f32 %v7630, %v7597
      %v7632 = vrot.slane %v7631, 4
      %v7633 = vadd.f32 %v7631, %v7632
      %v7634 = vrot.slane %v7633, 2
      %v7635 = vadd.f32 %v7633, %v7634
      %v7636 = vrot.slane %v7635, 1
      %v7637 = vadd.f32 %v7635, %v7636
      %v7638 = vadd.f32 %v7570, %v7574
      %v7639 = vadd.f32 %v7638, %v7578
      %v7640 = vadd.f32 %v7639, %v7582
      %v7641 = vadd.f32 %v7640, %v7586
      %v7642 = vadd.f32 %v7641, %v7590
      %v7643 = vadd.f32 %v7642, %v7594
      %v7644 = vadd.f32 %v7643, %v7598
      %v7645 = vrot.slane %v7644, 4
      %v7646 = vadd.f32 %v7644, %v7645
      %v7647 = vrot.slane %v7646, 2
      %v7648 = vadd.f32 %v7646, %v7647
      %v7649 = vrot.slane %v7648, 1
      %v7650 = vadd.f32 %v7648, %v7649
      %v7651 = vmul.f32 %v7611, %v3448
      %v7652 = vmul.f32 %v7624, %v3448
      %v7653 = vmul.f32 %v7637, %v3448
      %v7654 = vmul.f32 %v7650, %v3448
      %v7655 = vsub.f32 %v7567, %v7651
      %v7656 = vsub.f32 %v7568, %v7652
      %v7657 = vsub.f32 %v7569, %v7653
      %v7658 = vsub.f32 %v7570, %v7654
      %v7659 = vsub.f32 %v7571, %v7651
      %v7660 = vsub.f32 %v7572, %v7652
      %v7661 = vsub.f32 %v7573, %v7653
      %v7662 = vsub.f32 %v7574, %v7654
      %v7663 = vsub.f32 %v7575, %v7651
      %v7664 = vsub.f32 %v7576, %v7652
      %v7665 = vsub.f32 %v7577, %v7653
      %v7666 = vsub.f32 %v7578, %v7654
      %v7667 = vsub.f32 %v7579, %v7651
      %v7668 = vsub.f32 %v7580, %v7652
      %v7669 = vsub.f32 %v7581, %v7653
      %v7670 = vsub.f32 %v7582, %v7654
      %v7671 = vsub.f32 %v7583, %v7651
      %v7672 = vsub.f32 %v7584, %v7652
      %v7673 = vsub.f32 %v7585, %v7653
      %v7674 = vsub.f32 %v7586, %v7654
      %v7675 = vsub.f32 %v7587, %v7651
      %v7676 = vsub.f32 %v7588, %v7652
      %v7677 = vsub.f32 %v7589, %v7653
      %v7678 = vsub.f32 %v7590, %v7654
      %v7679 = vsub.f32 %v7591, %v7651
      %v7680 = vsub.f32 %v7592, %v7652
      %v7681 = vsub.f32 %v7593, %v7653
      %v7682 = vsub.f32 %v7594, %v7654
      %v7683 = vsub.f32 %v7595, %v7651
      %v7684 = vsub.f32 %v7596, %v7652
      %v7685 = vsub.f32 %v7597, %v7653
      %v7686 = vsub.f32 %v7598, %v7654
      %v7687 = vmul.f32 %v7655, %v7655
      %v7688 = vmul.f32 %v7656, %v7656
      %v7689 = vmul.f32 %v7657, %v7657
      %v7690 = vmul.f32 %v7658, %v7658
      %v7691 = vmul.f32 %v7659, %v7659
      %v7692 = vmul.f32 %v7660, %v7660
      %v7693 = vmul.f32 %v7661, %v7661
      %v7694 = vmul.f32 %v7662, %v7662
      %v7695 = vmul.f32 %v7663, %v7663
      %v7696 = vmul.f32 %v7664, %v7664
      %v7697 = vmul.f32 %v7665, %v7665
      %v7698 = vmul.f32 %v7666, %v7666
      %v7699 = vmul.f32 %v7667, %v7667
      %v7700 = vmul.f32 %v7668, %v7668
      %v7701 = vmul.f32 %v7669, %v7669
      %v7702 = vmul.f32 %v7670, %v7670
      %v7703 = vmul.f32 %v7671, %v7671
      %v7704 = vmul.f32 %v7672, %v7672
      %v7705 = vmul.f32 %v7673, %v7673
      %v7706 = vmul.f32 %v7674, %v7674
      %v7707 = vmul.f32 %v7675, %v7675
      %v7708 = vmul.f32 %v7676, %v7676
      %v7709 = vmul.f32 %v7677, %v7677
      %v7710 = vmul.f32 %v7678, %v7678
      %v7711 = vmul.f32 %v7679, %v7679
      %v7712 = vmul.f32 %v7680, %v7680
      %v7713 = vmul.f32 %v7681, %v7681
      %v7714 = vmul.f32 %v7682, %v7682
      %v7715 = vmul.f32 %v7683, %v7683
      %v7716 = vmul.f32 %v7684, %v7684
      %v7717 = vmul.f32 %v7685, %v7685
      %v7718 = vmul.f32 %v7686, %v7686
      %v7719 = vadd.f32 %v7687, %v7691
      %v7720 = vadd.f32 %v7719, %v7695
      %v7721 = vadd.f32 %v7720, %v7699
      %v7722 = vadd.f32 %v7721, %v7703
      %v7723 = vadd.f32 %v7722, %v7707
      %v7724 = vadd.f32 %v7723, %v7711
      %v7725 = vadd.f32 %v7724, %v7715
      %v7726 = vrot.slane %v7725, 4
      %v7727 = vadd.f32 %v7725, %v7726
      %v7728 = vrot.slane %v7727, 2
      %v7729 = vadd.f32 %v7727, %v7728
      %v7730 = vrot.slane %v7729, 1
      %v7731 = vadd.f32 %v7729, %v7730
      %v7732 = vadd.f32 %v7688, %v7692
      %v7733 = vadd.f32 %v7732, %v7696
      %v7734 = vadd.f32 %v7733, %v7700
      %v7735 = vadd.f32 %v7734, %v7704
      %v7736 = vadd.f32 %v7735, %v7708
      %v7737 = vadd.f32 %v7736, %v7712
      %v7738 = vadd.f32 %v7737, %v7716
      %v7739 = vrot.slane %v7738, 4
      %v7740 = vadd.f32 %v7738, %v7739
      %v7741 = vrot.slane %v7740, 2
      %v7742 = vadd.f32 %v7740, %v7741
      %v7743 = vrot.slane %v7742, 1
      %v7744 = vadd.f32 %v7742, %v7743
      %v7745 = vadd.f32 %v7689, %v7693
      %v7746 = vadd.f32 %v7745, %v7697
      %v7747 = vadd.f32 %v7746, %v7701
      %v7748 = vadd.f32 %v7747, %v7705
      %v7749 = vadd.f32 %v7748, %v7709
      %v7750 = vadd.f32 %v7749, %v7713
      %v7751 = vadd.f32 %v7750, %v7717
      %v7752 = vrot.slane %v7751, 4
      %v7753 = vadd.f32 %v7751, %v7752
      %v7754 = vrot.slane %v7753, 2
      %v7755 = vadd.f32 %v7753, %v7754
      %v7756 = vrot.slane %v7755, 1
      %v7757 = vadd.f32 %v7755, %v7756
      %v7758 = vadd.f32 %v7690, %v7694
      %v7759 = vadd.f32 %v7758, %v7698
      %v7760 = vadd.f32 %v7759, %v7702
      %v7761 = vadd.f32 %v7760, %v7706
      %v7762 = vadd.f32 %v7761, %v7710
      %v7763 = vadd.f32 %v7762, %v7714
      %v7764 = vadd.f32 %v7763, %v7718
      %v7765 = vrot.slane %v7764, 4
      %v7766 = vadd.f32 %v7764, %v7765
      %v7767 = vrot.slane %v7766, 2
      %v7768 = vadd.f32 %v7766, %v7767
      %v7769 = vrot.slane %v7768, 1
      %v7770 = vadd.f32 %v7768, %v7769
      %v7771 = vmul.f32 %v7731, %v3448
      %v7772 = vmul.f32 %v7744, %v3448
      %v7773 = vmul.f32 %v7757, %v3448
      %v7774 = vmul.f32 %v7770, %v3448
      %v7775 = vadd.f32 %v7771, 1e-05
      %v7776 = vadd.f32 %v7772, 1e-05
      %v7777 = vadd.f32 %v7773, 1e-05
      %v7778 = vadd.f32 %v7774, 1e-05
      %v7779 = vrsqrt.pop %v7775
      %v7780 = vmul.f32 %v7779, %v7775
      %v7781 = vmul.f32 %v7780, %v7779
      %v7782 = vmul.f32 0.5, %v7781
      %v7783 = vsub.f32 1.5, %v7782
      %v7784 = vmul.f32 %v7779, %v7783
      %vm7785 = vweird.f32 %v7775
      %vm7786 = vweird.f32 %v7779
      %vm7787 = vmor %vm7785, %vm7786
      %v7788 = vsel %vm7787, %v7779, %v7784
      %v7789 = vrsqrt.pop %v7776
      %v7790 = vmul.f32 %v7789, %v7776
      %v7791 = vmul.f32 %v7790, %v7789
      %v7792 = vmul.f32 0.5, %v7791
      %v7793 = vsub.f32 1.5, %v7792
      %v7794 = vmul.f32 %v7789, %v7793
      %vm7795 = vweird.f32 %v7776
      %vm7796 = vweird.f32 %v7789
      %vm7797 = vmor %vm7795, %vm7796
      %v7798 = vsel %vm7797, %v7789, %v7794
      %v7799 = vrsqrt.pop %v7777
      %v7800 = vmul.f32 %v7799, %v7777
      %v7801 = vmul.f32 %v7800, %v7799
      %v7802 = vmul.f32 0.5, %v7801
      %v7803 = vsub.f32 1.5, %v7802
      %v7804 = vmul.f32 %v7799, %v7803
      %vm7805 = vweird.f32 %v7777
      %vm7806 = vweird.f32 %v7799
      %vm7807 = vmor %vm7805, %vm7806
      %v7808 = vsel %vm7807, %v7799, %v7804
      %v7809 = vrsqrt.pop %v7778
      %v7810 = vmul.f32 %v7809, %v7778
      %v7811 = vmul.f32 %v7810, %v7809
      %v7812 = vmul.f32 0.5, %v7811
      %v7813 = vsub.f32 1.5, %v7812
      %v7814 = vmul.f32 %v7809, %v7813
      %vm7815 = vweird.f32 %v7778
      %vm7816 = vweird.f32 %v7809
      %vm7817 = vmor %vm7815, %vm7816
      %v7818 = vsel %vm7817, %v7809, %v7814
      %v7819 = vmul.f32 %v7655, %v7788
      %v7820 = vmul.f32 %v7656, %v7798
      %v7821 = vmul.f32 %v7657, %v7808
      %v7822 = vmul.f32 %v7658, %v7818
      %v7823 = vmul.f32 %v7659, %v7788
      %v7824 = vmul.f32 %v7660, %v7798
      %v7825 = vmul.f32 %v7661, %v7808
      %v7826 = vmul.f32 %v7662, %v7818
      %v7827 = vmul.f32 %v7663, %v7788
      %v7828 = vmul.f32 %v7664, %v7798
      %v7829 = vmul.f32 %v7665, %v7808
      %v7830 = vmul.f32 %v7666, %v7818
      %v7831 = vmul.f32 %v7667, %v7788
      %v7832 = vmul.f32 %v7668, %v7798
      %v7833 = vmul.f32 %v7669, %v7808
      %v7834 = vmul.f32 %v7670, %v7818
      %v7835 = vmul.f32 %v7671, %v7788
      %v7836 = vmul.f32 %v7672, %v7798
      %v7837 = vmul.f32 %v7673, %v7808
      %v7838 = vmul.f32 %v7674, %v7818
      %v7839 = vmul.f32 %v7675, %v7788
      %v7840 = vmul.f32 %v7676, %v7798
      %v7841 = vmul.f32 %v7677, %v7808
      %v7842 = vmul.f32 %v7678, %v7818
      %v7843 = vmul.f32 %v7679, %v7788
      %v7844 = vmul.f32 %v7680, %v7798
      %v7845 = vmul.f32 %v7681, %v7808
      %v7846 = vmul.f32 %v7682, %v7818
      %v7847 = vmul.f32 %v7683, %v7788
      %v7848 = vmul.f32 %v7684, %v7798
      %v7849 = vmul.f32 %v7685, %v7808
      %v7850 = vmul.f32 %v7686, %v7818
      %v7851 = vmul.f32 %v7819, %v3652
      %v7852 = vmul.f32 %v7820, %v3652
      %v7853 = vmul.f32 %v7821, %v3652
      %v7854 = vmul.f32 %v7822, %v3652
      %v7855 = vmul.f32 %v7823, %v3657
      %v7856 = vmul.f32 %v7824, %v3657
      %v7857 = vmul.f32 %v7825, %v3657
      %v7858 = vmul.f32 %v7826, %v3657
      %v7859 = vmul.f32 %v7827, %v3662
      %v7860 = vmul.f32 %v7828, %v3662
      %v7861 = vmul.f32 %v7829, %v3662
      %v7862 = vmul.f32 %v7830, %v3662
      %v7863 = vmul.f32 %v7831, %v3667
      %v7864 = vmul.f32 %v7832, %v3667
      %v7865 = vmul.f32 %v7833, %v3667
      %v7866 = vmul.f32 %v7834, %v3667
      %v7867 = vmul.f32 %v7835, %v3672
      %v7868 = vmul.f32 %v7836, %v3672
      %v7869 = vmul.f32 %v7837, %v3672
      %v7870 = vmul.f32 %v7838, %v3672
      %v7871 = vmul.f32 %v7839, %v3677
      %v7872 = vmul.f32 %v7840, %v3677
      %v7873 = vmul.f32 %v7841, %v3677
      %v7874 = vmul.f32 %v7842, %v3677
      %v7875 = vmul.f32 %v7843, %v3682
      %v7876 = vmul.f32 %v7844, %v3682
      %v7877 = vmul.f32 %v7845, %v3682
      %v7878 = vmul.f32 %v7846, %v3682
      %v7879 = vmul.f32 %v7847, %v3687
      %v7880 = vmul.f32 %v7848, %v3687
      %v7881 = vmul.f32 %v7849, %v3687
      %v7882 = vmul.f32 %v7850, %v3687
      %v7883 = vadd.f32 %v7851, %v3724
      %v7884 = vadd.f32 %v7852, %v3724
      %v7885 = vadd.f32 %v7853, %v3724
      %v7886 = vadd.f32 %v7854, %v3724
      %v7887 = vadd.f32 %v7855, %v3729
      %v7888 = vadd.f32 %v7856, %v3729
      %v7889 = vadd.f32 %v7857, %v3729
      %v7890 = vadd.f32 %v7858, %v3729
      %v7891 = vadd.f32 %v7859, %v3734
      %v7892 = vadd.f32 %v7860, %v3734
      %v7893 = vadd.f32 %v7861, %v3734
      %v7894 = vadd.f32 %v7862, %v3734
      %v7895 = vadd.f32 %v7863, %v3739
      %v7896 = vadd.f32 %v7864, %v3739
      %v7897 = vadd.f32 %v7865, %v3739
      %v7898 = vadd.f32 %v7866, %v3739
      %v7899 = vadd.f32 %v7867, %v3744
      %v7900 = vadd.f32 %v7868, %v3744
      %v7901 = vadd.f32 %v7869, %v3744
      %v7902 = vadd.f32 %v7870, %v3744
      %v7903 = vadd.f32 %v7871, %v3749
      %v7904 = vadd.f32 %v7872, %v3749
      %v7905 = vadd.f32 %v7873, %v3749
      %v7906 = vadd.f32 %v7874, %v3749
      %v7907 = vadd.f32 %v7875, %v3754
      %v7908 = vadd.f32 %v7876, %v3754
      %v7909 = vadd.f32 %v7877, %v3754
      %v7910 = vadd.f32 %v7878, %v3754
      %v7911 = vadd.f32 %v7879, %v3759
      %v7912 = vadd.f32 %v7880, %v3759
      %v7913 = vadd.f32 %v7881, %v3759
      %v7914 = vadd.f32 %v7882, %v3759
      %7915 = vmatpush.msra.mxu0 0.0
      %7916 = vmatpush.msra.mxu0 0.0
      %7917 = vmatpush.msra.mxu0 0.0
      %7918 = vmatpush.msra.mxu0 0.0
      %7919 = vmatpush.msra.mxu0 0.0
      %7920 = vmatpush.msra.mxu0 0.0
      %7921 = vmatpush.msra.mxu0 0.0
      %7922 = vmatpush.msra.mxu0 0.0
      %7923 = vmatpush.msra.mxu0 %v7911
      %7924 = vmatpush.msra.mxu0 %v7907
      %7925 = vmatpush.msra.mxu0 %v7903
      %7926 = vmatpush.msra.mxu0 %v7899
      %7927 = vmatpush.msra.mxu0 %v7895
      %7928 = vmatpush.msra.mxu0 %v7891
      %7929 = vmatpush.msra.mxu0 %v7887
      %7930 = vmatpush.msra.mxu0 %v7883
      %7931 = vmatmul.f32.gmra.mxu0 %v3880
      %v7932 = vpop.f32.mrf.mxu0
      %v7933 = vadd.f32 %v3796, %v7932
      %7934 = vmatmul.f32.gmra.mxu0 %v3883
      %v7935 = vpop.f32.mrf.mxu0
      %v7936 = vadd.f32 %v3801, %v7935
      %7937 = vmatmul.f32.gmra.mxu0 %v3886
      %v7938 = vpop.f32.mrf.mxu0
      %v7939 = vadd.f32 %v3806, %v7938
      %7940 = vmatmul.f32.gmra.mxu0 %v3889
      %v7941 = vpop.f32.mrf.mxu0
      %v7942 = vadd.f32 %v3811, %v7941
      %7943 = vmatmul.f32.gmra.mxu0 %v3892
      %v7944 = vpop.f32.mrf.mxu0
      %v7945 = vadd.f32 %v3816, %v7944
      %7946 = vmatmul.f32.gmra.mxu0 %v3895
      %v7947 = vpop.f32.mrf.mxu0
      %v7948 = vadd.f32 %v3821, %v7947
      %7949 = vmatmul.f32.gmra.mxu0 %v3898
      %v7950 = vpop.f32.mrf.mxu0
      %v7951 = vadd.f32 %v3826, %v7950
      %7952 = vmatmul.f32.gmra.mxu0 %v3901
      %v7953 = vpop.f32.mrf.mxu0
      %v7954 = vadd.f32 %v3831, %v7953
      %7955 = vmatmul.f32.gmra.mxu0 %v3904
      %v7956 = vpop.f32.mrf.mxu0
      %v7957 = vadd.f32 %v3836, %v7956
      %7958 = vmatmul.f32.gmra.mxu0 %v3907
      %v7959 = vpop.f32.mrf.mxu0
      %v7960 = vadd.f32 %v3841, %v7959
      %7961 = vmatmul.f32.gmra.mxu0 %v3910
      %v7962 = vpop.f32.mrf.mxu0
      %v7963 = vadd.f32 %v3846, %v7962
      %7964 = vmatmul.f32.gmra.mxu0 %v3913
      %v7965 = vpop.f32.mrf.mxu0
      %v7966 = vadd.f32 %v3851, %v7965
      %7967 = vmatmul.f32.gmra.mxu0 %v3916
      %v7968 = vpop.f32.mrf.mxu0
      %v7969 = vadd.f32 %v3856, %v7968
      %7970 = vmatmul.f32.gmra.mxu0 %v3919
      %v7971 = vpop.f32.mrf.mxu0
      %v7972 = vadd.f32 %v3861, %v7971
      %7973 = vmatmul.f32.gmra.mxu0 %v3922
      %v7974 = vpop.f32.mrf.mxu0
      %v7975 = vadd.f32 %v3866, %v7974
      %7976 = vmatmul.f32.gmra.mxu0 %v3925
      %v7977 = vpop.f32.mrf.mxu0
      %v7978 = vadd.f32 %v3871, %v7977
      %7979 = vmatmul.f32.gmra.mxu0 %v3928
      %v7980 = vpop.f32.mrf.mxu0
      %v7981 = vadd.f32 %v3876, %v7980
      %7982 = vdwg.mxu0
      %7983 = vmatpush.msra.mxu0 0.0
      %7984 = vmatpush.msra.mxu0 0.0
      %7985 = vmatpush.msra.mxu0 0.0
      %7986 = vmatpush.msra.mxu0 0.0
      %7987 = vmatpush.msra.mxu0 0.0
      %7988 = vmatpush.msra.mxu0 0.0
      %7989 = vmatpush.msra.mxu0 0.0
      %7990 = vmatpush.msra.mxu0 0.0
      %7991 = vmatpush.msra.mxu0 %v7912
      %7992 = vmatpush.msra.mxu0 %v7908
      %7993 = vmatpush.msra.mxu0 %v7904
      %7994 = vmatpush.msra.mxu0 %v7900
      %7995 = vmatpush.msra.mxu0 %v7896
      %7996 = vmatpush.msra.mxu0 %v7892
      %7997 = vmatpush.msra.mxu0 %v7888
      %7998 = vmatpush.msra.mxu0 %v7884
      %7999 = vmatmul.f32.gmra.mxu0 %v3880
      %v8000 = vpop.f32.mrf.mxu0
      %v8001 = vadd.f32 %v3796, %v8000
      %8002 = vmatmul.f32.gmra.mxu0 %v3883
      %v8003 = vpop.f32.mrf.mxu0
      %v8004 = vadd.f32 %v3801, %v8003
      %8005 = vmatmul.f32.gmra.mxu0 %v3886
      %v8006 = vpop.f32.mrf.mxu0
      %v8007 = vadd.f32 %v3806, %v8006
      %8008 = vmatmul.f32.gmra.mxu0 %v3889
      %v8009 = vpop.f32.mrf.mxu0
      %v8010 = vadd.f32 %v3811, %v8009
      %8011 = vmatmul.f32.gmra.mxu0 %v3892
      %v8012 = vpop.f32.mrf.mxu0
      %v8013 = vadd.f32 %v3816, %v8012
      %8014 = vmatmul.f32.gmra.mxu0 %v3895
      %v8015 = vpop.f32.mrf.mxu0
      %v8016 = vadd.f32 %v3821, %v8015
      %8017 = vmatmul.f32.gmra.mxu0 %v3898
      %v8018 = vpop.f32.mrf.mxu0
      %v8019 = vadd.f32 %v3826, %v8018
      %8020 = vmatmul.f32.gmra.mxu0 %v3901
      %v8021 = vpop.f32.mrf.mxu0
      %v8022 = vadd.f32 %v3831, %v8021
      %8023 = vmatmul.f32.gmra.mxu0 %v3904
      %v8024 = vpop.f32.mrf.mxu0
      %v8025 = vadd.f32 %v3836, %v8024
      %8026 = vmatmul.f32.gmra.mxu0 %v3907
      %v8027 = vpop.f32.mrf.mxu0
      %v8028 = vadd.f32 %v3841, %v8027
      %8029 = vmatmul.f32.gmra.mxu0 %v3910
      %v8030 = vpop.f32.mrf.mxu0
      %v8031 = vadd.f32 %v3846, %v8030
      %8032 = vmatmul.f32.gmra.mxu0 %v3913
      %v8033 = vpop.f32.mrf.mxu0
      %v8034 = vadd.f32 %v3851, %v8033
      %8035 = vmatmul.f32.gmra.mxu0 %v3916
      %v8036 = vpop.f32.mrf.mxu0
      %v8037 = vadd.f32 %v3856, %v8036
      %8038 = vmatmul.f32.gmra.mxu0 %v3919
      %v8039 = vpop.f32.mrf.mxu0
      %v8040 = vadd.f32 %v3861, %v8039
      %8041 = vmatmul.f32.gmra.mxu0 %v3922
      %v8042 = vpop.f32.mrf.mxu0
      %v8043 = vadd.f32 %v3866, %v8042
      %8044 = vmatmul.f32.gmra.mxu0 %v3925
      %v8045 = vpop.f32.mrf.mxu0
      %v8046 = vadd.f32 %v3871, %v8045
      %8047 = vmatmul.f32.gmra.mxu0 %v3928
      %v8048 = vpop.f32.mrf.mxu0
      %v8049 = vadd.f32 %v3876, %v8048
      %8050 = vdwg.mxu0
      %8051 = vmatpush.msra.mxu0 0.0
      %8052 = vmatpush.msra.mxu0 0.0
      %8053 = vmatpush.msra.mxu0 0.0
      %8054 = vmatpush.msra.mxu0 0.0
      %8055 = vmatpush.msra.mxu0 0.0
      %8056 = vmatpush.msra.mxu0 0.0
      %8057 = vmatpush.msra.mxu0 0.0
      %8058 = vmatpush.msra.mxu0 0.0
      %8059 = vmatpush.msra.mxu0 %v7913
      %8060 = vmatpush.msra.mxu0 %v7909
      %8061 = vmatpush.msra.mxu0 %v7905
      %8062 = vmatpush.msra.mxu0 %v7901
      %8063 = vmatpush.msra.mxu0 %v7897
      %8064 = vmatpush.msra.mxu0 %v7893
      %8065 = vmatpush.msra.mxu0 %v7889
      %8066 = vmatpush.msra.mxu0 %v7885
      %8067 = vmatmul.f32.gmra.mxu0 %v3880
      %v8068 = vpop.f32.mrf.mxu0
      %v8069 = vadd.f32 %v3796, %v8068
      %8070 = vmatmul.f32.gmra.mxu0 %v3883
      %v8071 = vpop.f32.mrf.mxu0
      %v8072 = vadd.f32 %v3801, %v8071
      %8073 = vmatmul.f32.gmra.mxu0 %v3886
      %v8074 = vpop.f32.mrf.mxu0
      %v8075 = vadd.f32 %v3806, %v8074
      %8076 = vmatmul.f32.gmra.mxu0 %v3889
      %v8077 = vpop.f32.mrf.mxu0
      %v8078 = vadd.f32 %v3811, %v8077
      %8079 = vmatmul.f32.gmra.mxu0 %v3892
      %v8080 = vpop.f32.mrf.mxu0
      %v8081 = vadd.f32 %v3816, %v8080
      %8082 = vmatmul.f32.gmra.mxu0 %v3895
      %v8083 = vpop.f32.mrf.mxu0
      %v8084 = vadd.f32 %v3821, %v8083
      %8085 = vmatmul.f32.gmra.mxu0 %v3898
      %v8086 = vpop.f32.mrf.mxu0
      %v8087 = vadd.f32 %v3826, %v8086
      %8088 = vmatmul.f32.gmra.mxu0 %v3901
      %v8089 = vpop.f32.mrf.mxu0
      %v8090 = vadd.f32 %v3831, %v8089
      %8091 = vmatmul.f32.gmra.mxu0 %v3904
      %v8092 = vpop.f32.mrf.mxu0
      %v8093 = vadd.f32 %v3836, %v8092
      %8094 = vmatmul.f32.gmra.mxu0 %v3907
      %v8095 = vpop.f32.mrf.mxu0
      %v8096 = vadd.f32 %v3841, %v8095
      %8097 = vmatmul.f32.gmra.mxu0 %v3910
      %v8098 = vpop.f32.mrf.mxu0
      %v8099 = vadd.f32 %v3846, %v8098
      %8100 = vmatmul.f32.gmra.mxu0 %v3913
      %v8101 = vpop.f32.mrf.mxu0
      %v8102 = vadd.f32 %v3851, %v8101
      %8103 = vmatmul.f32.gmra.mxu0 %v3916
      %v8104 = vpop.f32.mrf.mxu0
      %v8105 = vadd.f32 %v3856, %v8104
      %8106 = vmatmul.f32.gmra.mxu0 %v3919
      %v8107 = vpop.f32.mrf.mxu0
      %v8108 = vadd.f32 %v3861, %v8107
      %8109 = vmatmul.f32.gmra.mxu0 %v3922
      %v8110 = vpop.f32.mrf.mxu0
      %v8111 = vadd.f32 %v3866, %v8110
      %8112 = vmatmul.f32.gmra.mxu0 %v3925
      %v8113 = vpop.f32.mrf.mxu0
      %v8114 = vadd.f32 %v3871, %v8113
      %8115 = vmatmul.f32.gmra.mxu0 %v3928
      %v8116 = vpop.f32.mrf.mxu0
      %v8117 = vadd.f32 %v3876, %v8116
      %8118 = vdwg.mxu0
      %8119 = vmatpush.msra.mxu0 0.0
      %8120 = vmatpush.msra.mxu0 0.0
      %8121 = vmatpush.msra.mxu0 0.0
      %8122 = vmatpush.msra.mxu0 0.0
      %8123 = vmatpush.msra.mxu0 0.0
      %8124 = vmatpush.msra.mxu0 0.0
      %8125 = vmatpush.msra.mxu0 0.0
      %8126 = vmatpush.msra.mxu0 0.0
      %8127 = vmatpush.msra.mxu0 %v7914
      %8128 = vmatpush.msra.mxu0 %v7910
      %8129 = vmatpush.msra.mxu0 %v7906
      %8130 = vmatpush.msra.mxu0 %v7902
      %8131 = vmatpush.msra.mxu0 %v7898
      %8132 = vmatpush.msra.mxu0 %v7894
      %8133 = vmatpush.msra.mxu0 %v7890
      %8134 = vmatpush.msra.mxu0 %v7886
      %8135 = vmatmul.f32.gmra.mxu0 %v3880
      %v8136 = vpop.f32.mrf.mxu0
      %v8137 = vadd.f32 %v3796, %v8136
      %8138 = vmatmul.f32.gmra.mxu0 %v3883
      %v8139 = vpop.f32.mrf.mxu0
      %v8140 = vadd.f32 %v3801, %v8139
      %8141 = vmatmul.f32.gmra.mxu0 %v3886
      %v8142 = vpop.f32.mrf.mxu0
      %v8143 = vadd.f32 %v3806, %v8142
      %8144 = vmatmul.f32.gmra.mxu0 %v3889
      %v8145 = vpop.f32.mrf.mxu0
      %v8146 = vadd.f32 %v3811, %v8145
      %8147 = vmatmul.f32.gmra.mxu0 %v3892
      %v8148 = vpop.f32.mrf.mxu0
      %v8149 = vadd.f32 %v3816, %v8148
      %8150 = vmatmul.f32.gmra.mxu0 %v3895
      %v8151 = vpop.f32.mrf.mxu0
      %v8152 = vadd.f32 %v3821, %v8151
      %8153 = vmatmul.f32.gmra.mxu0 %v3898
      %v8154 = vpop.f32.mrf.mxu0
      %v8155 = vadd.f32 %v3826, %v8154
      %8156 = vmatmul.f32.gmra.mxu0 %v3901
      %v8157 = vpop.f32.mrf.mxu0
      %v8158 = vadd.f32 %v3831, %v8157
      %8159 = vmatmul.f32.gmra.mxu0 %v3904
      %v8160 = vpop.f32.mrf.mxu0
      %v8161 = vadd.f32 %v3836, %v8160
      %8162 = vmatmul.f32.gmra.mxu0 %v3907
      %v8163 = vpop.f32.mrf.mxu0
      %v8164 = vadd.f32 %v3841, %v8163
      %8165 = vmatmul.f32.gmra.mxu0 %v3910
      %v8166 = vpop.f32.mrf.mxu0
      %v8167 = vadd.f32 %v3846, %v8166
      %8168 = vmatmul.f32.gmra.mxu0 %v3913
      %v8169 = vpop.f32.mrf.mxu0
      %v8170 = vadd.f32 %v3851, %v8169
      %8171 = vmatmul.f32.gmra.mxu0 %v3916
      %v8172 = vpop.f32.mrf.mxu0
      %v8173 = vadd.f32 %v3856, %v8172
      %8174 = vmatmul.f32.gmra.mxu0 %v3919
      %v8175 = vpop.f32.mrf.mxu0
      %v8176 = vadd.f32 %v3861, %v8175
      %8177 = vmatmul.f32.gmra.mxu0 %v3922
      %v8178 = vpop.f32.mrf.mxu0
      %v8179 = vadd.f32 %v3866, %v8178
      %8180 = vmatmul.f32.gmra.mxu0 %v3925
      %v8181 = vpop.f32.mrf.mxu0
      %v8182 = vadd.f32 %v3871, %v8181
      %8183 = vmatmul.f32.gmra.mxu0 %v3928
      %v8184 = vpop.f32.mrf.mxu0
      %v8185 = vadd.f32 %v3876, %v8184
      %8186 = vdwg.mxu0
      %v8187 = vsel %vm2068, %v7981, -inf
      %v8188 = vsel %vm2068, %v8049, -inf
      %v8189 = vsel %vm2068, %v8117, -inf
      %v8190 = vsel %vm2068, %v8185, -inf
      %v8191 = vmax.f32 %v8187, %v8188
      %v8192 = vmax.f32 %v8189, %v8190
      %v8193 = vmax.f32 %v8191, %v8192
      %8194 = vmax.xlane.f32.xlu0 %v8193
      %v8195 = vpop.xlane.xlu0 %8194
      %v8196 = vsub.f32 %v7981, %v8195
      %v8197 = vsub.f32 %v8049, %v8195
      %v8198 = vsub.f32 %v8117, %v8195
      %v8199 = vsub.f32 %v8185, %v8195
      %v8200 = vmul.f32 %v8196, 1.442695
      %v8201 = vpow.pop %v8200
      %v8202 = vmul.f32 %v8197, 1.442695
      %v8203 = vpow.pop %v8202
      %v8204 = vmul.f32 %v8198, 1.442695
      %v8205 = vpow.pop %v8204
      %v8206 = vmul.f32 %v8199, 1.442695
      %v8207 = vpow.pop %v8206
      %v8208 = vsel %vm2068, %v8201, 0.0
      %v8209 = vsel %vm2068, %v8203, 0.0
      %v8210 = vadd.f32 %v8208, %v8209
      %v8211 = vsel %vm2068, %v8205, 0.0
      %v8212 = vadd.f32 %v8210, %v8211
      %v8213 = vsel %vm2068, %v8207, 0.0
      %v8214 = vadd.f32 %v8212, %v8213
      %8215 = vadd.xlane.f32.xlu0 %v8214
      %v8216 = vpop.xlane.xlu0 %8215
      %v8217 = vrcp.pop %v8216
      %v8218 = vmul.f32 %v8216, %v8217
      %v8219 = vsub.f32 1.0, %v8218
      %v8220 = vmul.f32 %v8217, %v8219
      %v8221 = vadd.f32 %v8217, %v8220
      %vm8222 = vweird.f32 %v8216
      %vm8223 = vweird.f32 %v8217
      %vm8224 = vmor %vm8222, %vm8223
      %v8225 = vsel %vm8224, %v8217, %v8221
      %v8226 = vand.u32 2147483647, %v8216
      %vm8227 = vcmp.eq.f32.partialorder %v8226, 8.507059e+37
      %v8228 = vand.u32 %v8216, 2147483648
      %v8229 = vor.u32 1.1754944e-38, %v8228
      %v8230 = vsel %vm8227, %v8229, %v8225
      %v8231 = vmul.f32 %v8201, %v8230
      %v8232 = vmul.f32 %v8203, %v8230
      %v8233 = vmul.f32 %v8205, %v8230
      %v8234 = vmul.f32 %v8207, %v8230
      %v8235 = vperm.slane %v8231, 0
      %v8236 = vperm.slane %v8232, 0
      %v8237 = vperm.slane %v8233, 0
      %v8238 = vperm.slane %v8234, 0
      %v8239 = vmul.f32 %v7933, %v8235
      %v8240 = vmul.f32 %v8001, %v8236
      %v8241 = vmul.f32 %v8069, %v8237
      %v8242 = vmul.f32 %v8137, %v8238
      %v8243 = vmul.f32 %v7936, %v8235
      %v8244 = vmul.f32 %v8004, %v8236
      %v8245 = vmul.f32 %v8072, %v8237
      %v8246 = vmul.f32 %v8140, %v8238
      %v8247 = vadd.f32 %v8239, %v8240
      %v8248 = vadd.f32 %v8247, %v8241
      %v8249 = vadd.f32 %v8248, %v8242
      %8250 = vadd.xlane.f32.xlu0 %v8249
      %v8251 = vpop.xlane.xlu0 %8250
      %v8252 = vadd.f32 %v8243, %v8244
      %v8253 = vadd.f32 %v8252, %v8245
      %v8254 = vadd.f32 %v8253, %v8246
      %8255 = vadd.xlane.f32.xlu0 %v8254
      %v8256 = vpop.xlane.xlu0 %8255
      %v8257 = vperm.slane %v8231, 1
      %v8258 = vperm.slane %v8232, 1
      %v8259 = vperm.slane %v8233, 1
      %v8260 = vperm.slane %v8234, 1
      %v8261 = vmul.f32 %v7939, %v8257
      %v8262 = vmul.f32 %v8007, %v8258
      %v8263 = vmul.f32 %v8075, %v8259
      %v8264 = vmul.f32 %v8143, %v8260
      %v8265 = vmul.f32 %v7942, %v8257
      %v8266 = vmul.f32 %v8010, %v8258
      %v8267 = vmul.f32 %v8078, %v8259
      %v8268 = vmul.f32 %v8146, %v8260
      %v8269 = vadd.f32 %v8261, %v8262
      %v8270 = vadd.f32 %v8269, %v8263
      %v8271 = vadd.f32 %v8270, %v8264
      %8272 = vadd.xlane.f32.xlu0 %v8271
      %v8273 = vpop.xlane.xlu0 %8272
      %v8274 = vadd.f32 %v8265, %v8266
      %v8275 = vadd.f32 %v8274, %v8267
      %v8276 = vadd.f32 %v8275, %v8268
      %8277 = vadd.xlane.f32.xlu0 %v8276
      %v8278 = vpop.xlane.xlu0 %8277
      %v8279 = vperm.slane %v8231, 2
      %v8280 = vperm.slane %v8232, 2
      %v8281 = vperm.slane %v8233, 2
      %v8282 = vperm.slane %v8234, 2
      %v8283 = vmul.f32 %v7945, %v8279
      %v8284 = vmul.f32 %v8013, %v8280
      %v8285 = vmul.f32 %v8081, %v8281
      %v8286 = vmul.f32 %v8149, %v8282
      %v8287 = vmul.f32 %v7948, %v8279
      %v8288 = vmul.f32 %v8016, %v8280
      %v8289 = vmul.f32 %v8084, %v8281
      %v8290 = vmul.f32 %v8152, %v8282
      %v8291 = vadd.f32 %v8283, %v8284
      %v8292 = vadd.f32 %v8291, %v8285
      %v8293 = vadd.f32 %v8292, %v8286
      %8294 = vadd.xlane.f32.xlu0 %v8293
      %v8295 = vpop.xlane.xlu0 %8294
      %v8296 = vadd.f32 %v8287, %v8288
      %v8297 = vadd.f32 %v8296, %v8289
      %v8298 = vadd.f32 %v8297, %v8290
      %8299 = vadd.xlane.f32.xlu0 %v8298
      %v8300 = vpop.xlane.xlu0 %8299
      %v8301 = vperm.slane %v8231, 3
      %v8302 = vperm.slane %v8232, 3
      %v8303 = vperm.slane %v8233, 3
      %v8304 = vperm.slane %v8234, 3
      %v8305 = vmul.f32 %v7951, %v8301
      %v8306 = vmul.f32 %v8019, %v8302
      %v8307 = vmul.f32 %v8087, %v8303
      %v8308 = vmul.f32 %v8155, %v8304
      %v8309 = vmul.f32 %v7954, %v8301
      %v8310 = vmul.f32 %v8022, %v8302
      %v8311 = vmul.f32 %v8090, %v8303
      %v8312 = vmul.f32 %v8158, %v8304
      %v8313 = vadd.f32 %v8305, %v8306
      %v8314 = vadd.f32 %v8313, %v8307
      %v8315 = vadd.f32 %v8314, %v8308
      %8316 = vadd.xlane.f32.xlu0 %v8315
      %v8317 = vpop.xlane.xlu0 %8316
      %v8318 = vadd.f32 %v8309, %v8310
      %v8319 = vadd.f32 %v8318, %v8311
      %v8320 = vadd.f32 %v8319, %v8312
      %8321 = vadd.xlane.f32.xlu0 %v8320
      %v8322 = vpop.xlane.xlu0 %8321
      %v8323 = vmax.f32 %v7957, 0.0
      %v8324 = vmax.f32 %v8025, 0.0
      %v8325 = vmax.f32 %v8093, 0.0
      %v8326 = vmax.f32 %v8161, 0.0
      %v8327 = vmax.f32 %v7960, 0.0
      %v8328 = vmax.f32 %v8028, 0.0
      %v8329 = vmax.f32 %v8096, 0.0
      %v8330 = vmax.f32 %v8164, 0.0
      %v8331 = vmax.f32 %v7963, 0.0
      %v8332 = vmax.f32 %v8031, 0.0
      %v8333 = vmax.f32 %v8099, 0.0
      %v8334 = vmax.f32 %v8167, 0.0
      %v8335 = vmax.f32 %v7966, 0.0
      %v8336 = vmax.f32 %v8034, 0.0
      %v8337 = vmax.f32 %v8102, 0.0
      %v8338 = vmax.f32 %v8170, 0.0
      %v8339 = vmax.f32 %v7969, 0.0
      %v8340 = vmax.f32 %v8037, 0.0
      %v8341 = vmax.f32 %v8105, 0.0
      %v8342 = vmax.f32 %v8173, 0.0
      %v8343 = vmax.f32 %v7972, 0.0
      %v8344 = vmax.f32 %v8040, 0.0
      %v8345 = vmax.f32 %v8108, 0.0
      %v8346 = vmax.f32 %v8176, 0.0
      %v8347 = vmax.f32 %v7975, 0.0
      %v8348 = vmax.f32 %v8043, 0.0
      %v8349 = vmax.f32 %v8111, 0.0
      %v8350 = vmax.f32 %v8179, 0.0
      %v8351 = vmax.f32 %v7978, 0.0
      %v8352 = vmax.f32 %v8046, 0.0
      %v8353 = vmax.f32 %v8114, 0.0
      %v8354 = vmax.f32 %v8182, 0.0
      %8356 = vset.pattern.permute.xlu0 0
      %8357 = vperm.xlu0 %8356, %v8251
      %v8358 = vpop.permute.xlu0 %8357
      %8361 = vset.pattern.permute.xlu0 0
      %8362 = vperm.xlu0 %8361, %v8256
      %v8363 = vpop.permute.xlu0 %8362
      %8366 = vset.pattern.permute.xlu0 0
      %8367 = vperm.xlu0 %8366, %v8273
      %v8368 = vpop.permute.xlu0 %8367
      %8371 = vset.pattern.permute.xlu0 0
      %8372 = vperm.xlu0 %8371, %v8278
      %v8373 = vpop.permute.xlu0 %8372
      %8376 = vset.pattern.permute.xlu0 0
      %8377 = vperm.xlu0 %8376, %v8295
      %v8378 = vpop.permute.xlu0 %8377
      %8381 = vset.pattern.permute.xlu0 0
      %8382 = vperm.xlu0 %8381, %v8300
      %v8383 = vpop.permute.xlu0 %8382
      %8386 = vset.pattern.permute.xlu0 0
      %8387 = vperm.xlu0 %8386, %v8317
      %v8388 = vpop.permute.xlu0 %8387
      %8391 = vset.pattern.permute.xlu0 0
      %8392 = vperm.xlu0 %8391, %v8322
      %v8393 = vpop.permute.xlu0 %8392
      %v8395 = vmul.f32 %v8323, %v8358
      %v8396 = vmul.f32 %v8324, %v8358
      %v8397 = vmul.f32 %v8325, %v8358
      %v8398 = vmul.f32 %v8326, %v8358
      %v8399 = vmul.f32 %v8327, %v8363
      %v8400 = vmul.f32 %v8328, %v8363
      %v8401 = vmul.f32 %v8329, %v8363
      %v8402 = vmul.f32 %v8330, %v8363
      %v8403 = vmul.f32 %v8331, %v8368
      %v8404 = vmul.f32 %v8332, %v8368
      %v8405 = vmul.f32 %v8333, %v8368
      %v8406 = vmul.f32 %v8334, %v8368
      %v8407 = vmul.f32 %v8335, %v8373
      %v8408 = vmul.f32 %v8336, %v8373
      %v8409 = vmul.f32 %v8337, %v8373
      %v8410 = vmul.f32 %v8338, %v8373
      %v8411 = vmul.f32 %v8339, %v8378
      %v8412 = vmul.f32 %v8340, %v8378
      %v8413 = vmul.f32 %v8341, %v8378
      %v8414 = vmul.f32 %v8342, %v8378
      %v8415 = vmul.f32 %v8343, %v8383
      %v8416 = vmul.f32 %v8344, %v8383
      %v8417 = vmul.f32 %v8345, %v8383
      %v8418 = vmul.f32 %v8346, %v8383
      %v8419 = vmul.f32 %v8347, %v8388
      %v8420 = vmul.f32 %v8348, %v8388
      %v8421 = vmul.f32 %v8349, %v8388
      %v8422 = vmul.f32 %v8350, %v8388
      %v8423 = vmul.f32 %v8351, %v8393
      %v8424 = vmul.f32 %v8352, %v8393
      %v8425 = vmul.f32 %v8353, %v8393
      %v8426 = vmul.f32 %v8354, %v8393
      %8427 = vmatpush.msra.mxu0 0.0
      %8428 = vmatpush.msra.mxu0 0.0
      %8429 = vmatpush.msra.mxu0 0.0
      %8430 = vmatpush.msra.mxu0 0.0
      %8431 = vmatpush.msra.mxu0 0.0
      %8432 = vmatpush.msra.mxu0 0.0
      %8433 = vmatpush.msra.mxu0 0.0
      %8434 = vmatpush.msra.mxu0 0.0
      %8435 = vmatpush.msra.mxu0 %v8423
      %8436 = vmatpush.msra.mxu0 %v8419
      %8437 = vmatpush.msra.mxu0 %v8415
      %8438 = vmatpush.msra.mxu0 %v8411
      %8439 = vmatpush.msra.mxu0 %v8407
      %8440 = vmatpush.msra.mxu0 %v8403
      %8441 = vmatpush.msra.mxu0 %v8399
      %8442 = vmatpush.msra.mxu0 %v8395
      %8443 = vmatmul.f32.gmra.mxu0 %v4483
      %v8444 = vpop.f32.mrf.mxu0
      %v8445 = vadd.f32 %v4445, %v8444
      %8446 = vmatmul.f32.gmra.mxu0 %v4486
      %v8447 = vpop.f32.mrf.mxu0
      %v8448 = vadd.f32 %v4450, %v8447
      %8449 = vmatmul.f32.gmra.mxu0 %v4489
      %v8450 = vpop.f32.mrf.mxu0
      %v8451 = vadd.f32 %v4455, %v8450
      %8452 = vmatmul.f32.gmra.mxu0 %v4492
      %v8453 = vpop.f32.mrf.mxu0
      %v8454 = vadd.f32 %v4460, %v8453
      %8455 = vmatmul.f32.gmra.mxu0 %v4495
      %v8456 = vpop.f32.mrf.mxu0
      %v8457 = vadd.f32 %v4465, %v8456
      %8458 = vmatmul.f32.gmra.mxu0 %v4498
      %v8459 = vpop.f32.mrf.mxu0
      %v8460 = vadd.f32 %v4470, %v8459
      %8461 = vmatmul.f32.gmra.mxu0 %v4501
      %v8462 = vpop.f32.mrf.mxu0
      %v8463 = vadd.f32 %v4475, %v8462
      %8464 = vmatmul.f32.gmra.mxu0 %v4504
      %v8465 = vpop.f32.mrf.mxu0
      %v8466 = vadd.f32 %v4480, %v8465
      %8467 = vdwg.mxu0
      %8468 = vmatpush.msra.mxu0 0.0
      %8469 = vmatpush.msra.mxu0 0.0
      %8470 = vmatpush.msra.mxu0 0.0
      %8471 = vmatpush.msra.mxu0 0.0
      %8472 = vmatpush.msra.mxu0 0.0
      %8473 = vmatpush.msra.mxu0 0.0
      %8474 = vmatpush.msra.mxu0 0.0
      %8475 = vmatpush.msra.mxu0 0.0
      %8476 = vmatpush.msra.mxu0 %v8424
      %8477 = vmatpush.msra.mxu0 %v8420
      %8478 = vmatpush.msra.mxu0 %v8416
      %8479 = vmatpush.msra.mxu0 %v8412
      %8480 = vmatpush.msra.mxu0 %v8408
      %8481 = vmatpush.msra.mxu0 %v8404
      %8482 = vmatpush.msra.mxu0 %v8400
      %8483 = vmatpush.msra.mxu0 %v8396
      %8484 = vmatmul.f32.gmra.mxu0 %v4483
      %v8485 = vpop.f32.mrf.mxu0
      %v8486 = vadd.f32 %v4445, %v8485
      %8487 = vmatmul.f32.gmra.mxu0 %v4486
      %v8488 = vpop.f32.mrf.mxu0
      %v8489 = vadd.f32 %v4450, %v8488
      %8490 = vmatmul.f32.gmra.mxu0 %v4489
      %v8491 = vpop.f32.mrf.mxu0
      %v8492 = vadd.f32 %v4455, %v8491
      %8493 = vmatmul.f32.gmra.mxu0 %v4492
      %v8494 = vpop.f32.mrf.mxu0
      %v8495 = vadd.f32 %v4460, %v8494
      %8496 = vmatmul.f32.gmra.mxu0 %v4495
      %v8497 = vpop.f32.mrf.mxu0
      %v8498 = vadd.f32 %v4465, %v8497
      %8499 = vmatmul.f32.gmra.mxu0 %v4498
      %v8500 = vpop.f32.mrf.mxu0
      %v8501 = vadd.f32 %v4470, %v8500
      %8502 = vmatmul.f32.gmra.mxu0 %v4501
      %v8503 = vpop.f32.mrf.mxu0
      %v8504 = vadd.f32 %v4475, %v8503
      %8505 = vmatmul.f32.gmra.mxu0 %v4504
      %v8506 = vpop.f32.mrf.mxu0
      %v8507 = vadd.f32 %v4480, %v8506
      %8508 = vdwg.mxu0
      %8509 = vmatpush.msra.mxu0 0.0
      %8510 = vmatpush.msra.mxu0 0.0
      %8511 = vmatpush.msra.mxu0 0.0
      %8512 = vmatpush.msra.mxu0 0.0
      %8513 = vmatpush.msra.mxu0 0.0
      %8514 = vmatpush.msra.mxu0 0.0
      %8515 = vmatpush.msra.mxu0 0.0
      %8516 = vmatpush.msra.mxu0 0.0
      %8517 = vmatpush.msra.mxu0 %v8425
      %8518 = vmatpush.msra.mxu0 %v8421
      %8519 = vmatpush.msra.mxu0 %v8417
      %8520 = vmatpush.msra.mxu0 %v8413
      %8521 = vmatpush.msra.mxu0 %v8409
      %8522 = vmatpush.msra.mxu0 %v8405
      %8523 = vmatpush.msra.mxu0 %v8401
      %8524 = vmatpush.msra.mxu0 %v8397
      %8525 = vmatmul.f32.gmra.mxu0 %v4483
      %v8526 = vpop.f32.mrf.mxu0
      %v8527 = vadd.f32 %v4445, %v8526
      %8528 = vmatmul.f32.gmra.mxu0 %v4486
      %v8529 = vpop.f32.mrf.mxu0
      %v8530 = vadd.f32 %v4450, %v8529
      %8531 = vmatmul.f32.gmra.mxu0 %v4489
      %v8532 = vpop.f32.mrf.mxu0
      %v8533 = vadd.f32 %v4455, %v8532
      %8534 = vmatmul.f32.gmra.mxu0 %v4492
      %v8535 = vpop.f32.mrf.mxu0
      %v8536 = vadd.f32 %v4460, %v8535
      %8537 = vmatmul.f32.gmra.mxu0 %v4495
      %v8538 = vpop.f32.mrf.mxu0
      %v8539 = vadd.f32 %v4465, %v8538
      %8540 = vmatmul.f32.gmra.mxu0 %v4498
      %v8541 = vpop.f32.mrf.mxu0
      %v8542 = vadd.f32 %v4470, %v8541
      %8543 = vmatmul.f32.gmra.mxu0 %v4501
      %v8544 = vpop.f32.mrf.mxu0
      %v8545 = vadd.f32 %v4475, %v8544
      %8546 = vmatmul.f32.gmra.mxu0 %v4504
      %v8547 = vpop.f32.mrf.mxu0
      %v8548 = vadd.f32 %v4480, %v8547
      %8549 = vdwg.mxu0
      %8550 = vmatpush.msra.mxu0 0.0
      %8551 = vmatpush.msra.mxu0 0.0
      %8552 = vmatpush.msra.mxu0 0.0
      %8553 = vmatpush.msra.mxu0 0.0
      %8554 = vmatpush.msra.mxu0 0.0
      %8555 = vmatpush.msra.mxu0 0.0
      %8556 = vmatpush.msra.mxu0 0.0
      %8557 = vmatpush.msra.mxu0 0.0
      %8558 = vmatpush.msra.mxu0 %v8426
      %8559 = vmatpush.msra.mxu0 %v8422
      %8560 = vmatpush.msra.mxu0 %v8418
      %8561 = vmatpush.msra.mxu0 %v8414
      %8562 = vmatpush.msra.mxu0 %v8410
      %8563 = vmatpush.msra.mxu0 %v8406
      %8564 = vmatpush.msra.mxu0 %v8402
      %8565 = vmatpush.msra.mxu0 %v8398
      %8566 = vmatmul.f32.gmra.mxu0 %v4483
      %v8567 = vpop.f32.mrf.mxu0
      %v8568 = vadd.f32 %v4445, %v8567
      %8569 = vmatmul.f32.gmra.mxu0 %v4486
      %v8570 = vpop.f32.mrf.mxu0
      %v8571 = vadd.f32 %v4450, %v8570
      %8572 = vmatmul.f32.gmra.mxu0 %v4489
      %v8573 = vpop.f32.mrf.mxu0
      %v8574 = vadd.f32 %v4455, %v8573
      %8575 = vmatmul.f32.gmra.mxu0 %v4492
      %v8576 = vpop.f32.mrf.mxu0
      %v8577 = vadd.f32 %v4460, %v8576
      %8578 = vmatmul.f32.gmra.mxu0 %v4495
      %v8579 = vpop.f32.mrf.mxu0
      %v8580 = vadd.f32 %v4465, %v8579
      %8581 = vmatmul.f32.gmra.mxu0 %v4498
      %v8582 = vpop.f32.mrf.mxu0
      %v8583 = vadd.f32 %v4470, %v8582
      %8584 = vmatmul.f32.gmra.mxu0 %v4501
      %v8585 = vpop.f32.mrf.mxu0
      %v8586 = vadd.f32 %v4475, %v8585
      %8587 = vmatmul.f32.gmra.mxu0 %v4504
      %v8588 = vpop.f32.mrf.mxu0
      %v8589 = vadd.f32 %v4480, %v8588
      %8590 = vdwg.mxu0
      %v8591 = vmul.f32 %v8445, 0.5
      %v8592 = vmul.f32 %v8486, 0.5
      %v8593 = vmul.f32 %v8527, 0.5
      %v8594 = vmul.f32 %v8568, 0.5
      %v8595 = vmul.f32 %v8448, 0.5
      %v8596 = vmul.f32 %v8489, 0.5
      %v8597 = vmul.f32 %v8530, 0.5
      %v8598 = vmul.f32 %v8571, 0.5
      %v8599 = vmul.f32 %v8451, 0.5
      %v8600 = vmul.f32 %v8492, 0.5
      %v8601 = vmul.f32 %v8533, 0.5
      %v8602 = vmul.f32 %v8574, 0.5
      %v8603 = vmul.f32 %v8454, 0.5
      %v8604 = vmul.f32 %v8495, 0.5
      %v8605 = vmul.f32 %v8536, 0.5
      %v8606 = vmul.f32 %v8577, 0.5
      %v8607 = vmul.f32 %v8457, 0.5
      %v8608 = vmul.f32 %v8498, 0.5
      %v8609 = vmul.f32 %v8539, 0.5
      %v8610 = vmul.f32 %v8580, 0.5
      %v8611 = vmul.f32 %v8460, 0.5
      %v8612 = vmul.f32 %v8501, 0.5
      %v8613 = vmul.f32 %v8542, 0.5
      %v8614 = vmul.f32 %v8583, 0.5
      %v8615 = vmul.f32 %v8463, 0.5
      %v8616 = vmul.f32 %v8504, 0.5
      %v8617 = vmul.f32 %v8545, 0.5
      %v8618 = vmul.f32 %v8586, 0.5
      %v8619 = vmul.f32 %v8466, 0.5
      %v8620 = vmul.f32 %v8507, 0.5
      %v8621 = vmul.f32 %v8548, 0.5
      %v8622 = vmul.f32 %v8589, 0.5
      %v8623 = vmul.f32 %v7567, 0.5
      %v8624 = vmul.f32 %v7568, 0.5
      %v8625 = vmul.f32 %v7569, 0.5
      %v8626 = vmul.f32 %v7570, 0.5
      %v8627 = vmul.f32 %v7571, 0.5
      %v8628 = vmul.f32 %v7572, 0.5
      %v8629 = vmul.f32 %v7573, 0.5
      %v8630 = vmul.f32 %v7574, 0.5
      %v8631 = vmul.f32 %v7575, 0.5
      %v8632 = vmul.f32 %v7576, 0.5
      %v8633 = vmul.f32 %v7577, 0.5
      %v8634 = vmul.f32 %v7578, 0.5
      %v8635 = vmul.f32 %v7579, 0.5
      %v8636 = vmul.f32 %v7580, 0.5
      %v8637 = vmul.f32 %v7581, 0.5
      %v8638 = vmul.f32 %v7582, 0.5
      %v8639 = vmul.f32 %v7583, 0.5
      %v8640 = vmul.f32 %v7584, 0.5
      %v8641 = vmul.f32 %v7585, 0.5
      %v8642 = vmul.f32 %v7586, 0.5
      %v8643 = vmul.f32 %v7587, 0.5
      %v8644 = vmul.f32 %v7588, 0.5
      %v8645 = vmul.f32 %v7589, 0.5
      %v8646 = vmul.f32 %v7590, 0.5
      %v8647 = vmul.f32 %v7591, 0.5
      %v8648 = vmul.f32 %v7592, 0.5
      %v8649 = vmul.f32 %v7593, 0.5
      %v8650 = vmul.f32 %v7594, 0.5
      %v8651 = vmul.f32 %v7595, 0.5
      %v8652 = vmul.f32 %v7596, 0.5
      %v8653 = vmul.f32 %v7597, 0.5
      %v8654 = vmul.f32 %v7598, 0.5
      %v8655 = vadd.f32 %v8591, %v8623
      %v8656 = vadd.f32 %v8592, %v8624
      %v8657 = vadd.f32 %v8593, %v8625
      %v8658 = vadd.f32 %v8594, %v8626
      %v8659 = vadd.f32 %v8595, %v8627
      %v8660 = vadd.f32 %v8596, %v8628
      %v8661 = vadd.f32 %v8597, %v8629
      %v8662 = vadd.f32 %v8598, %v8630
      %v8663 = vadd.f32 %v8599, %v8631
      %v8664 = vadd.f32 %v8600, %v8632
      %v8665 = vadd.f32 %v8601, %v8633
      %v8666 = vadd.f32 %v8602, %v8634
      %v8667 = vadd.f32 %v8603, %v8635
      %v8668 = vadd.f32 %v8604, %v8636
      %v8669 = vadd.f32 %v8605, %v8637
      %v8670 = vadd.f32 %v8606, %v8638
      %v8671 = vadd.f32 %v8607, %v8639
      %v8672 = vadd.f32 %v8608, %v8640
      %v8673 = vadd.f32 %v8609, %v8641
      %v8674 = vadd.f32 %v8610, %v8642
      %v8675 = vadd.f32 %v8611, %v8643
      %v8676 = vadd.f32 %v8612, %v8644
      %v8677 = vadd.f32 %v8613, %v8645
      %v8678 = vadd.f32 %v8614, %v8646
      %v8679 = vadd.f32 %v8615, %v8647
      %v8680 = vadd.f32 %v8616, %v8648
      %v8681 = vadd.f32 %v8617, %v8649
      %v8682 = vadd.f32 %v8618, %v8650
      %v8683 = vadd.f32 %v8619, %v8651
      %v8684 = vadd.f32 %v8620, %v8652
      %v8685 = vadd.f32 %v8621, %v8653
      %v8686 = vadd.f32 %v8622, %v8654
      %v8687 = vadd.f32 %v8655, %v8659
      %v8688 = vadd.f32 %v8687, %v8663
      %v8689 = vadd.f32 %v8688, %v8667
      %v8690 = vadd.f32 %v8689, %v8671
      %v8691 = vadd.f32 %v8690, %v8675
      %v8692 = vadd.f32 %v8691, %v8679
      %v8693 = vadd.f32 %v8692, %v8683
      %v8694 = vrot.slane %v8693, 4
      %v8695 = vadd.f32 %v8693, %v8694
      %v8696 = vrot.slane %v8695, 2
      %v8697 = vadd.f32 %v8695, %v8696
      %v8698 = vrot.slane %v8697, 1
      %v8699 = vadd.f32 %v8697, %v8698
      %v8700 = vadd.f32 %v8656, %v8660
      %v8701 = vadd.f32 %v8700, %v8664
      %v8702 = vadd.f32 %v8701, %v8668
      %v8703 = vadd.f32 %v8702, %v8672
      %v8704 = vadd.f32 %v8703, %v8676
      %v8705 = vadd.f32 %v8704, %v8680
      %v8706 = vadd.f32 %v8705, %v8684
      %v8707 = vrot.slane %v8706, 4
      %v8708 = vadd.f32 %v8706, %v8707
      %v8709 = vrot.slane %v8708, 2
      %v8710 = vadd.f32 %v8708, %v8709
      %v8711 = vrot.slane %v8710, 1
      %v8712 = vadd.f32 %v8710, %v8711
      %v8713 = vadd.f32 %v8657, %v8661
      %v8714 = vadd.f32 %v8713, %v8665
      %v8715 = vadd.f32 %v8714, %v8669
      %v8716 = vadd.f32 %v8715, %v8673
      %v8717 = vadd.f32 %v8716, %v8677
      %v8718 = vadd.f32 %v8717, %v8681
      %v8719 = vadd.f32 %v8718, %v8685
      %v8720 = vrot.slane %v8719, 4
      %v8721 = vadd.f32 %v8719, %v8720
      %v8722 = vrot.slane %v8721, 2
      %v8723 = vadd.f32 %v8721, %v8722
      %v8724 = vrot.slane %v8723, 1
      %v8725 = vadd.f32 %v8723, %v8724
      %v8726 = vadd.f32 %v8658, %v8662
      %v8727 = vadd.f32 %v8726, %v8666
      %v8728 = vadd.f32 %v8727, %v8670
      %v8729 = vadd.f32 %v8728, %v8674
      %v8730 = vadd.f32 %v8729, %v8678
      %v8731 = vadd.f32 %v8730, %v8682
      %v8732 = vadd.f32 %v8731, %v8686
      %v8733 = vrot.slane %v8732, 4
      %v8734 = vadd.f32 %v8732, %v8733
      %v8735 = vrot.slane %v8734, 2
      %v8736 = vadd.f32 %v8734, %v8735
      %v8737 = vrot.slane %v8736, 1
      %v8738 = vadd.f32 %v8736, %v8737
      %v8739 = vmul.f32 %v8699, %v3448
      %v8740 = vmul.f32 %v8712, %v3448
      %v8741 = vmul.f32 %v8725, %v3448
      %v8742 = vmul.f32 %v8738, %v3448
      %v8743 = vsub.f32 %v8655, %v8739
      %v8744 = vsub.f32 %v8656, %v8740
      %v8745 = vsub.f32 %v8657, %v8741
      %v8746 = vsub.f32 %v8658, %v8742
      %v8747 = vsub.f32 %v8659, %v8739
      %v8748 = vsub.f32 %v8660, %v8740
      %v8749 = vsub.f32 %v8661, %v8741
      %v8750 = vsub.f32 %v8662, %v8742
      %v8751 = vsub.f32 %v8663, %v8739
      %v8752 = vsub.f32 %v8664, %v8740
      %v8753 = vsub.f32 %v8665, %v8741
      %v8754 = vsub.f32 %v8666, %v8742
      %v8755 = vsub.f32 %v8667, %v8739
      %v8756 = vsub.f32 %v8668, %v8740
      %v8757 = vsub.f32 %v8669, %v8741
      %v8758 = vsub.f32 %v8670, %v8742
      %v8759 = vsub.f32 %v8671, %v8739
      %v8760 = vsub.f32 %v8672, %v8740
      %v8761 = vsub.f32 %v8673, %v8741
      %v8762 = vsub.f32 %v8674, %v8742
      %v8763 = vsub.f32 %v8675, %v8739
      %v8764 = vsub.f32 %v8676, %v8740
      %v8765 = vsub.f32 %v8677, %v8741
      %v8766 = vsub.f32 %v8678, %v8742
      %v8767 = vsub.f32 %v8679, %v8739
      %v8768 = vsub.f32 %v8680, %v8740
      %v8769 = vsub.f32 %v8681, %v8741
      %v8770 = vsub.f32 %v8682, %v8742
      %v8771 = vsub.f32 %v8683, %v8739
      %v8772 = vsub.f32 %v8684, %v8740
      %v8773 = vsub.f32 %v8685, %v8741
      %v8774 = vsub.f32 %v8686, %v8742
      %v8775 = vmul.f32 %v8743, %v8743
      %v8776 = vmul.f32 %v8744, %v8744
      %v8777 = vmul.f32 %v8745, %v8745
      %v8778 = vmul.f32 %v8746, %v8746
      %v8779 = vmul.f32 %v8747, %v8747
      %v8780 = vmul.f32 %v8748, %v8748
      %v8781 = vmul.f32 %v8749, %v8749
      %v8782 = vmul.f32 %v8750, %v8750
      %v8783 = vmul.f32 %v8751, %v8751
      %v8784 = vmul.f32 %v8752, %v8752
      %v8785 = vmul.f32 %v8753, %v8753
      %v8786 = vmul.f32 %v8754, %v8754
      %v8787 = vmul.f32 %v8755, %v8755
      %v8788 = vmul.f32 %v8756, %v8756
      %v8789 = vmul.f32 %v8757, %v8757
      %v8790 = vmul.f32 %v8758, %v8758
      %v8791 = vmul.f32 %v8759, %v8759
      %v8792 = vmul.f32 %v8760, %v8760
      %v8793 = vmul.f32 %v8761, %v8761
      %v8794 = vmul.f32 %v8762, %v8762
      %v8795 = vmul.f32 %v8763, %v8763
      %v8796 = vmul.f32 %v8764, %v8764
      %v8797 = vmul.f32 %v8765, %v8765
      %v8798 = vmul.f32 %v8766, %v8766
      %v8799 = vmul.f32 %v8767, %v8767
      %v8800 = vmul.f32 %v8768, %v8768
      %v8801 = vmul.f32 %v8769, %v8769
      %v8802 = vmul.f32 %v8770, %v8770
      %v8803 = vmul.f32 %v8771, %v8771
      %v8804 = vmul.f32 %v8772, %v8772
      %v8805 = vmul.f32 %v8773, %v8773
      %v8806 = vmul.f32 %v8774, %v8774
      %v8807 = vadd.f32 %v8775, %v8779
      %v8808 = vadd.f32 %v8807, %v8783
      %v8809 = vadd.f32 %v8808, %v8787
      %v8810 = vadd.f32 %v8809, %v8791
      %v8811 = vadd.f32 %v8810, %v8795
      %v8812 = vadd.f32 %v8811, %v8799
      %v8813 = vadd.f32 %v8812, %v8803
      %v8814 = vrot.slane %v8813, 4
      %v8815 = vadd.f32 %v8813, %v8814
      %v8816 = vrot.slane %v8815, 2
      %v8817 = vadd.f32 %v8815, %v8816
      %v8818 = vrot.slane %v8817, 1
      %v8819 = vadd.f32 %v8817, %v8818
      %v8820 = vadd.f32 %v8776, %v8780
      %v8821 = vadd.f32 %v8820, %v8784
      %v8822 = vadd.f32 %v8821, %v8788
      %v8823 = vadd.f32 %v8822, %v8792
      %v8824 = vadd.f32 %v8823, %v8796
      %v8825 = vadd.f32 %v8824, %v8800
      %v8826 = vadd.f32 %v8825, %v8804
      %v8827 = vrot.slane %v8826, 4
      %v8828 = vadd.f32 %v8826, %v8827
      %v8829 = vrot.slane %v8828, 2
      %v8830 = vadd.f32 %v8828, %v8829
      %v8831 = vrot.slane %v8830, 1
      %v8832 = vadd.f32 %v8830, %v8831
      %v8833 = vadd.f32 %v8777, %v8781
      %v8834 = vadd.f32 %v8833, %v8785
      %v8835 = vadd.f32 %v8834, %v8789
      %v8836 = vadd.f32 %v8835, %v8793
      %v8837 = vadd.f32 %v8836, %v8797
      %v8838 = vadd.f32 %v8837, %v8801
      %v8839 = vadd.f32 %v8838, %v8805
      %v8840 = vrot.slane %v8839, 4
      %v8841 = vadd.f32 %v8839, %v8840
      %v8842 = vrot.slane %v8841, 2
      %v8843 = vadd.f32 %v8841, %v8842
      %v8844 = vrot.slane %v8843, 1
      %v8845 = vadd.f32 %v8843, %v8844
      %v8846 = vadd.f32 %v8778, %v8782
      %v8847 = vadd.f32 %v8846, %v8786
      %v8848 = vadd.f32 %v8847, %v8790
      %v8849 = vadd.f32 %v8848, %v8794
      %v8850 = vadd.f32 %v8849, %v8798
      %v8851 = vadd.f32 %v8850, %v8802
      %v8852 = vadd.f32 %v8851, %v8806
      %v8853 = vrot.slane %v8852, 4
      %v8854 = vadd.f32 %v8852, %v8853
      %v8855 = vrot.slane %v8854, 2
      %v8856 = vadd.f32 %v8854, %v8855
      %v8857 = vrot.slane %v8856, 1
      %v8858 = vadd.f32 %v8856, %v8857
      %v8859 = vmul.f32 %v8819, %v3448
      %v8860 = vmul.f32 %v8832, %v3448
      %v8861 = vmul.f32 %v8845, %v3448
      %v8862 = vmul.f32 %v8858, %v3448
      %v8863 = vadd.f32 %v8859, 1e-05
      %v8864 = vadd.f32 %v8860, 1e-05
      %v8865 = vadd.f32 %v8861, 1e-05
      %v8866 = vadd.f32 %v8862, 1e-05
      %v8867 = vrsqrt.pop %v8863
      %v8868 = vmul.f32 %v8867, %v8863
      %v8869 = vmul.f32 %v8868, %v8867
      %v8870 = vmul.f32 0.5, %v8869
      %v8871 = vsub.f32 1.5, %v8870
      %v8872 = vmul.f32 %v8867, %v8871
      %vm8873 = vweird.f32 %v8863
      %vm8874 = vweird.f32 %v8867
      %vm8875 = vmor %vm8873, %vm8874
      %v8876 = vsel %vm8875, %v8867, %v8872
      %v8877 = vrsqrt.pop %v8864
      %v8878 = vmul.f32 %v8877, %v8864
      %v8879 = vmul.f32 %v8878, %v8877
      %v8880 = vmul.f32 0.5, %v8879
      %v8881 = vsub.f32 1.5, %v8880
      %v8882 = vmul.f32 %v8877, %v8881
      %vm8883 = vweird.f32 %v8864
      %vm8884 = vweird.f32 %v8877
      %vm8885 = vmor %vm8883, %vm8884
      %v8886 = vsel %vm8885, %v8877, %v8882
      %v8887 = vrsqrt.pop %v8865
      %v8888 = vmul.f32 %v8887, %v8865
      %v8889 = vmul.f32 %v8888, %v8887
      %v8890 = vmul.f32 0.5, %v8889
      %v8891 = vsub.f32 1.5, %v8890
      %v8892 = vmul.f32 %v8887, %v8891
      %vm8893 = vweird.f32 %v8865
      %vm8894 = vweird.f32 %v8887
      %vm8895 = vmor %vm8893, %vm8894
      %v8896 = vsel %vm8895, %v8887, %v8892
      %v8897 = vrsqrt.pop %v8866
      %v8898 = vmul.f32 %v8897, %v8866
      %v8899 = vmul.f32 %v8898, %v8897
      %v8900 = vmul.f32 0.5, %v8899
      %v8901 = vsub.f32 1.5, %v8900
      %v8902 = vmul.f32 %v8897, %v8901
      %vm8903 = vweird.f32 %v8866
      %vm8904 = vweird.f32 %v8897
      %vm8905 = vmor %vm8903, %vm8904
      %v8906 = vsel %vm8905, %v8897, %v8902
      %v8907 = vmul.f32 %v8743, %v8876
      %v8908 = vmul.f32 %v8744, %v8886
      %v8909 = vmul.f32 %v8745, %v8896
      %v8910 = vmul.f32 %v8746, %v8906
      %v8911 = vmul.f32 %v8747, %v8876
      %v8912 = vmul.f32 %v8748, %v8886
      %v8913 = vmul.f32 %v8749, %v8896
      %v8914 = vmul.f32 %v8750, %v8906
      %v8915 = vmul.f32 %v8751, %v8876
      %v8916 = vmul.f32 %v8752, %v8886
      %v8917 = vmul.f32 %v8753, %v8896
      %v8918 = vmul.f32 %v8754, %v8906
      %v8919 = vmul.f32 %v8755, %v8876
      %v8920 = vmul.f32 %v8756, %v8886
      %v8921 = vmul.f32 %v8757, %v8896
      %v8922 = vmul.f32 %v8758, %v8906
      %v8923 = vmul.f32 %v8759, %v8876
      %v8924 = vmul.f32 %v8760, %v8886
      %v8925 = vmul.f32 %v8761, %v8896
      %v8926 = vmul.f32 %v8762, %v8906
      %v8927 = vmul.f32 %v8763, %v8876
      %v8928 = vmul.f32 %v8764, %v8886
      %v8929 = vmul.f32 %v8765, %v8896
      %v8930 = vmul.f32 %v8766, %v8906
      %v8931 = vmul.f32 %v8767, %v8876
      %v8932 = vmul.f32 %v8768, %v8886
      %v8933 = vmul.f32 %v8769, %v8896
      %v8934 = vmul.f32 %v8770, %v8906
      %v8935 = vmul.f32 %v8771, %v8876
      %v8936 = vmul.f32 %v8772, %v8886
      %v8937 = vmul.f32 %v8773, %v8896
      %v8938 = vmul.f32 %v8774, %v8906
      %v8939 = vmul.f32 %v8907, %v5021
      %v8940 = vmul.f32 %v8908, %v5021
      %v8941 = vmul.f32 %v8909, %v5021
      %v8942 = vmul.f32 %v8910, %v5021
      %v8943 = vmul.f32 %v8911, %v5026
      %v8944 = vmul.f32 %v8912, %v5026
      %v8945 = vmul.f32 %v8913, %v5026
      %v8946 = vmul.f32 %v8914, %v5026
      %v8947 = vmul.f32 %v8915, %v5031
      %v8948 = vmul.f32 %v8916, %v5031
      %v8949 = vmul.f32 %v8917, %v5031
      %v8950 = vmul.f32 %v8918, %v5031
      %v8951 = vmul.f32 %v8919, %v5036
      %v8952 = vmul.f32 %v8920, %v5036
      %v8953 = vmul.f32 %v8921, %v5036
      %v8954 = vmul.f32 %v8922, %v5036
      %v8955 = vmul.f32 %v8923, %v5041
      %v8956 = vmul.f32 %v8924, %v5041
      %v8957 = vmul.f32 %v8925, %v5041
      %v8958 = vmul.f32 %v8926, %v5041
      %v8959 = vmul.f32 %v8927, %v5046
      %v8960 = vmul.f32 %v8928, %v5046
      %v8961 = vmul.f32 %v8929, %v5046
      %v8962 = vmul.f32 %v8930, %v5046
      %v8963 = vmul.f32 %v8931, %v5051
      %v8964 = vmul.f32 %v8932, %v5051
      %v8965 = vmul.f32 %v8933, %v5051
      %v8966 = vmul.f32 %v8934, %v5051
      %v8967 = vmul.f32 %v8935, %v5056
      %v8968 = vmul.f32 %v8936, %v5056
      %v8969 = vmul.f32 %v8937, %v5056
      %v8970 = vmul.f32 %v8938, %v5056
      %v8971 = vadd.f32 %v8939, %v5093
      %v8972 = vadd.f32 %v8940, %v5093
      %v8973 = vadd.f32 %v8941, %v5093
      %v8974 = vadd.f32 %v8942, %v5093
      %v8975 = vadd.f32 %v8943, %v5098
      %v8976 = vadd.f32 %v8944, %v5098
      %v8977 = vadd.f32 %v8945, %v5098
      %v8978 = vadd.f32 %v8946, %v5098
      %v8979 = vadd.f32 %v8947, %v5103
      %v8980 = vadd.f32 %v8948, %v5103
      %v8981 = vadd.f32 %v8949, %v5103
      %v8982 = vadd.f32 %v8950, %v5103
      %v8983 = vadd.f32 %v8951, %v5108
      %v8984 = vadd.f32 %v8952, %v5108
      %v8985 = vadd.f32 %v8953, %v5108
      %v8986 = vadd.f32 %v8954, %v5108
      %v8987 = vadd.f32 %v8955, %v5113
      %v8988 = vadd.f32 %v8956, %v5113
      %v8989 = vadd.f32 %v8957, %v5113
      %v8990 = vadd.f32 %v8958, %v5113
      %v8991 = vadd.f32 %v8959, %v5118
      %v8992 = vadd.f32 %v8960, %v5118
      %v8993 = vadd.f32 %v8961, %v5118
      %v8994 = vadd.f32 %v8962, %v5118
      %v8995 = vadd.f32 %v8963, %v5123
      %v8996 = vadd.f32 %v8964, %v5123
      %v8997 = vadd.f32 %v8965, %v5123
      %v8998 = vadd.f32 %v8966, %v5123
      %v8999 = vadd.f32 %v8967, %v5128
      %v9000 = vadd.f32 %v8968, %v5128
      %v9001 = vadd.f32 %v8969, %v5128
      %v9002 = vadd.f32 %v8970, %v5128
      %9003 = vmatpush.msra.mxu0 0.0
      %9004 = vmatpush.msra.mxu0 0.0
      %9005 = vmatpush.msra.mxu0 0.0
      %9006 = vmatpush.msra.mxu0 0.0
      %9007 = vmatpush.msra.mxu0 0.0
      %9008 = vmatpush.msra.mxu0 0.0
      %9009 = vmatpush.msra.mxu0 0.0
      %9010 = vmatpush.msra.mxu0 0.0
      %9011 = vmatpush.msra.mxu0 %v8999
      %9012 = vmatpush.msra.mxu0 %v8995
      %9013 = vmatpush.msra.mxu0 %v8991
      %9014 = vmatpush.msra.mxu0 %v8987
      %9015 = vmatpush.msra.mxu0 %v8983
      %9016 = vmatpush.msra.mxu0 %v8979
      %9017 = vmatpush.msra.mxu0 %v8975
      %9018 = vmatpush.msra.mxu0 %v8971
      %9019 = vmatmul.f32.gmra.mxu0 %v5173
      %v9020 = vpop.f32.mrf.mxu0
      %v9021 = vadd.f32 %v5165, %v9020
      %9022 = vmatmul.f32.gmra.mxu0 %v5176
      %v9023 = vpop.f32.mrf.mxu0
      %v9024 = vadd.f32 %v5170, %v9023
      %9025 = vdwg.mxu0
      %9026 = vmatpush.msra.mxu0 0.0
      %9027 = vmatpush.msra.mxu0 0.0
      %9028 = vmatpush.msra.mxu0 0.0
      %9029 = vmatpush.msra.mxu0 0.0
      %9030 = vmatpush.msra.mxu0 0.0
      %9031 = vmatpush.msra.mxu0 0.0
      %9032 = vmatpush.msra.mxu0 0.0
      %9033 = vmatpush.msra.mxu0 0.0
      %9034 = vmatpush.msra.mxu0 %v9000
      %9035 = vmatpush.msra.mxu0 %v8996
      %9036 = vmatpush.msra.mxu0 %v8992
      %9037 = vmatpush.msra.mxu0 %v8988
      %9038 = vmatpush.msra.mxu0 %v8984
      %9039 = vmatpush.msra.mxu0 %v8980
      %9040 = vmatpush.msra.mxu0 %v8976
      %9041 = vmatpush.msra.mxu0 %v8972
      %9042 = vmatmul.f32.gmra.mxu0 %v5173
      %v9043 = vpop.f32.mrf.mxu0
      %v9044 = vadd.f32 %v5165, %v9043
      %9045 = vmatmul.f32.gmra.mxu0 %v5176
      %v9046 = vpop.f32.mrf.mxu0
      %v9047 = vadd.f32 %v5170, %v9046
      %9048 = vdwg.mxu0
      %9049 = vmatpush.msra.mxu0 0.0
      %9050 = vmatpush.msra.mxu0 0.0
      %9051 = vmatpush.msra.mxu0 0.0
      %9052 = vmatpush.msra.mxu0 0.0
      %9053 = vmatpush.msra.mxu0 0.0
      %9054 = vmatpush.msra.mxu0 0.0
      %9055 = vmatpush.msra.mxu0 0.0
      %9056 = vmatpush.msra.mxu0 0.0
      %9057 = vmatpush.msra.mxu0 %v9001
      %9058 = vmatpush.msra.mxu0 %v8997
      %9059 = vmatpush.msra.mxu0 %v8993
      %9060 = vmatpush.msra.mxu0 %v8989
      %9061 = vmatpush.msra.mxu0 %v8985
      %9062 = vmatpush.msra.mxu0 %v8981
      %9063 = vmatpush.msra.mxu0 %v8977
      %9064 = vmatpush.msra.mxu0 %v8973
      %9065 = vmatmul.f32.gmra.mxu0 %v5173
      %v9066 = vpop.f32.mrf.mxu0
      %v9067 = vadd.f32 %v5165, %v9066
      %9068 = vmatmul.f32.gmra.mxu0 %v5176
      %v9069 = vpop.f32.mrf.mxu0
      %v9070 = vadd.f32 %v5170, %v9069
      %9071 = vdwg.mxu0
      %9072 = vmatpush.msra.mxu0 0.0
      %9073 = vmatpush.msra.mxu0 0.0
      %9074 = vmatpush.msra.mxu0 0.0
      %9075 = vmatpush.msra.mxu0 0.0
      %9076 = vmatpush.msra.mxu0 0.0
      %9077 = vmatpush.msra.mxu0 0.0
      %9078 = vmatpush.msra.mxu0 0.0
      %9079 = vmatpush.msra.mxu0 0.0
      %9080 = vmatpush.msra.mxu0 %v9002
      %9081 = vmatpush.msra.mxu0 %v8998
      %9082 = vmatpush.msra.mxu0 %v8994
      %9083 = vmatpush.msra.mxu0 %v8990
      %9084 = vmatpush.msra.mxu0 %v8986
      %9085 = vmatpush.msra.mxu0 %v8982
      %9086 = vmatpush.msra.mxu0 %v8978
      %9087 = vmatpush.msra.mxu0 %v8974
      %9088 = vmatmul.f32.gmra.mxu0 %v5173
      %v9089 = vpop.f32.mrf.mxu0
      %v9090 = vadd.f32 %v5165, %v9089
      %9091 = vmatmul.f32.gmra.mxu0 %v5176
      %v9092 = vpop.f32.mrf.mxu0
      %v9093 = vadd.f32 %v5170, %v9092
      %9094 = vdwg.mxu0
      %vm9095 = vcmp.gt.f32.partialorder %v9021, 0.0
      %vm9096 = vcmp.gt.f32.partialorder %v9044, 0.0
      %vm9097 = vcmp.gt.f32.partialorder %v9067, 0.0
      %vm9098 = vcmp.gt.f32.partialorder %v9090, 0.0
      %vm9099 = vcmp.gt.f32.partialorder %v9024, 0.0
      %vm9100 = vcmp.gt.f32.partialorder %v9047, 0.0
      %vm9101 = vcmp.gt.f32.partialorder %v9070, 0.0
      %vm9102 = vcmp.gt.f32.partialorder %v9093, 0.0
      %v9103 = vmin.f32 %v9021, 0.0
      %v9104 = vmin.f32 %v9044, 0.0
      %v9105 = vmin.f32 %v9067, 0.0
      %v9106 = vmin.f32 %v9090, 0.0
      %v9107 = vmin.f32 %v9024, 0.0
      %v9108 = vmin.f32 %v9047, 0.0
      %v9109 = vmin.f32 %v9070, 0.0
      %v9110 = vmin.f32 %v9093, 0.0
      %v9111 = vmul.f32 %v9103, 1.442695
      %v9112 = vpow.pop %v9111
      %v9113 = vmul.f32 %v9104, 1.442695
      %v9114 = vpow.pop %v9113
      %v9115 = vmul.f32 %v9105, 1.442695
      %v9116 = vpow.pop %v9115
      %v9117 = vmul.f32 %v9106, 1.442695
      %v9118 = vpow.pop %v9117
      %v9119 = vmul.f32 %v9107, 1.442695
      %v9120 = vpow.pop %v9119
      %v9121 = vmul.f32 %v9108, 1.442695
      %v9122 = vpow.pop %v9121
      %v9123 = vmul.f32 %v9109, 1.442695
      %v9124 = vpow.pop %v9123
      %v9125 = vmul.f32 %v9110, 1.442695
      %v9126 = vpow.pop %v9125
      %v9127 = vsub.f32 %v9112, 1.0
      %v9128 = vsub.f32 %v9114, 1.0
      %v9129 = vsub.f32 %v9116, 1.0
      %v9130 = vsub.f32 %v9118, 1.0
      %v9131 = vsub.f32 %v9120, 1.0
      %v9132 = vsub.f32 %v9122, 1.0
      %v9133 = vsub.f32 %v9124, 1.0
      %v9134 = vsub.f32 %v9126, 1.0
      %v9135 = vsel %vm9095, %v9021, %v9127
      %v9136 = vsel %vm9096, %v9044, %v9128
      %v9137 = vsel %vm9097, %v9067, %v9129
      %v9138 = vsel %vm9098, %v9090, %v9130
      %v9139 = vsel %vm9099, %v9024, %v9131
      %v9140 = vsel %vm9100, %v9047, %v9132
      %v9141 = vsel %vm9101, %v9070, %v9133
      %v9142 = vsel %vm9102, %v9093, %v9134
      %9143 = vmatpush.msra.mxu0 0.0
      %9144 = vmatpush.msra.mxu0 0.0
      %9145 = vmatpush.msra.mxu0 0.0
      %9146 = vmatpush.msra.mxu0 0.0
      %9147 = vmatpush.msra.mxu0 0.0
      %9148 = vmatpush.msra.mxu0 0.0
      %9149 = vmatpush.msra.mxu0 0.0
      %9150 = vmatpush.msra.mxu0 0.0
      %9151 = vmatpush.msra.mxu0 0.0
      %9152 = vmatpush.msra.mxu0 0.0
      %9153 = vmatpush.msra.mxu0 0.0
      %9154 = vmatpush.msra.mxu0 0.0
      %9155 = vmatpush.msra.mxu0 0.0
      %9156 = vmatpush.msra.mxu0 0.0
      %9157 = vmatpush.msra.mxu0 %v9139
      %9158 = vmatpush.msra.mxu0 %v9135
      %9159 = vmatmul.f32.gmra.mxu0 %v5359
      %v9160 = vpop.f32.mrf.mxu0
      %v9161 = vadd.f32 %v5321, %v9160
      %9162 = vmatmul.f32.gmra.mxu0 %v5362
      %v9163 = vpop.f32.mrf.mxu0
      %v9164 = vadd.f32 %v5326, %v9163
      %9165 = vmatmul.f32.gmra.mxu0 %v5365
      %v9166 = vpop.f32.mrf.mxu0
      %v9167 = vadd.f32 %v5331, %v9166
      %9168 = vmatmul.f32.gmra.mxu0 %v5368
      %v9169 = vpop.f32.mrf.mxu0
      %v9170 = vadd.f32 %v5336, %v9169
      %9171 = vmatmul.f32.gmra.mxu0 %v5371
      %v9172 = vpop.f32.mrf.mxu0
      %v9173 = vadd.f32 %v5341, %v9172
      %9174 = vmatmul.f32.gmra.mxu0 %v5374
      %v9175 = vpop.f32.mrf.mxu0
      %v9176 = vadd.f32 %v5346, %v9175
      %9177 = vmatmul.f32.gmra.mxu0 %v5377
      %v9178 = vpop.f32.mrf.mxu0
      %v9179 = vadd.f32 %v5351, %v9178
      %9180 = vmatmul.f32.gmra.mxu0 %v5380
      %v9181 = vpop.f32.mrf.mxu0
      %v9182 = vadd.f32 %v5356, %v9181
      %9183 = vdwg.mxu0
      %9184 = vmatpush.msra.mxu0 0.0
      %9185 = vmatpush.msra.mxu0 0.0
      %9186 = vmatpush.msra.mxu0 0.0
      %9187 = vmatpush.msra.mxu0 0.0
      %9188 = vmatpush.msra.mxu0 0.0
      %9189 = vmatpush.msra.mxu0 0.0
      %9190 = vmatpush.msra.mxu0 0.0
      %9191 = vmatpush.msra.mxu0 0.0
      %9192 = vmatpush.msra.mxu0 0.0
      %9193 = vmatpush.msra.mxu0 0.0
      %9194 = vmatpush.msra.mxu0 0.0
      %9195 = vmatpush.msra.mxu0 0.0
      %9196 = vmatpush.msra.mxu0 0.0
      %9197 = vmatpush.msra.mxu0 0.0
      %9198 = vmatpush.msra.mxu0 %v9140
      %9199 = vmatpush.msra.mxu0 %v9136
      %9200 = vmatmul.f32.gmra.mxu0 %v5359
      %v9201 = vpop.f32.mrf.mxu0
      %v9202 = vadd.f32 %v5321, %v9201
      %9203 = vmatmul.f32.gmra.mxu0 %v5362
      %v9204 = vpop.f32.mrf.mxu0
      %v9205 = vadd.f32 %v5326, %v9204
      %9206 = vmatmul.f32.gmra.mxu0 %v5365
      %v9207 = vpop.f32.mrf.mxu0
      %v9208 = vadd.f32 %v5331, %v9207
      %9209 = vmatmul.f32.gmra.mxu0 %v5368
      %v9210 = vpop.f32.mrf.mxu0
      %v9211 = vadd.f32 %v5336, %v9210
      %9212 = vmatmul.f32.gmra.mxu0 %v5371
      %v9213 = vpop.f32.mrf.mxu0
      %v9214 = vadd.f32 %v5341, %v9213
      %9215 = vmatmul.f32.gmra.mxu0 %v5374
      %v9216 = vpop.f32.mrf.mxu0
      %v9217 = vadd.f32 %v5346, %v9216
      %9218 = vmatmul.f32.gmra.mxu0 %v5377
      %v9219 = vpop.f32.mrf.mxu0
      %v9220 = vadd.f32 %v5351, %v9219
      %9221 = vmatmul.f32.gmra.mxu0 %v5380
      %v9222 = vpop.f32.mrf.mxu0
      %v9223 = vadd.f32 %v5356, %v9222
      %9224 = vdwg.mxu0
      %9225 = vmatpush.msra.mxu0 0.0
      %9226 = vmatpush.msra.mxu0 0.0
      %9227 = vmatpush.msra.mxu0 0.0
      %9228 = vmatpush.msra.mxu0 0.0
      %9229 = vmatpush.msra.mxu0 0.0
      %9230 = vmatpush.msra.mxu0 0.0
      %9231 = vmatpush.msra.mxu0 0.0
      %9232 = vmatpush.msra.mxu0 0.0
      %9233 = vmatpush.msra.mxu0 0.0
      %9234 = vmatpush.msra.mxu0 0.0
      %9235 = vmatpush.msra.mxu0 0.0
      %9236 = vmatpush.msra.mxu0 0.0
      %9237 = vmatpush.msra.mxu0 0.0
      %9238 = vmatpush.msra.mxu0 0.0
      %9239 = vmatpush.msra.mxu0 %v9141
      %9240 = vmatpush.msra.mxu0 %v9137
      %9241 = vmatmul.f32.gmra.mxu0 %v5359
      %v9242 = vpop.f32.mrf.mxu0
      %v9243 = vadd.f32 %v5321, %v9242
      %9244 = vmatmul.f32.gmra.mxu0 %v5362
      %v9245 = vpop.f32.mrf.mxu0
      %v9246 = vadd.f32 %v5326, %v9245
      %9247 = vmatmul.f32.gmra.mxu0 %v5365
      %v9248 = vpop.f32.mrf.mxu0
      %v9249 = vadd.f32 %v5331, %v9248
      %9250 = vmatmul.f32.gmra.mxu0 %v5368
      %v9251 = vpop.f32.mrf.mxu0
      %v9252 = vadd.f32 %v5336, %v9251
      %9253 = vmatmul.f32.gmra.mxu0 %v5371
      %v9254 = vpop.f32.mrf.mxu0
      %v9255 = vadd.f32 %v5341, %v9254
      %9256 = vmatmul.f32.gmra.mxu0 %v5374
      %v9257 = vpop.f32.mrf.mxu0
      %v9258 = vadd.f32 %v5346, %v9257
      %9259 = vmatmul.f32.gmra.mxu0 %v5377
      %v9260 = vpop.f32.mrf.mxu0
      %v9261 = vadd.f32 %v5351, %v9260
      %9262 = vmatmul.f32.gmra.mxu0 %v5380
      %v9263 = vpop.f32.mrf.mxu0
      %v9264 = vadd.f32 %v5356, %v9263
      %9265 = vdwg.mxu0
      %9266 = vmatpush.msra.mxu0 0.0
      %9267 = vmatpush.msra.mxu0 0.0
      %9268 = vmatpush.msra.mxu0 0.0
      %9269 = vmatpush.msra.mxu0 0.0
      %9270 = vmatpush.msra.mxu0 0.0
      %9271 = vmatpush.msra.mxu0 0.0
      %9272 = vmatpush.msra.mxu0 0.0
      %9273 = vmatpush.msra.mxu0 0.0
      %9274 = vmatpush.msra.mxu0 0.0
      %9275 = vmatpush.msra.mxu0 0.0
      %9276 = vmatpush.msra.mxu0 0.0
      %9277 = vmatpush.msra.mxu0 0.0
      %9278 = vmatpush.msra.mxu0 0.0
      %9279 = vmatpush.msra.mxu0 0.0
      %9280 = vmatpush.msra.mxu0 %v9142
      %9281 = vmatpush.msra.mxu0 %v9138
      %9282 = vmatmul.f32.gmra.mxu0 %v5359
      %v9283 = vpop.f32.mrf.mxu0
      %v9284 = vadd.f32 %v5321, %v9283
      %9285 = vmatmul.f32.gmra.mxu0 %v5362
      %v9286 = vpop.f32.mrf.mxu0
      %v9287 = vadd.f32 %v5326, %v9286
      %9288 = vmatmul.f32.gmra.mxu0 %v5365
      %v9289 = vpop.f32.mrf.mxu0
      %v9290 = vadd.f32 %v5331, %v9289
      %9291 = vmatmul.f32.gmra.mxu0 %v5368
      %v9292 = vpop.f32.mrf.mxu0
      %v9293 = vadd.f32 %v5336, %v9292
      %9294 = vmatmul.f32.gmra.mxu0 %v5371
      %v9295 = vpop.f32.mrf.mxu0
      %v9296 = vadd.f32 %v5341, %v9295
      %9297 = vmatmul.f32.gmra.mxu0 %v5374
      %v9298 = vpop.f32.mrf.mxu0
      %v9299 = vadd.f32 %v5346, %v9298
      %9300 = vmatmul.f32.gmra.mxu0 %v5377
      %v9301 = vpop.f32.mrf.mxu0
      %v9302 = vadd.f32 %v5351, %v9301
      %9303 = vmatmul.f32.gmra.mxu0 %v5380
      %v9304 = vpop.f32.mrf.mxu0
      %v9305 = vadd.f32 %v5356, %v9304
      %9306 = vdwg.mxu0
      %v9307 = vmul.f32 %v9161, 0.5
      %v9308 = vmul.f32 %v9202, 0.5
      %v9309 = vmul.f32 %v9243, 0.5
      %v9310 = vmul.f32 %v9284, 0.5
      %v9311 = vmul.f32 %v9164, 0.5
      %v9312 = vmul.f32 %v9205, 0.5
      %v9313 = vmul.f32 %v9246, 0.5
      %v9314 = vmul.f32 %v9287, 0.5
      %v9315 = vmul.f32 %v9167, 0.5
      %v9316 = vmul.f32 %v9208, 0.5
      %v9317 = vmul.f32 %v9249, 0.5
      %v9318 = vmul.f32 %v9290, 0.5
      %v9319 = vmul.f32 %v9170, 0.5
      %v9320 = vmul.f32 %v9211, 0.5
      %v9321 = vmul.f32 %v9252, 0.5
      %v9322 = vmul.f32 %v9293, 0.5
      %v9323 = vmul.f32 %v9173, 0.5
      %v9324 = vmul.f32 %v9214, 0.5
      %v9325 = vmul.f32 %v9255, 0.5
      %v9326 = vmul.f32 %v9296, 0.5
      %v9327 = vmul.f32 %v9176, 0.5
      %v9328 = vmul.f32 %v9217, 0.5
      %v9329 = vmul.f32 %v9258, 0.5
      %v9330 = vmul.f32 %v9299, 0.5
      %v9331 = vmul.f32 %v9179, 0.5
      %v9332 = vmul.f32 %v9220, 0.5
      %v9333 = vmul.f32 %v9261, 0.5
      %v9334 = vmul.f32 %v9302, 0.5
      %v9335 = vmul.f32 %v9182, 0.5
      %v9336 = vmul.f32 %v9223, 0.5
      %v9337 = vmul.f32 %v9264, 0.5
      %v9338 = vmul.f32 %v9305, 0.5
      %v9339 = vmul.f32 %v8655, 0.5
      %v9340 = vmul.f32 %v8656, 0.5
      %v9341 = vmul.f32 %v8657, 0.5
      %v9342 = vmul.f32 %v8658, 0.5
      %v9343 = vmul.f32 %v8659, 0.5
      %v9344 = vmul.f32 %v8660, 0.5
      %v9345 = vmul.f32 %v8661, 0.5
      %v9346 = vmul.f32 %v8662, 0.5
      %v9347 = vmul.f32 %v8663, 0.5
      %v9348 = vmul.f32 %v8664, 0.5
      %v9349 = vmul.f32 %v8665, 0.5
      %v9350 = vmul.f32 %v8666, 0.5
      %v9351 = vmul.f32 %v8667, 0.5
      %v9352 = vmul.f32 %v8668, 0.5
      %v9353 = vmul.f32 %v8669, 0.5
      %v9354 = vmul.f32 %v8670, 0.5
      %v9355 = vmul.f32 %v8671, 0.5
      %v9356 = vmul.f32 %v8672, 0.5
      %v9357 = vmul.f32 %v8673, 0.5
      %v9358 = vmul.f32 %v8674, 0.5
      %v9359 = vmul.f32 %v8675, 0.5
      %v9360 = vmul.f32 %v8676, 0.5
      %v9361 = vmul.f32 %v8677, 0.5
      %v9362 = vmul.f32 %v8678, 0.5
      %v9363 = vmul.f32 %v8679, 0.5
      %v9364 = vmul.f32 %v8680, 0.5
      %v9365 = vmul.f32 %v8681, 0.5
      %v9366 = vmul.f32 %v8682, 0.5
      %v9367 = vmul.f32 %v8683, 0.5
      %v9368 = vmul.f32 %v8684, 0.5
      %v9369 = vmul.f32 %v8685, 0.5
      %v9370 = vmul.f32 %v8686, 0.5
      %v9371 = vadd.f32 %v9307, %v9339
      %v9372 = vadd.f32 %v9308, %v9340
      %v9373 = vadd.f32 %v9309, %v9341
      %v9374 = vadd.f32 %v9310, %v9342
      %v9375 = vadd.f32 %v9311, %v9343
      %v9376 = vadd.f32 %v9312, %v9344
      %v9377 = vadd.f32 %v9313, %v9345
      %v9378 = vadd.f32 %v9314, %v9346
      %v9379 = vadd.f32 %v9315, %v9347
      %v9380 = vadd.f32 %v9316, %v9348
      %v9381 = vadd.f32 %v9317, %v9349
      %v9382 = vadd.f32 %v9318, %v9350
      %v9383 = vadd.f32 %v9319, %v9351
      %v9384 = vadd.f32 %v9320, %v9352
      %v9385 = vadd.f32 %v9321, %v9353
      %v9386 = vadd.f32 %v9322, %v9354
      %v9387 = vadd.f32 %v9323, %v9355
      %v9388 = vadd.f32 %v9324, %v9356
      %v9389 = vadd.f32 %v9325, %v9357
      %v9390 = vadd.f32 %v9326, %v9358
      %v9391 = vadd.f32 %v9327, %v9359
      %v9392 = vadd.f32 %v9328, %v9360
      %v9393 = vadd.f32 %v9329, %v9361
      %v9394 = vadd.f32 %v9330, %v9362
      %v9395 = vadd.f32 %v9331, %v9363
      %v9396 = vadd.f32 %v9332, %v9364
      %v9397 = vadd.f32 %v9333, %v9365
      %v9398 = vadd.f32 %v9334, %v9366
      %v9399 = vadd.f32 %v9335, %v9367
      %v9400 = vadd.f32 %v9336, %v9368
      %v9401 = vadd.f32 %v9337, %v9369
      %v9402 = vadd.f32 %v9338, %v9370
      %v9403 = vadd.f32 %v9371, %v9372
      %v9404 = vadd.f32 %v9403, %v9373
      %v9405 = vadd.f32 %v9404, %v9374
      %9406 = vadd.xlane.f32.xlu0 %v9405
      %v9407 = vpop.xlane.xlu0 %9406
      %v9408 = vadd.f32 %v9375, %v9376
      %v9409 = vadd.f32 %v9408, %v9377
      %v9410 = vadd.f32 %v9409, %v9378
      %9411 = vadd.xlane.f32.xlu0 %v9410
      %v9412 = vpop.xlane.xlu0 %9411
      %v9413 = vadd.f32 %v9379, %v9380
      %v9414 = vadd.f32 %v9413, %v9381
      %v9415 = vadd.f32 %v9414, %v9382
      %9416 = vadd.xlane.f32.xlu0 %v9415
      %v9417 = vpop.xlane.xlu0 %9416
      %v9418 = vadd.f32 %v9383, %v9384
      %v9419 = vadd.f32 %v9418, %v9385
      %v9420 = vadd.f32 %v9419, %v9386
      %9421 = vadd.xlane.f32.xlu0 %v9420
      %v9422 = vpop.xlane.xlu0 %9421
      %v9423 = vadd.f32 %v9387, %v9388
      %v9424 = vadd.f32 %v9423, %v9389
      %v9425 = vadd.f32 %v9424, %v9390
      %9426 = vadd.xlane.f32.xlu0 %v9425
      %v9427 = vpop.xlane.xlu0 %9426
      %v9428 = vadd.f32 %v9391, %v9392
      %v9429 = vadd.f32 %v9428, %v9393
      %v9430 = vadd.f32 %v9429, %v9394
      %9431 = vadd.xlane.f32.xlu0 %v9430
      %v9432 = vpop.xlane.xlu0 %9431
      %v9433 = vadd.f32 %v9395, %v9396
      %v9434 = vadd.f32 %v9433, %v9397
      %v9435 = vadd.f32 %v9434, %v9398
      %9436 = vadd.xlane.f32.xlu0 %v9435
      %v9437 = vpop.xlane.xlu0 %9436
      %v9438 = vadd.f32 %v9399, %v9400
      %v9439 = vadd.f32 %v9438, %v9401
      %v9440 = vadd.f32 %v9439, %v9402
      %9441 = vadd.xlane.f32.xlu0 %v9440
      %v9442 = vpop.xlane.xlu0 %9441
      %v9443 = vmul.f32 %v9407, %v5688
      %v9444 = vmul.f32 %v9412, %v5688
      %v9445 = vmul.f32 %v9417, %v5688
      %v9446 = vmul.f32 %v9422, %v5688
      %v9447 = vmul.f32 %v9427, %v5688
      %v9448 = vmul.f32 %v9432, %v5688
      %v9449 = vmul.f32 %v9437, %v5688
      %v9450 = vmul.f32 %v9442, %v5688
      %s9451 = scalar_lea.vmem %s965, 64
      %9452 = vst.msk [vmem:[%s9451] sm:$0xff] %vm5697, %v9443
      %9453 = vst.msk [vmem:[%s9451 + $0x8] sm:$0xff] %vm5697, %v9444
      %9454 = vst.msk [vmem:[%s9451 + $0x10] sm:$0xff] %vm5697, %v9445
      %9455 = vst.msk [vmem:[%s9451 + $0x18] sm:$0xff] %vm5697, %v9446
      %9456 = vst.msk [vmem:[%s9451 + $0x20] sm:$0xff] %vm5697, %v9447
      %9457 = vst.msk [vmem:[%s9451 + $0x28] sm:$0xff] %vm5697, %v9448
      %9458 = vst.msk [vmem:[%s9451 + $0x30] sm:$0xff] %vm5697, %v9449
      %9459 = vst.msk [vmem:[%s9451 + $0x38] sm:$0xff] %vm5697, %v9450
      %s9460 = smul.u32 2, %s74
      %p9461 = scmp.lt.s32.totalorder %s9460, 3
      %s9462 = scalar_select %p9461, %s9460, 3
      %s9463 = smul.addr %s9462, 8
      %s9464 = smul.addr %s9463, 8
      %s9465 = scalar_lea.vmem %s63, %s9464
      // Predicated region
      $region145: #{net_forward.1} parent=143 // pred_check
        %p9466 = pneg %p748
      $region146: #{net_forward.1} parent=143 // pred_check_branch
        %9468 = sbr.rel (%p9466) target = $region148
      $region147: #{net_forward.1} parent=143 // pred_region
        %s9469 = smul.u32 2, %s74
      $region148: #{net_forward.1} parent=143 // pred_fallthru
        _
    $region144: #{net_forward.1} parent=5 // pred_fallthru
      _
    %p9470 = scmp.le.s32.totalorder 2, %s69
    // Predicated region
    $region149: #{net_forward.1} parent=5 // pred_check
      %p9471 = pneg %p9470
    $region150: #{net_forward.1} parent=5 // pred_check_branch
      %9473 = sbr.rel (%p9471) target = $region152
    $region151: #{net_forward.1} parent=5 // pred_region
      %s9474 = ssub.s32 %s69, 2
      // Predicated region
      $region153: #{net_forward.1} parent=151 // pred_check
        %p9475 = pneg %p754
      $region154: #{net_forward.1} parent=151 // pred_check_branch
        %9477 = sbr.rel (%p9475) target = $region156
      $region155: #{net_forward.1} parent=151 // pred_region
        %s9478 = smul.u32 2, %s75
        %p9479 = scmp.lt.s32.totalorder %s9478, 3
        %s9480 = scalar_select %p9479, %s9478, 3
        %s9481 = smul.addr %s9480, 8
        %s9482 = smul.addr %s9481, 8
        %s9483 = scalar_lea.vmem %s63, %s9482
      $region156: #{net_forward.1} parent=151 // pred_fallthru
        _
    $region152: #{net_forward.1} parent=5 // pred_fallthru
      _
  $region6: #{net_forward.1} parent=0 // loop_footer
    %s73 = sadd.s32 1, %s69
  $region7: #{net_forward.1} parent=0 // loop_footer_branch
    %68 = sbr.rel target = $region3
  $region8: #{net_forward.1} parent=0 // loop_exit
    _

</llo_original>
